<compile_context>
chip_gen: v6e
topology: v6e:2x2x1
jax: 0.10.0
libtpu: 0.0.40
codegen_flags: <defaults>
</compile_context>

<pallas_src>
from functools import partial

import jax
import jax.numpy as jnp
from jax.experimental import pallas as pl
from jax.experimental.pallas import tpu as pltpu

_KS = 7
_PAD = 3
_BN_EPS = 1e-5          # nn.BatchNorm2d default
_LANE = 128             # TPU lane width

# XLA's float32 erf rational polynomial (ErfImpl32) so the GELU matches
# PyTorch's default exact (erf-based) nn.GELU to f32 rounding.
_ERF_ALPHA = (-2.72614225801306e-10, 2.77068142495902e-08, -2.10102402082508e-06,
              -5.69250639462346e-05, -7.34990630326855e-04, -2.95459980854025e-03,
              -1.60960333262415e-02)
_ERF_BETA = (-1.45660718464996e-05, -2.13374055278905e-04, -1.68282697438203e-03,
             -7.37332916720468e-03, -1.42647390514189e-02)


def _erf_f32(x):
    x = jnp.clip(x, -4.0, 4.0)
    x2 = x * x
    p = jnp.full_like(x2, _ERF_ALPHA[0])
    for c in _ERF_ALPHA[1:]:
        p = p * x2 + c
    q = jnp.full_like(x2, _ERF_BETA[0])
    for c in _ERF_BETA[1:]:
        q = q * x2 + c
    # EUP approx reciprocal + one Newton step (~f32 exact) instead of a long
    # VPU divide on the widest (NHW x 4C) tensor.
    r = pl.reciprocal(q, approx=True)
    r = r * (2.0 - q * r)
    return jnp.clip(x * p * r, -1.0, 1.0)


def _gelu_exact(x):
    # 0.5 * x * (1 + erf(x / sqrt(2)))  == PyTorch nn.GELU() default
    return 0.5 * x * (1.0 + _erf_f32(x * 0.7071067811865476))


# ---------------------------------------------------------------------------
# Pass 1: depthwise 7x7 convolution, tiled over (batch, 128-channel block).
# ---------------------------------------------------------------------------
def _dwconv_kernel(x_ref, w_ref, dw_ref, pad_scr):
    # x_ref/dw_ref: (1, H, W, CB)   w_ref: (7, 7, CB)
    # pad_scr: (H+6, W+6, CB) VMEM scratch used as a zero-halo buffer.
    _, H, W, CB = x_ref.shape

    # Build the halo in VMEM instead of jnp.pad-ing in HBM (saves one full HBM
    # write + read of the activation).  Re-zeroed every grid step so it stays
    # correct under megacore ("parallel") grid sharding.
    pad_scr[...] = jnp.zeros_like(pad_scr)
    pad_scr[_PAD:_PAD + H, _PAD:_PAD + W, :] = x_ref[0]

    w = w_ref[...]                                        # (7, 7, CB)
    acc = jnp.zeros((H, W, CB), jnp.float32)
    for kh in range(_KS):                                 # 49 static taps
        for kw in range(_KS):
            acc = acc + pad_scr[kh:kh + H, kw:kw + W, :] * w[kh, kw]
    # NOTE: dwconv bias omitted here — BatchNorm's mean subtraction cancels a
    # constant per-channel bias exactly, so the forward output is unchanged.
    dw_ref[0] = acc


# ---------------------------------------------------------------------------
# Pass 2: BN-affine -> 1x1 conv -> GELU -> 1x1 conv -> residual, per pixel tile.
# ---------------------------------------------------------------------------
def _mlp_kernel(dw_ref, x_ref, scale_ref, shift_ref, w1_ref, b1_ref, w2_ref,
                b2_ref, out_ref, *, mm_dtype):
    y = dw_ref[...] * scale_ref[...] + shift_ref[...]     # BatchNorm (affine form)
    h = jnp.dot(y.astype(mm_dtype), w1_ref[...],
                preferred_element_type=jnp.float32) + b1_ref[...]
    h = _gelu_exact(h)
    o = jnp.dot(h.astype(mm_dtype), w2_ref[...],
                preferred_element_type=jnp.float32) + b2_ref[...]
    out_ref[...] = x_ref[...] + o                         # residual add


# ---------------------------------------------------------------------------
# Wrapper
# ---------------------------------------------------------------------------
def _round_up(x, m):
    return (x + m - 1) // m * m


def _pad_to(a, shape):
    return jnp.pad(a, [(0, t - s) for s, t in zip(a.shape, shape)])


def convnext_block(x_nchw, params, *, tile_rows=256, matmul_dtype=jnp.float32):
    """Forward pass of the PyTorch `Block` module. Input/output are NCHW.

    `matmul_dtype=jnp.bfloat16` feeds the MXU bf16 inputs (f32 accumulate) for
    ~2-3x matmul throughput on v6e/v7x; default f32 keeps exact parity.
    """
    x = jnp.transpose(x_nchw, (0, 2, 3, 1)).astype(jnp.float32)   # NCHW -> NHWC
    N, H, W, C = x.shape
    C4 = 4 * C
    Cp = _round_up(C, _LANE)
    C4p = _round_up(C4, _LANE)
    CB = _LANE                                     # channel block for pass 1

    # Zero-pad channels to lane width (padded channels stay exactly zero
    # through dwconv, BN (gamma/beta padded with 0) and both matmuls).
    x_p = _pad_to(x, (N, H, W, Cp))
    w_dw = _pad_to(params["w_dw"].astype(jnp.float32), (_KS, _KS, Cp))
    gamma = _pad_to(params["gamma"].reshape(1, C).astype(jnp.float32), (1, Cp))
    beta = _pad_to(params["beta"].reshape(1, C).astype(jnp.float32), (1, Cp))
    w1 = _pad_to(params["w1"].astype(jnp.float32), (Cp, C4p)).astype(matmul_dtype)
    b1 = _pad_to(params["b1"].reshape(1, C4).astype(jnp.float32), (1, C4p))
    w2 = _pad_to(params["w2"].astype(jnp.float32), (C4p, Cp)).astype(matmul_dtype)
    b2 = _pad_to(params["b2"].reshape(1, C).astype(jnp.float32), (1, Cp))
    # params["b_dw"] intentionally unused: BN mean subtraction cancels it.

    cparams_dw = pltpu.CompilerParams(
        dimension_semantics=("parallel", "parallel"),
        vmem_limit_bytes=48 * 1024 * 1024)

    # ---- pass 1: depthwise 7x7 conv ----
    dw = pl.pallas_call(
        _dwconv_kernel,
        out_shape=jax.ShapeDtypeStruct((N, H, W, Cp), jnp.float32),
        grid=(N, Cp // CB),
        in_specs=[
            pl.BlockSpec((1, H, W, CB), lambda n, c: (n, 0, 0, c)),
            pl.BlockSpec((_KS, _KS, CB), lambda n, c: (0, 0, c)),
        ],
        out_specs=pl.BlockSpec((1, H, W, CB), lambda n, c: (n, 0, 0, c)),
        scratch_shapes=[pltpu.VMEM((H + 2 * _PAD, W + 2 * _PAD, CB), jnp.float32)],
        compiler_params=cparams_dw,
    )(x_p, w_dw)

    # ---- BatchNorm2d training-mode batch stats: cheap XLA reduction ----
    # Splitting the stats out is what lets the main kernel be pixel-tiled.
    mean = jnp.mean(dw, axis=(0, 1, 2))                               # (Cp,)
    var = jnp.mean(jnp.square(dw - mean), axis=(0, 1, 2))             # biased var
    scale = (gamma[0] * jax.lax.rsqrt(var + _BN_EPS)).reshape(1, Cp)
    shift = (beta[0] - mean * scale[0]).reshape(1, Cp)
    # TODO(synk): running-stat updates (training side effect) are not modeled;
    #             they do not affect the forward output.

    # ---- pass 2: fused BN-affine -> MLP -> residual, pixel-tiled + pipelined ----
    nhw = N * H * W
    tm = _round_up(min(tile_rows, _round_up(nhw, 8)), 8)
    np_rows = _round_up(nhw, tm)
    dw_flat = _pad_to(dw.reshape(nhw, Cp), (np_rows, Cp))
    x_flat = _pad_to(x_p.reshape(nhw, Cp), (np_rows, Cp))

    out_flat = pl.pallas_call(
        partial(_mlp_kernel, mm_dtype=matmul_dtype),
        out_shape=jax.ShapeDtypeStruct((np_rows, Cp), jnp.float32),
        grid=(np_rows // tm,),
        in_specs=[
            pl.BlockSpec((tm, Cp), lambda i: (i, 0)),        # dwconv output tile
            pl.BlockSpec((tm, Cp), lambda i: (i, 0)),        # residual tile
            pl.BlockSpec((1, Cp), lambda i: (0, 0)),         # BN scale
            pl.BlockSpec((1, Cp), lambda i: (0, 0)),         # BN shift
            pl.BlockSpec((Cp, C4p), lambda i: (0, 0)),       # w1 (resident)
            pl.BlockSpec((1, C4p), lambda i: (0, 0)),        # b1
            pl.BlockSpec((C4p, Cp), lambda i: (0, 0)),       # w2 (resident)
            pl.BlockSpec((1, Cp), lambda i: (0, 0)),         # b2
        ],
        out_specs=pl.BlockSpec((tm, Cp), lambda i: (i, 0)),
        compiler_params=pltpu.CompilerParams(
            dimension_semantics=("parallel",),
            vmem_limit_bytes=48 * 1024 * 1024),
    )(dw_flat, x_flat, scale, shift, w1, b1, w2, b2)

    out = out_flat[:nhw, :C].reshape(N, H, W, C)
    return jnp.transpose(out, (0, 3, 1, 2))                  # NHWC -> NCHW


# ---------------------------------------------------------------------------
# Parameters + pure-JAX reference (for a correctness gate)
# ---------------------------------------------------------------------------
def init_params(key, channels):
    """Deterministic synthetic parameters matching the PyTorch module's shapes."""
    ks = jax.random.split(key, 8)
    c4 = 4 * channels
    return {
        "w_dw": 0.1 * jax.random.normal(ks[0], (_KS, _KS, channels), jnp.float32),
        "b_dw": 0.1 * jax.random.normal(ks[1], (1, channels), jnp.float32),
        "gamma": 1.0 + 0.1 * jax.random.normal(ks[2], (1, channels), jnp.float32),
        "beta": 0.1 * jax.random.normal(ks[3], (1, channels), jnp.float32),
        "w1": jax.random.normal(ks[4], (channels, c4), jnp.float32) / jnp.sqrt(channels),
        "b1": 0.1 * jax.random.normal(ks[5], (1, c4), jnp.float32),
        "w2": jax.random.normal(ks[6], (c4, channels), jnp.float32) / jnp.sqrt(c4),
        "b2": 0.1 * jax.random.normal(ks[7], (1, channels), jnp.float32),
    }


def _reference(x_nchw, params):
    x = x_nchw.astype(jnp.float32)
    C = x.shape[1]
    w = jnp.transpose(params["w_dw"], (2, 0, 1))[:, None]    # (C,1,7,7)
    dw = jax.lax.conv_general_dilated(
        x, w, window_strides=(1, 1), padding=((_PAD, _PAD), (_PAD, _PAD)),
        dimension_numbers=("NCHW", "OIHW", "NCHW"), feature_group_count=C)
    dw = dw + params["b_dw"].reshape(1, C, 1, 1)
    mean = jnp.mean(dw, axis=(0, 2, 3), keepdims=True)
    var = jnp.mean(jnp.square(dw - mean), axis=(0, 2, 3), keepdims=True)
    y = (dw - mean) * jax.lax.rsqrt(var + _BN_EPS)
    y = y * params["gamma"].reshape(1, C, 1, 1) + params["beta"].reshape(1, C, 1, 1)
    h = jnp.einsum("nchw,cd->ndhw", y, params["w1"]) + params["b1"].reshape(1, -1, 1, 1)
    h = jax.nn.gelu(h, approximate=False)
    o = jnp.einsum("ndhw,dc->nchw", h, params["w2"]) + params["b2"].reshape(1, -1, 1, 1)
    return x + o


if __name__ == "__main__":
    key = jax.random.PRNGKey(0)
    k_x, k_p = jax.random.split(key)

    channels = 4
    x = jax.random.normal(k_x, (2, channels, 16, 16), jnp.float32)   # NCHW, like PyTorch
    params = init_params(k_p, channels)

    out = jax.jit(convnext_block)(x, params)
    jax.block_until_ready(out)
    assert out.shape == x.shape and out.dtype == jnp.float32

    ref = _reference(x, params)
    max_err = float(jnp.max(jnp.abs(out - ref)))
    assert max_err < 5e-3, f"max abs err vs reference: {max_err}"
    print("KERNEL_OK")
</pallas_src>

<mosaic_0001>
module attributes {stable_mosaic.version = 11 : i64} {
  func.func @_dwconv_kernel(%arg0: i32, %arg1: i32, %arg2: memref<1x16x16x128xf32, #tpu.memory_space<vmem>>, %arg3: memref<7x7x128xf32, #tpu.memory_space<vmem>>, %arg4: memref<1x16x16x128xf32, #tpu.memory_space<vmem>>, %arg5: memref<22x22x128xf32, #tpu.memory_space<vmem>>) attributes {dimension_semantics = [#tpu.dimension_semantics<parallel>, #tpu.dimension_semantics<parallel>], iteration_bounds = array<i64: 2, 1>, scalar_prefetch = 0 : i64, scratch_operands = 1 : i64, tpu.core_type = #tpu.core_type<tc>, window_params = [{transform_indices = @transform_0, window_bounds = array<i64: 1, 16, 16, 128>}, {transform_indices = @transform_1, window_bounds = array<i64: 7, 7, 128>}, {transform_indices = @transform_2, window_bounds = array<i64: 1, 16, 16, 128>}]} {
    %cst = arith.constant 0.000000e+00 : f32
    %0 = vector.broadcast %cst : f32 to vector<22x22x128xf32>
    %c0 = arith.constant 0 : index
    %c0_0 = arith.constant 0 : index
    %c0_1 = arith.constant 0 : index
    %1 = vector.load %arg5[%c0, %c0_0, %c0_1] : memref<22x22x128xf32, #tpu.memory_space<vmem>>, vector<22x22x128xf32>
    tpu.vector_store %arg5[%c0, %c0_0, %c0_1], %0 {strides = array<i32>} : memref<22x22x128xf32, #tpu.memory_space<vmem>>, vector<22x22x128xf32>,
    %c0_2 = arith.constant 0 : index
    %c0_3 = arith.constant 0 : index
    %c0_4 = arith.constant 0 : index
    %c0_5 = arith.constant 0 : index
    %2 = vector.load %arg2[%c0_2, %c0_3, %c0_4, %c0_5] : memref<1x16x16x128xf32, #tpu.memory_space<vmem>>, vector<1x16x16x128xf32>
    %3 = vector.shape_cast %2 : vector<1x16x16x128xf32> to vector<16x16x128xf32>
    %c3 = arith.constant 3 : index
    %c3_6 = arith.constant 3 : index
    %c0_7 = arith.constant 0 : index
    %4 = vector.load %arg5[%c3, %c3_6, %c0_7] : memref<22x22x128xf32, #tpu.memory_space<vmem>>, vector<16x16x128xf32>
    tpu.vector_store %arg5[%c3, %c3_6, %c0_7], %3 {strides = array<i32>} : memref<22x22x128xf32, #tpu.memory_space<vmem>>, vector<16x16x128xf32>,
    %c0_8 = arith.constant 0 : index
    %c0_9 = arith.constant 0 : index
    %c0_10 = arith.constant 0 : index
    %5 = vector.load %arg3[%c0_8, %c0_9, %c0_10] : memref<7x7x128xf32, #tpu.memory_space<vmem>>, vector<7x7x128xf32>
    %cst_11 = arith.constant 0.000000e+00 : f32
    %6 = vector.broadcast %cst_11 : f32 to vector<16x16x128xf32>
    %c0_12 = arith.constant 0 : index
    %c0_13 = arith.constant 0 : index
    %c0_14 = arith.constant 0 : index
    %7 = vector.load %arg5[%c0_12, %c0_13, %c0_14] : memref<22x22x128xf32, #tpu.memory_space<vmem>>, vector<16x16x128xf32>
    %8 = vector.extract_strided_slice %5 {offsets = [0, 0, 0], sizes = [1, 1, 128], strides = [1, 1, 1]} : vector<7x7x128xf32> to vector<1x1x128xf32>
    %9 = vector.shape_cast %8 : vector<1x1x128xf32> to vector<128xf32>
    %10 = vector.shape_cast %9 : vector<128xf32> to vector<1x1x128xf32>
    %11 = vector.broadcast %10 : vector<1x1x128xf32> to vector<16x16x128xf32>
    %12 = arith.mulf %7, %11 : vector<16x16x128xf32>
    %13 = arith.addf %6, %12 : vector<16x16x128xf32>
    %c0_15 = arith.constant 0 : index
    %c1 = arith.constant 1 : index
    %c0_16 = arith.constant 0 : index
    %14 = vector.load %arg5[%c0_15, %c1, %c0_16] : memref<22x22x128xf32, #tpu.memory_space<vmem>>, vector<16x16x128xf32>
    %15 = vector.extract_strided_slice %5 {offsets = [0, 1, 0], sizes = [1, 1, 128], strides = [1, 1, 1]} : vector<7x7x128xf32> to vector<1x1x128xf32>
    %16 = vector.shape_cast %15 : vector<1x1x128xf32> to vector<128xf32>
    %17 = vector.shape_cast %16 : vector<128xf32> to vector<1x1x128xf32>
    %18 = vector.broadcast %17 : vector<1x1x128xf32> to vector<16x16x128xf32>
    %19 = arith.mulf %14, %18 : vector<16x16x128xf32>
    %20 = arith.addf %13, %19 : vector<16x16x128xf32>
    %c0_17 = arith.constant 0 : index
    %c2 = arith.constant 2 : index
    %c0_18 = arith.constant 0 : index
    %21 = vector.load %arg5[%c0_17, %c2, %c0_18] : memref<22x22x128xf32, #tpu.memory_space<vmem>>, vector<16x16x128xf32>
    %22 = vector.extract_strided_slice %5 {offsets = [0, 2, 0], sizes = [1, 1, 128], strides = [1, 1, 1]} : vector<7x7x128xf32> to vector<1x1x128xf32>
    %23 = vector.shape_cast %22 : vector<1x1x128xf32> to vector<128xf32>
    %24 = vector.shape_cast %23 : vector<128xf32> to vector<1x1x128xf32>
    %25 = vector.broadcast %24 : vector<1x1x128xf32> to vector<16x16x128xf32>
    %26 = arith.mulf %21, %25 : vector<16x16x128xf32>
    %27 = arith.addf %20, %26 : vector<16x16x128xf32>
    %c0_19 = arith.constant 0 : index
    %c3_20 = arith.constant 3 : index
    %c0_21 = arith.constant 0 : index
    %28 = vector.load %arg5[%c0_19, %c3_20, %c0_21] : memref<22x22x128xf32, #tpu.memory_space<vmem>>, vector<16x16x128xf32>
    %29 = vector.extract_strided_slice %5 {offsets = [0, 3, 0], sizes = [1, 1, 128], strides = [1, 1, 1]} : vector<7x7x128xf32> to vector<1x1x128xf32>
    %30 = vector.shape_cast %29 : vector<1x1x128xf32> to vector<128xf32>
    %31 = vector.shape_cast %30 : vector<128xf32> to vector<1x1x128xf32>
    %32 = vector.broadcast %31 : vector<1x1x128xf32> to vector<16x16x128xf32>
    %33 = arith.mulf %28, %32 : vector<16x16x128xf32>
    %34 = arith.addf %27, %33 : vector<16x16x128xf32>
    %c0_22 = arith.constant 0 : index
    %c4 = arith.constant 4 : index
    %c0_23 = arith.constant 0 : index
    %35 = vector.load %arg5[%c0_22, %c4, %c0_23] : memref<22x22x128xf32, #tpu.memory_space<vmem>>, vector<16x16x128xf32>
    %36 = vector.extract_strided_slice %5 {offsets = [0, 4, 0], sizes = [1, 1, 128], strides = [1, 1, 1]} : vector<7x7x128xf32> to vector<1x1x128xf32>
    %37 = vector.shape_cast %36 : vector<1x1x128xf32> to vector<128xf32>
    %38 = vector.shape_cast %37 : vector<128xf32> to vector<1x1x128xf32>
    %39 = vector.broadcast %38 : vector<1x1x128xf32> to vector<16x16x128xf32>
    %40 = arith.mulf %35, %39 : vector<16x16x128xf32>
    %41 = arith.addf %34, %40 : vector<16x16x128xf32>
    %c0_24 = arith.constant 0 : index
    %c5 = arith.constant 5 : index
    %c0_25 = arith.constant 0 : index
    %42 = vector.load %arg5[%c0_24, %c5, %c0_25] : memref<22x22x128xf32, #tpu.memory_space<vmem>>, vector<16x16x128xf32>
    %43 = vector.extract_strided_slice %5 {offsets = [0, 5, 0], sizes = [1, 1, 128], strides = [1, 1, 1]} : vector<7x7x128xf32> to vector<1x1x128xf32>
    %44 = vector.shape_cast %43 : vector<1x1x128xf32> to vector<128xf32>
    %45 = vector.shape_cast %44 : vector<128xf32> to vector<1x1x128xf32>
    %46 = vector.broadcast %45 : vector<1x1x128xf32> to vector<16x16x128xf32>
    %47 = arith.mulf %42, %46 : vector<16x16x128xf32>
    %48 = arith.addf %41, %47 : vector<16x16x128xf32>
    %c0_26 = arith.constant 0 : index
    %c6 = arith.constant 6 : index
    %c0_27 = arith.constant 0 : index
    %49 = vector.load %arg5[%c0_26, %c6, %c0_27] : memref<22x22x128xf32, #tpu.memory_space<vmem>>, vector<16x16x128xf32>
    %50 = vector.extract_strided_slice %5 {offsets = [0, 6, 0], sizes = [1, 1, 128], strides = [1, 1, 1]} : vector<7x7x128xf32> to vector<1x1x128xf32>
    %51 = vector.shape_cast %50 : vector<1x1x128xf32> to vector<128xf32>
    %52 = vector.shape_cast %51 : vector<128xf32> to vector<1x1x128xf32>
    %53 = vector.broadcast %52 : vector<1x1x128xf32> to vector<16x16x128xf32>
    %54 = arith.mulf %49, %53 : vector<16x16x128xf32>
    %55 = arith.addf %48, %54 : vector<16x16x128xf32>
    %c1_28 = arith.constant 1 : index
    %c0_29 = arith.constant 0 : index
    %c0_30 = arith.constant 0 : index
    %56 = vector.load %arg5[%c1_28, %c0_29, %c0_30] : memref<22x22x128xf32, #tpu.memory_space<vmem>>, vector<16x16x128xf32>
    %57 = vector.extract_strided_slice %5 {offsets = [1, 0, 0], sizes = [1, 1, 128], strides = [1, 1, 1]} : vector<7x7x128xf32> to vector<1x1x128xf32>
    %58 = vector.shape_cast %57 : vector<1x1x128xf32> to vector<128xf32>
    %59 = vector.shape_cast %58 : vector<128xf32> to vector<1x1x128xf32>
    %60 = vector.broadcast %59 : vector<1x1x128xf32> to vector<16x16x128xf32>
    %61 = arith.mulf %56, %60 : vector<16x16x128xf32>
    %62 = arith.addf %55, %61 : vector<16x16x128xf32>
    %c1_31 = arith.constant 1 : index
    %c1_32 = arith.constant 1 : index
    %c0_33 = arith.constant 0 : index
    %63 = vector.load %arg5[%c1_31, %c1_32, %c0_33] : memref<22x22x128xf32, #tpu.memory_space<vmem>>, vector<16x16x128xf32>
    %64 = vector.extract_strided_slice %5 {offsets = [1, 1, 0], sizes = [1, 1, 128], strides = [1, 1, 1]} : vector<7x7x128xf32> to vector<1x1x128xf32>
    %65 = vector.shape_cast %64 : vector<1x1x128xf32> to vector<128xf32>
    %66 = vector.shape_cast %65 : vector<128xf32> to vector<1x1x128xf32>
    %67 = vector.broadcast %66 : vector<1x1x128xf32> to vector<16x16x128xf32>
    %68 = arith.mulf %63, %67 : vector<16x16x128xf32>
    %69 = arith.addf %62, %68 : vector<16x16x128xf32>
    %c1_34 = arith.constant 1 : index
    %c2_35 = arith.constant 2 : index
    %c0_36 = arith.constant 0 : index
    %70 = vector.load %arg5[%c1_34, %c2_35, %c0_36] : memref<22x22x128xf32, #tpu.memory_space<vmem>>, vector<16x16x128xf32>
    %71 = vector.extract_strided_slice %5 {offsets = [1, 2, 0], sizes = [1, 1, 128], strides = [1, 1, 1]} : vector<7x7x128xf32> to vector<1x1x128xf32>
    %72 = vector.shape_cast %71 : vector<1x1x128xf32> to vector<128xf32>
    %73 = vector.shape_cast %72 : vector<128xf32> to vector<1x1x128xf32>
    %74 = vector.broadcast %73 : vector<1x1x128xf32> to vector<16x16x128xf32>
    %75 = arith.mulf %70, %74 : vector<16x16x128xf32>
    %76 = arith.addf %69, %75 : vector<16x16x128xf32>
    %c1_37 = arith.constant 1 : index
    %c3_38 = arith.constant 3 : index
    %c0_39 = arith.constant 0 : index
    %77 = vector.load %arg5[%c1_37, %c3_38, %c0_39] : memref<22x22x128xf32, #tpu.memory_space<vmem>>, vector<16x16x128xf32>
    %78 = vector.extract_strided_slice %5 {offsets = [1, 3, 0], sizes = [1, 1, 128], strides = [1, 1, 1]} : vector<7x7x128xf32> to vector<1x1x128xf32>
    %79 = vector.shape_cast %78 : vector<1x1x128xf32> to vector<128xf32>
    %80 = vector.shape_cast %79 : vector<128xf32> to vector<1x1x128xf32>
    %81 = vector.broadcast %80 : vector<1x1x128xf32> to vector<16x16x128xf32>
    %82 = arith.mulf %77, %81 : vector<16x16x128xf32>
    %83 = arith.addf %76, %82 : vector<16x16x128xf32>
    %c1_40 = arith.constant 1 : index
    %c4_41 = arith.constant 4 : index
    %c0_42 = arith.constant 0 : index
    %84 = vector.load %arg5[%c1_40, %c4_41, %c0_42] : memref<22x22x128xf32, #tpu.memory_space<vmem>>, vector<16x16x128xf32>
    %85 = vector.extract_strided_slice %5 {offsets = [1, 4, 0], sizes = [1, 1, 128], strides = [1, 1, 1]} : vector<7x7x128xf32> to vector<1x1x128xf32>
    %86 = vector.shape_cast %85 : vector<1x1x128xf32> to vector<128xf32>
    %87 = vector.shape_cast %86 : vector<128xf32> to vector<1x1x128xf32>
    %88 = vector.broadcast %87 : vector<1x1x128xf32> to vector<16x16x128xf32>
    %89 = arith.mulf %84, %88 : vector<16x16x128xf32>
    %90 = arith.addf %83, %89 : vector<16x16x128xf32>
    %c1_43 = arith.constant 1 : index
    %c5_44 = arith.constant 5 : index
    %c0_45 = arith.constant 0 : index
    %91 = vector.load %arg5[%c1_43, %c5_44, %c0_45] : memref<22x22x128xf32, #tpu.memory_space<vmem>>, vector<16x16x128xf32>
    %92 = vector.extract_strided_slice %5 {offsets = [1, 5, 0], sizes = [1, 1, 128], strides = [1, 1, 1]} : vector<7x7x128xf32> to vector<1x1x128xf32>
    %93 = vector.shape_cast %92 : vector<1x1x128xf32> to vector<128xf32>
    %94 = vector.shape_cast %93 : vector<128xf32> to vector<1x1x128xf32>
    %95 = vector.broadcast %94 : vector<1x1x128xf32> to vector<16x16x128xf32>
    %96 = arith.mulf %91, %95 : vector<16x16x128xf32>
    %97 = arith.addf %90, %96 : vector<16x16x128xf32>
    %c1_46 = arith.constant 1 : index
    %c6_47 = arith.constant 6 : index
    %c0_48 = arith.constant 0 : index
    %98 = vector.load %arg5[%c1_46, %c6_47, %c0_48] : memref<22x22x128xf32, #tpu.memory_space<vmem>>, vector<16x16x128xf32>
    %99 = vector.extract_strided_slice %5 {offsets = [1, 6, 0], sizes = [1, 1, 128], strides = [1, 1, 1]} : vector<7x7x128xf32> to vector<1x1x128xf32>
    %100 = vector.shape_cast %99 : vector<1x1x128xf32> to vector<128xf32>
    %101 = vector.shape_cast %100 : vector<128xf32> to vector<1x1x128xf32>
    %102 = vector.broadcast %101 : vector<1x1x128xf32> to vector<16x16x128xf32>
    %103 = arith.mulf %98, %102 : vector<16x16x128xf32>
    %104 = arith.addf %97, %103 : vector<16x16x128xf32>
    %c2_49 = arith.constant 2 : index
    %c0_50 = arith.constant 0 : index
    %c0_51 = arith.constant 0 : index
    %105 = vector.load %arg5[%c2_49, %c0_50, %c0_51] : memref<22x22x128xf32, #tpu.memory_space<vmem>>, vector<16x16x128xf32>
    %106 = vector.extract_strided_slice %5 {offsets = [2, 0, 0], sizes = [1, 1, 128], strides = [1, 1, 1]} : vector<7x7x128xf32> to vector<1x1x128xf32>
    %107 = vector.shape_cast %106 : vector<1x1x128xf32> to vector<128xf32>
    %108 = vector.shape_cast %107 : vector<128xf32> to vector<1x1x128xf32>
    %109 = vector.broadcast %108 : vector<1x1x128xf32> to vector<16x16x128xf32>
    %110 = arith.mulf %105, %109 : vector<16x16x128xf32>
    %111 = arith.addf %104, %110 : vector<16x16x128xf32>
    %c2_52 = arith.constant 2 : index
    %c1_53 = arith.constant 1 : index
    %c0_54 = arith.constant 0 : index
    %112 = vector.load %arg5[%c2_52, %c1_53, %c0_54] : memref<22x22x128xf32, #tpu.memory_space<vmem>>, vector<16x16x128xf32>
    %113 = vector.extract_strided_slice %5 {offsets = [2, 1, 0], sizes = [1, 1, 128], strides = [1, 1, 1]} : vector<7x7x128xf32> to vector<1x1x128xf32>
    %114 = vector.shape_cast %113 : vector<1x1x128xf32> to vector<128xf32>
    %115 = vector.shape_cast %114 : vector<128xf32> to vector<1x1x128xf32>
    %116 = vector.broadcast %115 : vector<1x1x128xf32> to vector<16x16x128xf32>
    %117 = arith.mulf %112, %116 : vector<16x16x128xf32>
    %118 = arith.addf %111, %117 : vector<16x16x128xf32>
    %c2_55 = arith.constant 2 : index
    %c2_56 = arith.constant 2 : index
    %c0_57 = arith.constant 0 : index
    %119 = vector.load %arg5[%c2_55, %c2_56, %c0_57] : memref<22x22x128xf32, #tpu.memory_space<vmem>>, vector<16x16x128xf32>
    %120 = vector.extract_strided_slice %5 {offsets = [2, 2, 0], sizes = [1, 1, 128], strides = [1, 1, 1]} : vector<7x7x128xf32> to vector<1x1x128xf32>
    %121 = vector.shape_cast %120 : vector<1x1x128xf32> to vector<128xf32>
    %122 = vector.shape_cast %121 : vector<128xf32> to vector<1x1x128xf32>
    %123 = vector.broadcast %122 : vector<1x1x128xf32> to vector<16x16x128xf32>
    %124 = arith.mulf %119, %123 : vector<16x16x128xf32>
    %125 = arith.addf %118, %124 : vector<16x16x128xf32>
    %c2_58 = arith.constant 2 : index
    %c3_59 = arith.constant 3 : index
    %c0_60 = arith.constant 0 : index
    %126 = vector.load %arg5[%c2_58, %c3_59, %c0_60] : memref<22x22x128xf32, #tpu.memory_space<vmem>>, vector<16x16x128xf32>
    %127 = vector.extract_strided_slice %5 {offsets = [2, 3, 0], sizes = [1, 1, 128], strides = [1, 1, 1]} : vector<7x7x128xf32> to vector<1x1x128xf32>
    %128 = vector.shape_cast %127 : vector<1x1x128xf32> to vector<128xf32>
    %129 = vector.shape_cast %128 : vector<128xf32> to vector<1x1x128xf32>
    %130 = vector.broadcast %129 : vector<1x1x128xf32> to vector<16x16x128xf32>
    %131 = arith.mulf %126, %130 : vector<16x16x128xf32>
    %132 = arith.addf %125, %131 : vector<16x16x128xf32>
    %c2_61 = arith.constant 2 : index
    %c4_62 = arith.constant 4 : index
    %c0_63 = arith.constant 0 : index
    %133 = vector.load %arg5[%c2_61, %c4_62, %c0_63] : memref<22x22x128xf32, #tpu.memory_space<vmem>>, vector<16x16x128xf32>
    %134 = vector.extract_strided_slice %5 {offsets = [2, 4, 0], sizes = [1, 1, 128], strides = [1, 1, 1]} : vector<7x7x128xf32> to vector<1x1x128xf32>
    %135 = vector.shape_cast %134 : vector<1x1x128xf32> to vector<128xf32>
    %136 = vector.shape_cast %135 : vector<128xf32> to vector<1x1x128xf32>
    %137 = vector.broadcast %136 : vector<1x1x128xf32> to vector<16x16x128xf32>
    %138 = arith.mulf %133, %137 : vector<16x16x128xf32>
    %139 = arith.addf %132, %138 : vector<16x16x128xf32>
    %c2_64 = arith.constant 2 : index
    %c5_65 = arith.constant 5 : index
    %c0_66 = arith.constant 0 : index
    %140 = vector.load %arg5[%c2_64, %c5_65, %c0_66] : memref<22x22x128xf32, #tpu.memory_space<vmem>>, vector<16x16x128xf32>
    %141 = vector.extract_strided_slice %5 {offsets = [2, 5, 0], sizes = [1, 1, 128], strides = [1, 1, 1]} : vector<7x7x128xf32> to vector<1x1x128xf32>
    %142 = vector.shape_cast %141 : vector<1x1x128xf32> to vector<128xf32>
    %143 = vector.shape_cast %142 : vector<128xf32> to vector<1x1x128xf32>
    %144 = vector.broadcast %143 : vector<1x1x128xf32> to vector<16x16x128xf32>
    %145 = arith.mulf %140, %144 : vector<16x16x128xf32>
    %146 = arith.addf %139, %145 : vector<16x16x128xf32>
    %c2_67 = arith.constant 2 : index
    %c6_68 = arith.constant 6 : index
    %c0_69 = arith.constant 0 : index
    %147 = vector.load %arg5[%c2_67, %c6_68, %c0_69] : memref<22x22x128xf32, #tpu.memory_space<vmem>>, vector<16x16x128xf32>
    %148 = vector.extract_strided_slice %5 {offsets = [2, 6, 0], sizes = [1, 1, 128], strides = [1, 1, 1]} : vector<7x7x128xf32> to vector<1x1x128xf32>
    %149 = vector.shape_cast %148 : vector<1x1x128xf32> to vector<128xf32>
    %150 = vector.shape_cast %149 : vector<128xf32> to vector<1x1x128xf32>
    %151 = vector.broadcast %150 : vector<1x1x128xf32> to vector<16x16x128xf32>
    %152 = arith.mulf %147, %151 : vector<16x16x128xf32>
    %153 = arith.addf %146, %152 : vector<16x16x128xf32>
    %c3_70 = arith.constant 3 : index
    %c0_71 = arith.constant 0 : index
    %c0_72 = arith.constant 0 : index
    %154 = vector.load %arg5[%c3_70, %c0_71, %c0_72] : memref<22x22x128xf32, #tpu.memory_space<vmem>>, vector<16x16x128xf32>
    %155 = vector.extract_strided_slice %5 {offsets = [3, 0, 0], sizes = [1, 1, 128], strides = [1, 1, 1]} : vector<7x7x128xf32> to vector<1x1x128xf32>
    %156 = vector.shape_cast %155 : vector<1x1x128xf32> to vector<128xf32>
    %157 = vector.shape_cast %156 : vector<128xf32> to vector<1x1x128xf32>
    %158 = vector.broadcast %157 : vector<1x1x128xf32> to vector<16x16x128xf32>
    %159 = arith.mulf %154, %158 : vector<16x16x128xf32>
    %160 = arith.addf %153, %159 : vector<16x16x128xf32>
    %c3_73 = arith.constant 3 : index
    %c1_74 = arith.constant 1 : index
    %c0_75 = arith.constant 0 : index
    %161 = vector.load %arg5[%c3_73, %c1_74, %c0_75] : memref<22x22x128xf32, #tpu.memory_space<vmem>>, vector<16x16x128xf32>
    %162 = vector.extract_strided_slice %5 {offsets = [3, 1, 0], sizes = [1, 1, 128], strides = [1, 1, 1]} : vector<7x7x128xf32> to vector<1x1x128xf32>
    %163 = vector.shape_cast %162 : vector<1x1x128xf32> to vector<128xf32>
    %164 = vector.shape_cast %163 : vector<128xf32> to vector<1x1x128xf32>
    %165 = vector.broadcast %164 : vector<1x1x128xf32> to vector<16x16x128xf32>
    %166 = arith.mulf %161, %165 : vector<16x16x128xf32>
    %167 = arith.addf %160, %166 : vector<16x16x128xf32>
    %c3_76 = arith.constant 3 : index
    %c2_77 = arith.constant 2 : index
    %c0_78 = arith.constant 0 : index
    %168 = vector.load %arg5[%c3_76, %c2_77, %c0_78] : memref<22x22x128xf32, #tpu.memory_space<vmem>>, vector<16x16x128xf32>
    %169 = vector.extract_strided_slice %5 {offsets = [3, 2, 0], sizes = [1, 1, 128], strides = [1, 1, 1]} : vector<7x7x128xf32> to vector<1x1x128xf32>
    %170 = vector.shape_cast %169 : vector<1x1x128xf32> to vector<128xf32>
    %171 = vector.shape_cast %170 : vector<128xf32> to vector<1x1x128xf32>
    %172 = vector.broadcast %171 : vector<1x1x128xf32> to vector<16x16x128xf32>
    %173 = arith.mulf %168, %172 : vector<16x16x128xf32>
    %174 = arith.addf %167, %173 : vector<16x16x128xf32>
    %c3_79 = arith.constant 3 : index
    %c3_80 = arith.constant 3 : index
    %c0_81 = arith.constant 0 : index
    %175 = vector.load %arg5[%c3_79, %c3_80, %c0_81] : memref<22x22x128xf32, #tpu.memory_space<vmem>>, vector<16x16x128xf32>
    %176 = vector.extract_strided_slice %5 {offsets = [3, 3, 0], sizes = [1, 1, 128], strides = [1, 1, 1]} : vector<7x7x128xf32> to vector<1x1x128xf32>
    %177 = vector.shape_cast %176 : vector<1x1x128xf32> to vector<128xf32>
    %178 = vector.shape_cast %177 : vector<128xf32> to vector<1x1x128xf32>
    %179 = vector.broadcast %178 : vector<1x1x128xf32> to vector<16x16x128xf32>
    %180 = arith.mulf %175, %179 : vector<16x16x128xf32>
    %181 = arith.addf %174, %180 : vector<16x16x128xf32>
    %c3_82 = arith.constant 3 : index
    %c4_83 = arith.constant 4 : index
    %c0_84 = arith.constant 0 : index
    %182 = vector.load %arg5[%c3_82, %c4_83, %c0_84] : memref<22x22x128xf32, #tpu.memory_space<vmem>>, vector<16x16x128xf32>
    %183 = vector.extract_strided_slice %5 {offsets = [3, 4, 0], sizes = [1, 1, 128], strides = [1, 1, 1]} : vector<7x7x128xf32> to vector<1x1x128xf32>
    %184 = vector.shape_cast %183 : vector<1x1x128xf32> to vector<128xf32>
    %185 = vector.shape_cast %184 : vector<128xf32> to vector<1x1x128xf32>
    %186 = vector.broadcast %185 : vector<1x1x128xf32> to vector<16x16x128xf32>
    %187 = arith.mulf %182, %186 : vector<16x16x128xf32>
    %188 = arith.addf %181, %187 : vector<16x16x128xf32>
    %c3_85 = arith.constant 3 : index
    %c5_86 = arith.constant 5 : index
    %c0_87 = arith.constant 0 : index
    %189 = vector.load %arg5[%c3_85, %c5_86, %c0_87] : memref<22x22x128xf32, #tpu.memory_space<vmem>>, vector<16x16x128xf32>
    %190 = vector.extract_strided_slice %5 {offsets = [3, 5, 0], sizes = [1, 1, 128], strides = [1, 1, 1]} : vector<7x7x128xf32> to vector<1x1x128xf32>
    %191 = vector.shape_cast %190 : vector<1x1x128xf32> to vector<128xf32>
    %192 = vector.shape_cast %191 : vector<128xf32> to vector<1x1x128xf32>
    %193 = vector.broadcast %192 : vector<1x1x128xf32> to vector<16x16x128xf32>
    %194 = arith.mulf %189, %193 : vector<16x16x128xf32>
    %195 = arith.addf %188, %194 : vector<16x16x128xf32>
    %c3_88 = arith.constant 3 : index
    %c6_89 = arith.constant 6 : index
    %c0_90 = arith.constant 0 : index
    %196 = vector.load %arg5[%c3_88, %c6_89, %c0_90] : memref<22x22x128xf32, #tpu.memory_space<vmem>>, vector<16x16x128xf32>
    %197 = vector.extract_strided_slice %5 {offsets = [3, 6, 0], sizes = [1, 1, 128], strides = [1, 1, 1]} : vector<7x7x128xf32> to vector<1x1x128xf32>
    %198 = vector.shape_cast %197 : vector<1x1x128xf32> to vector<128xf32>
    %199 = vector.shape_cast %198 : vector<128xf32> to vector<1x1x128xf32>
    %200 = vector.broadcast %199 : vector<1x1x128xf32> to vector<16x16x128xf32>
    %201 = arith.mulf %196, %200 : vector<16x16x128xf32>
    %202 = arith.addf %195, %201 : vector<16x16x128xf32>
    %c4_91 = arith.constant 4 : index
    %c0_92 = arith.constant 0 : index
    %c0_93 = arith.constant 0 : index
    %203 = vector.load %arg5[%c4_91, %c0_92, %c0_93] : memref<22x22x128xf32, #tpu.memory_space<vmem>>, vector<16x16x128xf32>
    %204 = vector.extract_strided_slice %5 {offsets = [4, 0, 0], sizes = [1, 1, 128], strides = [1, 1, 1]} : vector<7x7x128xf32> to vector<1x1x128xf32>
    %205 = vector.shape_cast %204 : vector<1x1x128xf32> to vector<128xf32>
    %206 = vector.shape_cast %205 : vector<128xf32> to vector<1x1x128xf32>
    %207 = vector.broadcast %206 : vector<1x1x128xf32> to vector<16x16x128xf32>
    %208 = arith.mulf %203, %207 : vector<16x16x128xf32>
    %209 = arith.addf %202, %208 : vector<16x16x128xf32>
    %c4_94 = arith.constant 4 : index
    %c1_95 = arith.constant 1 : index
    %c0_96 = arith.constant 0 : index
    %210 = vector.load %arg5[%c4_94, %c1_95, %c0_96] : memref<22x22x128xf32, #tpu.memory_space<vmem>>, vector<16x16x128xf32>
    %211 = vector.extract_strided_slice %5 {offsets = [4, 1, 0], sizes = [1, 1, 128], strides = [1, 1, 1]} : vector<7x7x128xf32> to vector<1x1x128xf32>
    %212 = vector.shape_cast %211 : vector<1x1x128xf32> to vector<128xf32>
    %213 = vector.shape_cast %212 : vector<128xf32> to vector<1x1x128xf32>
    %214 = vector.broadcast %213 : vector<1x1x128xf32> to vector<16x16x128xf32>
    %215 = arith.mulf %210, %214 : vector<16x16x128xf32>
    %216 = arith.addf %209, %215 : vector<16x16x128xf32>
    %c4_97 = arith.constant 4 : index
    %c2_98 = arith.constant 2 : index
    %c0_99 = arith.constant 0 : index
    %217 = vector.load %arg5[%c4_97, %c2_98, %c0_99] : memref<22x22x128xf32, #tpu.memory_space<vmem>>, vector<16x16x128xf32>
    %218 = vector.extract_strided_slice %5 {offsets = [4, 2, 0], sizes = [1, 1, 128], strides = [1, 1, 1]} : vector<7x7x128xf32> to vector<1x1x128xf32>
    %219 = vector.shape_cast %218 : vector<1x1x128xf32> to vector<128xf32>
    %220 = vector.shape_cast %219 : vector<128xf32> to vector<1x1x128xf32>
    %221 = vector.broadcast %220 : vector<1x1x128xf32> to vector<16x16x128xf32>
    %222 = arith.mulf %217, %221 : vector<16x16x128xf32>
    %223 = arith.addf %216, %222 : vector<16x16x128xf32>
    %c4_100 = arith.constant 4 : index
    %c3_101 = arith.constant 3 : index
    %c0_102 = arith.constant 0 : index
    %224 = vector.load %arg5[%c4_100, %c3_101, %c0_102] : memref<22x22x128xf32, #tpu.memory_space<vmem>>, vector<16x16x128xf32>
    %225 = vector.extract_strided_slice %5 {offsets = [4, 3, 0], sizes = [1, 1, 128], strides = [1, 1, 1]} : vector<7x7x128xf32> to vector<1x1x128xf32>
    %226 = vector.shape_cast %225 : vector<1x1x128xf32> to vector<128xf32>
    %227 = vector.shape_cast %226 : vector<128xf32> to vector<1x1x128xf32>
    %228 = vector.broadcast %227 : vector<1x1x128xf32> to vector<16x16x128xf32>
    %229 = arith.mulf %224, %228 : vector<16x16x128xf32>
    %230 = arith.addf %223, %229 : vector<16x16x128xf32>
    %c4_103 = arith.constant 4 : index
    %c4_104 = arith.constant 4 : index
    %c0_105 = arith.constant 0 : index
    %231 = vector.load %arg5[%c4_103, %c4_104, %c0_105] : memref<22x22x128xf32, #tpu.memory_space<vmem>>, vector<16x16x128xf32>
    %232 = vector.extract_strided_slice %5 {offsets = [4, 4, 0], sizes = [1, 1, 128], strides = [1, 1, 1]} : vector<7x7x128xf32> to vector<1x1x128xf32>
    %233 = vector.shape_cast %232 : vector<1x1x128xf32> to vector<128xf32>
    %234 = vector.shape_cast %233 : vector<128xf32> to vector<1x1x128xf32>
    %235 = vector.broadcast %234 : vector<1x1x128xf32> to vector<16x16x128xf32>
    %236 = arith.mulf %231, %235 : vector<16x16x128xf32>
    %237 = arith.addf %230, %236 : vector<16x16x128xf32>
    %c4_106 = arith.constant 4 : index
    %c5_107 = arith.constant 5 : index
    %c0_108 = arith.constant 0 : index
    %238 = vector.load %arg5[%c4_106, %c5_107, %c0_108] : memref<22x22x128xf32, #tpu.memory_space<vmem>>, vector<16x16x128xf32>
    %239 = vector.extract_strided_slice %5 {offsets = [4, 5, 0], sizes = [1, 1, 128], strides = [1, 1, 1]} : vector<7x7x128xf32> to vector<1x1x128xf32>
    %240 = vector.shape_cast %239 : vector<1x1x128xf32> to vector<128xf32>
    %241 = vector.shape_cast %240 : vector<128xf32> to vector<1x1x128xf32>
    %242 = vector.broadcast %241 : vector<1x1x128xf32> to vector<16x16x128xf32>
    %243 = arith.mulf %238, %242 : vector<16x16x128xf32>
    %244 = arith.addf %237, %243 : vector<16x16x128xf32>
    %c4_109 = arith.constant 4 : index
    %c6_110 = arith.constant 6 : index
    %c0_111 = arith.constant 0 : index
    %245 = vector.load %arg5[%c4_109, %c6_110, %c0_111] : memref<22x22x128xf32, #tpu.memory_space<vmem>>, vector<16x16x128xf32>
    %246 = vector.extract_strided_slice %5 {offsets = [4, 6, 0], sizes = [1, 1, 128], strides = [1, 1, 1]} : vector<7x7x128xf32> to vector<1x1x128xf32>
    %247 = vector.shape_cast %246 : vector<1x1x128xf32> to vector<128xf32>
    %248 = vector.shape_cast %247 : vector<128xf32> to vector<1x1x128xf32>
    %249 = vector.broadcast %248 : vector<1x1x128xf32> to vector<16x16x128xf32>
    %250 = arith.mulf %245, %249 : vector<16x16x128xf32>
    %251 = arith.addf %244, %250 : vector<16x16x128xf32>
    %c5_112 = arith.constant 5 : index
    %c0_113 = arith.constant 0 : index
    %c0_114 = arith.constant 0 : index
    %252 = vector.load %arg5[%c5_112, %c0_113, %c0_114] : memref<22x22x128xf32, #tpu.memory_space<vmem>>, vector<16x16x128xf32>
    %253 = vector.extract_strided_slice %5 {offsets = [5, 0, 0], sizes = [1, 1, 128], strides = [1, 1, 1]} : vector<7x7x128xf32> to vector<1x1x128xf32>
    %254 = vector.shape_cast %253 : vector<1x1x128xf32> to vector<128xf32>
    %255 = vector.shape_cast %254 : vector<128xf32> to vector<1x1x128xf32>
    %256 = vector.broadcast %255 : vector<1x1x128xf32> to vector<16x16x128xf32>
    %257 = arith.mulf %252, %256 : vector<16x16x128xf32>
    %258 = arith.addf %251, %257 : vector<16x16x128xf32>
    %c5_115 = arith.constant 5 : index
    %c1_116 = arith.constant 1 : index
    %c0_117 = arith.constant 0 : index
    %259 = vector.load %arg5[%c5_115, %c1_116, %c0_117] : memref<22x22x128xf32, #tpu.memory_space<vmem>>, vector<16x16x128xf32>
    %260 = vector.extract_strided_slice %5 {offsets = [5, 1, 0], sizes = [1, 1, 128], strides = [1, 1, 1]} : vector<7x7x128xf32> to vector<1x1x128xf32>
    %261 = vector.shape_cast %260 : vector<1x1x128xf32> to vector<128xf32>
    %262 = vector.shape_cast %261 : vector<128xf32> to vector<1x1x128xf32>
    %263 = vector.broadcast %262 : vector<1x1x128xf32> to vector<16x16x128xf32>
    %264 = arith.mulf %259, %263 : vector<16x16x128xf32>
    %265 = arith.addf %258, %264 : vector<16x16x128xf32>
    %c5_118 = arith.constant 5 : index
    %c2_119 = arith.constant 2 : index
    %c0_120 = arith.constant 0 : index
    %266 = vector.load %arg5[%c5_118, %c2_119, %c0_120] : memref<22x22x128xf32, #tpu.memory_space<vmem>>, vector<16x16x128xf32>
    %267 = vector.extract_strided_slice %5 {offsets = [5, 2, 0], sizes = [1, 1, 128], strides = [1, 1, 1]} : vector<7x7x128xf32> to vector<1x1x128xf32>
    %268 = vector.shape_cast %267 : vector<1x1x128xf32> to vector<128xf32>
    %269 = vector.shape_cast %268 : vector<128xf32> to vector<1x1x128xf32>
    %270 = vector.broadcast %269 : vector<1x1x128xf32> to vector<16x16x128xf32>
    %271 = arith.mulf %266, %270 : vector<16x16x128xf32>
    %272 = arith.addf %265, %271 : vector<16x16x128xf32>
    %c5_121 = arith.constant 5 : index
    %c3_122 = arith.constant 3 : index
    %c0_123 = arith.constant 0 : index
    %273 = vector.load %arg5[%c5_121, %c3_122, %c0_123] : memref<22x22x128xf32, #tpu.memory_space<vmem>>, vector<16x16x128xf32>
    %274 = vector.extract_strided_slice %5 {offsets = [5, 3, 0], sizes = [1, 1, 128], strides = [1, 1, 1]} : vector<7x7x128xf32> to vector<1x1x128xf32>
    %275 = vector.shape_cast %274 : vector<1x1x128xf32> to vector<128xf32>
    %276 = vector.shape_cast %275 : vector<128xf32> to vector<1x1x128xf32>
    %277 = vector.broadcast %276 : vector<1x1x128xf32> to vector<16x16x128xf32>
    %278 = arith.mulf %273, %277 : vector<16x16x128xf32>
    %279 = arith.addf %272, %278 : vector<16x16x128xf32>
    %c5_124 = arith.constant 5 : index
    %c4_125 = arith.constant 4 : index
    %c0_126 = arith.constant 0 : index
    %280 = vector.load %arg5[%c5_124, %c4_125, %c0_126] : memref<22x22x128xf32, #tpu.memory_space<vmem>>, vector<16x16x128xf32>
    %281 = vector.extract_strided_slice %5 {offsets = [5, 4, 0], sizes = [1, 1, 128], strides = [1, 1, 1]} : vector<7x7x128xf32> to vector<1x1x128xf32>
    %282 = vector.shape_cast %281 : vector<1x1x128xf32> to vector<128xf32>
    %283 = vector.shape_cast %282 : vector<128xf32> to vector<1x1x128xf32>
    %284 = vector.broadcast %283 : vector<1x1x128xf32> to vector<16x16x128xf32>
    %285 = arith.mulf %280, %284 : vector<16x16x128xf32>
    %286 = arith.addf %279, %285 : vector<16x16x128xf32>
    %c5_127 = arith.constant 5 : index
    %c5_128 = arith.constant 5 : index
    %c0_129 = arith.constant 0 : index
    %287 = vector.load %arg5[%c5_127, %c5_128, %c0_129] : memref<22x22x128xf32, #tpu.memory_space<vmem>>, vector<16x16x128xf32>
    %288 = vector.extract_strided_slice %5 {offsets = [5, 5, 0], sizes = [1, 1, 128], strides = [1, 1, 1]} : vector<7x7x128xf32> to vector<1x1x128xf32>
    %289 = vector.shape_cast %288 : vector<1x1x128xf32> to vector<128xf32>
    %290 = vector.shape_cast %289 : vector<128xf32> to vector<1x1x128xf32>
    %291 = vector.broadcast %290 : vector<1x1x128xf32> to vector<16x16x128xf32>
    %292 = arith.mulf %287, %291 : vector<16x16x128xf32>
    %293 = arith.addf %286, %292 : vector<16x16x128xf32>
    %c5_130 = arith.constant 5 : index
    %c6_131 = arith.constant 6 : index
    %c0_132 = arith.constant 0 : index
    %294 = vector.load %arg5[%c5_130, %c6_131, %c0_132] : memref<22x22x128xf32, #tpu.memory_space<vmem>>, vector<16x16x128xf32>
    %295 = vector.extract_strided_slice %5 {offsets = [5, 6, 0], sizes = [1, 1, 128], strides = [1, 1, 1]} : vector<7x7x128xf32> to vector<1x1x128xf32>
    %296 = vector.shape_cast %295 : vector<1x1x128xf32> to vector<128xf32>
    %297 = vector.shape_cast %296 : vector<128xf32> to vector<1x1x128xf32>
    %298 = vector.broadcast %297 : vector<1x1x128xf32> to vector<16x16x128xf32>
    %299 = arith.mulf %294, %298 : vector<16x16x128xf32>
    %300 = arith.addf %293, %299 : vector<16x16x128xf32>
    %c6_133 = arith.constant 6 : index
    %c0_134 = arith.constant 0 : index
    %c0_135 = arith.constant 0 : index
    %301 = vector.load %arg5[%c6_133, %c0_134, %c0_135] : memref<22x22x128xf32, #tpu.memory_space<vmem>>, vector<16x16x128xf32>
    %302 = vector.extract_strided_slice %5 {offsets = [6, 0, 0], sizes = [1, 1, 128], strides = [1, 1, 1]} : vector<7x7x128xf32> to vector<1x1x128xf32>
    %303 = vector.shape_cast %302 : vector<1x1x128xf32> to vector<128xf32>
    %304 = vector.shape_cast %303 : vector<128xf32> to vector<1x1x128xf32>
    %305 = vector.broadcast %304 : vector<1x1x128xf32> to vector<16x16x128xf32>
    %306 = arith.mulf %301, %305 : vector<16x16x128xf32>
    %307 = arith.addf %300, %306 : vector<16x16x128xf32>
    %c6_136 = arith.constant 6 : index
    %c1_137 = arith.constant 1 : index
    %c0_138 = arith.constant 0 : index
    %308 = vector.load %arg5[%c6_136, %c1_137, %c0_138] : memref<22x22x128xf32, #tpu.memory_space<vmem>>, vector<16x16x128xf32>
    %309 = vector.extract_strided_slice %5 {offsets = [6, 1, 0], sizes = [1, 1, 128], strides = [1, 1, 1]} : vector<7x7x128xf32> to vector<1x1x128xf32>
    %310 = vector.shape_cast %309 : vector<1x1x128xf32> to vector<128xf32>
    %311 = vector.shape_cast %310 : vector<128xf32> to vector<1x1x128xf32>
    %312 = vector.broadcast %311 : vector<1x1x128xf32> to vector<16x16x128xf32>
    %313 = arith.mulf %308, %312 : vector<16x16x128xf32>
    %314 = arith.addf %307, %313 : vector<16x16x128xf32>
    %c6_139 = arith.constant 6 : index
    %c2_140 = arith.constant 2 : index
    %c0_141 = arith.constant 0 : index
    %315 = vector.load %arg5[%c6_139, %c2_140, %c0_141] : memref<22x22x128xf32, #tpu.memory_space<vmem>>, vector<16x16x128xf32>
    %316 = vector.extract_strided_slice %5 {offsets = [6, 2, 0], sizes = [1, 1, 128], strides = [1, 1, 1]} : vector<7x7x128xf32> to vector<1x1x128xf32>
    %317 = vector.shape_cast %316 : vector<1x1x128xf32> to vector<128xf32>
    %318 = vector.shape_cast %317 : vector<128xf32> to vector<1x1x128xf32>
    %319 = vector.broadcast %318 : vector<1x1x128xf32> to vector<16x16x128xf32>
    %320 = arith.mulf %315, %319 : vector<16x16x128xf32>
    %321 = arith.addf %314, %320 : vector<16x16x128xf32>
    %c6_142 = arith.constant 6 : index
    %c3_143 = arith.constant 3 : index
    %c0_144 = arith.constant 0 : index
    %322 = vector.load %arg5[%c6_142, %c3_143, %c0_144] : memref<22x22x128xf32, #tpu.memory_space<vmem>>, vector<16x16x128xf32>
    %323 = vector.extract_strided_slice %5 {offsets = [6, 3, 0], sizes = [1, 1, 128], strides = [1, 1, 1]} : vector<7x7x128xf32> to vector<1x1x128xf32>
    %324 = vector.shape_cast %323 : vector<1x1x128xf32> to vector<128xf32>
    %325 = vector.shape_cast %324 : vector<128xf32> to vector<1x1x128xf32>
    %326 = vector.broadcast %325 : vector<1x1x128xf32> to vector<16x16x128xf32>
    %327 = arith.mulf %322, %326 : vector<16x16x128xf32>
    %328 = arith.addf %321, %327 : vector<16x16x128xf32>
    %c6_145 = arith.constant 6 : index
    %c4_146 = arith.constant 4 : index
    %c0_147 = arith.constant 0 : index
    %329 = vector.load %arg5[%c6_145, %c4_146, %c0_147] : memref<22x22x128xf32, #tpu.memory_space<vmem>>, vector<16x16x128xf32>
    %330 = vector.extract_strided_slice %5 {offsets = [6, 4, 0], sizes = [1, 1, 128], strides = [1, 1, 1]} : vector<7x7x128xf32> to vector<1x1x128xf32>
    %331 = vector.shape_cast %330 : vector<1x1x128xf32> to vector<128xf32>
    %332 = vector.shape_cast %331 : vector<128xf32> to vector<1x1x128xf32>
    %333 = vector.broadcast %332 : vector<1x1x128xf32> to vector<16x16x128xf32>
    %334 = arith.mulf %329, %333 : vector<16x16x128xf32>
    %335 = arith.addf %328, %334 : vector<16x16x128xf32>
    %c6_148 = arith.constant 6 : index
    %c5_149 = arith.constant 5 : index
    %c0_150 = arith.constant 0 : index
    %336 = vector.load %arg5[%c6_148, %c5_149, %c0_150] : memref<22x22x128xf32, #tpu.memory_space<vmem>>, vector<16x16x128xf32>
    %337 = vector.extract_strided_slice %5 {offsets = [6, 5, 0], sizes = [1, 1, 128], strides = [1, 1, 1]} : vector<7x7x128xf32> to vector<1x1x128xf32>
    %338 = vector.shape_cast %337 : vector<1x1x128xf32> to vector<128xf32>
    %339 = vector.shape_cast %338 : vector<128xf32> to vector<1x1x128xf32>
    %340 = vector.broadcast %339 : vector<1x1x128xf32> to vector<16x16x128xf32>
    %341 = arith.mulf %336, %340 : vector<16x16x128xf32>
    %342 = arith.addf %335, %341 : vector<16x16x128xf32>
    %c6_151 = arith.constant 6 : index
    %c6_152 = arith.constant 6 : index
    %c0_153 = arith.constant 0 : index
    %343 = vector.load %arg5[%c6_151, %c6_152, %c0_153] : memref<22x22x128xf32, #tpu.memory_space<vmem>>, vector<16x16x128xf32>
    %344 = vector.extract_strided_slice %5 {offsets = [6, 6, 0], sizes = [1, 1, 128], strides = [1, 1, 1]} : vector<7x7x128xf32> to vector<1x1x128xf32>
    %345 = vector.shape_cast %344 : vector<1x1x128xf32> to vector<128xf32>
    %346 = vector.shape_cast %345 : vector<128xf32> to vector<1x1x128xf32>
    %347 = vector.broadcast %346 : vector<1x1x128xf32> to vector<16x16x128xf32>
    %348 = arith.mulf %343, %347 : vector<16x16x128xf32>
    %349 = arith.addf %342, %348 : vector<16x16x128xf32>
    %c0_154 = arith.constant 0 : index
    %c0_155 = arith.constant 0 : index
    %c0_156 = arith.constant 0 : index
    %c0_157 = arith.constant 0 : index
    %350 = vector.load %arg4[%c0_154, %c0_155, %c0_156, %c0_157] : memref<1x16x16x128xf32, #tpu.memory_space<vmem>>, vector<1x16x16x128xf32>
    %351 = vector.shape_cast %350 : vector<1x16x16x128xf32> to vector<16x16x128xf32>
    %352 = vector.shape_cast %349 : vector<16x16x128xf32> to vector<1x16x16x128xf32>
    tpu.vector_store %arg4[%c0_154, %c0_155, %c0_156, %c0_157], %352 {strides = array<i32>} : memref<1x16x16x128xf32, #tpu.memory_space<vmem>>, vector<1x16x16x128xf32>,
    return
  }
  func.func @transform_0(%arg0: i32, %arg1: i32) -> (i32, i32, i32, i32) {
    %c0_i32 = arith.constant 0 : i32
    %c0_i32_0 = arith.constant 0 : i32
    %c0_i32_1 = arith.constant 0 : i32
    return %arg0, %c0_i32, %c0_i32_0, %arg1 : i32, i32, i32, i32
  }
  func.func @transform_1(%arg0: i32, %arg1: i32) -> (i32, i32, i32) {
    %c0_i32 = arith.constant 0 : i32
    %c0_i32_0 = arith.constant 0 : i32
    %c0_i32_1 = arith.constant 0 : i32
    return %c0_i32, %c0_i32_0, %arg1 : i32, i32, i32
  }
  func.func @transform_2(%arg0: i32, %arg1: i32) -> (i32, i32, i32, i32) {
    %c0_i32 = arith.constant 0 : i32
    %c0_i32_0 = arith.constant 0 : i32
    %c0_i32_1 = arith.constant 0 : i32
    return %arg0, %c0_i32, %c0_i32_0, %arg1 : i32, i32, i32, i32
  }
}

module attributes {stable_mosaic.version = 11 : i64} {
  func.func @_mlp_kernel(%arg0: i32, %arg1: memref<256x128xf32, #tpu.memory_space<vmem>>, %arg2: memref<256x128xf32, #tpu.memory_space<vmem>>, %arg3: memref<1x128xf32, #tpu.memory_space<vmem>>, %arg4: memref<1x128xf32, #tpu.memory_space<vmem>>, %arg5: memref<128x128xf32, #tpu.memory_space<vmem>>, %arg6: memref<1x128xf32, #tpu.memory_space<vmem>>, %arg7: memref<128x128xf32, #tpu.memory_space<vmem>>, %arg8: memref<1x128xf32, #tpu.memory_space<vmem>>, %arg9: memref<256x128xf32, #tpu.memory_space<vmem>>) attributes {dimension_semantics = [#tpu.dimension_semantics<parallel>], iteration_bounds = array<i64: 2>, scalar_prefetch = 0 : i64, scratch_operands = 0 : i64, tpu.core_type = #tpu.core_type<tc>, window_params = [{transform_indices = @transform_0, window_bounds = array<i64: 256, 128>}, {transform_indices = @transform_1, window_bounds = array<i64: 256, 128>}, {pipeline_mode = #tpu.pipeline_mode<synchronous>, transform_indices = @transform_2, window_bounds = array<i64: 1, 128>}, {pipeline_mode = #tpu.pipeline_mode<synchronous>, transform_indices = @transform_3, window_bounds = array<i64: 1, 128>}, {pipeline_mode = #tpu.pipeline_mode<synchronous>, transform_indices = @transform_4, window_bounds = array<i64: 128, 128>}, {pipeline_mode = #tpu.pipeline_mode<synchronous>, transform_indices = @transform_5, window_bounds = array<i64: 1, 128>}, {pipeline_mode = #tpu.pipeline_mode<synchronous>, transform_indices = @transform_6, window_bounds = array<i64: 128, 128>}, {pipeline_mode = #tpu.pipeline_mode<synchronous>, transform_indices = @transform_7, window_bounds = array<i64: 1, 128>}, {transform_indices = @transform_8, window_bounds = array<i64: 256, 128>}]} {
    %c0 = arith.constant 0 : index
    %c0_0 = arith.constant 0 : index
    %0 = vector.load %arg1[%c0, %c0_0] : memref<256x128xf32, #tpu.memory_space<vmem>>, vector<256x128xf32>
    %c0_1 = arith.constant 0 : index
    %c0_2 = arith.constant 0 : index
    %1 = vector.load %arg3[%c0_1, %c0_2] : memref<1x128xf32, #tpu.memory_space<vmem>>, vector<1x128xf32>
    %2 = vector.broadcast %1 : vector<1x128xf32> to vector<256x128xf32>
    %3 = arith.mulf %0, %2 : vector<256x128xf32>
    %c0_3 = arith.constant 0 : index
    %c0_4 = arith.constant 0 : index
    %4 = vector.load %arg4[%c0_3, %c0_4] : memref<1x128xf32, #tpu.memory_space<vmem>>, vector<1x128xf32>
    %5 = vector.broadcast %4 : vector<1x128xf32> to vector<256x128xf32>
    %6 = arith.addf %3, %5 : vector<256x128xf32>
    %c0_5 = arith.constant 0 : index
    %c0_6 = arith.constant 0 : index
    %7 = vector.load %arg5[%c0_5, %c0_6] : memref<128x128xf32, #tpu.memory_space<vmem>>, vector<128x128xf32>
    %cst = arith.constant dense<0.000000e+00> : vector<256x128xf32>
    %8 = tpu.matmul %6, %7, %cst {dimension_numbers = #tpu.dot_dimension_numbers<[1], [0], [0], [1], [0, 0, 1, 1], [], []>} : vector<256x128xf32>, vector<128x128xf32>, vector<256x128xf32> -> vector<256x128xf32>
    %c0_7 = arith.constant 0 : index
    %c0_8 = arith.constant 0 : index
    %9 = vector.load %arg6[%c0_7, %c0_8] : memref<1x128xf32, #tpu.memory_space<vmem>>, vector<1x128xf32>
    %10 = vector.broadcast %9 : vector<1x128xf32> to vector<256x128xf32>
    %11 = arith.addf %8, %10 : vector<256x128xf32>
    %cst_9 = arith.constant 5.000000e-01 : f32
    %12 = vector.broadcast %cst_9 : f32 to vector<256x128xf32>
    %13 = arith.mulf %12, %11 : vector<256x128xf32>
    %cst_10 = arith.constant 0.707106769 : f32
    %14 = vector.broadcast %cst_10 : f32 to vector<256x128xf32>
    %15 = arith.mulf %11, %14 : vector<256x128xf32>
    %cst_11 = arith.constant -4.000000e+00 : f32
    %cst_12 = arith.constant 4.000000e+00 : f32
    %16 = vector.broadcast %cst_11 : f32 to vector<256x128xf32>
    %17 = arith.maximumf %16, %15 : vector<256x128xf32>
    %18 = vector.broadcast %cst_12 : f32 to vector<256x128xf32>
    %19 = arith.minimumf %18, %17 : vector<256x128xf32>
    %20 = arith.mulf %19, %19 : vector<256x128xf32>
    %cst_13 = arith.constant -2.72614237E-10 : f32
    %21 = vector.broadcast %cst_13 : f32 to vector<256x128xf32>
    %22 = arith.mulf %21, %20 : vector<256x128xf32>
    %cst_14 = arith.constant 2.77068146E-8 : f32
    %23 = vector.broadcast %cst_14 : f32 to vector<256x128xf32>
    %24 = arith.addf %22, %23 : vector<256x128xf32>
    %25 = arith.mulf %24, %20 : vector<256x128xf32>
    %cst_15 = arith.constant -2.10102394E-6 : f32
    %26 = vector.broadcast %cst_15 : f32 to vector<256x128xf32>
    %27 = arith.addf %25, %26 : vector<256x128xf32>
    %28 = arith.mulf %27, %20 : vector<256x128xf32>
    %cst_16 = arith.constant -5.69250624E-5 : f32
    %29 = vector.broadcast %cst_16 : f32 to vector<256x128xf32>
    %30 = arith.addf %28, %29 : vector<256x128xf32>
    %31 = arith.mulf %30, %20 : vector<256x128xf32>
    %cst_17 = arith.constant -7.34990637E-4 : f32
    %32 = vector.broadcast %cst_17 : f32 to vector<256x128xf32>
    %33 = arith.addf %31, %32 : vector<256x128xf32>
    %34 = arith.mulf %33, %20 : vector<256x128xf32>
    %cst_18 = arith.constant -2.954600e-03 : f32
    %35 = vector.broadcast %cst_18 : f32 to vector<256x128xf32>
    %36 = arith.addf %34, %35 : vector<256x128xf32>
    %37 = arith.mulf %36, %20 : vector<256x128xf32>
    %cst_19 = arith.constant -0.0160960332 : f32
    %38 = vector.broadcast %cst_19 : f32 to vector<256x128xf32>
    %39 = arith.addf %37, %38 : vector<256x128xf32>
    %cst_20 = arith.constant -1.45660715E-5 : f32
    %40 = vector.broadcast %cst_20 : f32 to vector<256x128xf32>
    %41 = arith.mulf %40, %20 : vector<256x128xf32>
    %cst_21 = arith.constant -2.13374049E-4 : f32
    %42 = vector.broadcast %cst_21 : f32 to vector<256x128xf32>
    %43 = arith.addf %41, %42 : vector<256x128xf32>
    %44 = arith.mulf %43, %20 : vector<256x128xf32>
    %cst_22 = arith.constant -0.00168282702 : f32
    %45 = vector.broadcast %cst_22 : f32 to vector<256x128xf32>
    %46 = arith.addf %44, %45 : vector<256x128xf32>
    %47 = arith.mulf %46, %20 : vector<256x128xf32>
    %cst_23 = arith.constant -0.00737332925 : f32
    %48 = vector.broadcast %cst_23 : f32 to vector<256x128xf32>
    %49 = arith.addf %47, %48 : vector<256x128xf32>
    %50 = arith.mulf %49, %20 : vector<256x128xf32>
    %cst_24 = arith.constant -0.0142647391 : f32
    %51 = vector.broadcast %cst_24 : f32 to vector<256x128xf32>
    %52 = arith.addf %50, %51 : vector<256x128xf32>
    %53 = tpu.reciprocal %52 {approx = true} : vector<256x128xf32> -> vector<256x128xf32>
    %54 = arith.mulf %52, %53 : vector<256x128xf32>
    %cst_25 = arith.constant 2.000000e+00 : f32
    %55 = vector.broadcast %cst_25 : f32 to vector<256x128xf32>
    %56 = arith.subf %55, %54 : vector<256x128xf32>
    %57 = arith.mulf %53, %56 : vector<256x128xf32>
    %58 = arith.mulf %19, %39 : vector<256x128xf32>
    %59 = arith.mulf %58, %57 : vector<256x128xf32>
    %cst_26 = arith.constant -1.000000e+00 : f32
    %cst_27 = arith.constant 1.000000e+00 : f32
    %60 = vector.broadcast %cst_26 : f32 to vector<256x128xf32>
    %61 = arith.maximumf %60, %59 : vector<256x128xf32>
    %62 = vector.broadcast %cst_27 : f32 to vector<256x128xf32>
    %63 = arith.minimumf %62, %61 : vector<256x128xf32>
    %cst_28 = arith.constant 1.000000e+00 : f32
    %64 = vector.broadcast %cst_28 : f32 to vector<256x128xf32>
    %65 = arith.addf %64, %63 : vector<256x128xf32>
    %66 = arith.mulf %13, %65 : vector<256x128xf32>
    %c0_29 = arith.constant 0 : index
    %c0_30 = arith.constant 0 : index
    %67 = vector.load %arg7[%c0_29, %c0_30] : memref<128x128xf32, #tpu.memory_space<vmem>>, vector<128x128xf32>
    %cst_31 = arith.constant dense<0.000000e+00> : vector<256x128xf32>
    %68 = tpu.matmul %66, %67, %cst_31 {dimension_numbers = #tpu.dot_dimension_numbers<[1], [0], [0], [1], [0, 0, 1, 1], [], []>} : vector<256x128xf32>, vector<128x128xf32>, vector<256x128xf32> -> vector<256x128xf32>
    %c0_32 = arith.constant 0 : index
    %c0_33 = arith.constant 0 : index
    %69 = vector.load %arg8[%c0_32, %c0_33] : memref<1x128xf32, #tpu.memory_space<vmem>>, vector<1x128xf32>
    %70 = vector.broadcast %69 : vector<1x128xf32> to vector<256x128xf32>
    %71 = arith.addf %68, %70 : vector<256x128xf32>
    %c0_34 = arith.constant 0 : index
    %c0_35 = arith.constant 0 : index
    %72 = vector.load %arg2[%c0_34, %c0_35] : memref<256x128xf32, #tpu.memory_space<vmem>>, vector<256x128xf32>
    %73 = arith.addf %72, %71 : vector<256x128xf32>
    %c0_36 = arith.constant 0 : index
    %c0_37 = arith.constant 0 : index
    %74 = vector.load %arg9[%c0_36, %c0_37] : memref<256x128xf32, #tpu.memory_space<vmem>>, vector<256x128xf32>
    tpu.vector_store %arg9[%c0_36, %c0_37], %73 {strides = array<i32>} : memref<256x128xf32, #tpu.memory_space<vmem>>, vector<256x128xf32>,
    return
  }
  func.func @transform_0(%arg0: i32) -> (i32, i32) {
    %c0_i32 = arith.constant 0 : i32
    %c0_i32_0 = arith.constant 0 : i32
    return %arg0, %c0_i32 : i32, i32
  }
  func.func @transform_1(%arg0: i32) -> (i32, i32) {
    %c0_i32 = arith.constant 0 : i32
    %c0_i32_0 = arith.constant 0 : i32
    return %arg0, %c0_i32 : i32, i32
  }
  func.func @transform_2(%arg0: i32) -> (i32, i32) {
    %c0_i32 = arith.constant 0 : i32
    %c0_i32_0 = arith.constant 0 : i32
    %c0_i32_1 = arith.constant 0 : i32
    return %c0_i32, %c0_i32_0 : i32, i32
  }
  func.func @transform_3(%arg0: i32) -> (i32, i32) {
    %c0_i32 = arith.constant 0 : i32
    %c0_i32_0 = arith.constant 0 : i32
    %c0_i32_1 = arith.constant 0 : i32
    return %c0_i32, %c0_i32_0 : i32, i32
  }
  func.func @transform_4(%arg0: i32) -> (i32, i32) {
    %c0_i32 = arith.constant 0 : i32
    %c0_i32_0 = arith.constant 0 : i32
    %c0_i32_1 = arith.constant 0 : i32
    return %c0_i32, %c0_i32_0 : i32, i32
  }
  func.func @transform_5(%arg0: i32) -> (i32, i32) {
    %c0_i32 = arith.constant 0 : i32
    %c0_i32_0 = arith.constant 0 : i32
    %c0_i32_1 = arith.constant 0 : i32
    return %c0_i32, %c0_i32_0 : i32, i32
  }
  func.func @transform_6(%arg0: i32) -> (i32, i32) {
    %c0_i32 = arith.constant 0 : i32
    %c0_i32_0 = arith.constant 0 : i32
    %c0_i32_1 = arith.constant 0 : i32
    return %c0_i32, %c0_i32_0 : i32, i32
  }
  func.func @transform_7(%arg0: i32) -> (i32, i32) {
    %c0_i32 = arith.constant 0 : i32
    %c0_i32_0 = arith.constant 0 : i32
    %c0_i32_1 = arith.constant 0 : i32
    return %c0_i32, %c0_i32_0 : i32, i32
  }
  func.func @transform_8(%arg0: i32) -> (i32, i32) {
    %c0_i32 = arith.constant 0 : i32
    %c0_i32_0 = arith.constant 0 : i32
    return %arg0, %c0_i32 : i32, i32
  }
}

</mosaic_0001>

<llo_original>
// kernel: convnext_block.3
$region0: #{convnext_block.3}
  #allocation0 [shape = 'u32[]', space=smem, size = 0x4, offset = 0x4, fixed_abs, tag = 'smem constant byte address 0x4 - core index']
  #allocation1 [shape = 'u32[144,128]{1,0:T(1,128)}', space=vmem, size = 0x12000, scoped, tag = 'internal scratch']
  %s0 = inlined_call_operand.vmem [shape: f32[512,128], index: 0, kind: input, shape index: {}]
  %s1 = inlined_call_operand.vmem [shape: f32[512,128], index: 1, kind: input, shape index: {}]
  %s2 = inlined_call_operand.vmem [shape: f32[1,128], index: 2, kind: input, shape index: {}]
  %s3 = inlined_call_operand.vmem [shape: f32[1,128], index: 3, kind: input, shape index: {}]
  %s4 = inlined_call_operand.vmem [shape: f32[128,128], index: 4, kind: input, shape index: {}]
  %s5 = inlined_call_operand.vmem [shape: f32[1,128], index: 5, kind: input, shape index: {}]
  %s6 = inlined_call_operand.vmem [shape: f32[128,128], index: 6, kind: input, shape index: {}]
  %s7 = inlined_call_operand.vmem [shape: f32[1,128], index: 7, kind: input, shape index: {}]
  %s8 = inlined_call_operand.vmem [shape: f32[512,128], index: 8, kind: output, shape index: {}]
  %s9 = sld [smem:[#allocation0]]
  $region65: #{convnext_block.3} parent=0
    _
  %s11 = ssub.s32 1, %s9
  %s12 = scalar_select 0, %s11, %s9
  loop: start=0, step=1, limit=4
  $region2: #{convnext_block.3} parent=0 // loop_pre_header
    _
  $region3: #{convnext_block.3} parent=0 // loop_header
    %s14 = sphi 0, %s18
    %p15 = scmp.ge.s32.totalorder %s14, 4
    %s24 = sphi 0, %s26
    %s27 = sphi 0, %s24
    %s28 = sphi 0, %s27
    %s44 = sphi 0, %s28
    %s50 = sphi 0, %s52
    %s53 = sphi 0, %s50
    %s54 = sphi 0, %s53
    %s70 = sphi 0, %s54
    %s74 = sphi 0, %s74
    %s76 = sphi 0, %s74
    %s77 = sphi 0, %s76
    %s91 = sphi 0, %s77
    %s95 = sphi 0, %s95
    %s97 = sphi 0, %s95
    %s98 = sphi 0, %s97
    %s112 = sphi 0, %s98
    %s116 = sphi 0, %s116
    %s118 = sphi 0, %s116
    %s119 = sphi 0, %s118
    %s133 = sphi 0, %s119
    %s137 = sphi 0, %s137
    %s139 = sphi 0, %s137
    %s140 = sphi 0, %s139
    %s154 = sphi 0, %s140
    %s158 = sphi 0, %s158
    %s160 = sphi 0, %s158
    %s161 = sphi 0, %s160
    %s175 = sphi 0, %s161
    %s179 = sphi 0, %s179
    %s181 = sphi 0, %s179
    %s182 = sphi 0, %s181
    %s196 = sphi 0, %s182
    %s202 = sphi 0, %s204
    %s205 = sphi 0, %s202
    %s206 = sphi 0, %s205
    %s222 = sphi 0, %s206
  $region4: #{convnext_block.3} parent=0 // loop_header_branch
    %17 = sbr.rel (%p15) target = $region8
  $region5: #{convnext_block.3} parent=0 // loop_body
    %s19 = ssub.s32 %s14, 1
    %s20 = ssub.s32 %s14, 2
    %s21 = sadd.s32 %s14, 1
    %s22 = ssub.s32 %s14, %s21
    %p23 = scmp.eq.s32.totalorder %s22, 0
    %s25 = sadd.s32 %s24, 1
    %s26 = scalar_select %p23, %s24, %s25
    %p29 = pneg %p23
    %p30 = scmp.eq.s32.totalorder %s14, 1
    %p31 = por %p29, %p30
    %p32 = scmp.ne.s32.totalorder %s24, %s27
    %p33 = scmp.eq.s32.totalorder %s14, 0
    %p34 = por %p32, %p33
    %p35 = scmp.ne.s32.totalorder %s24, %s27
    %p36 = scmp.eq.s32.totalorder %s19, 1
    %p37 = por %p35, %p36
    %p38 = scmp.ne.s32.totalorder %s27, %s28
    %p39 = scmp.eq.s32.totalorder %s19, 0
    %p40 = por %p38, %p39
    %p41 = scmp.ne.s32.totalorder %s27, %s28
    %p42 = scmp.eq.s32.totalorder %s20, 1
    %p43 = por %p41, %p42
    %p45 = scmp.ne.s32.totalorder %s28, %s44
    %p46 = scmp.eq.s32.totalorder %s20, 0
    %p47 = por %p45, %p46
    %s48 = ssub.s32 %s14, %s21
    %p49 = scmp.eq.s32.totalorder %s48, 0
    %s51 = sadd.s32 %s50, 1
    %s52 = scalar_select %p49, %s50, %s51
    %p55 = pneg %p49
    %p56 = scmp.eq.s32.totalorder %s14, 1
    %p57 = por %p55, %p56
    %p58 = scmp.ne.s32.totalorder %s50, %s53
    %p59 = scmp.eq.s32.totalorder %s14, 0
    %p60 = por %p58, %p59
    %p61 = scmp.ne.s32.totalorder %s50, %s53
    %p62 = scmp.eq.s32.totalorder %s19, 1
    %p63 = por %p61, %p62
    %p64 = scmp.ne.s32.totalorder %s53, %s54
    %p65 = scmp.eq.s32.totalorder %s19, 0
    %p66 = por %p64, %p65
    %p67 = scmp.ne.s32.totalorder %s53, %s54
    %p68 = scmp.eq.s32.totalorder %s20, 1
    %p69 = por %p67, %p68
    %p71 = scmp.ne.s32.totalorder %s54, %s70
    %p72 = scmp.eq.s32.totalorder %s20, 0
    %p73 = por %p71, %p72
    %s75 = sadd.s32 %s74, 1
    %p78 = scmp.eq.s32.totalorder %s14, 1
    %p79 = scmp.ne.s32.totalorder %s74, %s76
    %p80 = scmp.eq.s32.totalorder %s14, 0
    %p81 = por %p79, %p80
    %p82 = scmp.ne.s32.totalorder %s74, %s76
    %p83 = scmp.eq.s32.totalorder %s19, 1
    %p84 = por %p82, %p83
    %p85 = scmp.ne.s32.totalorder %s76, %s77
    %p86 = scmp.eq.s32.totalorder %s19, 0
    %p87 = por %p85, %p86
    %p88 = scmp.ne.s32.totalorder %s76, %s77
    %p89 = scmp.eq.s32.totalorder %s20, 1
    %p90 = por %p88, %p89
    %p92 = scmp.ne.s32.totalorder %s77, %s91
    %p93 = scmp.eq.s32.totalorder %s20, 0
    %p94 = por %p92, %p93
    %s96 = sadd.s32 %s95, 1
    %p99 = scmp.eq.s32.totalorder %s14, 1
    %p100 = scmp.ne.s32.totalorder %s95, %s97
    %p101 = scmp.eq.s32.totalorder %s14, 0
    %p102 = por %p100, %p101
    %p103 = scmp.ne.s32.totalorder %s95, %s97
    %p104 = scmp.eq.s32.totalorder %s19, 1
    %p105 = por %p103, %p104
    %p106 = scmp.ne.s32.totalorder %s97, %s98
    %p107 = scmp.eq.s32.totalorder %s19, 0
    %p108 = por %p106, %p107
    %p109 = scmp.ne.s32.totalorder %s97, %s98
    %p110 = scmp.eq.s32.totalorder %s20, 1
    %p111 = por %p109, %p110
    %p113 = scmp.ne.s32.totalorder %s98, %s112
    %p114 = scmp.eq.s32.totalorder %s20, 0
    %p115 = por %p113, %p114
    %s117 = sadd.s32 %s116, 1
    %p120 = scmp.eq.s32.totalorder %s14, 1
    %p121 = scmp.ne.s32.totalorder %s116, %s118
    %p122 = scmp.eq.s32.totalorder %s14, 0
    %p123 = por %p121, %p122
    %p124 = scmp.ne.s32.totalorder %s116, %s118
    %p125 = scmp.eq.s32.totalorder %s19, 1
    %p126 = por %p124, %p125
    %p127 = scmp.ne.s32.totalorder %s118, %s119
    %p128 = scmp.eq.s32.totalorder %s19, 0
    %p129 = por %p127, %p128
    %p130 = scmp.ne.s32.totalorder %s118, %s119
    %p131 = scmp.eq.s32.totalorder %s20, 1
    %p132 = por %p130, %p131
    %p134 = scmp.ne.s32.totalorder %s119, %s133
    %p135 = scmp.eq.s32.totalorder %s20, 0
    %p136 = por %p134, %p135
    %s138 = sadd.s32 %s137, 1
    %p141 = scmp.eq.s32.totalorder %s14, 1
    %p142 = scmp.ne.s32.totalorder %s137, %s139
    %p143 = scmp.eq.s32.totalorder %s14, 0
    %p144 = por %p142, %p143
    %p145 = scmp.ne.s32.totalorder %s137, %s139
    %p146 = scmp.eq.s32.totalorder %s19, 1
    %p147 = por %p145, %p146
    %p148 = scmp.ne.s32.totalorder %s139, %s140
    %p149 = scmp.eq.s32.totalorder %s19, 0
    %p150 = por %p148, %p149
    %p151 = scmp.ne.s32.totalorder %s139, %s140
    %p152 = scmp.eq.s32.totalorder %s20, 1
    %p153 = por %p151, %p152
    %p155 = scmp.ne.s32.totalorder %s140, %s154
    %p156 = scmp.eq.s32.totalorder %s20, 0
    %p157 = por %p155, %p156
    %s159 = sadd.s32 %s158, 1
    %p162 = scmp.eq.s32.totalorder %s14, 1
    %p163 = scmp.ne.s32.totalorder %s158, %s160
    %p164 = scmp.eq.s32.totalorder %s14, 0
    %p165 = por %p163, %p164
    %p166 = scmp.ne.s32.totalorder %s158, %s160
    %p167 = scmp.eq.s32.totalorder %s19, 1
    %p168 = por %p166, %p167
    %p169 = scmp.ne.s32.totalorder %s160, %s161
    %p170 = scmp.eq.s32.totalorder %s19, 0
    %p171 = por %p169, %p170
    %p172 = scmp.ne.s32.totalorder %s160, %s161
    %p173 = scmp.eq.s32.totalorder %s20, 1
    %p174 = por %p172, %p173
    %p176 = scmp.ne.s32.totalorder %s161, %s175
    %p177 = scmp.eq.s32.totalorder %s20, 0
    %p178 = por %p176, %p177
    %s180 = sadd.s32 %s179, 1
    %p183 = scmp.eq.s32.totalorder %s14, 1
    %p184 = scmp.ne.s32.totalorder %s179, %s181
    %p185 = scmp.eq.s32.totalorder %s14, 0
    %p186 = por %p184, %p185
    %p187 = scmp.ne.s32.totalorder %s179, %s181
    %p188 = scmp.eq.s32.totalorder %s19, 1
    %p189 = por %p187, %p188
    %p190 = scmp.ne.s32.totalorder %s181, %s182
    %p191 = scmp.eq.s32.totalorder %s19, 0
    %p192 = por %p190, %p191
    %p193 = scmp.ne.s32.totalorder %s181, %s182
    %p194 = scmp.eq.s32.totalorder %s20, 1
    %p195 = por %p193, %p194
    %p197 = scmp.ne.s32.totalorder %s182, %s196
    %p198 = scmp.eq.s32.totalorder %s20, 0
    %p199 = por %p197, %p198
    %s200 = ssub.s32 %s14, %s21
    %p201 = scmp.eq.s32.totalorder %s200, 0
    %s203 = sadd.s32 %s202, 1
    %s204 = scalar_select %p201, %s202, %s203
    %p207 = pneg %p201
    %p208 = scmp.eq.s32.totalorder %s14, 1
    %p209 = por %p207, %p208
    %p210 = scmp.ne.s32.totalorder %s202, %s205
    %p211 = scmp.eq.s32.totalorder %s14, 0
    %p212 = por %p210, %p211
    %p213 = scmp.ne.s32.totalorder %s202, %s205
    %p214 = scmp.eq.s32.totalorder %s19, 1
    %p215 = por %p213, %p214
    %p216 = scmp.ne.s32.totalorder %s205, %s206
    %p217 = scmp.eq.s32.totalorder %s19, 0
    %p218 = por %p216, %p217
    %p219 = scmp.ne.s32.totalorder %s205, %s206
    %p220 = scmp.eq.s32.totalorder %s20, 1
    %p221 = por %p219, %p220
    %p223 = scmp.ne.s32.totalorder %s206, %s222
    %p224 = scmp.eq.s32.totalorder %s20, 0
    %p225 = por %p223, %p224
    %p226 = scmp.le.s32.totalorder 1, %s14
    %p227 = scmp.lt.s32.totalorder %s14, 3
    %p228 = pnand %p226, %p227
    %p229 = pneg %p228
    // Predicated region
    $region9: #{convnext_block.3} parent=5 // pred_check
      _
    $region10: #{convnext_block.3} parent=5 // pred_check_branch
      %231 = sbr.rel (%p228) target = $region12
    $region11: #{convnext_block.3} parent=5 // pred_region
      %s232 = ssub.s32 %s14, 1
      // Predicated region
      $region13: #{convnext_block.3} parent=11 // pred_check
        %p233 = pneg %p87
      $region14: #{convnext_block.3} parent=11 // pred_check_branch
        %235 = sbr.rel (%p233) target = $region16
      $region15: #{convnext_block.3} parent=11 // pred_region
        _
      $region16: #{convnext_block.3} parent=11 // pred_fallthru
        _
      // Predicated region
      $region17: #{convnext_block.3} parent=11 // pred_check
        %p236 = pneg %p108
      $region18: #{convnext_block.3} parent=11 // pred_check_branch
        %238 = sbr.rel (%p236) target = $region20
      $region19: #{convnext_block.3} parent=11 // pred_region
        _
      $region20: #{convnext_block.3} parent=11 // pred_fallthru
        _
      // Predicated region
      $region21: #{convnext_block.3} parent=11 // pred_check
        %p239 = pneg %p129
      $region22: #{convnext_block.3} parent=11 // pred_check_branch
        %241 = sbr.rel (%p239) target = $region24
      $region23: #{convnext_block.3} parent=11 // pred_region
        _
      $region24: #{convnext_block.3} parent=11 // pred_fallthru
        _
      // Predicated region
      $region25: #{convnext_block.3} parent=11 // pred_check
        %p242 = pneg %p150
      $region26: #{convnext_block.3} parent=11 // pred_check_branch
        %244 = sbr.rel (%p242) target = $region28
      $region27: #{convnext_block.3} parent=11 // pred_region
        _
      $region28: #{convnext_block.3} parent=11 // pred_fallthru
        _
      // Predicated region
      $region29: #{convnext_block.3} parent=11 // pred_check
        %p245 = pneg %p171
      $region30: #{convnext_block.3} parent=11 // pred_check_branch
        %247 = sbr.rel (%p245) target = $region32
      $region31: #{convnext_block.3} parent=11 // pred_region
        _
      $region32: #{convnext_block.3} parent=11 // pred_fallthru
        _
      // Predicated region
      $region33: #{convnext_block.3} parent=11 // pred_check
        %p248 = pneg %p192
      $region34: #{convnext_block.3} parent=11 // pred_check_branch
        %250 = sbr.rel (%p248) target = $region36
      $region35: #{convnext_block.3} parent=11 // pred_region
        _
      $region36: #{convnext_block.3} parent=11 // pred_fallthru
        _
    $region12: #{convnext_block.3} parent=5 // pred_fallthru
      _
    %p251 = scmp.lt.s32.totalorder %s14, 2
    // Predicated region
    $region37: #{convnext_block.3} parent=5 // pred_check
      %p252 = pneg %p251
    $region38: #{convnext_block.3} parent=5 // pred_check_branch
      %254 = sbr.rel (%p252) target = $region40
    $region39: #{convnext_block.3} parent=5 // pred_region
      // Predicated region
      $region41: #{convnext_block.3} parent=39 // pred_check
        %p255 = pneg %p34
      $region42: #{convnext_block.3} parent=39 // pred_check_branch
        %257 = sbr.rel (%p255) target = $region44
      $region43: #{convnext_block.3} parent=39 // pred_region
        %s258 = smul.u32 32, %s14
        %p259 = scmp.lt.s32.totalorder %s258, 63
        %s260 = scalar_select %p259, %s258, 63
        %s261 = smul.addr %s260, 8
        %s262 = scalar_lea.vmem %s0, %s261
        %s263 = smul.u32 32, %s14
      $region44: #{convnext_block.3} parent=39 // pred_fallthru
        _
      // Predicated region
      $region45: #{convnext_block.3} parent=39 // pred_check
        %p264 = pneg %p60
      $region46: #{convnext_block.3} parent=39 // pred_check_branch
        %266 = sbr.rel (%p264) target = $region48
      $region47: #{convnext_block.3} parent=39 // pred_region
        %s267 = smul.u32 32, %s14
        %p268 = scmp.lt.s32.totalorder %s267, 63
        %s269 = scalar_select %p268, %s267, 63
        %s270 = smul.addr %s269, 8
        %s271 = scalar_lea.vmem %s1, %s270
        %s272 = smul.u32 32, %s14
      $region48: #{convnext_block.3} parent=39 // pred_fallthru
        _
    $region40: #{convnext_block.3} parent=5 // pred_fallthru
      _
    %p273 = scmp.le.s32.totalorder 1, %s14
    %p274 = scmp.lt.s32.totalorder %s14, 3
    %p275 = pnand %p273, %p274
    %p276 = pneg %p275
    // Predicated region
    $region49: #{convnext_block.3} parent=5 // pred_check
      _
    $region50: #{convnext_block.3} parent=5 // pred_check_branch
      %278 = sbr.rel (%p275) target = $region52
    $region51: #{convnext_block.3} parent=5 // pred_region
      %s279 = ssub.s32 %s14, 1
      %s280 = smul.u32 32, %s19
      %p281 = scmp.lt.s32.totalorder %s280, 63
      %s282 = scalar_select %p281, %s280, 63
      %s283 = smul.addr %s282, 8
      %s284 = scalar_lea.vmem %s0, %s283
      %p285 = pneg %p40
      %p286 = pneg %p37
      %s287 = smul.u32 32, %s19
      %p288 = scmp.lt.s32.totalorder %s287, 63
      %s289 = scalar_select %p288, %s287, 63
      %s290 = smul.addr %s289, 8
      %s291 = scalar_lea.vmem %s1, %s290
      %p292 = pneg %p66
      %p293 = pneg %p63
      %p294 = pneg %p87
      %p295 = pneg %p84
      %p296 = pneg %p108
      %p297 = pneg %p105
      %p298 = pneg %p129
      %p299 = pneg %p126
      %p300 = pneg %p150
      %p301 = pneg %p147
      %p302 = pneg %p171
      %p303 = pneg %p168
      %p304 = pneg %p192
      %p305 = pneg %p189
      %p306 = pneg %p218
      %p307 = pneg %p215
      %s308 = smul.u32 32, %s19
      %p309 = scmp.lt.s32.totalorder %s308, 63
      %s310 = scalar_select %p309, %s308, 63
      %s311 = smul.addr %s310, 8
      %s312 = scalar_lea.vmem %s8, %s311
      %s313 = smul.u32 32, %s19
      %p314 = scmp.lt.s32.totalorder %s313, 63
      %s315 = scalar_select %p314, %s313, 63
      %s316 = smul.addr %s315, 8
      %s317 = scalar_lea.vmem %s0, %s316
      %s318 = smul.u32 32, %s19
      %s319 = smul.u32 32, %s19
      %p320 = scmp.lt.s32.totalorder %s319, 63
      %s321 = scalar_select %p320, %s319, 63
      %s322 = smul.addr %s321, 8
      %s323 = scalar_lea.vmem %s1, %s322
      %s324 = smul.u32 32, %s19
      %s325 = smul.u32 32, %s19
      %p326 = scmp.lt.s32.totalorder %s325, 63
      %s327 = scalar_select %p326, %s325, 63
      %s328 = smul.addr %s327, 8
      %s329 = scalar_lea.vmem %s8, %s328
      %s330 = smul.u32 32, %s19
      %v331 = vld [vmem:[%s317] sm:$0xff]
      %v332 = vld [vmem:[%s317 + $0x8] sm:$0xff]
      %v333 = vld [vmem:[%s317 + $0x10] sm:$0xff]
      %v334 = vld [vmem:[%s317 + $0x18] sm:$0xff]
      %v335 = vld [vmem:[%s317 + $0x20] sm:$0xff]
      %v336 = vld [vmem:[%s317 + $0x28] sm:$0xff]
      %v337 = vld [vmem:[%s317 + $0x30] sm:$0xff]
      %v338 = vld [vmem:[%s317 + $0x38] sm:$0xff]
      %v339 = vld [vmem:[%s317 + $0x40] sm:$0xff]
      %v340 = vld [vmem:[%s317 + $0x48] sm:$0xff]
      %v341 = vld [vmem:[%s317 + $0x50] sm:$0xff]
      %v342 = vld [vmem:[%s317 + $0x58] sm:$0xff]
      %v343 = vld [vmem:[%s317 + $0x60] sm:$0xff]
      %v344 = vld [vmem:[%s317 + $0x68] sm:$0xff]
      %v345 = vld [vmem:[%s317 + $0x70] sm:$0xff]
      %v346 = vld [vmem:[%s317 + $0x78] sm:$0xff]
      %v347 = vld [vmem:[%s317 + $0x80] sm:$0xff]
      %v348 = vld [vmem:[%s317 + $0x88] sm:$0xff]
      %v349 = vld [vmem:[%s317 + $0x90] sm:$0xff]
      %v350 = vld [vmem:[%s317 + $0x98] sm:$0xff]
      %v351 = vld [vmem:[%s317 + $0xa0] sm:$0xff]
      %v352 = vld [vmem:[%s317 + $0xa8] sm:$0xff]
      %v353 = vld [vmem:[%s317 + $0xb0] sm:$0xff]
      %v354 = vld [vmem:[%s317 + $0xb8] sm:$0xff]
      %v355 = vld [vmem:[%s317 + $0xc0] sm:$0xff]
      %v356 = vld [vmem:[%s317 + $0xc8] sm:$0xff]
      %v357 = vld [vmem:[%s317 + $0xd0] sm:$0xff]
      %v358 = vld [vmem:[%s317 + $0xd8] sm:$0xff]
      %v359 = vld [vmem:[%s317 + $0xe0] sm:$0xff]
      %v360 = vld [vmem:[%s317 + $0xe8] sm:$0xff]
      %v361 = vld [vmem:[%s317 + $0xf0] sm:$0xff]
      %v362 = vld [vmem:[%s317 + $0xf8] sm:$0xff]
      %v363 = vld [vmem:[%s2] sm:$0x1]
      %v365 = vlaneseq
      %v366 = vshrl.u32 %v365, 7
      %v367 = vsub.s32 0, %v366
      %v368 = vrot.slane %v363, %v367
      %v370 = vmul.f32 %v331, %v368
      %v371 = vmul.f32 %v332, %v368
      %v372 = vmul.f32 %v333, %v368
      %v373 = vmul.f32 %v334, %v368
      %v374 = vmul.f32 %v335, %v368
      %v375 = vmul.f32 %v336, %v368
      %v376 = vmul.f32 %v337, %v368
      %v377 = vmul.f32 %v338, %v368
      %v378 = vmul.f32 %v339, %v368
      %v379 = vmul.f32 %v340, %v368
      %v380 = vmul.f32 %v341, %v368
      %v381 = vmul.f32 %v342, %v368
      %v382 = vmul.f32 %v343, %v368
      %v383 = vmul.f32 %v344, %v368
      %v384 = vmul.f32 %v345, %v368
      %v385 = vmul.f32 %v346, %v368
      %v386 = vmul.f32 %v347, %v368
      %v387 = vmul.f32 %v348, %v368
      %v388 = vmul.f32 %v349, %v368
      %v389 = vmul.f32 %v350, %v368
      %v390 = vmul.f32 %v351, %v368
      %v391 = vmul.f32 %v352, %v368
      %v392 = vmul.f32 %v353, %v368
      %v393 = vmul.f32 %v354, %v368
      %v394 = vmul.f32 %v355, %v368
      %v395 = vmul.f32 %v356, %v368
      %v396 = vmul.f32 %v357, %v368
      %v397 = vmul.f32 %v358, %v368
      %v398 = vmul.f32 %v359, %v368
      %v399 = vmul.f32 %v360, %v368
      %v400 = vmul.f32 %v361, %v368
      %v401 = vmul.f32 %v362, %v368
      %v402 = vld [vmem:[%s3] sm:$0x1]
      %v404 = vlaneseq
      %v405 = vshrl.u32 %v404, 7
      %v406 = vsub.s32 0, %v405
      %v407 = vrot.slane %v402, %v406
      %v409 = vadd.f32 %v370, %v407
      %v410 = vadd.f32 %v371, %v407
      %v411 = vadd.f32 %v372, %v407
      %v412 = vadd.f32 %v373, %v407
      %v413 = vadd.f32 %v374, %v407
      %v414 = vadd.f32 %v375, %v407
      %v415 = vadd.f32 %v376, %v407
      %v416 = vadd.f32 %v377, %v407
      %v417 = vadd.f32 %v378, %v407
      %v418 = vadd.f32 %v379, %v407
      %v419 = vadd.f32 %v380, %v407
      %v420 = vadd.f32 %v381, %v407
      %v421 = vadd.f32 %v382, %v407
      %v422 = vadd.f32 %v383, %v407
      %v423 = vadd.f32 %v384, %v407
      %v424 = vadd.f32 %v385, %v407
      %v425 = vadd.f32 %v386, %v407
      %v426 = vadd.f32 %v387, %v407
      %v427 = vadd.f32 %v388, %v407
      %v428 = vadd.f32 %v389, %v407
      %v429 = vadd.f32 %v390, %v407
      %v430 = vadd.f32 %v391, %v407
      %v431 = vadd.f32 %v392, %v407
      %v432 = vadd.f32 %v393, %v407
      %v433 = vadd.f32 %v394, %v407
      %v434 = vadd.f32 %v395, %v407
      %v435 = vadd.f32 %v396, %v407
      %v436 = vadd.f32 %v397, %v407
      %v437 = vadd.f32 %v398, %v407
      %v438 = vadd.f32 %v399, %v407
      %v439 = vadd.f32 %v400, %v407
      %v440 = vadd.f32 %v401, %v407
      %v441 = vld [vmem:[%s4] sm:$0xff]
      %v442 = vld [vmem:[%s4 + $0x8] sm:$0xff]
      %v443 = vld [vmem:[%s4 + $0x10] sm:$0xff]
      %v444 = vld [vmem:[%s4 + $0x18] sm:$0xff]
      %v445 = vld [vmem:[%s4 + $0x20] sm:$0xff]
      %v446 = vld [vmem:[%s4 + $0x28] sm:$0xff]
      %v447 = vld [vmem:[%s4 + $0x30] sm:$0xff]
      %v448 = vld [vmem:[%s4 + $0x38] sm:$0xff]
      %v449 = vld [vmem:[%s4 + $0x40] sm:$0xff]
      %v450 = vld [vmem:[%s4 + $0x48] sm:$0xff]
      %v451 = vld [vmem:[%s4 + $0x50] sm:$0xff]
      %v452 = vld [vmem:[%s4 + $0x58] sm:$0xff]
      %v453 = vld [vmem:[%s4 + $0x60] sm:$0xff]
      %v454 = vld [vmem:[%s4 + $0x68] sm:$0xff]
      %v455 = vld [vmem:[%s4 + $0x70] sm:$0xff]
      %v456 = vld [vmem:[%s4 + $0x78] sm:$0xff]
      %v457 = vld [vmem:[%s5] sm:$0x1]
      %v459 = vlaneseq
      %v460 = vshrl.u32 %v459, 7
      %v461 = vsub.s32 0, %v460
      %v462 = vrot.slane %v457, %v461
      %464 = vmatprep.subr.mxu0 0.0
      %465 = vmatpush1.msra.mxu0 %v456
      %466 = vmatprep.subr.mxu0 0.0
      %467 = vmatpush1.msra.mxu0 %v455
      %468 = vmatprep.subr.mxu0 0.0
      %469 = vmatpush1.msra.mxu0 %v454
      %470 = vmatprep.subr.mxu0 0.0
      %471 = vmatpush1.msra.mxu0 %v453
      %472 = vmatprep.subr.mxu0 0.0
      %473 = vmatpush1.msra.mxu0 %v452
      %474 = vmatprep.subr.mxu0 0.0
      %475 = vmatpush1.msra.mxu0 %v451
      %476 = vmatprep.subr.mxu0 0.0
      %477 = vmatpush1.msra.mxu0 %v450
      %478 = vmatprep.subr.mxu0 0.0
      %479 = vmatpush1.msra.mxu0 %v449
      %480 = vmatprep.subr.mxu0 0.0
      %481 = vmatpush1.msra.mxu0 %v448
      %482 = vmatprep.subr.mxu0 0.0
      %483 = vmatpush1.msra.mxu0 %v447
      %484 = vmatprep.subr.mxu0 0.0
      %485 = vmatpush1.msra.mxu0 %v446
      %486 = vmatprep.subr.mxu0 0.0
      %487 = vmatpush1.msra.mxu0 %v445
      %488 = vmatprep.subr.mxu0 0.0
      %489 = vmatpush1.msra.mxu0 %v444
      %490 = vmatprep.subr.mxu0 0.0
      %491 = vmatpush1.msra.mxu0 %v443
      %492 = vmatprep.subr.mxu0 0.0
      %493 = vmatpush1.msra.mxu0 %v442
      %494 = vmatprep.subr.mxu0 0.0
      %495 = vmatpush1.msra.mxu0 %v441
      %496 = vmatprep.subr.mxu0 0.0
      %497 = vmatpush2.msra.mxu0 0.0
      %498 = vmatprep.subr.mxu0 0.0
      %499 = vmatpush2.msra.mxu0 0.0
      %500 = vmatprep.subr.mxu0 0.0
      %501 = vmatpush2.msra.mxu0 0.0
      %502 = vmatprep.subr.mxu0 0.0
      %503 = vmatpush2.msra.mxu0 0.0
      %504 = vmatprep.subr.mxu0 0.0
      %505 = vmatpush2.msra.mxu0 0.0
      %506 = vmatprep.subr.mxu0 0.0
      %507 = vmatpush2.msra.mxu0 0.0
      %508 = vmatprep.subr.mxu0 0.0
      %509 = vmatpush2.msra.mxu0 0.0
      %510 = vmatprep.subr.mxu0 0.0
      %511 = vmatpush2.msra.mxu0 0.0
      %512 = vmatprep.subr.mxu0 0.0
      %513 = vmatpush2.msra.mxu0 0.0
      %514 = vmatprep.subr.mxu0 0.0
      %515 = vmatpush2.msra.mxu0 0.0
      %516 = vmatprep.subr.mxu0 0.0
      %517 = vmatpush2.msra.mxu0 0.0
      %518 = vmatprep.subr.mxu0 0.0
      %519 = vmatpush2.msra.mxu0 0.0
      %520 = vmatprep.subr.mxu0 0.0
      %521 = vmatpush2.msra.mxu0 0.0
      %522 = vmatprep.subr.mxu0 0.0
      %523 = vmatpush2.msra.mxu0 0.0
      %524 = vmatprep.subr.mxu0 0.0
      %525 = vmatpush2.msra.mxu0 0.0
      %526 = vmatprep.subr.mxu0 0.0
      %527 = vmatpush2.msra.mxu0 0.0
      %528 = vmatprep.mubr.f32.mxu0 0.0
      %529 = vmatmul.mubr.f32.gmra.mxu0 %v409
      %v530 = vpop.f32.mrf.mxu0
      %v531 = vadd.f32 %v462, %v530
      %v532 = vpop.f32.mrf.mxu0
      %533 = vmatprep.mubr.f32.mxu0 0.0
      %534 = vmatmul.mubr.f32.gmra.mxu0 %v410
      %v535 = vpop.f32.mrf.mxu0
      %v536 = vadd.f32 %v462, %v535
      %v537 = vpop.f32.mrf.mxu0
      %538 = vmatprep.mubr.f32.mxu0 0.0
      %539 = vmatmul.mubr.f32.gmra.mxu0 %v411
      %v540 = vpop.f32.mrf.mxu0
      %v541 = vadd.f32 %v462, %v540
      %v542 = vpop.f32.mrf.mxu0
      %543 = vmatprep.mubr.f32.mxu0 0.0
      %544 = vmatmul.mubr.f32.gmra.mxu0 %v412
      %v545 = vpop.f32.mrf.mxu0
      %v546 = vadd.f32 %v462, %v545
      %v547 = vpop.f32.mrf.mxu0
      %548 = vmatprep.mubr.f32.mxu0 0.0
      %549 = vmatmul.mubr.f32.gmra.mxu0 %v413
      %v550 = vpop.f32.mrf.mxu0
      %v551 = vadd.f32 %v462, %v550
      %v552 = vpop.f32.mrf.mxu0
      %553 = vmatprep.mubr.f32.mxu0 0.0
      %554 = vmatmul.mubr.f32.gmra.mxu0 %v414
      %v555 = vpop.f32.mrf.mxu0
      %v556 = vadd.f32 %v462, %v555
      %v557 = vpop.f32.mrf.mxu0
      %558 = vmatprep.mubr.f32.mxu0 0.0
      %559 = vmatmul.mubr.f32.gmra.mxu0 %v415
      %v560 = vpop.f32.mrf.mxu0
      %v561 = vadd.f32 %v462, %v560
      %v562 = vpop.f32.mrf.mxu0
      %563 = vmatprep.mubr.f32.mxu0 0.0
      %564 = vmatmul.mubr.f32.gmra.mxu0 %v416
      %v565 = vpop.f32.mrf.mxu0
      %v566 = vadd.f32 %v462, %v565
      %v567 = vpop.f32.mrf.mxu0
      %568 = vmatprep.mubr.f32.mxu0 0.0
      %569 = vmatmul.mubr.f32.gmra.mxu0 %v417
      %v570 = vpop.f32.mrf.mxu0
      %v571 = vadd.f32 %v462, %v570
      %v572 = vpop.f32.mrf.mxu0
      %573 = vmatprep.mubr.f32.mxu0 0.0
      %574 = vmatmul.mubr.f32.gmra.mxu0 %v418
      %v575 = vpop.f32.mrf.mxu0
      %v576 = vadd.f32 %v462, %v575
      %v577 = vpop.f32.mrf.mxu0
      %578 = vmatprep.mubr.f32.mxu0 0.0
      %579 = vmatmul.mubr.f32.gmra.mxu0 %v419
      %v580 = vpop.f32.mrf.mxu0
      %v581 = vadd.f32 %v462, %v580
      %v582 = vpop.f32.mrf.mxu0
      %583 = vmatprep.mubr.f32.mxu0 0.0
      %584 = vmatmul.mubr.f32.gmra.mxu0 %v420
      %v585 = vpop.f32.mrf.mxu0
      %v586 = vadd.f32 %v462, %v585
      %v587 = vpop.f32.mrf.mxu0
      %588 = vmatprep.mubr.f32.mxu0 0.0
      %589 = vmatmul.mubr.f32.gmra.mxu0 %v421
      %v590 = vpop.f32.mrf.mxu0
      %v591 = vadd.f32 %v462, %v590
      %v592 = vpop.f32.mrf.mxu0
      %593 = vmatprep.mubr.f32.mxu0 0.0
      %594 = vmatmul.mubr.f32.gmra.mxu0 %v422
      %v595 = vpop.f32.mrf.mxu0
      %v596 = vadd.f32 %v462, %v595
      %v597 = vpop.f32.mrf.mxu0
      %598 = vmatprep.mubr.f32.mxu0 0.0
      %599 = vmatmul.mubr.f32.gmra.mxu0 %v423
      %v600 = vpop.f32.mrf.mxu0
      %v601 = vadd.f32 %v462, %v600
      %v602 = vpop.f32.mrf.mxu0
      %603 = vmatprep.mubr.f32.mxu0 0.0
      %604 = vmatmul.mubr.f32.gmra.mxu0 %v424
      %v605 = vpop.f32.mrf.mxu0
      %v606 = vadd.f32 %v462, %v605
      %v607 = vpop.f32.mrf.mxu0
      %608 = vmatprep.mubr.f32.mxu0 0.0
      %609 = vmatmul.mubr.f32.gmra.mxu0 %v425
      %v610 = vpop.f32.mrf.mxu0
      %v611 = vadd.f32 %v462, %v610
      %v612 = vpop.f32.mrf.mxu0
      %613 = vmatprep.mubr.f32.mxu0 0.0
      %614 = vmatmul.mubr.f32.gmra.mxu0 %v426
      %v615 = vpop.f32.mrf.mxu0
      %v616 = vadd.f32 %v462, %v615
      %v617 = vpop.f32.mrf.mxu0
      %618 = vmatprep.mubr.f32.mxu0 0.0
      %619 = vmatmul.mubr.f32.gmra.mxu0 %v427
      %v620 = vpop.f32.mrf.mxu0
      %v621 = vadd.f32 %v462, %v620
      %v622 = vpop.f32.mrf.mxu0
      %623 = vmatprep.mubr.f32.mxu0 0.0
      %624 = vmatmul.mubr.f32.gmra.mxu0 %v428
      %v625 = vpop.f32.mrf.mxu0
      %v626 = vadd.f32 %v462, %v625
      %v627 = vpop.f32.mrf.mxu0
      %628 = vmatprep.mubr.f32.mxu0 0.0
      %629 = vmatmul.mubr.f32.gmra.mxu0 %v429
      %v630 = vpop.f32.mrf.mxu0
      %v631 = vadd.f32 %v462, %v630
      %v632 = vpop.f32.mrf.mxu0
      %633 = vmatprep.mubr.f32.mxu0 0.0
      %634 = vmatmul.mubr.f32.gmra.mxu0 %v430
      %v635 = vpop.f32.mrf.mxu0
      %v636 = vadd.f32 %v462, %v635
      %v637 = vpop.f32.mrf.mxu0
      %638 = vmatprep.mubr.f32.mxu0 0.0
      %639 = vmatmul.mubr.f32.gmra.mxu0 %v431
      %v640 = vpop.f32.mrf.mxu0
      %v641 = vadd.f32 %v462, %v640
      %v642 = vpop.f32.mrf.mxu0
      %643 = vmatprep.mubr.f32.mxu0 0.0
      %644 = vmatmul.mubr.f32.gmra.mxu0 %v432
      %v645 = vpop.f32.mrf.mxu0
      %v646 = vadd.f32 %v462, %v645
      %v647 = vpop.f32.mrf.mxu0
      %648 = vmatprep.mubr.f32.mxu0 0.0
      %649 = vmatmul.mubr.f32.gmra.mxu0 %v433
      %v650 = vpop.f32.mrf.mxu0
      %v651 = vadd.f32 %v462, %v650
      %v652 = vpop.f32.mrf.mxu0
      %653 = vmatprep.mubr.f32.mxu0 0.0
      %654 = vmatmul.mubr.f32.gmra.mxu0 %v434
      %v655 = vpop.f32.mrf.mxu0
      %v656 = vadd.f32 %v462, %v655
      %v657 = vpop.f32.mrf.mxu0
      %658 = vmatprep.mubr.f32.mxu0 0.0
      %659 = vmatmul.mubr.f32.gmra.mxu0 %v435
      %v660 = vpop.f32.mrf.mxu0
      %v661 = vadd.f32 %v462, %v660
      %v662 = vpop.f32.mrf.mxu0
      %663 = vmatprep.mubr.f32.mxu0 0.0
      %664 = vmatmul.mubr.f32.gmra.mxu0 %v436
      %v665 = vpop.f32.mrf.mxu0
      %v666 = vadd.f32 %v462, %v665
      %v667 = vpop.f32.mrf.mxu0
      %668 = vmatprep.mubr.f32.mxu0 0.0
      %669 = vmatmul.mubr.f32.gmra.mxu0 %v437
      %v670 = vpop.f32.mrf.mxu0
      %v671 = vadd.f32 %v462, %v670
      %v672 = vpop.f32.mrf.mxu0
      %673 = vmatprep.mubr.f32.mxu0 0.0
      %674 = vmatmul.mubr.f32.gmra.mxu0 %v438
      %v675 = vpop.f32.mrf.mxu0
      %v676 = vadd.f32 %v462, %v675
      %v677 = vpop.f32.mrf.mxu0
      %678 = vmatprep.mubr.f32.mxu0 0.0
      %679 = vmatmul.mubr.f32.gmra.mxu0 %v439
      %v680 = vpop.f32.mrf.mxu0
      %v681 = vadd.f32 %v462, %v680
      %v682 = vpop.f32.mrf.mxu0
      %683 = vmatprep.mubr.f32.mxu0 0.0
      %684 = vmatmul.mubr.f32.gmra.mxu0 %v440
      %v685 = vpop.f32.mrf.mxu0
      %v686 = vadd.f32 %v462, %v685
      %v687 = vpop.f32.mrf.mxu0
      %688 = vdwg.mxu0
      %v689 = vmul.f32 %v531, 0.5
      %v690 = vmul.f32 %v536, 0.5
      %v691 = vmul.f32 %v541, 0.5
      %v692 = vmul.f32 %v546, 0.5
      %v693 = vmul.f32 %v551, 0.5
      %v694 = vmul.f32 %v556, 0.5
      %v695 = vmul.f32 %v561, 0.5
      %v696 = vmul.f32 %v566, 0.5
      %v697 = vmul.f32 %v571, 0.5
      %v698 = vmul.f32 %v576, 0.5
      %v699 = vmul.f32 %v581, 0.5
      %v700 = vmul.f32 %v586, 0.5
      %v701 = vmul.f32 %v591, 0.5
      %v702 = vmul.f32 %v596, 0.5
      %v703 = vmul.f32 %v601, 0.5
      %v704 = vmul.f32 %v606, 0.5
      %v705 = vmul.f32 %v611, 0.5
      %v706 = vmul.f32 %v616, 0.5
      %v707 = vmul.f32 %v621, 0.5
      %v708 = vmul.f32 %v626, 0.5
      %v709 = vmul.f32 %v631, 0.5
      %v710 = vmul.f32 %v636, 0.5
      %v711 = vmul.f32 %v641, 0.5
      %v712 = vmul.f32 %v646, 0.5
      %v713 = vmul.f32 %v651, 0.5
      %v714 = vmul.f32 %v656, 0.5
      %v715 = vmul.f32 %v661, 0.5
      %v716 = vmul.f32 %v666, 0.5
      %v717 = vmul.f32 %v671, 0.5
      %v718 = vmul.f32 %v676, 0.5
      %v719 = vmul.f32 %v681, 0.5
      %v720 = vmul.f32 %v686, 0.5
      %v721 = vmul.f32 %v531, 0.70710677
      %v722 = vmul.f32 %v536, 0.70710677
      %v723 = vmul.f32 %v541, 0.70710677
      %v724 = vmul.f32 %v546, 0.70710677
      %v725 = vmul.f32 %v551, 0.70710677
      %v726 = vmul.f32 %v556, 0.70710677
      %v727 = vmul.f32 %v561, 0.70710677
      %v728 = vmul.f32 %v566, 0.70710677
      %v729 = vmul.f32 %v571, 0.70710677
      %v730 = vmul.f32 %v576, 0.70710677
      %v731 = vmul.f32 %v581, 0.70710677
      %v732 = vmul.f32 %v586, 0.70710677
      %v733 = vmul.f32 %v591, 0.70710677
      %v734 = vmul.f32 %v596, 0.70710677
      %v735 = vmul.f32 %v601, 0.70710677
      %v736 = vmul.f32 %v606, 0.70710677
      %v737 = vmul.f32 %v611, 0.70710677
      %v738 = vmul.f32 %v616, 0.70710677
      %v739 = vmul.f32 %v621, 0.70710677
      %v740 = vmul.f32 %v626, 0.70710677
      %v741 = vmul.f32 %v631, 0.70710677
      %v742 = vmul.f32 %v636, 0.70710677
      %v743 = vmul.f32 %v641, 0.70710677
      %v744 = vmul.f32 %v646, 0.70710677
      %v745 = vmul.f32 %v651, 0.70710677
      %v746 = vmul.f32 %v656, 0.70710677
      %v747 = vmul.f32 %v661, 0.70710677
      %v748 = vmul.f32 %v666, 0.70710677
      %v749 = vmul.f32 %v671, 0.70710677
      %v750 = vmul.f32 %v676, 0.70710677
      %v751 = vmul.f32 %v681, 0.70710677
      %v752 = vmul.f32 %v686, 0.70710677
      %v753 = vmax.f32 %v721, -4.0
      %v754 = vmax.f32 %v722, -4.0
      %v755 = vmax.f32 %v723, -4.0
      %v756 = vmax.f32 %v724, -4.0
      %v757 = vmax.f32 %v725, -4.0
      %v758 = vmax.f32 %v726, -4.0
      %v759 = vmax.f32 %v727, -4.0
      %v760 = vmax.f32 %v728, -4.0
      %v761 = vmax.f32 %v729, -4.0
      %v762 = vmax.f32 %v730, -4.0
      %v763 = vmax.f32 %v731, -4.0
      %v764 = vmax.f32 %v732, -4.0
      %v765 = vmax.f32 %v733, -4.0
      %v766 = vmax.f32 %v734, -4.0
      %v767 = vmax.f32 %v735, -4.0
      %v768 = vmax.f32 %v736, -4.0
      %v769 = vmax.f32 %v737, -4.0
      %v770 = vmax.f32 %v738, -4.0
      %v771 = vmax.f32 %v739, -4.0
      %v772 = vmax.f32 %v740, -4.0
      %v773 = vmax.f32 %v741, -4.0
      %v774 = vmax.f32 %v742, -4.0
      %v775 = vmax.f32 %v743, -4.0
      %v776 = vmax.f32 %v744, -4.0
      %v777 = vmax.f32 %v745, -4.0
      %v778 = vmax.f32 %v746, -4.0
      %v779 = vmax.f32 %v747, -4.0
      %v780 = vmax.f32 %v748, -4.0
      %v781 = vmax.f32 %v749, -4.0
      %v782 = vmax.f32 %v750, -4.0
      %v783 = vmax.f32 %v751, -4.0
      %v784 = vmax.f32 %v752, -4.0
      %v785 = vmin.f32 %v753, 4.0
      %v786 = vmin.f32 %v754, 4.0
      %v787 = vmin.f32 %v755, 4.0
      %v788 = vmin.f32 %v756, 4.0
      %v789 = vmin.f32 %v757, 4.0
      %v790 = vmin.f32 %v758, 4.0
      %v791 = vmin.f32 %v759, 4.0
      %v792 = vmin.f32 %v760, 4.0
      %v793 = vmin.f32 %v761, 4.0
      %v794 = vmin.f32 %v762, 4.0
      %v795 = vmin.f32 %v763, 4.0
      %v796 = vmin.f32 %v764, 4.0
      %v797 = vmin.f32 %v765, 4.0
      %v798 = vmin.f32 %v766, 4.0
      %v799 = vmin.f32 %v767, 4.0
      %v800 = vmin.f32 %v768, 4.0
      %v801 = vmin.f32 %v769, 4.0
      %v802 = vmin.f32 %v770, 4.0
      %v803 = vmin.f32 %v771, 4.0
      %v804 = vmin.f32 %v772, 4.0
      %v805 = vmin.f32 %v773, 4.0
      %v806 = vmin.f32 %v774, 4.0
      %v807 = vmin.f32 %v775, 4.0
      %v808 = vmin.f32 %v776, 4.0
      %v809 = vmin.f32 %v777, 4.0
      %v810 = vmin.f32 %v778, 4.0
      %v811 = vmin.f32 %v779, 4.0
      %v812 = vmin.f32 %v780, 4.0
      %v813 = vmin.f32 %v781, 4.0
      %v814 = vmin.f32 %v782, 4.0
      %v815 = vmin.f32 %v783, 4.0
      %v816 = vmin.f32 %v784, 4.0
      %v817 = vmul.f32 %v785, %v785
      %v818 = vmul.f32 %v786, %v786
      %v819 = vmul.f32 %v787, %v787
      %v820 = vmul.f32 %v788, %v788
      %v821 = vmul.f32 %v789, %v789
      %v822 = vmul.f32 %v790, %v790
      %v823 = vmul.f32 %v791, %v791
      %v824 = vmul.f32 %v792, %v792
      %v825 = vmul.f32 %v793, %v793
      %v826 = vmul.f32 %v794, %v794
      %v827 = vmul.f32 %v795, %v795
      %v828 = vmul.f32 %v796, %v796
      %v829 = vmul.f32 %v797, %v797
      %v830 = vmul.f32 %v798, %v798
      %v831 = vmul.f32 %v799, %v799
      %v832 = vmul.f32 %v800, %v800
      %v833 = vmul.f32 %v801, %v801
      %v834 = vmul.f32 %v802, %v802
      %v835 = vmul.f32 %v803, %v803
      %v836 = vmul.f32 %v804, %v804
      %v837 = vmul.f32 %v805, %v805
      %v838 = vmul.f32 %v806, %v806
      %v839 = vmul.f32 %v807, %v807
      %v840 = vmul.f32 %v808, %v808
      %v841 = vmul.f32 %v809, %v809
      %v842 = vmul.f32 %v810, %v810
      %v843 = vmul.f32 %v811, %v811
      %v844 = vmul.f32 %v812, %v812
      %v845 = vmul.f32 %v813, %v813
      %v846 = vmul.f32 %v814, %v814
      %v847 = vmul.f32 %v815, %v815
      %v848 = vmul.f32 %v816, %v816
      %v849 = vmul.f32 %v817, -2.7261424e-10
      %v850 = vmul.f32 %v818, -2.7261424e-10
      %v851 = vmul.f32 %v819, -2.7261424e-10
      %v852 = vmul.f32 %v820, -2.7261424e-10
      %v853 = vmul.f32 %v821, -2.7261424e-10
      %v854 = vmul.f32 %v822, -2.7261424e-10
      %v855 = vmul.f32 %v823, -2.7261424e-10
      %v856 = vmul.f32 %v824, -2.7261424e-10
      %v857 = vmul.f32 %v825, -2.7261424e-10
      %v858 = vmul.f32 %v826, -2.7261424e-10
      %v859 = vmul.f32 %v827, -2.7261424e-10
      %v860 = vmul.f32 %v828, -2.7261424e-10
      %v861 = vmul.f32 %v829, -2.7261424e-10
      %v862 = vmul.f32 %v830, -2.7261424e-10
      %v863 = vmul.f32 %v831, -2.7261424e-10
      %v864 = vmul.f32 %v832, -2.7261424e-10
      %v865 = vmul.f32 %v833, -2.7261424e-10
      %v866 = vmul.f32 %v834, -2.7261424e-10
      %v867 = vmul.f32 %v835, -2.7261424e-10
      %v868 = vmul.f32 %v836, -2.7261424e-10
      %v869 = vmul.f32 %v837, -2.7261424e-10
      %v870 = vmul.f32 %v838, -2.7261424e-10
      %v871 = vmul.f32 %v839, -2.7261424e-10
      %v872 = vmul.f32 %v840, -2.7261424e-10
      %v873 = vmul.f32 %v841, -2.7261424e-10
      %v874 = vmul.f32 %v842, -2.7261424e-10
      %v875 = vmul.f32 %v843, -2.7261424e-10
      %v876 = vmul.f32 %v844, -2.7261424e-10
      %v877 = vmul.f32 %v845, -2.7261424e-10
      %v878 = vmul.f32 %v846, -2.7261424e-10
      %v879 = vmul.f32 %v847, -2.7261424e-10
      %v880 = vmul.f32 %v848, -2.7261424e-10
      %v881 = vadd.f32 %v849, 2.7706815e-08
      %v882 = vadd.f32 %v850, 2.7706815e-08
      %v883 = vadd.f32 %v851, 2.7706815e-08
      %v884 = vadd.f32 %v852, 2.7706815e-08
      %v885 = vadd.f32 %v853, 2.7706815e-08
      %v886 = vadd.f32 %v854, 2.7706815e-08
      %v887 = vadd.f32 %v855, 2.7706815e-08
      %v888 = vadd.f32 %v856, 2.7706815e-08
      %v889 = vadd.f32 %v857, 2.7706815e-08
      %v890 = vadd.f32 %v858, 2.7706815e-08
      %v891 = vadd.f32 %v859, 2.7706815e-08
      %v892 = vadd.f32 %v860, 2.7706815e-08
      %v893 = vadd.f32 %v861, 2.7706815e-08
      %v894 = vadd.f32 %v862, 2.7706815e-08
      %v895 = vadd.f32 %v863, 2.7706815e-08
      %v896 = vadd.f32 %v864, 2.7706815e-08
      %v897 = vadd.f32 %v865, 2.7706815e-08
      %v898 = vadd.f32 %v866, 2.7706815e-08
      %v899 = vadd.f32 %v867, 2.7706815e-08
      %v900 = vadd.f32 %v868, 2.7706815e-08
      %v901 = vadd.f32 %v869, 2.7706815e-08
      %v902 = vadd.f32 %v870, 2.7706815e-08
      %v903 = vadd.f32 %v871, 2.7706815e-08
      %v904 = vadd.f32 %v872, 2.7706815e-08
      %v905 = vadd.f32 %v873, 2.7706815e-08
      %v906 = vadd.f32 %v874, 2.7706815e-08
      %v907 = vadd.f32 %v875, 2.7706815e-08
      %v908 = vadd.f32 %v876, 2.7706815e-08
      %v909 = vadd.f32 %v877, 2.7706815e-08
      %v910 = vadd.f32 %v878, 2.7706815e-08
      %v911 = vadd.f32 %v879, 2.7706815e-08
      %v912 = vadd.f32 %v880, 2.7706815e-08
      %v913 = vmul.f32 %v881, %v817
      %v914 = vmul.f32 %v882, %v818
      %v915 = vmul.f32 %v883, %v819
      %v916 = vmul.f32 %v884, %v820
      %v917 = vmul.f32 %v885, %v821
      %v918 = vmul.f32 %v886, %v822
      %v919 = vmul.f32 %v887, %v823
      %v920 = vmul.f32 %v888, %v824
      %v921 = vmul.f32 %v889, %v825
      %v922 = vmul.f32 %v890, %v826
      %v923 = vmul.f32 %v891, %v827
      %v924 = vmul.f32 %v892, %v828
      %v925 = vmul.f32 %v893, %v829
      %v926 = vmul.f32 %v894, %v830
      %v927 = vmul.f32 %v895, %v831
      %v928 = vmul.f32 %v896, %v832
      %v929 = vmul.f32 %v897, %v833
      %v930 = vmul.f32 %v898, %v834
      %v931 = vmul.f32 %v899, %v835
      %v932 = vmul.f32 %v900, %v836
      %v933 = vmul.f32 %v901, %v837
      %v934 = vmul.f32 %v902, %v838
      %v935 = vmul.f32 %v903, %v839
      %v936 = vmul.f32 %v904, %v840
      %v937 = vmul.f32 %v905, %v841
      %v938 = vmul.f32 %v906, %v842
      %v939 = vmul.f32 %v907, %v843
      %v940 = vmul.f32 %v908, %v844
      %v941 = vmul.f32 %v909, %v845
      %v942 = vmul.f32 %v910, %v846
      %v943 = vmul.f32 %v911, %v847
      %v944 = vmul.f32 %v912, %v848
      %v945 = vadd.f32 %v913, -2.101024e-06
      %v946 = vadd.f32 %v914, -2.101024e-06
      %v947 = vadd.f32 %v915, -2.101024e-06
      %v948 = vadd.f32 %v916, -2.101024e-06
      %v949 = vadd.f32 %v917, -2.101024e-06
      %v950 = vadd.f32 %v918, -2.101024e-06
      %v951 = vadd.f32 %v919, -2.101024e-06
      %v952 = vadd.f32 %v920, -2.101024e-06
      %v953 = vadd.f32 %v921, -2.101024e-06
      %v954 = vadd.f32 %v922, -2.101024e-06
      %v955 = vadd.f32 %v923, -2.101024e-06
      %v956 = vadd.f32 %v924, -2.101024e-06
      %v957 = vadd.f32 %v925, -2.101024e-06
      %v958 = vadd.f32 %v926, -2.101024e-06
      %v959 = vadd.f32 %v927, -2.101024e-06
      %v960 = vadd.f32 %v928, -2.101024e-06
      %v961 = vadd.f32 %v929, -2.101024e-06
      %v962 = vadd.f32 %v930, -2.101024e-06
      %v963 = vadd.f32 %v931, -2.101024e-06
      %v964 = vadd.f32 %v932, -2.101024e-06
      %v965 = vadd.f32 %v933, -2.101024e-06
      %v966 = vadd.f32 %v934, -2.101024e-06
      %v967 = vadd.f32 %v935, -2.101024e-06
      %v968 = vadd.f32 %v936, -2.101024e-06
      %v969 = vadd.f32 %v937, -2.101024e-06
      %v970 = vadd.f32 %v938, -2.101024e-06
      %v971 = vadd.f32 %v939, -2.101024e-06
      %v972 = vadd.f32 %v940, -2.101024e-06
      %v973 = vadd.f32 %v941, -2.101024e-06
      %v974 = vadd.f32 %v942, -2.101024e-06
      %v975 = vadd.f32 %v943, -2.101024e-06
      %v976 = vadd.f32 %v944, -2.101024e-06
      %v977 = vmul.f32 %v945, %v817
      %v978 = vmul.f32 %v946, %v818
      %v979 = vmul.f32 %v947, %v819
      %v980 = vmul.f32 %v948, %v820
      %v981 = vmul.f32 %v949, %v821
      %v982 = vmul.f32 %v950, %v822
      %v983 = vmul.f32 %v951, %v823
      %v984 = vmul.f32 %v952, %v824
      %v985 = vmul.f32 %v953, %v825
      %v986 = vmul.f32 %v954, %v826
      %v987 = vmul.f32 %v955, %v827
      %v988 = vmul.f32 %v956, %v828
      %v989 = vmul.f32 %v957, %v829
      %v990 = vmul.f32 %v958, %v830
      %v991 = vmul.f32 %v959, %v831
      %v992 = vmul.f32 %v960, %v832
      %v993 = vmul.f32 %v961, %v833
      %v994 = vmul.f32 %v962, %v834
      %v995 = vmul.f32 %v963, %v835
      %v996 = vmul.f32 %v964, %v836
      %v997 = vmul.f32 %v965, %v837
      %v998 = vmul.f32 %v966, %v838
      %v999 = vmul.f32 %v967, %v839
      %v1000 = vmul.f32 %v968, %v840
      %v1001 = vmul.f32 %v969, %v841
      %v1002 = vmul.f32 %v970, %v842
      %v1003 = vmul.f32 %v971, %v843
      %v1004 = vmul.f32 %v972, %v844
      %v1005 = vmul.f32 %v973, %v845
      %v1006 = vmul.f32 %v974, %v846
      %v1007 = vmul.f32 %v975, %v847
      %v1008 = vmul.f32 %v976, %v848
      %v1009 = vadd.f32 %v977, -5.6925062e-05
      %v1010 = vadd.f32 %v978, -5.6925062e-05
      %v1011 = vadd.f32 %v979, -5.6925062e-05
      %v1012 = vadd.f32 %v980, -5.6925062e-05
      %v1013 = vadd.f32 %v981, -5.6925062e-05
      %v1014 = vadd.f32 %v982, -5.6925062e-05
      %v1015 = vadd.f32 %v983, -5.6925062e-05
      %v1016 = vadd.f32 %v984, -5.6925062e-05
      %v1017 = vadd.f32 %v985, -5.6925062e-05
      %v1018 = vadd.f32 %v986, -5.6925062e-05
      %v1019 = vadd.f32 %v987, -5.6925062e-05
      %v1020 = vadd.f32 %v988, -5.6925062e-05
      %v1021 = vadd.f32 %v989, -5.6925062e-05
      %v1022 = vadd.f32 %v990, -5.6925062e-05
      %v1023 = vadd.f32 %v991, -5.6925062e-05
      %v1024 = vadd.f32 %v992, -5.6925062e-05
      %v1025 = vadd.f32 %v993, -5.6925062e-05
      %v1026 = vadd.f32 %v994, -5.6925062e-05
      %v1027 = vadd.f32 %v995, -5.6925062e-05
      %v1028 = vadd.f32 %v996, -5.6925062e-05
      %v1029 = vadd.f32 %v997, -5.6925062e-05
      %v1030 = vadd.f32 %v998, -5.6925062e-05
      %v1031 = vadd.f32 %v999, -5.6925062e-05
      %v1032 = vadd.f32 %v1000, -5.6925062e-05
      %v1033 = vadd.f32 %v1001, -5.6925062e-05
      %v1034 = vadd.f32 %v1002, -5.6925062e-05
      %v1035 = vadd.f32 %v1003, -5.6925062e-05
      %v1036 = vadd.f32 %v1004, -5.6925062e-05
      %v1037 = vadd.f32 %v1005, -5.6925062e-05
      %v1038 = vadd.f32 %v1006, -5.6925062e-05
      %v1039 = vadd.f32 %v1007, -5.6925062e-05
      %v1040 = vadd.f32 %v1008, -5.6925062e-05
      %v1041 = vmul.f32 %v1009, %v817
      %v1042 = vmul.f32 %v1010, %v818
      %v1043 = vmul.f32 %v1011, %v819
      %v1044 = vmul.f32 %v1012, %v820
      %v1045 = vmul.f32 %v1013, %v821
      %v1046 = vmul.f32 %v1014, %v822
      %v1047 = vmul.f32 %v1015, %v823
      %v1048 = vmul.f32 %v1016, %v824
      %v1049 = vmul.f32 %v1017, %v825
      %v1050 = vmul.f32 %v1018, %v826
      %v1051 = vmul.f32 %v1019, %v827
      %v1052 = vmul.f32 %v1020, %v828
      %v1053 = vmul.f32 %v1021, %v829
      %v1054 = vmul.f32 %v1022, %v830
      %v1055 = vmul.f32 %v1023, %v831
      %v1056 = vmul.f32 %v1024, %v832
      %v1057 = vmul.f32 %v1025, %v833
      %v1058 = vmul.f32 %v1026, %v834
      %v1059 = vmul.f32 %v1027, %v835
      %v1060 = vmul.f32 %v1028, %v836
      %v1061 = vmul.f32 %v1029, %v837
      %v1062 = vmul.f32 %v1030, %v838
      %v1063 = vmul.f32 %v1031, %v839
      %v1064 = vmul.f32 %v1032, %v840
      %v1065 = vmul.f32 %v1033, %v841
      %v1066 = vmul.f32 %v1034, %v842
      %v1067 = vmul.f32 %v1035, %v843
      %v1068 = vmul.f32 %v1036, %v844
      %v1069 = vmul.f32 %v1037, %v845
      %v1070 = vmul.f32 %v1038, %v846
      %v1071 = vmul.f32 %v1039, %v847
      %v1072 = vmul.f32 %v1040, %v848
      %v1073 = vadd.f32 %v1041, -0.00073499064
      %v1074 = vadd.f32 %v1042, -0.00073499064
      %v1075 = vadd.f32 %v1043, -0.00073499064
      %v1076 = vadd.f32 %v1044, -0.00073499064
      %v1077 = vadd.f32 %v1045, -0.00073499064
      %v1078 = vadd.f32 %v1046, -0.00073499064
      %v1079 = vadd.f32 %v1047, -0.00073499064
      %v1080 = vadd.f32 %v1048, -0.00073499064
      %v1081 = vadd.f32 %v1049, -0.00073499064
      %v1082 = vadd.f32 %v1050, -0.00073499064
      %v1083 = vadd.f32 %v1051, -0.00073499064
      %v1084 = vadd.f32 %v1052, -0.00073499064
      %v1085 = vadd.f32 %v1053, -0.00073499064
      %v1086 = vadd.f32 %v1054, -0.00073499064
      %v1087 = vadd.f32 %v1055, -0.00073499064
      %v1088 = vadd.f32 %v1056, -0.00073499064
      %v1089 = vadd.f32 %v1057, -0.00073499064
      %v1090 = vadd.f32 %v1058, -0.00073499064
      %v1091 = vadd.f32 %v1059, -0.00073499064
      %v1092 = vadd.f32 %v1060, -0.00073499064
      %v1093 = vadd.f32 %v1061, -0.00073499064
      %v1094 = vadd.f32 %v1062, -0.00073499064
      %v1095 = vadd.f32 %v1063, -0.00073499064
      %v1096 = vadd.f32 %v1064, -0.00073499064
      %v1097 = vadd.f32 %v1065, -0.00073499064
      %v1098 = vadd.f32 %v1066, -0.00073499064
      %v1099 = vadd.f32 %v1067, -0.00073499064
      %v1100 = vadd.f32 %v1068, -0.00073499064
      %v1101 = vadd.f32 %v1069, -0.00073499064
      %v1102 = vadd.f32 %v1070, -0.00073499064
      %v1103 = vadd.f32 %v1071, -0.00073499064
      %v1104 = vadd.f32 %v1072, -0.00073499064
      %v1105 = vmul.f32 %v1073, %v817
      %v1106 = vmul.f32 %v1074, %v818
      %v1107 = vmul.f32 %v1075, %v819
      %v1108 = vmul.f32 %v1076, %v820
      %v1109 = vmul.f32 %v1077, %v821
      %v1110 = vmul.f32 %v1078, %v822
      %v1111 = vmul.f32 %v1079, %v823
      %v1112 = vmul.f32 %v1080, %v824
      %v1113 = vmul.f32 %v1081, %v825
      %v1114 = vmul.f32 %v1082, %v826
      %v1115 = vmul.f32 %v1083, %v827
      %v1116 = vmul.f32 %v1084, %v828
      %v1117 = vmul.f32 %v1085, %v829
      %v1118 = vmul.f32 %v1086, %v830
      %v1119 = vmul.f32 %v1087, %v831
      %v1120 = vmul.f32 %v1088, %v832
      %v1121 = vmul.f32 %v1089, %v833
      %v1122 = vmul.f32 %v1090, %v834
      %v1123 = vmul.f32 %v1091, %v835
      %v1124 = vmul.f32 %v1092, %v836
      %v1125 = vmul.f32 %v1093, %v837
      %v1126 = vmul.f32 %v1094, %v838
      %v1127 = vmul.f32 %v1095, %v839
      %v1128 = vmul.f32 %v1096, %v840
      %v1129 = vmul.f32 %v1097, %v841
      %v1130 = vmul.f32 %v1098, %v842
      %v1131 = vmul.f32 %v1099, %v843
      %v1132 = vmul.f32 %v1100, %v844
      %v1133 = vmul.f32 %v1101, %v845
      %v1134 = vmul.f32 %v1102, %v846
      %v1135 = vmul.f32 %v1103, %v847
      %v1136 = vmul.f32 %v1104, %v848
      %v1137 = vadd.f32 %v1105, -0.0029546
      %v1138 = vadd.f32 %v1106, -0.0029546
      %v1139 = vadd.f32 %v1107, -0.0029546
      %v1140 = vadd.f32 %v1108, -0.0029546
      %v1141 = vadd.f32 %v1109, -0.0029546
      %v1142 = vadd.f32 %v1110, -0.0029546
      %v1143 = vadd.f32 %v1111, -0.0029546
      %v1144 = vadd.f32 %v1112, -0.0029546
      %v1145 = vadd.f32 %v1113, -0.0029546
      %v1146 = vadd.f32 %v1114, -0.0029546
      %v1147 = vadd.f32 %v1115, -0.0029546
      %v1148 = vadd.f32 %v1116, -0.0029546
      %v1149 = vadd.f32 %v1117, -0.0029546
      %v1150 = vadd.f32 %v1118, -0.0029546
      %v1151 = vadd.f32 %v1119, -0.0029546
      %v1152 = vadd.f32 %v1120, -0.0029546
      %v1153 = vadd.f32 %v1121, -0.0029546
      %v1154 = vadd.f32 %v1122, -0.0029546
      %v1155 = vadd.f32 %v1123, -0.0029546
      %v1156 = vadd.f32 %v1124, -0.0029546
      %v1157 = vadd.f32 %v1125, -0.0029546
      %v1158 = vadd.f32 %v1126, -0.0029546
      %v1159 = vadd.f32 %v1127, -0.0029546
      %v1160 = vadd.f32 %v1128, -0.0029546
      %v1161 = vadd.f32 %v1129, -0.0029546
      %v1162 = vadd.f32 %v1130, -0.0029546
      %v1163 = vadd.f32 %v1131, -0.0029546
      %v1164 = vadd.f32 %v1132, -0.0029546
      %v1165 = vadd.f32 %v1133, -0.0029546
      %v1166 = vadd.f32 %v1134, -0.0029546
      %v1167 = vadd.f32 %v1135, -0.0029546
      %v1168 = vadd.f32 %v1136, -0.0029546
      %v1169 = vmul.f32 %v1137, %v817
      %v1170 = vmul.f32 %v1138, %v818
      %v1171 = vmul.f32 %v1139, %v819
      %v1172 = vmul.f32 %v1140, %v820
      %v1173 = vmul.f32 %v1141, %v821
      %v1174 = vmul.f32 %v1142, %v822
      %v1175 = vmul.f32 %v1143, %v823
      %v1176 = vmul.f32 %v1144, %v824
      %v1177 = vmul.f32 %v1145, %v825
      %v1178 = vmul.f32 %v1146, %v826
      %v1179 = vmul.f32 %v1147, %v827
      %v1180 = vmul.f32 %v1148, %v828
      %v1181 = vmul.f32 %v1149, %v829
      %v1182 = vmul.f32 %v1150, %v830
      %v1183 = vmul.f32 %v1151, %v831
      %v1184 = vmul.f32 %v1152, %v832
      %v1185 = vmul.f32 %v1153, %v833
      %v1186 = vmul.f32 %v1154, %v834
      %v1187 = vmul.f32 %v1155, %v835
      %v1188 = vmul.f32 %v1156, %v836
      %v1189 = vmul.f32 %v1157, %v837
      %v1190 = vmul.f32 %v1158, %v838
      %v1191 = vmul.f32 %v1159, %v839
      %v1192 = vmul.f32 %v1160, %v840
      %v1193 = vmul.f32 %v1161, %v841
      %v1194 = vmul.f32 %v1162, %v842
      %v1195 = vmul.f32 %v1163, %v843
      %v1196 = vmul.f32 %v1164, %v844
      %v1197 = vmul.f32 %v1165, %v845
      %v1198 = vmul.f32 %v1166, %v846
      %v1199 = vmul.f32 %v1167, %v847
      %v1200 = vmul.f32 %v1168, %v848
      %v1201 = vadd.f32 %v1169, -0.016096033
      %v1202 = vadd.f32 %v1170, -0.016096033
      %v1203 = vadd.f32 %v1171, -0.016096033
      %v1204 = vadd.f32 %v1172, -0.016096033
      %v1205 = vadd.f32 %v1173, -0.016096033
      %v1206 = vadd.f32 %v1174, -0.016096033
      %v1207 = vadd.f32 %v1175, -0.016096033
      %v1208 = vadd.f32 %v1176, -0.016096033
      %v1209 = vadd.f32 %v1177, -0.016096033
      %v1210 = vadd.f32 %v1178, -0.016096033
      %v1211 = vadd.f32 %v1179, -0.016096033
      %v1212 = vadd.f32 %v1180, -0.016096033
      %v1213 = vadd.f32 %v1181, -0.016096033
      %v1214 = vadd.f32 %v1182, -0.016096033
      %v1215 = vadd.f32 %v1183, -0.016096033
      %v1216 = vadd.f32 %v1184, -0.016096033
      %v1217 = vadd.f32 %v1185, -0.016096033
      %v1218 = vadd.f32 %v1186, -0.016096033
      %v1219 = vadd.f32 %v1187, -0.016096033
      %v1220 = vadd.f32 %v1188, -0.016096033
      %v1221 = vadd.f32 %v1189, -0.016096033
      %v1222 = vadd.f32 %v1190, -0.016096033
      %v1223 = vadd.f32 %v1191, -0.016096033
      %v1224 = vadd.f32 %v1192, -0.016096033
      %v1225 = vadd.f32 %v1193, -0.016096033
      %v1226 = vadd.f32 %v1194, -0.016096033
      %v1227 = vadd.f32 %v1195, -0.016096033
      %v1228 = vadd.f32 %v1196, -0.016096033
      %v1229 = vadd.f32 %v1197, -0.016096033
      %v1230 = vadd.f32 %v1198, -0.016096033
      %v1231 = vadd.f32 %v1199, -0.016096033
      %v1232 = vadd.f32 %v1200, -0.016096033
      %v1233 = vmul.f32 %v817, -1.45660715e-05
      %v1234 = vmul.f32 %v818, -1.45660715e-05
      %v1235 = vmul.f32 %v819, -1.45660715e-05
      %v1236 = vmul.f32 %v820, -1.45660715e-05
      %v1237 = vmul.f32 %v821, -1.45660715e-05
      %v1238 = vmul.f32 %v822, -1.45660715e-05
      %v1239 = vmul.f32 %v823, -1.45660715e-05
      %v1240 = vmul.f32 %v824, -1.45660715e-05
      %v1241 = vmul.f32 %v825, -1.45660715e-05
      %v1242 = vmul.f32 %v826, -1.45660715e-05
      %v1243 = vmul.f32 %v827, -1.45660715e-05
      %v1244 = vmul.f32 %v828, -1.45660715e-05
      %v1245 = vmul.f32 %v829, -1.45660715e-05
      %v1246 = vmul.f32 %v830, -1.45660715e-05
      %v1247 = vmul.f32 %v831, -1.45660715e-05
      %v1248 = vmul.f32 %v832, -1.45660715e-05
      %v1249 = vmul.f32 %v833, -1.45660715e-05
      %v1250 = vmul.f32 %v834, -1.45660715e-05
      %v1251 = vmul.f32 %v835, -1.45660715e-05
      %v1252 = vmul.f32 %v836, -1.45660715e-05
      %v1253 = vmul.f32 %v837, -1.45660715e-05
      %v1254 = vmul.f32 %v838, -1.45660715e-05
      %v1255 = vmul.f32 %v839, -1.45660715e-05
      %v1256 = vmul.f32 %v840, -1.45660715e-05
      %v1257 = vmul.f32 %v841, -1.45660715e-05
      %v1258 = vmul.f32 %v842, -1.45660715e-05
      %v1259 = vmul.f32 %v843, -1.45660715e-05
      %v1260 = vmul.f32 %v844, -1.45660715e-05
      %v1261 = vmul.f32 %v845, -1.45660715e-05
      %v1262 = vmul.f32 %v846, -1.45660715e-05
      %v1263 = vmul.f32 %v847, -1.45660715e-05
      %v1264 = vmul.f32 %v848, -1.45660715e-05
      %v1265 = vadd.f32 %v1233, -0.00021337405
      %v1266 = vadd.f32 %v1234, -0.00021337405
      %v1267 = vadd.f32 %v1235, -0.00021337405
      %v1268 = vadd.f32 %v1236, -0.00021337405
      %v1269 = vadd.f32 %v1237, -0.00021337405
      %v1270 = vadd.f32 %v1238, -0.00021337405
      %v1271 = vadd.f32 %v1239, -0.00021337405
      %v1272 = vadd.f32 %v1240, -0.00021337405
      %v1273 = vadd.f32 %v1241, -0.00021337405
      %v1274 = vadd.f32 %v1242, -0.00021337405
      %v1275 = vadd.f32 %v1243, -0.00021337405
      %v1276 = vadd.f32 %v1244, -0.00021337405
      %v1277 = vadd.f32 %v1245, -0.00021337405
      %v1278 = vadd.f32 %v1246, -0.00021337405
      %v1279 = vadd.f32 %v1247, -0.00021337405
      %v1280 = vadd.f32 %v1248, -0.00021337405
      %v1281 = vadd.f32 %v1249, -0.00021337405
      %v1282 = vadd.f32 %v1250, -0.00021337405
      %v1283 = vadd.f32 %v1251, -0.00021337405
      %v1284 = vadd.f32 %v1252, -0.00021337405
      %v1285 = vadd.f32 %v1253, -0.00021337405
      %v1286 = vadd.f32 %v1254, -0.00021337405
      %v1287 = vadd.f32 %v1255, -0.00021337405
      %v1288 = vadd.f32 %v1256, -0.00021337405
      %v1289 = vadd.f32 %v1257, -0.00021337405
      %v1290 = vadd.f32 %v1258, -0.00021337405
      %v1291 = vadd.f32 %v1259, -0.00021337405
      %v1292 = vadd.f32 %v1260, -0.00021337405
      %v1293 = vadd.f32 %v1261, -0.00021337405
      %v1294 = vadd.f32 %v1262, -0.00021337405
      %v1295 = vadd.f32 %v1263, -0.00021337405
      %v1296 = vadd.f32 %v1264, -0.00021337405
      %v1297 = vmul.f32 %v1265, %v817
      %v1298 = vmul.f32 %v1266, %v818
      %v1299 = vmul.f32 %v1267, %v819
      %v1300 = vmul.f32 %v1268, %v820
      %v1301 = vmul.f32 %v1269, %v821
      %v1302 = vmul.f32 %v1270, %v822
      %v1303 = vmul.f32 %v1271, %v823
      %v1304 = vmul.f32 %v1272, %v824
      %v1305 = vmul.f32 %v1273, %v825
      %v1306 = vmul.f32 %v1274, %v826
      %v1307 = vmul.f32 %v1275, %v827
      %v1308 = vmul.f32 %v1276, %v828
      %v1309 = vmul.f32 %v1277, %v829
      %v1310 = vmul.f32 %v1278, %v830
      %v1311 = vmul.f32 %v1279, %v831
      %v1312 = vmul.f32 %v1280, %v832
      %v1313 = vmul.f32 %v1281, %v833
      %v1314 = vmul.f32 %v1282, %v834
      %v1315 = vmul.f32 %v1283, %v835
      %v1316 = vmul.f32 %v1284, %v836
      %v1317 = vmul.f32 %v1285, %v837
      %v1318 = vmul.f32 %v1286, %v838
      %v1319 = vmul.f32 %v1287, %v839
      %v1320 = vmul.f32 %v1288, %v840
      %v1321 = vmul.f32 %v1289, %v841
      %v1322 = vmul.f32 %v1290, %v842
      %v1323 = vmul.f32 %v1291, %v843
      %v1324 = vmul.f32 %v1292, %v844
      %v1325 = vmul.f32 %v1293, %v845
      %v1326 = vmul.f32 %v1294, %v846
      %v1327 = vmul.f32 %v1295, %v847
      %v1328 = vmul.f32 %v1296, %v848
      %v1329 = vadd.f32 %v1297, -0.001682827
      %v1330 = vadd.f32 %v1298, -0.001682827
      %v1331 = vadd.f32 %v1299, -0.001682827
      %v1332 = vadd.f32 %v1300, -0.001682827
      %v1333 = vadd.f32 %v1301, -0.001682827
      %v1334 = vadd.f32 %v1302, -0.001682827
      %v1335 = vadd.f32 %v1303, -0.001682827
      %v1336 = vadd.f32 %v1304, -0.001682827
      %v1337 = vadd.f32 %v1305, -0.001682827
      %v1338 = vadd.f32 %v1306, -0.001682827
      %v1339 = vadd.f32 %v1307, -0.001682827
      %v1340 = vadd.f32 %v1308, -0.001682827
      %v1341 = vadd.f32 %v1309, -0.001682827
      %v1342 = vadd.f32 %v1310, -0.001682827
      %v1343 = vadd.f32 %v1311, -0.001682827
      %v1344 = vadd.f32 %v1312, -0.001682827
      %v1345 = vadd.f32 %v1313, -0.001682827
      %v1346 = vadd.f32 %v1314, -0.001682827
      %v1347 = vadd.f32 %v1315, -0.001682827
      %v1348 = vadd.f32 %v1316, -0.001682827
      %v1349 = vadd.f32 %v1317, -0.001682827
      %v1350 = vadd.f32 %v1318, -0.001682827
      %v1351 = vadd.f32 %v1319, -0.001682827
      %v1352 = vadd.f32 %v1320, -0.001682827
      %v1353 = vadd.f32 %v1321, -0.001682827
      %v1354 = vadd.f32 %v1322, -0.001682827
      %v1355 = vadd.f32 %v1323, -0.001682827
      %v1356 = vadd.f32 %v1324, -0.001682827
      %v1357 = vadd.f32 %v1325, -0.001682827
      %v1358 = vadd.f32 %v1326, -0.001682827
      %v1359 = vadd.f32 %v1327, -0.001682827
      %v1360 = vadd.f32 %v1328, -0.001682827
      %v1361 = vmul.f32 %v1329, %v817
      %v1362 = vmul.f32 %v1330, %v818
      %v1363 = vmul.f32 %v1331, %v819
      %v1364 = vmul.f32 %v1332, %v820
      %v1365 = vmul.f32 %v1333, %v821
      %v1366 = vmul.f32 %v1334, %v822
      %v1367 = vmul.f32 %v1335, %v823
      %v1368 = vmul.f32 %v1336, %v824
      %v1369 = vmul.f32 %v1337, %v825
      %v1370 = vmul.f32 %v1338, %v826
      %v1371 = vmul.f32 %v1339, %v827
      %v1372 = vmul.f32 %v1340, %v828
      %v1373 = vmul.f32 %v1341, %v829
      %v1374 = vmul.f32 %v1342, %v830
      %v1375 = vmul.f32 %v1343, %v831
      %v1376 = vmul.f32 %v1344, %v832
      %v1377 = vmul.f32 %v1345, %v833
      %v1378 = vmul.f32 %v1346, %v834
      %v1379 = vmul.f32 %v1347, %v835
      %v1380 = vmul.f32 %v1348, %v836
      %v1381 = vmul.f32 %v1349, %v837
      %v1382 = vmul.f32 %v1350, %v838
      %v1383 = vmul.f32 %v1351, %v839
      %v1384 = vmul.f32 %v1352, %v840
      %v1385 = vmul.f32 %v1353, %v841
      %v1386 = vmul.f32 %v1354, %v842
      %v1387 = vmul.f32 %v1355, %v843
      %v1388 = vmul.f32 %v1356, %v844
      %v1389 = vmul.f32 %v1357, %v845
      %v1390 = vmul.f32 %v1358, %v846
      %v1391 = vmul.f32 %v1359, %v847
      %v1392 = vmul.f32 %v1360, %v848
      %v1393 = vadd.f32 %v1361, -0.0073733293
      %v1394 = vadd.f32 %v1362, -0.0073733293
      %v1395 = vadd.f32 %v1363, -0.0073733293
      %v1396 = vadd.f32 %v1364, -0.0073733293
      %v1397 = vadd.f32 %v1365, -0.0073733293
      %v1398 = vadd.f32 %v1366, -0.0073733293
      %v1399 = vadd.f32 %v1367, -0.0073733293
      %v1400 = vadd.f32 %v1368, -0.0073733293
      %v1401 = vadd.f32 %v1369, -0.0073733293
      %v1402 = vadd.f32 %v1370, -0.0073733293
      %v1403 = vadd.f32 %v1371, -0.0073733293
      %v1404 = vadd.f32 %v1372, -0.0073733293
      %v1405 = vadd.f32 %v1373, -0.0073733293
      %v1406 = vadd.f32 %v1374, -0.0073733293
      %v1407 = vadd.f32 %v1375, -0.0073733293
      %v1408 = vadd.f32 %v1376, -0.0073733293
      %v1409 = vadd.f32 %v1377, -0.0073733293
      %v1410 = vadd.f32 %v1378, -0.0073733293
      %v1411 = vadd.f32 %v1379, -0.0073733293
      %v1412 = vadd.f32 %v1380, -0.0073733293
      %v1413 = vadd.f32 %v1381, -0.0073733293
      %v1414 = vadd.f32 %v1382, -0.0073733293
      %v1415 = vadd.f32 %v1383, -0.0073733293
      %v1416 = vadd.f32 %v1384, -0.0073733293
      %v1417 = vadd.f32 %v1385, -0.0073733293
      %v1418 = vadd.f32 %v1386, -0.0073733293
      %v1419 = vadd.f32 %v1387, -0.0073733293
      %v1420 = vadd.f32 %v1388, -0.0073733293
      %v1421 = vadd.f32 %v1389, -0.0073733293
      %v1422 = vadd.f32 %v1390, -0.0073733293
      %v1423 = vadd.f32 %v1391, -0.0073733293
      %v1424 = vadd.f32 %v1392, -0.0073733293
      %v1425 = vmul.f32 %v1393, %v817
      %v1426 = vmul.f32 %v1394, %v818
      %v1427 = vmul.f32 %v1395, %v819
      %v1428 = vmul.f32 %v1396, %v820
      %v1429 = vmul.f32 %v1397, %v821
      %v1430 = vmul.f32 %v1398, %v822
      %v1431 = vmul.f32 %v1399, %v823
      %v1432 = vmul.f32 %v1400, %v824
      %v1433 = vmul.f32 %v1401, %v825
      %v1434 = vmul.f32 %v1402, %v826
      %v1435 = vmul.f32 %v1403, %v827
      %v1436 = vmul.f32 %v1404, %v828
      %v1437 = vmul.f32 %v1405, %v829
      %v1438 = vmul.f32 %v1406, %v830
      %v1439 = vmul.f32 %v1407, %v831
      %v1440 = vmul.f32 %v1408, %v832
      %v1441 = vmul.f32 %v1409, %v833
      %v1442 = vmul.f32 %v1410, %v834
      %v1443 = vmul.f32 %v1411, %v835
      %v1444 = vmul.f32 %v1412, %v836
      %v1445 = vmul.f32 %v1413, %v837
      %v1446 = vmul.f32 %v1414, %v838
      %v1447 = vmul.f32 %v1415, %v839
      %v1448 = vmul.f32 %v1416, %v840
      %v1449 = vmul.f32 %v1417, %v841
      %v1450 = vmul.f32 %v1418, %v842
      %v1451 = vmul.f32 %v1419, %v843
      %v1452 = vmul.f32 %v1420, %v844
      %v1453 = vmul.f32 %v1421, %v845
      %v1454 = vmul.f32 %v1422, %v846
      %v1455 = vmul.f32 %v1423, %v847
      %v1456 = vmul.f32 %v1424, %v848
      %v1457 = vadd.f32 %v1425, -0.014264739
      %v1458 = vadd.f32 %v1426, -0.014264739
      %v1459 = vadd.f32 %v1427, -0.014264739
      %v1460 = vadd.f32 %v1428, -0.014264739
      %v1461 = vadd.f32 %v1429, -0.014264739
      %v1462 = vadd.f32 %v1430, -0.014264739
      %v1463 = vadd.f32 %v1431, -0.014264739
      %v1464 = vadd.f32 %v1432, -0.014264739
      %v1465 = vadd.f32 %v1433, -0.014264739
      %v1466 = vadd.f32 %v1434, -0.014264739
      %v1467 = vadd.f32 %v1435, -0.014264739
      %v1468 = vadd.f32 %v1436, -0.014264739
      %v1469 = vadd.f32 %v1437, -0.014264739
      %v1470 = vadd.f32 %v1438, -0.014264739
      %v1471 = vadd.f32 %v1439, -0.014264739
      %v1472 = vadd.f32 %v1440, -0.014264739
      %v1473 = vadd.f32 %v1441, -0.014264739
      %v1474 = vadd.f32 %v1442, -0.014264739
      %v1475 = vadd.f32 %v1443, -0.014264739
      %v1476 = vadd.f32 %v1444, -0.014264739
      %v1477 = vadd.f32 %v1445, -0.014264739
      %v1478 = vadd.f32 %v1446, -0.014264739
      %v1479 = vadd.f32 %v1447, -0.014264739
      %v1480 = vadd.f32 %v1448, -0.014264739
      %v1481 = vadd.f32 %v1449, -0.014264739
      %v1482 = vadd.f32 %v1450, -0.014264739
      %v1483 = vadd.f32 %v1451, -0.014264739
      %v1484 = vadd.f32 %v1452, -0.014264739
      %v1485 = vadd.f32 %v1453, -0.014264739
      %v1486 = vadd.f32 %v1454, -0.014264739
      %v1487 = vadd.f32 %v1455, -0.014264739
      %v1488 = vadd.f32 %v1456, -0.014264739
      %v1489 = vrcp.pop %v1457
      %v1490 = vrcp.pop %v1458
      %v1491 = vrcp.pop %v1459
      %v1492 = vrcp.pop %v1460
      %v1493 = vrcp.pop %v1461
      %v1494 = vrcp.pop %v1462
      %v1495 = vrcp.pop %v1463
      %v1496 = vrcp.pop %v1464
      %v1497 = vrcp.pop %v1465
      %v1498 = vrcp.pop %v1466
      %v1499 = vrcp.pop %v1467
      %v1500 = vrcp.pop %v1468
      %v1501 = vrcp.pop %v1469
      %v1502 = vrcp.pop %v1470
      %v1503 = vrcp.pop %v1471
      %v1504 = vrcp.pop %v1472
      %v1505 = vrcp.pop %v1473
      %v1506 = vrcp.pop %v1474
      %v1507 = vrcp.pop %v1475
      %v1508 = vrcp.pop %v1476
      %v1509 = vrcp.pop %v1477
      %v1510 = vrcp.pop %v1478
      %v1511 = vrcp.pop %v1479
      %v1512 = vrcp.pop %v1480
      %v1513 = vrcp.pop %v1481
      %v1514 = vrcp.pop %v1482
      %v1515 = vrcp.pop %v1483
      %v1516 = vrcp.pop %v1484
      %v1517 = vrcp.pop %v1485
      %v1518 = vrcp.pop %v1486
      %v1519 = vrcp.pop %v1487
      %v1520 = vrcp.pop %v1488
      %v1521 = vmul.f32 %v1457, %v1489
      %v1522 = vmul.f32 %v1458, %v1490
      %v1523 = vmul.f32 %v1459, %v1491
      %v1524 = vmul.f32 %v1460, %v1492
      %v1525 = vmul.f32 %v1461, %v1493
      %v1526 = vmul.f32 %v1462, %v1494
      %v1527 = vmul.f32 %v1463, %v1495
      %v1528 = vmul.f32 %v1464, %v1496
      %v1529 = vmul.f32 %v1465, %v1497
      %v1530 = vmul.f32 %v1466, %v1498
      %v1531 = vmul.f32 %v1467, %v1499
      %v1532 = vmul.f32 %v1468, %v1500
      %v1533 = vmul.f32 %v1469, %v1501
      %v1534 = vmul.f32 %v1470, %v1502
      %v1535 = vmul.f32 %v1471, %v1503
      %v1536 = vmul.f32 %v1472, %v1504
      %v1537 = vmul.f32 %v1473, %v1505
      %v1538 = vmul.f32 %v1474, %v1506
      %v1539 = vmul.f32 %v1475, %v1507
      %v1540 = vmul.f32 %v1476, %v1508
      %v1541 = vmul.f32 %v1477, %v1509
      %v1542 = vmul.f32 %v1478, %v1510
      %v1543 = vmul.f32 %v1479, %v1511
      %v1544 = vmul.f32 %v1480, %v1512
      %v1545 = vmul.f32 %v1481, %v1513
      %v1546 = vmul.f32 %v1482, %v1514
      %v1547 = vmul.f32 %v1483, %v1515
      %v1548 = vmul.f32 %v1484, %v1516
      %v1549 = vmul.f32 %v1485, %v1517
      %v1550 = vmul.f32 %v1486, %v1518
      %v1551 = vmul.f32 %v1487, %v1519
      %v1552 = vmul.f32 %v1488, %v1520
      %v1553 = vsub.f32 2.0, %v1521
      %v1554 = vsub.f32 2.0, %v1522
      %v1555 = vsub.f32 2.0, %v1523
      %v1556 = vsub.f32 2.0, %v1524
      %v1557 = vsub.f32 2.0, %v1525
      %v1558 = vsub.f32 2.0, %v1526
      %v1559 = vsub.f32 2.0, %v1527
      %v1560 = vsub.f32 2.0, %v1528
      %v1561 = vsub.f32 2.0, %v1529
      %v1562 = vsub.f32 2.0, %v1530
      %v1563 = vsub.f32 2.0, %v1531
      %v1564 = vsub.f32 2.0, %v1532
      %v1565 = vsub.f32 2.0, %v1533
      %v1566 = vsub.f32 2.0, %v1534
      %v1567 = vsub.f32 2.0, %v1535
      %v1568 = vsub.f32 2.0, %v1536
      %v1569 = vsub.f32 2.0, %v1537
      %v1570 = vsub.f32 2.0, %v1538
      %v1571 = vsub.f32 2.0, %v1539
      %v1572 = vsub.f32 2.0, %v1540
      %v1573 = vsub.f32 2.0, %v1541
      %v1574 = vsub.f32 2.0, %v1542
      %v1575 = vsub.f32 2.0, %v1543
      %v1576 = vsub.f32 2.0, %v1544
      %v1577 = vsub.f32 2.0, %v1545
      %v1578 = vsub.f32 2.0, %v1546
      %v1579 = vsub.f32 2.0, %v1547
      %v1580 = vsub.f32 2.0, %v1548
      %v1581 = vsub.f32 2.0, %v1549
      %v1582 = vsub.f32 2.0, %v1550
      %v1583 = vsub.f32 2.0, %v1551
      %v1584 = vsub.f32 2.0, %v1552
      %v1585 = vmul.f32 %v1489, %v1553
      %v1586 = vmul.f32 %v1490, %v1554
      %v1587 = vmul.f32 %v1491, %v1555
      %v1588 = vmul.f32 %v1492, %v1556
      %v1589 = vmul.f32 %v1493, %v1557
      %v1590 = vmul.f32 %v1494, %v1558
      %v1591 = vmul.f32 %v1495, %v1559
      %v1592 = vmul.f32 %v1496, %v1560
      %v1593 = vmul.f32 %v1497, %v1561
      %v1594 = vmul.f32 %v1498, %v1562
      %v1595 = vmul.f32 %v1499, %v1563
      %v1596 = vmul.f32 %v1500, %v1564
      %v1597 = vmul.f32 %v1501, %v1565
      %v1598 = vmul.f32 %v1502, %v1566
      %v1599 = vmul.f32 %v1503, %v1567
      %v1600 = vmul.f32 %v1504, %v1568
      %v1601 = vmul.f32 %v1505, %v1569
      %v1602 = vmul.f32 %v1506, %v1570
      %v1603 = vmul.f32 %v1507, %v1571
      %v1604 = vmul.f32 %v1508, %v1572
      %v1605 = vmul.f32 %v1509, %v1573
      %v1606 = vmul.f32 %v1510, %v1574
      %v1607 = vmul.f32 %v1511, %v1575
      %v1608 = vmul.f32 %v1512, %v1576
      %v1609 = vmul.f32 %v1513, %v1577
      %v1610 = vmul.f32 %v1514, %v1578
      %v1611 = vmul.f32 %v1515, %v1579
      %v1612 = vmul.f32 %v1516, %v1580
      %v1613 = vmul.f32 %v1517, %v1581
      %v1614 = vmul.f32 %v1518, %v1582
      %v1615 = vmul.f32 %v1519, %v1583
      %v1616 = vmul.f32 %v1520, %v1584
      %v1617 = vmul.f32 %v785, %v1201
      %v1618 = vmul.f32 %v786, %v1202
      %v1619 = vmul.f32 %v787, %v1203
      %v1620 = vmul.f32 %v788, %v1204
      %v1621 = vmul.f32 %v789, %v1205
      %v1622 = vmul.f32 %v790, %v1206
      %v1623 = vmul.f32 %v791, %v1207
      %v1624 = vmul.f32 %v792, %v1208
      %v1625 = vmul.f32 %v793, %v1209
      %v1626 = vmul.f32 %v794, %v1210
      %v1627 = vmul.f32 %v795, %v1211
      %v1628 = vmul.f32 %v796, %v1212
      %v1629 = vmul.f32 %v797, %v1213
      %v1630 = vmul.f32 %v798, %v1214
      %v1631 = vmul.f32 %v799, %v1215
      %v1632 = vmul.f32 %v800, %v1216
      %v1633 = vmul.f32 %v801, %v1217
      %v1634 = vmul.f32 %v802, %v1218
      %v1635 = vmul.f32 %v803, %v1219
      %v1636 = vmul.f32 %v804, %v1220
      %v1637 = vmul.f32 %v805, %v1221
      %v1638 = vmul.f32 %v806, %v1222
      %v1639 = vmul.f32 %v807, %v1223
      %v1640 = vmul.f32 %v808, %v1224
      %v1641 = vmul.f32 %v809, %v1225
      %v1642 = vmul.f32 %v810, %v1226
      %v1643 = vmul.f32 %v811, %v1227
      %v1644 = vmul.f32 %v812, %v1228
      %v1645 = vmul.f32 %v813, %v1229
      %v1646 = vmul.f32 %v814, %v1230
      %v1647 = vmul.f32 %v815, %v1231
      %v1648 = vmul.f32 %v816, %v1232
      %v1649 = vmul.f32 %v1617, %v1585
      %v1650 = vmul.f32 %v1618, %v1586
      %v1651 = vmul.f32 %v1619, %v1587
      %v1652 = vmul.f32 %v1620, %v1588
      %v1653 = vmul.f32 %v1621, %v1589
      %v1654 = vmul.f32 %v1622, %v1590
      %v1655 = vmul.f32 %v1623, %v1591
      %v1656 = vmul.f32 %v1624, %v1592
      %v1657 = vmul.f32 %v1625, %v1593
      %v1658 = vmul.f32 %v1626, %v1594
      %v1659 = vmul.f32 %v1627, %v1595
      %v1660 = vmul.f32 %v1628, %v1596
      %v1661 = vmul.f32 %v1629, %v1597
      %v1662 = vmul.f32 %v1630, %v1598
      %v1663 = vmul.f32 %v1631, %v1599
      %v1664 = vmul.f32 %v1632, %v1600
      %v1665 = vmul.f32 %v1633, %v1601
      %v1666 = vmul.f32 %v1634, %v1602
      %v1667 = vmul.f32 %v1635, %v1603
      %v1668 = vmul.f32 %v1636, %v1604
      %v1669 = vmul.f32 %v1637, %v1605
      %v1670 = vmul.f32 %v1638, %v1606
      %v1671 = vmul.f32 %v1639, %v1607
      %v1672 = vmul.f32 %v1640, %v1608
      %v1673 = vmul.f32 %v1641, %v1609
      %v1674 = vmul.f32 %v1642, %v1610
      %v1675 = vmul.f32 %v1643, %v1611
      %v1676 = vmul.f32 %v1644, %v1612
      %v1677 = vmul.f32 %v1645, %v1613
      %v1678 = vmul.f32 %v1646, %v1614
      %v1679 = vmul.f32 %v1647, %v1615
      %v1680 = vmul.f32 %v1648, %v1616
      %v1681 = vmax.f32 %v1649, -1.0
      %v1682 = vmax.f32 %v1650, -1.0
      %v1683 = vmax.f32 %v1651, -1.0
      %v1684 = vmax.f32 %v1652, -1.0
      %v1685 = vmax.f32 %v1653, -1.0
      %v1686 = vmax.f32 %v1654, -1.0
      %v1687 = vmax.f32 %v1655, -1.0
      %v1688 = vmax.f32 %v1656, -1.0
      %v1689 = vmax.f32 %v1657, -1.0
      %v1690 = vmax.f32 %v1658, -1.0
      %v1691 = vmax.f32 %v1659, -1.0
      %v1692 = vmax.f32 %v1660, -1.0
      %v1693 = vmax.f32 %v1661, -1.0
      %v1694 = vmax.f32 %v1662, -1.0
      %v1695 = vmax.f32 %v1663, -1.0
      %v1696 = vmax.f32 %v1664, -1.0
      %v1697 = vmax.f32 %v1665, -1.0
      %v1698 = vmax.f32 %v1666, -1.0
      %v1699 = vmax.f32 %v1667, -1.0
      %v1700 = vmax.f32 %v1668, -1.0
      %v1701 = vmax.f32 %v1669, -1.0
      %v1702 = vmax.f32 %v1670, -1.0
      %v1703 = vmax.f32 %v1671, -1.0
      %v1704 = vmax.f32 %v1672, -1.0
      %v1705 = vmax.f32 %v1673, -1.0
      %v1706 = vmax.f32 %v1674, -1.0
      %v1707 = vmax.f32 %v1675, -1.0
      %v1708 = vmax.f32 %v1676, -1.0
      %v1709 = vmax.f32 %v1677, -1.0
      %v1710 = vmax.f32 %v1678, -1.0
      %v1711 = vmax.f32 %v1679, -1.0
      %v1712 = vmax.f32 %v1680, -1.0
      %v1713 = vmin.f32 %v1681, 1.0
      %v1714 = vmin.f32 %v1682, 1.0
      %v1715 = vmin.f32 %v1683, 1.0
      %v1716 = vmin.f32 %v1684, 1.0
      %v1717 = vmin.f32 %v1685, 1.0
      %v1718 = vmin.f32 %v1686, 1.0
      %v1719 = vmin.f32 %v1687, 1.0
      %v1720 = vmin.f32 %v1688, 1.0
      %v1721 = vmin.f32 %v1689, 1.0
      %v1722 = vmin.f32 %v1690, 1.0
      %v1723 = vmin.f32 %v1691, 1.0
      %v1724 = vmin.f32 %v1692, 1.0
      %v1725 = vmin.f32 %v1693, 1.0
      %v1726 = vmin.f32 %v1694, 1.0
      %v1727 = vmin.f32 %v1695, 1.0
      %v1728 = vmin.f32 %v1696, 1.0
      %v1729 = vmin.f32 %v1697, 1.0
      %v1730 = vmin.f32 %v1698, 1.0
      %v1731 = vmin.f32 %v1699, 1.0
      %v1732 = vmin.f32 %v1700, 1.0
      %v1733 = vmin.f32 %v1701, 1.0
      %v1734 = vmin.f32 %v1702, 1.0
      %v1735 = vmin.f32 %v1703, 1.0
      %v1736 = vmin.f32 %v1704, 1.0
      %v1737 = vmin.f32 %v1705, 1.0
      %v1738 = vmin.f32 %v1706, 1.0
      %v1739 = vmin.f32 %v1707, 1.0
      %v1740 = vmin.f32 %v1708, 1.0
      %v1741 = vmin.f32 %v1709, 1.0
      %v1742 = vmin.f32 %v1710, 1.0
      %v1743 = vmin.f32 %v1711, 1.0
      %v1744 = vmin.f32 %v1712, 1.0
      %v1745 = vadd.f32 %v1713, 1.0
      %v1746 = vadd.f32 %v1714, 1.0
      %v1747 = vadd.f32 %v1715, 1.0
      %v1748 = vadd.f32 %v1716, 1.0
      %v1749 = vadd.f32 %v1717, 1.0
      %v1750 = vadd.f32 %v1718, 1.0
      %v1751 = vadd.f32 %v1719, 1.0
      %v1752 = vadd.f32 %v1720, 1.0
      %v1753 = vadd.f32 %v1721, 1.0
      %v1754 = vadd.f32 %v1722, 1.0
      %v1755 = vadd.f32 %v1723, 1.0
      %v1756 = vadd.f32 %v1724, 1.0
      %v1757 = vadd.f32 %v1725, 1.0
      %v1758 = vadd.f32 %v1726, 1.0
      %v1759 = vadd.f32 %v1727, 1.0
      %v1760 = vadd.f32 %v1728, 1.0
      %v1761 = vadd.f32 %v1729, 1.0
      %v1762 = vadd.f32 %v1730, 1.0
      %v1763 = vadd.f32 %v1731, 1.0
      %v1764 = vadd.f32 %v1732, 1.0
      %v1765 = vadd.f32 %v1733, 1.0
      %v1766 = vadd.f32 %v1734, 1.0
      %v1767 = vadd.f32 %v1735, 1.0
      %v1768 = vadd.f32 %v1736, 1.0
      %v1769 = vadd.f32 %v1737, 1.0
      %v1770 = vadd.f32 %v1738, 1.0
      %v1771 = vadd.f32 %v1739, 1.0
      %v1772 = vadd.f32 %v1740, 1.0
      %v1773 = vadd.f32 %v1741, 1.0
      %v1774 = vadd.f32 %v1742, 1.0
      %v1775 = vadd.f32 %v1743, 1.0
      %v1776 = vadd.f32 %v1744, 1.0
      %v1777 = vmul.f32 %v689, %v1745
      %v1778 = vmul.f32 %v690, %v1746
      %v1779 = vmul.f32 %v691, %v1747
      %v1780 = vmul.f32 %v692, %v1748
      %v1781 = vmul.f32 %v693, %v1749
      %v1782 = vmul.f32 %v694, %v1750
      %v1783 = vmul.f32 %v695, %v1751
      %v1784 = vmul.f32 %v696, %v1752
      %v1785 = vmul.f32 %v697, %v1753
      %v1786 = vmul.f32 %v698, %v1754
      %v1787 = vmul.f32 %v699, %v1755
      %v1788 = vmul.f32 %v700, %v1756
      %v1789 = vmul.f32 %v701, %v1757
      %v1790 = vmul.f32 %v702, %v1758
      %v1791 = vmul.f32 %v703, %v1759
      %v1792 = vmul.f32 %v704, %v1760
      %v1793 = vmul.f32 %v705, %v1761
      %v1794 = vmul.f32 %v706, %v1762
      %v1795 = vmul.f32 %v707, %v1763
      %v1796 = vmul.f32 %v708, %v1764
      %v1797 = vmul.f32 %v709, %v1765
      %v1798 = vmul.f32 %v710, %v1766
      %v1799 = vmul.f32 %v711, %v1767
      %v1800 = vmul.f32 %v712, %v1768
      %v1801 = vmul.f32 %v713, %v1769
      %v1802 = vmul.f32 %v714, %v1770
      %v1803 = vmul.f32 %v715, %v1771
      %v1804 = vmul.f32 %v716, %v1772
      %v1805 = vmul.f32 %v717, %v1773
      %v1806 = vmul.f32 %v718, %v1774
      %v1807 = vmul.f32 %v719, %v1775
      %v1808 = vmul.f32 %v720, %v1776
      %v1809 = vld [vmem:[%s6] sm:$0xff]
      %v1810 = vld [vmem:[%s6 + $0x8] sm:$0xff]
      %v1811 = vld [vmem:[%s6 + $0x10] sm:$0xff]
      %v1812 = vld [vmem:[%s6 + $0x18] sm:$0xff]
      %v1813 = vld [vmem:[%s6 + $0x20] sm:$0xff]
      %v1814 = vld [vmem:[%s6 + $0x28] sm:$0xff]
      %v1815 = vld [vmem:[%s6 + $0x30] sm:$0xff]
      %v1816 = vld [vmem:[%s6 + $0x38] sm:$0xff]
      %v1817 = vld [vmem:[%s6 + $0x40] sm:$0xff]
      %v1818 = vld [vmem:[%s6 + $0x48] sm:$0xff]
      %v1819 = vld [vmem:[%s6 + $0x50] sm:$0xff]
      %v1820 = vld [vmem:[%s6 + $0x58] sm:$0xff]
      %v1821 = vld [vmem:[%s6 + $0x60] sm:$0xff]
      %v1822 = vld [vmem:[%s6 + $0x68] sm:$0xff]
      %v1823 = vld [vmem:[%s6 + $0x70] sm:$0xff]
      %v1824 = vld [vmem:[%s6 + $0x78] sm:$0xff]
      %v1825 = vld [vmem:[%s7] sm:$0x1]
      %v1827 = vlaneseq
      %v1828 = vshrl.u32 %v1827, 7
      %v1829 = vsub.s32 0, %v1828
      %v1830 = vrot.slane %v1825, %v1829
      %1832 = vmatprep.subr.mxu0 0.0
      %1833 = vmatpush1.msra.mxu0 %v1824
      %1834 = vmatprep.subr.mxu0 0.0
      %1835 = vmatpush1.msra.mxu0 %v1823
      %1836 = vmatprep.subr.mxu0 0.0
      %1837 = vmatpush1.msra.mxu0 %v1822
      %1838 = vmatprep.subr.mxu0 0.0
      %1839 = vmatpush1.msra.mxu0 %v1821
      %1840 = vmatprep.subr.mxu0 0.0
      %1841 = vmatpush1.msra.mxu0 %v1820
      %1842 = vmatprep.subr.mxu0 0.0
      %1843 = vmatpush1.msra.mxu0 %v1819
      %1844 = vmatprep.subr.mxu0 0.0
      %1845 = vmatpush1.msra.mxu0 %v1818
      %1846 = vmatprep.subr.mxu0 0.0
      %1847 = vmatpush1.msra.mxu0 %v1817
      %1848 = vmatprep.subr.mxu0 0.0
      %1849 = vmatpush1.msra.mxu0 %v1816
      %1850 = vmatprep.subr.mxu0 0.0
      %1851 = vmatpush1.msra.mxu0 %v1815
      %1852 = vmatprep.subr.mxu0 0.0
      %1853 = vmatpush1.msra.mxu0 %v1814
      %1854 = vmatprep.subr.mxu0 0.0
      %1855 = vmatpush1.msra.mxu0 %v1813
      %1856 = vmatprep.subr.mxu0 0.0
      %1857 = vmatpush1.msra.mxu0 %v1812
      %1858 = vmatprep.subr.mxu0 0.0
      %1859 = vmatpush1.msra.mxu0 %v1811
      %1860 = vmatprep.subr.mxu0 0.0
      %1861 = vmatpush1.msra.mxu0 %v1810
      %1862 = vmatprep.subr.mxu0 0.0
      %1863 = vmatpush1.msra.mxu0 %v1809
      %1864 = vmatprep.subr.mxu0 0.0
      %1865 = vmatpush2.msra.mxu0 0.0
      %1866 = vmatprep.subr.mxu0 0.0
      %1867 = vmatpush2.msra.mxu0 0.0
      %1868 = vmatprep.subr.mxu0 0.0
      %1869 = vmatpush2.msra.mxu0 0.0
      %1870 = vmatprep.subr.mxu0 0.0
      %1871 = vmatpush2.msra.mxu0 0.0
      %1872 = vmatprep.subr.mxu0 0.0
      %1873 = vmatpush2.msra.mxu0 0.0
      %1874 = vmatprep.subr.mxu0 0.0
      %1875 = vmatpush2.msra.mxu0 0.0
      %1876 = vmatprep.subr.mxu0 0.0
      %1877 = vmatpush2.msra.mxu0 0.0
      %1878 = vmatprep.subr.mxu0 0.0
      %1879 = vmatpush2.msra.mxu0 0.0
      %1880 = vmatprep.subr.mxu0 0.0
      %1881 = vmatpush2.msra.mxu0 0.0
      %1882 = vmatprep.subr.mxu0 0.0
      %1883 = vmatpush2.msra.mxu0 0.0
      %1884 = vmatprep.subr.mxu0 0.0
      %1885 = vmatpush2.msra.mxu0 0.0
      %1886 = vmatprep.subr.mxu0 0.0
      %1887 = vmatpush2.msra.mxu0 0.0
      %1888 = vmatprep.subr.mxu0 0.0
      %1889 = vmatpush2.msra.mxu0 0.0
      %1890 = vmatprep.subr.mxu0 0.0
      %1891 = vmatpush2.msra.mxu0 0.0
      %1892 = vmatprep.subr.mxu0 0.0
      %1893 = vmatpush2.msra.mxu0 0.0
      %1894 = vmatprep.subr.mxu0 0.0
      %1895 = vmatpush2.msra.mxu0 0.0
      %1896 = vmatprep.mubr.f32.mxu0 0.0
      %1897 = vmatmul.mubr.f32.gmra.mxu0 %v1777
      %v1898 = vpop.f32.mrf.mxu0
      %v1899 = vadd.f32 %v1830, %v1898
      %v1900 = vpop.f32.mrf.mxu0
      %1901 = vmatprep.mubr.f32.mxu0 0.0
      %1902 = vmatmul.mubr.f32.gmra.mxu0 %v1778
      %v1903 = vpop.f32.mrf.mxu0
      %v1904 = vadd.f32 %v1830, %v1903
      %v1905 = vpop.f32.mrf.mxu0
      %1906 = vmatprep.mubr.f32.mxu0 0.0
      %1907 = vmatmul.mubr.f32.gmra.mxu0 %v1779
      %v1908 = vpop.f32.mrf.mxu0
      %v1909 = vadd.f32 %v1830, %v1908
      %v1910 = vpop.f32.mrf.mxu0
      %1911 = vmatprep.mubr.f32.mxu0 0.0
      %1912 = vmatmul.mubr.f32.gmra.mxu0 %v1780
      %v1913 = vpop.f32.mrf.mxu0
      %v1914 = vadd.f32 %v1830, %v1913
      %v1915 = vpop.f32.mrf.mxu0
      %1916 = vmatprep.mubr.f32.mxu0 0.0
      %1917 = vmatmul.mubr.f32.gmra.mxu0 %v1781
      %v1918 = vpop.f32.mrf.mxu0
      %v1919 = vadd.f32 %v1830, %v1918
      %v1920 = vpop.f32.mrf.mxu0
      %1921 = vmatprep.mubr.f32.mxu0 0.0
      %1922 = vmatmul.mubr.f32.gmra.mxu0 %v1782
      %v1923 = vpop.f32.mrf.mxu0
      %v1924 = vadd.f32 %v1830, %v1923
      %v1925 = vpop.f32.mrf.mxu0
      %1926 = vmatprep.mubr.f32.mxu0 0.0
      %1927 = vmatmul.mubr.f32.gmra.mxu0 %v1783
      %v1928 = vpop.f32.mrf.mxu0
      %v1929 = vadd.f32 %v1830, %v1928
      %v1930 = vpop.f32.mrf.mxu0
      %1931 = vmatprep.mubr.f32.mxu0 0.0
      %1932 = vmatmul.mubr.f32.gmra.mxu0 %v1784
      %v1933 = vpop.f32.mrf.mxu0
      %v1934 = vadd.f32 %v1830, %v1933
      %v1935 = vpop.f32.mrf.mxu0
      %1936 = vmatprep.mubr.f32.mxu0 0.0
      %1937 = vmatmul.mubr.f32.gmra.mxu0 %v1785
      %v1938 = vpop.f32.mrf.mxu0
      %v1939 = vadd.f32 %v1830, %v1938
      %v1940 = vpop.f32.mrf.mxu0
      %1941 = vmatprep.mubr.f32.mxu0 0.0
      %1942 = vmatmul.mubr.f32.gmra.mxu0 %v1786
      %v1943 = vpop.f32.mrf.mxu0
      %v1944 = vadd.f32 %v1830, %v1943
      %v1945 = vpop.f32.mrf.mxu0
      %1946 = vmatprep.mubr.f32.mxu0 0.0
      %1947 = vmatmul.mubr.f32.gmra.mxu0 %v1787
      %v1948 = vpop.f32.mrf.mxu0
      %v1949 = vadd.f32 %v1830, %v1948
      %v1950 = vpop.f32.mrf.mxu0
      %1951 = vmatprep.mubr.f32.mxu0 0.0
      %1952 = vmatmul.mubr.f32.gmra.mxu0 %v1788
      %v1953 = vpop.f32.mrf.mxu0
      %v1954 = vadd.f32 %v1830, %v1953
      %v1955 = vpop.f32.mrf.mxu0
      %1956 = vmatprep.mubr.f32.mxu0 0.0
      %1957 = vmatmul.mubr.f32.gmra.mxu0 %v1789
      %v1958 = vpop.f32.mrf.mxu0
      %v1959 = vadd.f32 %v1830, %v1958
      %v1960 = vpop.f32.mrf.mxu0
      %1961 = vmatprep.mubr.f32.mxu0 0.0
      %1962 = vmatmul.mubr.f32.gmra.mxu0 %v1790
      %v1963 = vpop.f32.mrf.mxu0
      %v1964 = vadd.f32 %v1830, %v1963
      %v1965 = vpop.f32.mrf.mxu0
      %1966 = vmatprep.mubr.f32.mxu0 0.0
      %1967 = vmatmul.mubr.f32.gmra.mxu0 %v1791
      %v1968 = vpop.f32.mrf.mxu0
      %v1969 = vadd.f32 %v1830, %v1968
      %v1970 = vpop.f32.mrf.mxu0
      %1971 = vmatprep.mubr.f32.mxu0 0.0
      %1972 = vmatmul.mubr.f32.gmra.mxu0 %v1792
      %v1973 = vpop.f32.mrf.mxu0
      %v1974 = vadd.f32 %v1830, %v1973
      %v1975 = vpop.f32.mrf.mxu0
      %1976 = vmatprep.mubr.f32.mxu0 0.0
      %1977 = vmatmul.mubr.f32.gmra.mxu0 %v1793
      %v1978 = vpop.f32.mrf.mxu0
      %v1979 = vadd.f32 %v1830, %v1978
      %v1980 = vpop.f32.mrf.mxu0
      %1981 = vmatprep.mubr.f32.mxu0 0.0
      %1982 = vmatmul.mubr.f32.gmra.mxu0 %v1794
      %v1983 = vpop.f32.mrf.mxu0
      %v1984 = vadd.f32 %v1830, %v1983
      %v1985 = vpop.f32.mrf.mxu0
      %1986 = vmatprep.mubr.f32.mxu0 0.0
      %1987 = vmatmul.mubr.f32.gmra.mxu0 %v1795
      %v1988 = vpop.f32.mrf.mxu0
      %v1989 = vadd.f32 %v1830, %v1988
      %v1990 = vpop.f32.mrf.mxu0
      %1991 = vmatprep.mubr.f32.mxu0 0.0
      %1992 = vmatmul.mubr.f32.gmra.mxu0 %v1796
      %v1993 = vpop.f32.mrf.mxu0
      %v1994 = vadd.f32 %v1830, %v1993
      %v1995 = vpop.f32.mrf.mxu0
      %1996 = vmatprep.mubr.f32.mxu0 0.0
      %1997 = vmatmul.mubr.f32.gmra.mxu0 %v1797
      %v1998 = vpop.f32.mrf.mxu0
      %v1999 = vadd.f32 %v1830, %v1998
      %v2000 = vpop.f32.mrf.mxu0
      %2001 = vmatprep.mubr.f32.mxu0 0.0
      %2002 = vmatmul.mubr.f32.gmra.mxu0 %v1798
      %v2003 = vpop.f32.mrf.mxu0
      %v2004 = vadd.f32 %v1830, %v2003
      %v2005 = vpop.f32.mrf.mxu0
      %2006 = vmatprep.mubr.f32.mxu0 0.0
      %2007 = vmatmul.mubr.f32.gmra.mxu0 %v1799
      %v2008 = vpop.f32.mrf.mxu0
      %v2009 = vadd.f32 %v1830, %v2008
      %v2010 = vpop.f32.mrf.mxu0
      %2011 = vmatprep.mubr.f32.mxu0 0.0
      %2012 = vmatmul.mubr.f32.gmra.mxu0 %v1800
      %v2013 = vpop.f32.mrf.mxu0
      %v2014 = vadd.f32 %v1830, %v2013
      %v2015 = vpop.f32.mrf.mxu0
      %2016 = vmatprep.mubr.f32.mxu0 0.0
      %2017 = vmatmul.mubr.f32.gmra.mxu0 %v1801
      %v2018 = vpop.f32.mrf.mxu0
      %v2019 = vadd.f32 %v1830, %v2018
      %v2020 = vpop.f32.mrf.mxu0
      %2021 = vmatprep.mubr.f32.mxu0 0.0
      %2022 = vmatmul.mubr.f32.gmra.mxu0 %v1802
      %v2023 = vpop.f32.mrf.mxu0
      %v2024 = vadd.f32 %v1830, %v2023
      %v2025 = vpop.f32.mrf.mxu0
      %2026 = vmatprep.mubr.f32.mxu0 0.0
      %2027 = vmatmul.mubr.f32.gmra.mxu0 %v1803
      %v2028 = vpop.f32.mrf.mxu0
      %v2029 = vadd.f32 %v1830, %v2028
      %v2030 = vpop.f32.mrf.mxu0
      %2031 = vmatprep.mubr.f32.mxu0 0.0
      %2032 = vmatmul.mubr.f32.gmra.mxu0 %v1804
      %v2033 = vpop.f32.mrf.mxu0
      %v2034 = vadd.f32 %v1830, %v2033
      %v2035 = vpop.f32.mrf.mxu0
      %2036 = vmatprep.mubr.f32.mxu0 0.0
      %2037 = vmatmul.mubr.f32.gmra.mxu0 %v1805
      %v2038 = vpop.f32.mrf.mxu0
      %v2039 = vadd.f32 %v1830, %v2038
      %v2040 = vpop.f32.mrf.mxu0
      %2041 = vmatprep.mubr.f32.mxu0 0.0
      %2042 = vmatmul.mubr.f32.gmra.mxu0 %v1806
      %v2043 = vpop.f32.mrf.mxu0
      %v2044 = vadd.f32 %v1830, %v2043
      %v2045 = vpop.f32.mrf.mxu0
      %2046 = vmatprep.mubr.f32.mxu0 0.0
      %2047 = vmatmul.mubr.f32.gmra.mxu0 %v1807
      %v2048 = vpop.f32.mrf.mxu0
      %v2049 = vadd.f32 %v1830, %v2048
      %v2050 = vpop.f32.mrf.mxu0
      %2051 = vmatprep.mubr.f32.mxu0 0.0
      %2052 = vmatmul.mubr.f32.gmra.mxu0 %v1808
      %v2053 = vpop.f32.mrf.mxu0
      %v2054 = vadd.f32 %v1830, %v2053
      %v2055 = vpop.f32.mrf.mxu0
      %2056 = vdwg.mxu0
      %v2057 = vld [vmem:[%s323] sm:$0xff]
      %v2058 = vld [vmem:[%s323 + $0x8] sm:$0xff]
      %v2059 = vld [vmem:[%s323 + $0x10] sm:$0xff]
      %v2060 = vld [vmem:[%s323 + $0x18] sm:$0xff]
      %v2061 = vld [vmem:[%s323 + $0x20] sm:$0xff]
      %v2062 = vld [vmem:[%s323 + $0x28] sm:$0xff]
      %v2063 = vld [vmem:[%s323 + $0x30] sm:$0xff]
      %v2064 = vld [vmem:[%s323 + $0x38] sm:$0xff]
      %v2065 = vld [vmem:[%s323 + $0x40] sm:$0xff]
      %v2066 = vld [vmem:[%s323 + $0x48] sm:$0xff]
      %v2067 = vld [vmem:[%s323 + $0x50] sm:$0xff]
      %v2068 = vld [vmem:[%s323 + $0x58] sm:$0xff]
      %v2069 = vld [vmem:[%s323 + $0x60] sm:$0xff]
      %v2070 = vld [vmem:[%s323 + $0x68] sm:$0xff]
      %v2071 = vld [vmem:[%s323 + $0x70] sm:$0xff]
      %v2072 = vld [vmem:[%s323 + $0x78] sm:$0xff]
      %v2073 = vld [vmem:[%s323 + $0x80] sm:$0xff]
      %v2074 = vld [vmem:[%s323 + $0x88] sm:$0xff]
      %v2075 = vld [vmem:[%s323 + $0x90] sm:$0xff]
      %v2076 = vld [vmem:[%s323 + $0x98] sm:$0xff]
      %v2077 = vld [vmem:[%s323 + $0xa0] sm:$0xff]
      %v2078 = vld [vmem:[%s323 + $0xa8] sm:$0xff]
      %v2079 = vld [vmem:[%s323 + $0xb0] sm:$0xff]
      %v2080 = vld [vmem:[%s323 + $0xb8] sm:$0xff]
      %v2081 = vld [vmem:[%s323 + $0xc0] sm:$0xff]
      %v2082 = vld [vmem:[%s323 + $0xc8] sm:$0xff]
      %v2083 = vld [vmem:[%s323 + $0xd0] sm:$0xff]
      %v2084 = vld [vmem:[%s323 + $0xd8] sm:$0xff]
      %v2085 = vld [vmem:[%s323 + $0xe0] sm:$0xff]
      %v2086 = vld [vmem:[%s323 + $0xe8] sm:$0xff]
      %v2087 = vld [vmem:[%s323 + $0xf0] sm:$0xff]
      %v2088 = vld [vmem:[%s323 + $0xf8] sm:$0xff]
      %v2089 = vadd.f32 %v2057, %v1899
      %v2090 = vadd.f32 %v2058, %v1904
      %v2091 = vadd.f32 %v2059, %v1909
      %v2092 = vadd.f32 %v2060, %v1914
      %v2093 = vadd.f32 %v2061, %v1919
      %v2094 = vadd.f32 %v2062, %v1924
      %v2095 = vadd.f32 %v2063, %v1929
      %v2096 = vadd.f32 %v2064, %v1934
      %v2097 = vadd.f32 %v2065, %v1939
      %v2098 = vadd.f32 %v2066, %v1944
      %v2099 = vadd.f32 %v2067, %v1949
      %v2100 = vadd.f32 %v2068, %v1954
      %v2101 = vadd.f32 %v2069, %v1959
      %v2102 = vadd.f32 %v2070, %v1964
      %v2103 = vadd.f32 %v2071, %v1969
      %v2104 = vadd.f32 %v2072, %v1974
      %v2105 = vadd.f32 %v2073, %v1979
      %v2106 = vadd.f32 %v2074, %v1984
      %v2107 = vadd.f32 %v2075, %v1989
      %v2108 = vadd.f32 %v2076, %v1994
      %v2109 = vadd.f32 %v2077, %v1999
      %v2110 = vadd.f32 %v2078, %v2004
      %v2111 = vadd.f32 %v2079, %v2009
      %v2112 = vadd.f32 %v2080, %v2014
      %v2113 = vadd.f32 %v2081, %v2019
      %v2114 = vadd.f32 %v2082, %v2024
      %v2115 = vadd.f32 %v2083, %v2029
      %v2116 = vadd.f32 %v2084, %v2034
      %v2117 = vadd.f32 %v2085, %v2039
      %v2118 = vadd.f32 %v2086, %v2044
      %v2119 = vadd.f32 %v2087, %v2049
      %v2120 = vadd.f32 %v2088, %v2054
      %2121 = vst [vmem:[%s329] sm:$0xff] %v2089
      %2122 = vst [vmem:[%s329 + $0x8] sm:$0xff] %v2090
      %2123 = vst [vmem:[%s329 + $0x10] sm:$0xff] %v2091
      %2124 = vst [vmem:[%s329 + $0x18] sm:$0xff] %v2092
      %2125 = vst [vmem:[%s329 + $0x20] sm:$0xff] %v2093
      %2126 = vst [vmem:[%s329 + $0x28] sm:$0xff] %v2094
      %2127 = vst [vmem:[%s329 + $0x30] sm:$0xff] %v2095
      %2128 = vst [vmem:[%s329 + $0x38] sm:$0xff] %v2096
      %2129 = vst [vmem:[%s329 + $0x40] sm:$0xff] %v2097
      %2130 = vst [vmem:[%s329 + $0x48] sm:$0xff] %v2098
      %2131 = vst [vmem:[%s329 + $0x50] sm:$0xff] %v2099
      %2132 = vst [vmem:[%s329 + $0x58] sm:$0xff] %v2100
      %2133 = vst [vmem:[%s329 + $0x60] sm:$0xff] %v2101
      %2134 = vst [vmem:[%s329 + $0x68] sm:$0xff] %v2102
      %2135 = vst [vmem:[%s329 + $0x70] sm:$0xff] %v2103
      %2136 = vst [vmem:[%s329 + $0x78] sm:$0xff] %v2104
      %2137 = vst [vmem:[%s329 + $0x80] sm:$0xff] %v2105
      %2138 = vst [vmem:[%s329 + $0x88] sm:$0xff] %v2106
      %2139 = vst [vmem:[%s329 + $0x90] sm:$0xff] %v2107
      %2140 = vst [vmem:[%s329 + $0x98] sm:$0xff] %v2108
      %2141 = vst [vmem:[%s329 + $0xa0] sm:$0xff] %v2109
      %2142 = vst [vmem:[%s329 + $0xa8] sm:$0xff] %v2110
      %2143 = vst [vmem:[%s329 + $0xb0] sm:$0xff] %v2111
      %2144 = vst [vmem:[%s329 + $0xb8] sm:$0xff] %v2112
      %2145 = vst [vmem:[%s329 + $0xc0] sm:$0xff] %v2113
      %2146 = vst [vmem:[%s329 + $0xc8] sm:$0xff] %v2114
      %2147 = vst [vmem:[%s329 + $0xd0] sm:$0xff] %v2115
      %2148 = vst [vmem:[%s329 + $0xd8] sm:$0xff] %v2116
      %2149 = vst [vmem:[%s329 + $0xe0] sm:$0xff] %v2117
      %2150 = vst [vmem:[%s329 + $0xe8] sm:$0xff] %v2118
      %2151 = vst [vmem:[%s329 + $0xf0] sm:$0xff] %v2119
      %2152 = vst [vmem:[%s329 + $0xf8] sm:$0xff] %v2120
      %s2153 = smul.u32 32, %s19
      %p2154 = scmp.lt.s32.totalorder %s2153, 63
      %s2155 = scalar_select %p2154, %s2153, 63
      %s2156 = smul.addr %s2155, 8
      %s2157 = scalar_lea.vmem %s8, %s2156
      // Predicated region
      $region53: #{convnext_block.3} parent=51 // pred_check
        %p2158 = pneg %p215
      $region54: #{convnext_block.3} parent=51 // pred_check_branch
        %2160 = sbr.rel (%p2158) target = $region56
      $region55: #{convnext_block.3} parent=51 // pred_region
        %s2161 = smul.u32 32, %s19
      $region56: #{convnext_block.3} parent=51 // pred_fallthru
        _
    $region52: #{convnext_block.3} parent=5 // pred_fallthru
      _
    %p2162 = scmp.le.s32.totalorder 2, %s14
    // Predicated region
    $region57: #{convnext_block.3} parent=5 // pred_check
      %p2163 = pneg %p2162
    $region58: #{convnext_block.3} parent=5 // pred_check_branch
      %2165 = sbr.rel (%p2163) target = $region60
    $region59: #{convnext_block.3} parent=5 // pred_region
      %s2166 = ssub.s32 %s14, 2
      // Predicated region
      $region61: #{convnext_block.3} parent=59 // pred_check
        %p2167 = pneg %p221
      $region62: #{convnext_block.3} parent=59 // pred_check_branch
        %2169 = sbr.rel (%p2167) target = $region64
      $region63: #{convnext_block.3} parent=59 // pred_region
        %s2170 = smul.u32 32, %s20
        %p2171 = scmp.lt.s32.totalorder %s2170, 63
        %s2172 = scalar_select %p2171, %s2170, 63
        %s2173 = smul.addr %s2172, 8
        %s2174 = scalar_lea.vmem %s8, %s2173
      $region64: #{convnext_block.3} parent=59 // pred_fallthru
        _
    $region60: #{convnext_block.3} parent=5 // pred_fallthru
      _
  $region6: #{convnext_block.3} parent=0 // loop_footer
    %s18 = sadd.s32 1, %s14
  $region7: #{convnext_block.3} parent=0 // loop_footer_branch
    %13 = sbr.rel target = $region3
  $region8: #{convnext_block.3} parent=0 // loop_exit
    _

// kernel: convnext_block.2
$region0: #{convnext_block.2}
  #allocation0 [shape = 'u32[]', space=smem, size = 0x4, offset = 0x4, fixed_abs, tag = 'smem constant byte address 0x4 - core index']
  #allocation1 [shape = 'u32[144,128]{1,0:T(1,128)}', space=vmem, size = 0x12000, scoped, tag = 'internal scratch']
  #allocation2 [shape = 'f32[22,22,128]{2,1,0:T(8,128)}', space=vmem, size = 0x42000, scoped, tag = 'scratch operand']
  %s0 = inlined_call_operand.vmem [shape: f32[2,16,16,128], index: 0, kind: input, shape index: {}]
  %s1 = inlined_call_operand.vmem [shape: f32[7,7,128], index: 1, kind: input, shape index: {}]
  %s2 = inlined_call_operand.vmem [shape: f32[2,16,16,128], index: 2, kind: output, shape index: {}]
  %s3 = sld [smem:[#allocation0]]
  $region41: #{convnext_block.2} parent=0
    _
  %s5 = ssub.s32 1, %s3
  %s6 = scalar_select 0, %s5, %s3
  loop: start=0, step=1, limit=4
  $region2: #{convnext_block.2} parent=0 // loop_pre_header
    _
  $region3: #{convnext_block.2} parent=0 // loop_header
    %s8 = sphi 0, %s12
    %p9 = scmp.ge.s32.totalorder %s8, 4
    %s15 = sphi 0, %s27
    %s16 = sphi 0, %s23
    %s17 = sphi 0, %s15
    %s18 = sphi 0, %s16
    %s19 = sphi 0, %s17
    %s20 = sphi 0, %s18
    %s32 = sphi 0, %s34
    %s35 = sphi 0, %s32
    %s36 = sphi 0, %s35
    %s52 = sphi 0, %s36
    %s58 = sphi 0, %s60
    %s61 = sphi 0, %s58
    %s62 = sphi 0, %s61
    %s78 = sphi 0, %s62
    %s86 = sphi 0, %s88
    %s89 = sphi 0, %s86
    %s90 = sphi 0, %s89
    %s106 = sphi 0, %s90
  $region4: #{convnext_block.2} parent=0 // loop_header_branch
    %11 = sbr.rel (%p9) target = $region8
  $region5: #{convnext_block.2} parent=0 // loop_body
    %s13 = ssub.s32 %s8, 1
    %s14 = ssub.s32 %s8, 2
    %s21 = sadd.s32 1, %s16
    %p22 = scmp.ge.s32.totalorder %s21, 1
    %s23 = scalar_select %p22, 0, %s21
    %s24 = sadd.s32 1, %s15
    %s25 = scalar_select %p22, %s24, %s15
    %p26 = scmp.ge.s32.totalorder %s25, 2
    %s27 = scalar_select %p26, 0, %s25
    %s28 = ssub.s32 %s15, %s27
    %s29 = ssub.s32 %s16, %s23
    %s30 = sor.u32 %s28, %s29
    %p31 = scmp.eq.s32.totalorder %s30, 0
    %s33 = sadd.s32 %s32, 1
    %s34 = scalar_select %p31, %s32, %s33
    %p37 = pneg %p31
    %p38 = scmp.eq.s32.totalorder %s8, 1
    %p39 = por %p37, %p38
    %p40 = scmp.ne.s32.totalorder %s32, %s35
    %p41 = scmp.eq.s32.totalorder %s8, 0
    %p42 = por %p40, %p41
    %p43 = scmp.ne.s32.totalorder %s32, %s35
    %p44 = scmp.eq.s32.totalorder %s13, 1
    %p45 = por %p43, %p44
    %p46 = scmp.ne.s32.totalorder %s35, %s36
    %p47 = scmp.eq.s32.totalorder %s13, 0
    %p48 = por %p46, %p47
    %p49 = scmp.ne.s32.totalorder %s35, %s36
    %p50 = scmp.eq.s32.totalorder %s14, 1
    %p51 = por %p49, %p50
    %p53 = scmp.ne.s32.totalorder %s36, %s52
    %p54 = scmp.eq.s32.totalorder %s14, 0
    %p55 = por %p53, %p54
    %s56 = ssub.s32 %s16, %s23
    %p57 = scmp.eq.s32.totalorder %s56, 0
    %s59 = sadd.s32 %s58, 1
    %s60 = scalar_select %p57, %s58, %s59
    %p63 = pneg %p57
    %p64 = scmp.eq.s32.totalorder %s8, 1
    %p65 = por %p63, %p64
    %p66 = scmp.ne.s32.totalorder %s58, %s61
    %p67 = scmp.eq.s32.totalorder %s8, 0
    %p68 = por %p66, %p67
    %p69 = scmp.ne.s32.totalorder %s58, %s61
    %p70 = scmp.eq.s32.totalorder %s13, 1
    %p71 = por %p69, %p70
    %p72 = scmp.ne.s32.totalorder %s61, %s62
    %p73 = scmp.eq.s32.totalorder %s13, 0
    %p74 = por %p72, %p73
    %p75 = scmp.ne.s32.totalorder %s61, %s62
    %p76 = scmp.eq.s32.totalorder %s14, 1
    %p77 = por %p75, %p76
    %p79 = scmp.ne.s32.totalorder %s62, %s78
    %p80 = scmp.eq.s32.totalorder %s14, 0
    %p81 = por %p79, %p80
    %s82 = ssub.s32 %s15, %s27
    %s83 = ssub.s32 %s16, %s23
    %s84 = sor.u32 %s82, %s83
    %p85 = scmp.eq.s32.totalorder %s84, 0
    %s87 = sadd.s32 %s86, 1
    %s88 = scalar_select %p85, %s86, %s87
    %p91 = pneg %p85
    %p92 = scmp.eq.s32.totalorder %s8, 1
    %p93 = por %p91, %p92
    %p94 = scmp.ne.s32.totalorder %s86, %s89
    %p95 = scmp.eq.s32.totalorder %s8, 0
    %p96 = por %p94, %p95
    %p97 = scmp.ne.s32.totalorder %s86, %s89
    %p98 = scmp.eq.s32.totalorder %s13, 1
    %p99 = por %p97, %p98
    %p100 = scmp.ne.s32.totalorder %s89, %s90
    %p101 = scmp.eq.s32.totalorder %s13, 0
    %p102 = por %p100, %p101
    %p103 = scmp.ne.s32.totalorder %s89, %s90
    %p104 = scmp.eq.s32.totalorder %s14, 1
    %p105 = por %p103, %p104
    %p107 = scmp.ne.s32.totalorder %s90, %s106
    %p108 = scmp.eq.s32.totalorder %s14, 0
    %p109 = por %p107, %p108
    %p110 = scmp.le.s32.totalorder 1, %s8
    %p111 = scmp.lt.s32.totalorder %s8, 3
    %p112 = pnand %p110, %p111
    %p113 = pneg %p112
    // Predicated region
    $region9: #{convnext_block.2} parent=5 // pred_check
      _
    $region10: #{convnext_block.2} parent=5 // pred_check_branch
      %115 = sbr.rel (%p112) target = $region12
    $region11: #{convnext_block.2} parent=5 // pred_region
      %s116 = ssub.s32 %s8, 1
      // Predicated region
      $region13: #{convnext_block.2} parent=11 // pred_check
        %p117 = pneg %p74
      $region14: #{convnext_block.2} parent=11 // pred_check_branch
        %119 = sbr.rel (%p117) target = $region16
      $region15: #{convnext_block.2} parent=11 // pred_region
        %p120 = scmp.lt.s32.totalorder %s18, 0
        %s121 = scalar_select %p120, %s18, 0
        %s122 = smul.addr %s121, 8
        %s123 = scalar_lea.vmem %s1, %s122
      $region16: #{convnext_block.2} parent=11 // pred_fallthru
        _
    $region12: #{convnext_block.2} parent=5 // pred_fallthru
      _
    %p124 = scmp.lt.s32.totalorder %s8, 2
    // Predicated region
    $region17: #{convnext_block.2} parent=5 // pred_check
      %p125 = pneg %p124
    $region18: #{convnext_block.2} parent=5 // pred_check_branch
      %127 = sbr.rel (%p125) target = $region20
    $region19: #{convnext_block.2} parent=5 // pred_region
      // Predicated region
      $region21: #{convnext_block.2} parent=19 // pred_check
        %p128 = pneg %p42
      $region22: #{convnext_block.2} parent=19 // pred_check_branch
        %130 = sbr.rel (%p128) target = $region24
      $region23: #{convnext_block.2} parent=19 // pred_region
        %p131 = scmp.lt.s32.totalorder %s15, 1
        %s132 = scalar_select %p131, %s15, 1
        %p133 = scmp.lt.s32.totalorder %s16, 0
        %s134 = scalar_select %p133, %s16, 0
        %s135 = smul.addr %s132, 32
        %s136 = sadd.s32 %s134, %s135
        %s137 = smul.addr %s136, 8
        %s138 = scalar_lea.vmem %s0, %s137
      $region24: #{convnext_block.2} parent=19 // pred_fallthru
        _
    $region20: #{convnext_block.2} parent=5 // pred_fallthru
      _
    %p139 = scmp.le.s32.totalorder 1, %s8
    %p140 = scmp.lt.s32.totalorder %s8, 3
    %p141 = pnand %p139, %p140
    %p142 = pneg %p141
    // Predicated region
    $region25: #{convnext_block.2} parent=5 // pred_check
      _
    $region26: #{convnext_block.2} parent=5 // pred_check_branch
      %144 = sbr.rel (%p141) target = $region28
    $region27: #{convnext_block.2} parent=5 // pred_region
      %s145 = ssub.s32 %s8, 1
      %p146 = scmp.lt.s32.totalorder %s17, 1
      %s147 = scalar_select %p146, %s17, 1
      %p148 = scmp.lt.s32.totalorder %s18, 0
      %s149 = scalar_select %p148, %s18, 0
      %s150 = smul.addr %s147, 32
      %s151 = sadd.s32 %s149, %s150
      %s152 = smul.addr %s151, 8
      %s153 = scalar_lea.vmem %s0, %s152
      %p154 = pneg %p48
      %p155 = pneg %p45
      %p156 = scmp.lt.s32.totalorder %s18, 0
      %s157 = scalar_select %p156, %s18, 0
      %s158 = smul.addr %s157, 8
      %s159 = scalar_lea.vmem %s1, %s158
      %p160 = pneg %p74
      %p161 = pneg %p71
      %p162 = pneg %p102
      %p163 = pneg %p99
      %p164 = scmp.lt.s32.totalorder %s17, 1
      %s165 = scalar_select %p164, %s17, 1
      %p166 = scmp.lt.s32.totalorder %s18, 0
      %s167 = scalar_select %p166, %s18, 0
      %s168 = smul.addr %s165, 32
      %s169 = sadd.s32 %s167, %s168
      %s170 = smul.addr %s169, 8
      %s171 = scalar_lea.vmem %s2, %s170
      %p172 = scmp.lt.s32.totalorder %s17, 1
      %s173 = scalar_select %p172, %s17, 1
      %p174 = scmp.lt.s32.totalorder %s18, 0
      %s175 = scalar_select %p174, %s18, 0
      %s176 = smul.addr %s173, 32
      %s177 = sadd.s32 %s175, %s176
      %s178 = smul.addr %s177, 8
      %s179 = scalar_lea.vmem %s0, %s178
      %p180 = scmp.lt.s32.totalorder %s18, 0
      %s181 = scalar_select %p180, %s18, 0
      %s182 = smul.addr %s181, 8
      %s183 = scalar_lea.vmem %s1, %s182
      %p184 = scmp.lt.s32.totalorder %s17, 1
      %s185 = scalar_select %p184, %s17, 1
      %p186 = scmp.lt.s32.totalorder %s18, 0
      %s187 = scalar_select %p186, %s18, 0
      %s188 = smul.addr %s185, 32
      %s189 = sadd.s32 %s187, %s188
      %s190 = smul.addr %s189, 8
      %s191 = scalar_lea.vmem %s2, %s190
      %192 = vst [vmem:[#allocation2] sm:$0xff] 0.0
      %193 = vst [vmem:[#allocation2 + $0x8] sm:$0xff] 0.0
      %194 = vst [vmem:[#allocation2 + $0x10] sm:$0x3f] 0.0
      %195 = vst [vmem:[#allocation2 + $0x18] sm:$0xff] 0.0
      %196 = vst [vmem:[#allocation2 + $0x20] sm:$0xff] 0.0
      %197 = vst [vmem:[#allocation2 + $0x28] sm:$0x3f] 0.0
      %198 = vst [vmem:[#allocation2 + $0x30] sm:$0xff] 0.0
      %199 = vst [vmem:[#allocation2 + $0x38] sm:$0xff] 0.0
      %200 = vst [vmem:[#allocation2 + $0x40] sm:$0x3f] 0.0
      %201 = vst [vmem:[#allocation2 + $0x48] sm:$0xff] 0.0
      %202 = vst [vmem:[#allocation2 + $0x50] sm:$0xff] 0.0
      %203 = vst [vmem:[#allocation2 + $0x58] sm:$0x3f] 0.0
      %204 = vst [vmem:[#allocation2 + $0x60] sm:$0xff] 0.0
      %205 = vst [vmem:[#allocation2 + $0x68] sm:$0xff] 0.0
      %206 = vst [vmem:[#allocation2 + $0x70] sm:$0x3f] 0.0
      %207 = vst [vmem:[#allocation2 + $0x78] sm:$0xff] 0.0
      %208 = vst [vmem:[#allocation2 + $0x80] sm:$0xff] 0.0
      %209 = vst [vmem:[#allocation2 + $0x88] sm:$0x3f] 0.0
      %210 = vst [vmem:[#allocation2 + $0x90] sm:$0xff] 0.0
      %211 = vst [vmem:[#allocation2 + $0x98] sm:$0xff] 0.0
      %212 = vst [vmem:[#allocation2 + $0xa0] sm:$0x3f] 0.0
      %213 = vst [vmem:[#allocation2 + $0xa8] sm:$0xff] 0.0
      %214 = vst [vmem:[#allocation2 + $0xb0] sm:$0xff] 0.0
      %215 = vst [vmem:[#allocation2 + $0xb8] sm:$0x3f] 0.0
      %216 = vst [vmem:[#allocation2 + $0xc0] sm:$0xff] 0.0
      %217 = vst [vmem:[#allocation2 + $0xc8] sm:$0xff] 0.0
      %218 = vst [vmem:[#allocation2 + $0xd0] sm:$0x3f] 0.0
      %219 = vst [vmem:[#allocation2 + $0xd8] sm:$0xff] 0.0
      %220 = vst [vmem:[#allocation2 + $0xe0] sm:$0xff] 0.0
      %221 = vst [vmem:[#allocation2 + $0xe8] sm:$0x3f] 0.0
      %222 = vst [vmem:[#allocation2 + $0xf0] sm:$0xff] 0.0
      %223 = vst [vmem:[#allocation2 + $0xf8] sm:$0xff] 0.0
      %224 = vst [vmem:[#allocation2 + $0x100] sm:$0x3f] 0.0
      %225 = vst [vmem:[#allocation2 + $0x108] sm:$0xff] 0.0
      %226 = vst [vmem:[#allocation2 + $0x110] sm:$0xff] 0.0
      %227 = vst [vmem:[#allocation2 + $0x118] sm:$0x3f] 0.0
      %228 = vst [vmem:[#allocation2 + $0x120] sm:$0xff] 0.0
      %229 = vst [vmem:[#allocation2 + $0x128] sm:$0xff] 0.0
      %230 = vst [vmem:[#allocation2 + $0x130] sm:$0x3f] 0.0
      %231 = vst [vmem:[#allocation2 + $0x138] sm:$0xff] 0.0
      %232 = vst [vmem:[#allocation2 + $0x140] sm:$0xff] 0.0
      %233 = vst [vmem:[#allocation2 + $0x148] sm:$0x3f] 0.0
      %234 = vst [vmem:[#allocation2 + $0x150] sm:$0xff] 0.0
      %235 = vst [vmem:[#allocation2 + $0x158] sm:$0xff] 0.0
      %236 = vst [vmem:[#allocation2 + $0x160] sm:$0x3f] 0.0
      %237 = vst [vmem:[#allocation2 + $0x168] sm:$0xff] 0.0
      %238 = vst [vmem:[#allocation2 + $0x170] sm:$0xff] 0.0
      %239 = vst [vmem:[#allocation2 + $0x178] sm:$0x3f] 0.0
      %240 = vst [vmem:[#allocation2 + $0x180] sm:$0xff] 0.0
      %241 = vst [vmem:[#allocation2 + $0x188] sm:$0xff] 0.0
      %242 = vst [vmem:[#allocation2 + $0x190] sm:$0x3f] 0.0
      %243 = vst [vmem:[#allocation2 + $0x198] sm:$0xff] 0.0
      %244 = vst [vmem:[#allocation2 + $0x1a0] sm:$0xff] 0.0
      %245 = vst [vmem:[#allocation2 + $0x1a8] sm:$0x3f] 0.0
      %246 = vst [vmem:[#allocation2 + $0x1b0] sm:$0xff] 0.0
      %247 = vst [vmem:[#allocation2 + $0x1b8] sm:$0xff] 0.0
      %248 = vst [vmem:[#allocation2 + $0x1c0] sm:$0x3f] 0.0
      %249 = vst [vmem:[#allocation2 + $0x1c8] sm:$0xff] 0.0
      %250 = vst [vmem:[#allocation2 + $0x1d0] sm:$0xff] 0.0
      %251 = vst [vmem:[#allocation2 + $0x1d8] sm:$0x3f] 0.0
      %252 = vst [vmem:[#allocation2 + $0x1e0] sm:$0xff] 0.0
      %253 = vst [vmem:[#allocation2 + $0x1e8] sm:$0xff] 0.0
      %254 = vst [vmem:[#allocation2 + $0x1f0] sm:$0x3f] 0.0
      %255 = vst [vmem:[#allocation2 + $0x1f8] sm:$0xff] 0.0
      %256 = vst [vmem:[#allocation2 + $0x200] sm:$0xff] 0.0
      %257 = vst [vmem:[#allocation2 + $0x208] sm:$0x3f] 0.0
      %v258 = vld [vmem:[%s179] sm:$0xff]
      %v259 = vld [vmem:[%s179 + $0x8] sm:$0xff]
      %v260 = vld [vmem:[%s179 + $0x10] sm:$0xff]
      %v261 = vld [vmem:[%s179 + $0x18] sm:$0xff]
      %v262 = vld [vmem:[%s179 + $0x20] sm:$0xff]
      %v263 = vld [vmem:[%s179 + $0x28] sm:$0xff]
      %v264 = vld [vmem:[%s179 + $0x30] sm:$0xff]
      %v265 = vld [vmem:[%s179 + $0x38] sm:$0xff]
      %v266 = vld [vmem:[%s179 + $0x40] sm:$0xff]
      %v267 = vld [vmem:[%s179 + $0x48] sm:$0xff]
      %v268 = vld [vmem:[%s179 + $0x50] sm:$0xff]
      %v269 = vld [vmem:[%s179 + $0x58] sm:$0xff]
      %v270 = vld [vmem:[%s179 + $0x60] sm:$0xff]
      %v271 = vld [vmem:[%s179 + $0x68] sm:$0xff]
      %v272 = vld [vmem:[%s179 + $0x70] sm:$0xff]
      %v273 = vld [vmem:[%s179 + $0x78] sm:$0xff]
      %v274 = vld [vmem:[%s179 + $0x80] sm:$0xff]
      %v275 = vld [vmem:[%s179 + $0x88] sm:$0xff]
      %v276 = vld [vmem:[%s179 + $0x90] sm:$0xff]
      %v277 = vld [vmem:[%s179 + $0x98] sm:$0xff]
      %v278 = vld [vmem:[%s179 + $0xa0] sm:$0xff]
      %v279 = vld [vmem:[%s179 + $0xa8] sm:$0xff]
      %v280 = vld [vmem:[%s179 + $0xb0] sm:$0xff]
      %v281 = vld [vmem:[%s179 + $0xb8] sm:$0xff]
      %v282 = vld [vmem:[%s179 + $0xc0] sm:$0xff]
      %v283 = vld [vmem:[%s179 + $0xc8] sm:$0xff]
      %v284 = vld [vmem:[%s179 + $0xd0] sm:$0xff]
      %v285 = vld [vmem:[%s179 + $0xd8] sm:$0xff]
      %v286 = vld [vmem:[%s179 + $0xe0] sm:$0xff]
      %v287 = vld [vmem:[%s179 + $0xe8] sm:$0xff]
      %v288 = vld [vmem:[%s179 + $0xf0] sm:$0xff]
      %v289 = vld [vmem:[%s179 + $0xf8] sm:$0xff]
      %s290 = scalar_lea.vmem [#allocation2], 72
      %291 = vst [vmem:[%s290 + $0x3] sm:$0xff] %v258
      %292 = vst [vmem:[%s290 + $0xb] sm:$0xff] %v259
      %293 = vst [vmem:[%s290 + $0x1b] sm:$0xff] %v260
      %294 = vst [vmem:[%s290 + $0x23] sm:$0xff] %v261
      %295 = vst [vmem:[%s290 + $0x33] sm:$0xff] %v262
      %296 = vst [vmem:[%s290 + $0x3b] sm:$0xff] %v263
      %297 = vst [vmem:[%s290 + $0x4b] sm:$0xff] %v264
      %298 = vst [vmem:[%s290 + $0x53] sm:$0xff] %v265
      %299 = vst [vmem:[%s290 + $0x63] sm:$0xff] %v266
      %300 = vst [vmem:[%s290 + $0x6b] sm:$0xff] %v267
      %301 = vst [vmem:[%s290 + $0x7b] sm:$0xff] %v268
      %302 = vst [vmem:[%s290 + $0x83] sm:$0xff] %v269
      %303 = vst [vmem:[%s290 + $0x93] sm:$0xff] %v270
      %304 = vst [vmem:[%s290 + $0x9b] sm:$0xff] %v271
      %305 = vst [vmem:[%s290 + $0xab] sm:$0xff] %v272
      %306 = vst [vmem:[%s290 + $0xb3] sm:$0xff] %v273
      %307 = vst [vmem:[%s290 + $0xc3] sm:$0xff] %v274
      %308 = vst [vmem:[%s290 + $0xcb] sm:$0xff] %v275
      %309 = vst [vmem:[%s290 + $0xdb] sm:$0xff] %v276
      %310 = vst [vmem:[%s290 + $0xe3] sm:$0xff] %v277
      %311 = vst [vmem:[%s290 + $0xf3] sm:$0xff] %v278
      %312 = vst [vmem:[%s290 + $0xfb] sm:$0xff] %v279
      %313 = vst [vmem:[%s290 + $0x10b] sm:$0xff] %v280
      %314 = vst [vmem:[%s290 + $0x113] sm:$0xff] %v281
      %315 = vst [vmem:[%s290 + $0x123] sm:$0xff] %v282
      %316 = vst [vmem:[%s290 + $0x12b] sm:$0xff] %v283
      %317 = vst [vmem:[%s290 + $0x13b] sm:$0xff] %v284
      %318 = vst [vmem:[%s290 + $0x143] sm:$0xff] %v285
      %319 = vst [vmem:[%s290 + $0x153] sm:$0xff] %v286
      %320 = vst [vmem:[%s290 + $0x15b] sm:$0xff] %v287
      %321 = vst [vmem:[%s290 + $0x16b] sm:$0xff] %v288
      %322 = vst [vmem:[%s290 + $0x173] sm:$0xff] %v289
      %v323 = vld [vmem:[%s183] sm:$0x7f]
      %v324 = vld [vmem:[%s183 + $0x8] sm:$0x7f]
      %v325 = vld [vmem:[%s183 + $0x10] sm:$0x7f]
      %v326 = vld [vmem:[%s183 + $0x18] sm:$0x7f]
      %v327 = vld [vmem:[%s183 + $0x20] sm:$0x7f]
      %v328 = vld [vmem:[%s183 + $0x28] sm:$0x7f]
      %v329 = vld [vmem:[%s183 + $0x30] sm:$0x7f]
      %v330 = vld [vmem:[#allocation2] sm:$0xff]
      %v331 = vld [vmem:[#allocation2 + $0x8] sm:$0xff]
      %v332 = vld [vmem:[#allocation2 + $0x18] sm:$0xff]
      %v333 = vld [vmem:[#allocation2 + $0x20] sm:$0xff]
      %v334 = vld [vmem:[#allocation2 + $0x30] sm:$0xff]
      %v335 = vld [vmem:[#allocation2 + $0x38] sm:$0xff]
      %v336 = vld [vmem:[#allocation2 + $0x48] sm:$0xff]
      %v337 = vld [vmem:[#allocation2 + $0x50] sm:$0xff]
      %v338 = vld [vmem:[#allocation2 + $0x60] sm:$0xff]
      %v339 = vld [vmem:[#allocation2 + $0x68] sm:$0xff]
      %v340 = vld [vmem:[#allocation2 + $0x78] sm:$0xff]
      %v341 = vld [vmem:[#allocation2 + $0x80] sm:$0xff]
      %v342 = vld [vmem:[#allocation2 + $0x90] sm:$0xff]
      %v343 = vld [vmem:[#allocation2 + $0x98] sm:$0xff]
      %v344 = vld [vmem:[#allocation2 + $0xa8] sm:$0xff]
      %v345 = vld [vmem:[#allocation2 + $0xb0] sm:$0xff]
      %v346 = vld [vmem:[#allocation2 + $0xc0] sm:$0xff]
      %v347 = vld [vmem:[#allocation2 + $0xc8] sm:$0xff]
      %v348 = vld [vmem:[#allocation2 + $0xd8] sm:$0xff]
      %v349 = vld [vmem:[#allocation2 + $0xe0] sm:$0xff]
      %v350 = vld [vmem:[#allocation2 + $0xf0] sm:$0xff]
      %v351 = vld [vmem:[#allocation2 + $0xf8] sm:$0xff]
      %v352 = vld [vmem:[#allocation2 + $0x108] sm:$0xff]
      %v353 = vld [vmem:[#allocation2 + $0x110] sm:$0xff]
      %v354 = vld [vmem:[#allocation2 + $0x120] sm:$0xff]
      %v355 = vld [vmem:[#allocation2 + $0x128] sm:$0xff]
      %v356 = vld [vmem:[#allocation2 + $0x138] sm:$0xff]
      %v357 = vld [vmem:[#allocation2 + $0x140] sm:$0xff]
      %v358 = vld [vmem:[#allocation2 + $0x150] sm:$0xff]
      %v359 = vld [vmem:[#allocation2 + $0x158] sm:$0xff]
      %v360 = vld [vmem:[#allocation2 + $0x168] sm:$0xff]
      %v361 = vld [vmem:[#allocation2 + $0x170] sm:$0xff]
      %v362 = vlaneseq
      %v363 = vshrl.u32 %v362, 7
      %v364 = vsub.s32 0, %v363
      %v365 = vrot.slane %v323, %v364
      %v366 = vmul.f32 %v330, %v365
      %v367 = vmul.f32 %v331, %v365
      %v368 = vmul.f32 %v332, %v365
      %v369 = vmul.f32 %v333, %v365
      %v370 = vmul.f32 %v334, %v365
      %v371 = vmul.f32 %v335, %v365
      %v372 = vmul.f32 %v336, %v365
      %v373 = vmul.f32 %v337, %v365
      %v374 = vmul.f32 %v338, %v365
      %v375 = vmul.f32 %v339, %v365
      %v376 = vmul.f32 %v340, %v365
      %v377 = vmul.f32 %v341, %v365
      %v378 = vmul.f32 %v342, %v365
      %v379 = vmul.f32 %v343, %v365
      %v380 = vmul.f32 %v344, %v365
      %v381 = vmul.f32 %v345, %v365
      %v382 = vmul.f32 %v346, %v365
      %v383 = vmul.f32 %v347, %v365
      %v384 = vmul.f32 %v348, %v365
      %v385 = vmul.f32 %v349, %v365
      %v386 = vmul.f32 %v350, %v365
      %v387 = vmul.f32 %v351, %v365
      %v388 = vmul.f32 %v352, %v365
      %v389 = vmul.f32 %v353, %v365
      %v390 = vmul.f32 %v354, %v365
      %v391 = vmul.f32 %v355, %v365
      %v392 = vmul.f32 %v356, %v365
      %v393 = vmul.f32 %v357, %v365
      %v394 = vmul.f32 %v358, %v365
      %v395 = vmul.f32 %v359, %v365
      %v396 = vmul.f32 %v360, %v365
      %v397 = vmul.f32 %v361, %v365
      %v398 = vadd.f32 %v366, 0.0
      %v399 = vadd.f32 %v367, 0.0
      %v400 = vadd.f32 %v368, 0.0
      %v401 = vadd.f32 %v369, 0.0
      %v402 = vadd.f32 %v370, 0.0
      %v403 = vadd.f32 %v371, 0.0
      %v404 = vadd.f32 %v372, 0.0
      %v405 = vadd.f32 %v373, 0.0
      %v406 = vadd.f32 %v374, 0.0
      %v407 = vadd.f32 %v375, 0.0
      %v408 = vadd.f32 %v376, 0.0
      %v409 = vadd.f32 %v377, 0.0
      %v410 = vadd.f32 %v378, 0.0
      %v411 = vadd.f32 %v379, 0.0
      %v412 = vadd.f32 %v380, 0.0
      %v413 = vadd.f32 %v381, 0.0
      %v414 = vadd.f32 %v382, 0.0
      %v415 = vadd.f32 %v383, 0.0
      %v416 = vadd.f32 %v384, 0.0
      %v417 = vadd.f32 %v385, 0.0
      %v418 = vadd.f32 %v386, 0.0
      %v419 = vadd.f32 %v387, 0.0
      %v420 = vadd.f32 %v388, 0.0
      %v421 = vadd.f32 %v389, 0.0
      %v422 = vadd.f32 %v390, 0.0
      %v423 = vadd.f32 %v391, 0.0
      %v424 = vadd.f32 %v392, 0.0
      %v425 = vadd.f32 %v393, 0.0
      %v426 = vadd.f32 %v394, 0.0
      %v427 = vadd.f32 %v395, 0.0
      %v428 = vadd.f32 %v396, 0.0
      %v429 = vadd.f32 %v397, 0.0
      %v430 = vld [vmem:[#allocation2 + $0x1] sm:$0xff]
      %v431 = vld [vmem:[#allocation2 + $0x9] sm:$0xff]
      %v432 = vld [vmem:[#allocation2 + $0x19] sm:$0xff]
      %v433 = vld [vmem:[#allocation2 + $0x21] sm:$0xff]
      %v434 = vld [vmem:[#allocation2 + $0x31] sm:$0xff]
      %v435 = vld [vmem:[#allocation2 + $0x39] sm:$0xff]
      %v436 = vld [vmem:[#allocation2 + $0x49] sm:$0xff]
      %v437 = vld [vmem:[#allocation2 + $0x51] sm:$0xff]
      %v438 = vld [vmem:[#allocation2 + $0x61] sm:$0xff]
      %v439 = vld [vmem:[#allocation2 + $0x69] sm:$0xff]
      %v440 = vld [vmem:[#allocation2 + $0x79] sm:$0xff]
      %v441 = vld [vmem:[#allocation2 + $0x81] sm:$0xff]
      %v442 = vld [vmem:[#allocation2 + $0x91] sm:$0xff]
      %v443 = vld [vmem:[#allocation2 + $0x99] sm:$0xff]
      %v444 = vld [vmem:[#allocation2 + $0xa9] sm:$0xff]
      %v445 = vld [vmem:[#allocation2 + $0xb1] sm:$0xff]
      %v446 = vld [vmem:[#allocation2 + $0xc1] sm:$0xff]
      %v447 = vld [vmem:[#allocation2 + $0xc9] sm:$0xff]
      %v448 = vld [vmem:[#allocation2 + $0xd9] sm:$0xff]
      %v449 = vld [vmem:[#allocation2 + $0xe1] sm:$0xff]
      %v450 = vld [vmem:[#allocation2 + $0xf1] sm:$0xff]
      %v451 = vld [vmem:[#allocation2 + $0xf9] sm:$0xff]
      %v452 = vld [vmem:[#allocation2 + $0x109] sm:$0xff]
      %v453 = vld [vmem:[#allocation2 + $0x111] sm:$0xff]
      %v454 = vld [vmem:[#allocation2 + $0x121] sm:$0xff]
      %v455 = vld [vmem:[#allocation2 + $0x129] sm:$0xff]
      %v456 = vld [vmem:[#allocation2 + $0x139] sm:$0xff]
      %v457 = vld [vmem:[#allocation2 + $0x141] sm:$0xff]
      %v458 = vld [vmem:[#allocation2 + $0x151] sm:$0xff]
      %v459 = vld [vmem:[#allocation2 + $0x159] sm:$0xff]
      %v460 = vld [vmem:[#allocation2 + $0x169] sm:$0xff]
      %v461 = vld [vmem:[#allocation2 + $0x171] sm:$0xff]
      %v462 = vlaneseq
      %v463 = vshrl.u32 %v462, 7
      %v464 = vsub.s32 1, %v463
      %v465 = vrot.slane %v323, %v464
      %v466 = vmul.f32 %v430, %v465
      %v467 = vmul.f32 %v431, %v465
      %v468 = vmul.f32 %v432, %v465
      %v469 = vmul.f32 %v433, %v465
      %v470 = vmul.f32 %v434, %v465
      %v471 = vmul.f32 %v435, %v465
      %v472 = vmul.f32 %v436, %v465
      %v473 = vmul.f32 %v437, %v465
      %v474 = vmul.f32 %v438, %v465
      %v475 = vmul.f32 %v439, %v465
      %v476 = vmul.f32 %v440, %v465
      %v477 = vmul.f32 %v441, %v465
      %v478 = vmul.f32 %v442, %v465
      %v479 = vmul.f32 %v443, %v465
      %v480 = vmul.f32 %v444, %v465
      %v481 = vmul.f32 %v445, %v465
      %v482 = vmul.f32 %v446, %v465
      %v483 = vmul.f32 %v447, %v465
      %v484 = vmul.f32 %v448, %v465
      %v485 = vmul.f32 %v449, %v465
      %v486 = vmul.f32 %v450, %v465
      %v487 = vmul.f32 %v451, %v465
      %v488 = vmul.f32 %v452, %v465
      %v489 = vmul.f32 %v453, %v465
      %v490 = vmul.f32 %v454, %v465
      %v491 = vmul.f32 %v455, %v465
      %v492 = vmul.f32 %v456, %v465
      %v493 = vmul.f32 %v457, %v465
      %v494 = vmul.f32 %v458, %v465
      %v495 = vmul.f32 %v459, %v465
      %v496 = vmul.f32 %v460, %v465
      %v497 = vmul.f32 %v461, %v465
      %v498 = vadd.f32 %v398, %v466
      %v499 = vadd.f32 %v399, %v467
      %v500 = vadd.f32 %v400, %v468
      %v501 = vadd.f32 %v401, %v469
      %v502 = vadd.f32 %v402, %v470
      %v503 = vadd.f32 %v403, %v471
      %v504 = vadd.f32 %v404, %v472
      %v505 = vadd.f32 %v405, %v473
      %v506 = vadd.f32 %v406, %v474
      %v507 = vadd.f32 %v407, %v475
      %v508 = vadd.f32 %v408, %v476
      %v509 = vadd.f32 %v409, %v477
      %v510 = vadd.f32 %v410, %v478
      %v511 = vadd.f32 %v411, %v479
      %v512 = vadd.f32 %v412, %v480
      %v513 = vadd.f32 %v413, %v481
      %v514 = vadd.f32 %v414, %v482
      %v515 = vadd.f32 %v415, %v483
      %v516 = vadd.f32 %v416, %v484
      %v517 = vadd.f32 %v417, %v485
      %v518 = vadd.f32 %v418, %v486
      %v519 = vadd.f32 %v419, %v487
      %v520 = vadd.f32 %v420, %v488
      %v521 = vadd.f32 %v421, %v489
      %v522 = vadd.f32 %v422, %v490
      %v523 = vadd.f32 %v423, %v491
      %v524 = vadd.f32 %v424, %v492
      %v525 = vadd.f32 %v425, %v493
      %v526 = vadd.f32 %v426, %v494
      %v527 = vadd.f32 %v427, %v495
      %v528 = vadd.f32 %v428, %v496
      %v529 = vadd.f32 %v429, %v497
      %v530 = vld [vmem:[#allocation2 + $0x2] sm:$0xff]
      %v531 = vld [vmem:[#allocation2 + $0xa] sm:$0xff]
      %v532 = vld [vmem:[#allocation2 + $0x1a] sm:$0xff]
      %v533 = vld [vmem:[#allocation2 + $0x22] sm:$0xff]
      %v534 = vld [vmem:[#allocation2 + $0x32] sm:$0xff]
      %v535 = vld [vmem:[#allocation2 + $0x3a] sm:$0xff]
      %v536 = vld [vmem:[#allocation2 + $0x4a] sm:$0xff]
      %v537 = vld [vmem:[#allocation2 + $0x52] sm:$0xff]
      %v538 = vld [vmem:[#allocation2 + $0x62] sm:$0xff]
      %v539 = vld [vmem:[#allocation2 + $0x6a] sm:$0xff]
      %v540 = vld [vmem:[#allocation2 + $0x7a] sm:$0xff]
      %v541 = vld [vmem:[#allocation2 + $0x82] sm:$0xff]
      %v542 = vld [vmem:[#allocation2 + $0x92] sm:$0xff]
      %v543 = vld [vmem:[#allocation2 + $0x9a] sm:$0xff]
      %v544 = vld [vmem:[#allocation2 + $0xaa] sm:$0xff]
      %v545 = vld [vmem:[#allocation2 + $0xb2] sm:$0xff]
      %v546 = vld [vmem:[#allocation2 + $0xc2] sm:$0xff]
      %v547 = vld [vmem:[#allocation2 + $0xca] sm:$0xff]
      %v548 = vld [vmem:[#allocation2 + $0xda] sm:$0xff]
      %v549 = vld [vmem:[#allocation2 + $0xe2] sm:$0xff]
      %v550 = vld [vmem:[#allocation2 + $0xf2] sm:$0xff]
      %v551 = vld [vmem:[#allocation2 + $0xfa] sm:$0xff]
      %v552 = vld [vmem:[#allocation2 + $0x10a] sm:$0xff]
      %v553 = vld [vmem:[#allocation2 + $0x112] sm:$0xff]
      %v554 = vld [vmem:[#allocation2 + $0x122] sm:$0xff]
      %v555 = vld [vmem:[#allocation2 + $0x12a] sm:$0xff]
      %v556 = vld [vmem:[#allocation2 + $0x13a] sm:$0xff]
      %v557 = vld [vmem:[#allocation2 + $0x142] sm:$0xff]
      %v558 = vld [vmem:[#allocation2 + $0x152] sm:$0xff]
      %v559 = vld [vmem:[#allocation2 + $0x15a] sm:$0xff]
      %v560 = vld [vmem:[#allocation2 + $0x16a] sm:$0xff]
      %v561 = vld [vmem:[#allocation2 + $0x172] sm:$0xff]
      %v562 = vlaneseq
      %v563 = vshrl.u32 %v562, 7
      %v564 = vsub.s32 2, %v563
      %v565 = vrot.slane %v323, %v564
      %v566 = vmul.f32 %v530, %v565
      %v567 = vmul.f32 %v531, %v565
      %v568 = vmul.f32 %v532, %v565
      %v569 = vmul.f32 %v533, %v565
      %v570 = vmul.f32 %v534, %v565
      %v571 = vmul.f32 %v535, %v565
      %v572 = vmul.f32 %v536, %v565
      %v573 = vmul.f32 %v537, %v565
      %v574 = vmul.f32 %v538, %v565
      %v575 = vmul.f32 %v539, %v565
      %v576 = vmul.f32 %v540, %v565
      %v577 = vmul.f32 %v541, %v565
      %v578 = vmul.f32 %v542, %v565
      %v579 = vmul.f32 %v543, %v565
      %v580 = vmul.f32 %v544, %v565
      %v581 = vmul.f32 %v545, %v565
      %v582 = vmul.f32 %v546, %v565
      %v583 = vmul.f32 %v547, %v565
      %v584 = vmul.f32 %v548, %v565
      %v585 = vmul.f32 %v549, %v565
      %v586 = vmul.f32 %v550, %v565
      %v587 = vmul.f32 %v551, %v565
      %v588 = vmul.f32 %v552, %v565
      %v589 = vmul.f32 %v553, %v565
      %v590 = vmul.f32 %v554, %v565
      %v591 = vmul.f32 %v555, %v565
      %v592 = vmul.f32 %v556, %v565
      %v593 = vmul.f32 %v557, %v565
      %v594 = vmul.f32 %v558, %v565
      %v595 = vmul.f32 %v559, %v565
      %v596 = vmul.f32 %v560, %v565
      %v597 = vmul.f32 %v561, %v565
      %v598 = vadd.f32 %v498, %v566
      %v599 = vadd.f32 %v499, %v567
      %v600 = vadd.f32 %v500, %v568
      %v601 = vadd.f32 %v501, %v569
      %v602 = vadd.f32 %v502, %v570
      %v603 = vadd.f32 %v503, %v571
      %v604 = vadd.f32 %v504, %v572
      %v605 = vadd.f32 %v505, %v573
      %v606 = vadd.f32 %v506, %v574
      %v607 = vadd.f32 %v507, %v575
      %v608 = vadd.f32 %v508, %v576
      %v609 = vadd.f32 %v509, %v577
      %v610 = vadd.f32 %v510, %v578
      %v611 = vadd.f32 %v511, %v579
      %v612 = vadd.f32 %v512, %v580
      %v613 = vadd.f32 %v513, %v581
      %v614 = vadd.f32 %v514, %v582
      %v615 = vadd.f32 %v515, %v583
      %v616 = vadd.f32 %v516, %v584
      %v617 = vadd.f32 %v517, %v585
      %v618 = vadd.f32 %v518, %v586
      %v619 = vadd.f32 %v519, %v587
      %v620 = vadd.f32 %v520, %v588
      %v621 = vadd.f32 %v521, %v589
      %v622 = vadd.f32 %v522, %v590
      %v623 = vadd.f32 %v523, %v591
      %v624 = vadd.f32 %v524, %v592
      %v625 = vadd.f32 %v525, %v593
      %v626 = vadd.f32 %v526, %v594
      %v627 = vadd.f32 %v527, %v595
      %v628 = vadd.f32 %v528, %v596
      %v629 = vadd.f32 %v529, %v597
      %v630 = vld [vmem:[#allocation2 + $0x3] sm:$0xff]
      %v631 = vld [vmem:[#allocation2 + $0xb] sm:$0xff]
      %v632 = vld [vmem:[#allocation2 + $0x1b] sm:$0xff]
      %v633 = vld [vmem:[#allocation2 + $0x23] sm:$0xff]
      %v634 = vld [vmem:[#allocation2 + $0x33] sm:$0xff]
      %v635 = vld [vmem:[#allocation2 + $0x3b] sm:$0xff]
      %v636 = vld [vmem:[#allocation2 + $0x4b] sm:$0xff]
      %v637 = vld [vmem:[#allocation2 + $0x53] sm:$0xff]
      %v638 = vld [vmem:[#allocation2 + $0x63] sm:$0xff]
      %v639 = vld [vmem:[#allocation2 + $0x6b] sm:$0xff]
      %v640 = vld [vmem:[#allocation2 + $0x7b] sm:$0xff]
      %v641 = vld [vmem:[#allocation2 + $0x83] sm:$0xff]
      %v642 = vld [vmem:[#allocation2 + $0x93] sm:$0xff]
      %v643 = vld [vmem:[#allocation2 + $0x9b] sm:$0xff]
      %v644 = vld [vmem:[#allocation2 + $0xab] sm:$0xff]
      %v645 = vld [vmem:[#allocation2 + $0xb3] sm:$0xff]
      %v646 = vld [vmem:[#allocation2 + $0xc3] sm:$0xff]
      %v647 = vld [vmem:[#allocation2 + $0xcb] sm:$0xff]
      %v648 = vld [vmem:[#allocation2 + $0xdb] sm:$0xff]
      %v649 = vld [vmem:[#allocation2 + $0xe3] sm:$0xff]
      %v650 = vld [vmem:[#allocation2 + $0xf3] sm:$0xff]
      %v651 = vld [vmem:[#allocation2 + $0xfb] sm:$0xff]
      %v652 = vld [vmem:[#allocation2 + $0x10b] sm:$0xff]
      %v653 = vld [vmem:[#allocation2 + $0x113] sm:$0xff]
      %v654 = vld [vmem:[#allocation2 + $0x123] sm:$0xff]
      %v655 = vld [vmem:[#allocation2 + $0x12b] sm:$0xff]
      %v656 = vld [vmem:[#allocation2 + $0x13b] sm:$0xff]
      %v657 = vld [vmem:[#allocation2 + $0x143] sm:$0xff]
      %v658 = vld [vmem:[#allocation2 + $0x153] sm:$0xff]
      %v659 = vld [vmem:[#allocation2 + $0x15b] sm:$0xff]
      %v660 = vld [vmem:[#allocation2 + $0x16b] sm:$0xff]
      %v661 = vld [vmem:[#allocation2 + $0x173] sm:$0xff]
      %v662 = vlaneseq
      %v663 = vshrl.u32 %v662, 7
      %v664 = vsub.s32 3, %v663
      %v665 = vrot.slane %v323, %v664
      %v666 = vmul.f32 %v630, %v665
      %v667 = vmul.f32 %v631, %v665
      %v668 = vmul.f32 %v632, %v665
      %v669 = vmul.f32 %v633, %v665
      %v670 = vmul.f32 %v634, %v665
      %v671 = vmul.f32 %v635, %v665
      %v672 = vmul.f32 %v636, %v665
      %v673 = vmul.f32 %v637, %v665
      %v674 = vmul.f32 %v638, %v665
      %v675 = vmul.f32 %v639, %v665
      %v676 = vmul.f32 %v640, %v665
      %v677 = vmul.f32 %v641, %v665
      %v678 = vmul.f32 %v642, %v665
      %v679 = vmul.f32 %v643, %v665
      %v680 = vmul.f32 %v644, %v665
      %v681 = vmul.f32 %v645, %v665
      %v682 = vmul.f32 %v646, %v665
      %v683 = vmul.f32 %v647, %v665
      %v684 = vmul.f32 %v648, %v665
      %v685 = vmul.f32 %v649, %v665
      %v686 = vmul.f32 %v650, %v665
      %v687 = vmul.f32 %v651, %v665
      %v688 = vmul.f32 %v652, %v665
      %v689 = vmul.f32 %v653, %v665
      %v690 = vmul.f32 %v654, %v665
      %v691 = vmul.f32 %v655, %v665
      %v692 = vmul.f32 %v656, %v665
      %v693 = vmul.f32 %v657, %v665
      %v694 = vmul.f32 %v658, %v665
      %v695 = vmul.f32 %v659, %v665
      %v696 = vmul.f32 %v660, %v665
      %v697 = vmul.f32 %v661, %v665
      %v698 = vadd.f32 %v598, %v666
      %v699 = vadd.f32 %v599, %v667
      %v700 = vadd.f32 %v600, %v668
      %v701 = vadd.f32 %v601, %v669
      %v702 = vadd.f32 %v602, %v670
      %v703 = vadd.f32 %v603, %v671
      %v704 = vadd.f32 %v604, %v672
      %v705 = vadd.f32 %v605, %v673
      %v706 = vadd.f32 %v606, %v674
      %v707 = vadd.f32 %v607, %v675
      %v708 = vadd.f32 %v608, %v676
      %v709 = vadd.f32 %v609, %v677
      %v710 = vadd.f32 %v610, %v678
      %v711 = vadd.f32 %v611, %v679
      %v712 = vadd.f32 %v612, %v680
      %v713 = vadd.f32 %v613, %v681
      %v714 = vadd.f32 %v614, %v682
      %v715 = vadd.f32 %v615, %v683
      %v716 = vadd.f32 %v616, %v684
      %v717 = vadd.f32 %v617, %v685
      %v718 = vadd.f32 %v618, %v686
      %v719 = vadd.f32 %v619, %v687
      %v720 = vadd.f32 %v620, %v688
      %v721 = vadd.f32 %v621, %v689
      %v722 = vadd.f32 %v622, %v690
      %v723 = vadd.f32 %v623, %v691
      %v724 = vadd.f32 %v624, %v692
      %v725 = vadd.f32 %v625, %v693
      %v726 = vadd.f32 %v626, %v694
      %v727 = vadd.f32 %v627, %v695
      %v728 = vadd.f32 %v628, %v696
      %v729 = vadd.f32 %v629, %v697
      %v730 = vld [vmem:[#allocation2 + $0x4] sm:$0xff]
      %v731 = vld [vmem:[#allocation2 + $0xc] sm:$0xff]
      %v732 = vld [vmem:[#allocation2 + $0x1c] sm:$0xff]
      %v733 = vld [vmem:[#allocation2 + $0x24] sm:$0xff]
      %v734 = vld [vmem:[#allocation2 + $0x34] sm:$0xff]
      %v735 = vld [vmem:[#allocation2 + $0x3c] sm:$0xff]
      %v736 = vld [vmem:[#allocation2 + $0x4c] sm:$0xff]
      %v737 = vld [vmem:[#allocation2 + $0x54] sm:$0xff]
      %v738 = vld [vmem:[#allocation2 + $0x64] sm:$0xff]
      %v739 = vld [vmem:[#allocation2 + $0x6c] sm:$0xff]
      %v740 = vld [vmem:[#allocation2 + $0x7c] sm:$0xff]
      %v741 = vld [vmem:[#allocation2 + $0x84] sm:$0xff]
      %v742 = vld [vmem:[#allocation2 + $0x94] sm:$0xff]
      %v743 = vld [vmem:[#allocation2 + $0x9c] sm:$0xff]
      %v744 = vld [vmem:[#allocation2 + $0xac] sm:$0xff]
      %v745 = vld [vmem:[#allocation2 + $0xb4] sm:$0xff]
      %v746 = vld [vmem:[#allocation2 + $0xc4] sm:$0xff]
      %v747 = vld [vmem:[#allocation2 + $0xcc] sm:$0xff]
      %v748 = vld [vmem:[#allocation2 + $0xdc] sm:$0xff]
      %v749 = vld [vmem:[#allocation2 + $0xe4] sm:$0xff]
      %v750 = vld [vmem:[#allocation2 + $0xf4] sm:$0xff]
      %v751 = vld [vmem:[#allocation2 + $0xfc] sm:$0xff]
      %v752 = vld [vmem:[#allocation2 + $0x10c] sm:$0xff]
      %v753 = vld [vmem:[#allocation2 + $0x114] sm:$0xff]
      %v754 = vld [vmem:[#allocation2 + $0x124] sm:$0xff]
      %v755 = vld [vmem:[#allocation2 + $0x12c] sm:$0xff]
      %v756 = vld [vmem:[#allocation2 + $0x13c] sm:$0xff]
      %v757 = vld [vmem:[#allocation2 + $0x144] sm:$0xff]
      %v758 = vld [vmem:[#allocation2 + $0x154] sm:$0xff]
      %v759 = vld [vmem:[#allocation2 + $0x15c] sm:$0xff]
      %v760 = vld [vmem:[#allocation2 + $0x16c] sm:$0xff]
      %v761 = vld [vmem:[#allocation2 + $0x174] sm:$0xff]
      %v762 = vlaneseq
      %v763 = vshrl.u32 %v762, 7
      %v764 = vsub.s32 4, %v763
      %v765 = vrot.slane %v323, %v764
      %v766 = vmul.f32 %v730, %v765
      %v767 = vmul.f32 %v731, %v765
      %v768 = vmul.f32 %v732, %v765
      %v769 = vmul.f32 %v733, %v765
      %v770 = vmul.f32 %v734, %v765
      %v771 = vmul.f32 %v735, %v765
      %v772 = vmul.f32 %v736, %v765
      %v773 = vmul.f32 %v737, %v765
      %v774 = vmul.f32 %v738, %v765
      %v775 = vmul.f32 %v739, %v765
      %v776 = vmul.f32 %v740, %v765
      %v777 = vmul.f32 %v741, %v765
      %v778 = vmul.f32 %v742, %v765
      %v779 = vmul.f32 %v743, %v765
      %v780 = vmul.f32 %v744, %v765
      %v781 = vmul.f32 %v745, %v765
      %v782 = vmul.f32 %v746, %v765
      %v783 = vmul.f32 %v747, %v765
      %v784 = vmul.f32 %v748, %v765
      %v785 = vmul.f32 %v749, %v765
      %v786 = vmul.f32 %v750, %v765
      %v787 = vmul.f32 %v751, %v765
      %v788 = vmul.f32 %v752, %v765
      %v789 = vmul.f32 %v753, %v765
      %v790 = vmul.f32 %v754, %v765
      %v791 = vmul.f32 %v755, %v765
      %v792 = vmul.f32 %v756, %v765
      %v793 = vmul.f32 %v757, %v765
      %v794 = vmul.f32 %v758, %v765
      %v795 = vmul.f32 %v759, %v765
      %v796 = vmul.f32 %v760, %v765
      %v797 = vmul.f32 %v761, %v765
      %v798 = vadd.f32 %v698, %v766
      %v799 = vadd.f32 %v699, %v767
      %v800 = vadd.f32 %v700, %v768
      %v801 = vadd.f32 %v701, %v769
      %v802 = vadd.f32 %v702, %v770
      %v803 = vadd.f32 %v703, %v771
      %v804 = vadd.f32 %v704, %v772
      %v805 = vadd.f32 %v705, %v773
      %v806 = vadd.f32 %v706, %v774
      %v807 = vadd.f32 %v707, %v775
      %v808 = vadd.f32 %v708, %v776
      %v809 = vadd.f32 %v709, %v777
      %v810 = vadd.f32 %v710, %v778
      %v811 = vadd.f32 %v711, %v779
      %v812 = vadd.f32 %v712, %v780
      %v813 = vadd.f32 %v713, %v781
      %v814 = vadd.f32 %v714, %v782
      %v815 = vadd.f32 %v715, %v783
      %v816 = vadd.f32 %v716, %v784
      %v817 = vadd.f32 %v717, %v785
      %v818 = vadd.f32 %v718, %v786
      %v819 = vadd.f32 %v719, %v787
      %v820 = vadd.f32 %v720, %v788
      %v821 = vadd.f32 %v721, %v789
      %v822 = vadd.f32 %v722, %v790
      %v823 = vadd.f32 %v723, %v791
      %v824 = vadd.f32 %v724, %v792
      %v825 = vadd.f32 %v725, %v793
      %v826 = vadd.f32 %v726, %v794
      %v827 = vadd.f32 %v727, %v795
      %v828 = vadd.f32 %v728, %v796
      %v829 = vadd.f32 %v729, %v797
      %v830 = vld [vmem:[#allocation2 + $0x5] sm:$0xff]
      %v831 = vld [vmem:[#allocation2 + $0xd] sm:$0xff]
      %v832 = vld [vmem:[#allocation2 + $0x1d] sm:$0xff]
      %v833 = vld [vmem:[#allocation2 + $0x25] sm:$0xff]
      %v834 = vld [vmem:[#allocation2 + $0x35] sm:$0xff]
      %v835 = vld [vmem:[#allocation2 + $0x3d] sm:$0xff]
      %v836 = vld [vmem:[#allocation2 + $0x4d] sm:$0xff]
      %v837 = vld [vmem:[#allocation2 + $0x55] sm:$0xff]
      %v838 = vld [vmem:[#allocation2 + $0x65] sm:$0xff]
      %v839 = vld [vmem:[#allocation2 + $0x6d] sm:$0xff]
      %v840 = vld [vmem:[#allocation2 + $0x7d] sm:$0xff]
      %v841 = vld [vmem:[#allocation2 + $0x85] sm:$0xff]
      %v842 = vld [vmem:[#allocation2 + $0x95] sm:$0xff]
      %v843 = vld [vmem:[#allocation2 + $0x9d] sm:$0xff]
      %v844 = vld [vmem:[#allocation2 + $0xad] sm:$0xff]
      %v845 = vld [vmem:[#allocation2 + $0xb5] sm:$0xff]
      %v846 = vld [vmem:[#allocation2 + $0xc5] sm:$0xff]
      %v847 = vld [vmem:[#allocation2 + $0xcd] sm:$0xff]
      %v848 = vld [vmem:[#allocation2 + $0xdd] sm:$0xff]
      %v849 = vld [vmem:[#allocation2 + $0xe5] sm:$0xff]
      %v850 = vld [vmem:[#allocation2 + $0xf5] sm:$0xff]
      %v851 = vld [vmem:[#allocation2 + $0xfd] sm:$0xff]
      %v852 = vld [vmem:[#allocation2 + $0x10d] sm:$0xff]
      %v853 = vld [vmem:[#allocation2 + $0x115] sm:$0xff]
      %v854 = vld [vmem:[#allocation2 + $0x125] sm:$0xff]
      %v855 = vld [vmem:[#allocation2 + $0x12d] sm:$0xff]
      %v856 = vld [vmem:[#allocation2 + $0x13d] sm:$0xff]
      %v857 = vld [vmem:[#allocation2 + $0x145] sm:$0xff]
      %v858 = vld [vmem:[#allocation2 + $0x155] sm:$0xff]
      %v859 = vld [vmem:[#allocation2 + $0x15d] sm:$0xff]
      %v860 = vld [vmem:[#allocation2 + $0x16d] sm:$0xff]
      %v861 = vld [vmem:[#allocation2 + $0x175] sm:$0xff]
      %v862 = vlaneseq
      %v863 = vshrl.u32 %v862, 7
      %v864 = vsub.s32 5, %v863
      %v865 = vrot.slane %v323, %v864
      %v866 = vmul.f32 %v830, %v865
      %v867 = vmul.f32 %v831, %v865
      %v868 = vmul.f32 %v832, %v865
      %v869 = vmul.f32 %v833, %v865
      %v870 = vmul.f32 %v834, %v865
      %v871 = vmul.f32 %v835, %v865
      %v872 = vmul.f32 %v836, %v865
      %v873 = vmul.f32 %v837, %v865
      %v874 = vmul.f32 %v838, %v865
      %v875 = vmul.f32 %v839, %v865
      %v876 = vmul.f32 %v840, %v865
      %v877 = vmul.f32 %v841, %v865
      %v878 = vmul.f32 %v842, %v865
      %v879 = vmul.f32 %v843, %v865
      %v880 = vmul.f32 %v844, %v865
      %v881 = vmul.f32 %v845, %v865
      %v882 = vmul.f32 %v846, %v865
      %v883 = vmul.f32 %v847, %v865
      %v884 = vmul.f32 %v848, %v865
      %v885 = vmul.f32 %v849, %v865
      %v886 = vmul.f32 %v850, %v865
      %v887 = vmul.f32 %v851, %v865
      %v888 = vmul.f32 %v852, %v865
      %v889 = vmul.f32 %v853, %v865
      %v890 = vmul.f32 %v854, %v865
      %v891 = vmul.f32 %v855, %v865
      %v892 = vmul.f32 %v856, %v865
      %v893 = vmul.f32 %v857, %v865
      %v894 = vmul.f32 %v858, %v865
      %v895 = vmul.f32 %v859, %v865
      %v896 = vmul.f32 %v860, %v865
      %v897 = vmul.f32 %v861, %v865
      %v898 = vadd.f32 %v798, %v866
      %v899 = vadd.f32 %v799, %v867
      %v900 = vadd.f32 %v800, %v868
      %v901 = vadd.f32 %v801, %v869
      %v902 = vadd.f32 %v802, %v870
      %v903 = vadd.f32 %v803, %v871
      %v904 = vadd.f32 %v804, %v872
      %v905 = vadd.f32 %v805, %v873
      %v906 = vadd.f32 %v806, %v874
      %v907 = vadd.f32 %v807, %v875
      %v908 = vadd.f32 %v808, %v876
      %v909 = vadd.f32 %v809, %v877
      %v910 = vadd.f32 %v810, %v878
      %v911 = vadd.f32 %v811, %v879
      %v912 = vadd.f32 %v812, %v880
      %v913 = vadd.f32 %v813, %v881
      %v914 = vadd.f32 %v814, %v882
      %v915 = vadd.f32 %v815, %v883
      %v916 = vadd.f32 %v816, %v884
      %v917 = vadd.f32 %v817, %v885
      %v918 = vadd.f32 %v818, %v886
      %v919 = vadd.f32 %v819, %v887
      %v920 = vadd.f32 %v820, %v888
      %v921 = vadd.f32 %v821, %v889
      %v922 = vadd.f32 %v822, %v890
      %v923 = vadd.f32 %v823, %v891
      %v924 = vadd.f32 %v824, %v892
      %v925 = vadd.f32 %v825, %v893
      %v926 = vadd.f32 %v826, %v894
      %v927 = vadd.f32 %v827, %v895
      %v928 = vadd.f32 %v828, %v896
      %v929 = vadd.f32 %v829, %v897
      %v930 = vld [vmem:[#allocation2 + $0x6] sm:$0xff]
      %v931 = vld [vmem:[#allocation2 + $0xe] sm:$0xff]
      %v932 = vld [vmem:[#allocation2 + $0x1e] sm:$0xff]
      %v933 = vld [vmem:[#allocation2 + $0x26] sm:$0xff]
      %v934 = vld [vmem:[#allocation2 + $0x36] sm:$0xff]
      %v935 = vld [vmem:[#allocation2 + $0x3e] sm:$0xff]
      %v936 = vld [vmem:[#allocation2 + $0x4e] sm:$0xff]
      %v937 = vld [vmem:[#allocation2 + $0x56] sm:$0xff]
      %v938 = vld [vmem:[#allocation2 + $0x66] sm:$0xff]
      %v939 = vld [vmem:[#allocation2 + $0x6e] sm:$0xff]
      %v940 = vld [vmem:[#allocation2 + $0x7e] sm:$0xff]
      %v941 = vld [vmem:[#allocation2 + $0x86] sm:$0xff]
      %v942 = vld [vmem:[#allocation2 + $0x96] sm:$0xff]
      %v943 = vld [vmem:[#allocation2 + $0x9e] sm:$0xff]
      %v944 = vld [vmem:[#allocation2 + $0xae] sm:$0xff]
      %v945 = vld [vmem:[#allocation2 + $0xb6] sm:$0xff]
      %v946 = vld [vmem:[#allocation2 + $0xc6] sm:$0xff]
      %v947 = vld [vmem:[#allocation2 + $0xce] sm:$0xff]
      %v948 = vld [vmem:[#allocation2 + $0xde] sm:$0xff]
      %v949 = vld [vmem:[#allocation2 + $0xe6] sm:$0xff]
      %v950 = vld [vmem:[#allocation2 + $0xf6] sm:$0xff]
      %v951 = vld [vmem:[#allocation2 + $0xfe] sm:$0xff]
      %v952 = vld [vmem:[#allocation2 + $0x10e] sm:$0xff]
      %v953 = vld [vmem:[#allocation2 + $0x116] sm:$0xff]
      %v954 = vld [vmem:[#allocation2 + $0x126] sm:$0xff]
      %v955 = vld [vmem:[#allocation2 + $0x12e] sm:$0xff]
      %v956 = vld [vmem:[#allocation2 + $0x13e] sm:$0xff]
      %v957 = vld [vmem:[#allocation2 + $0x146] sm:$0xff]
      %v958 = vld [vmem:[#allocation2 + $0x156] sm:$0xff]
      %v959 = vld [vmem:[#allocation2 + $0x15e] sm:$0xff]
      %v960 = vld [vmem:[#allocation2 + $0x16e] sm:$0xff]
      %v961 = vld [vmem:[#allocation2 + $0x176] sm:$0xff]
      %v962 = vlaneseq
      %v963 = vshrl.u32 %v962, 7
      %v964 = vsub.s32 6, %v963
      %v965 = vrot.slane %v323, %v964
      %v966 = vmul.f32 %v930, %v965
      %v967 = vmul.f32 %v931, %v965
      %v968 = vmul.f32 %v932, %v965
      %v969 = vmul.f32 %v933, %v965
      %v970 = vmul.f32 %v934, %v965
      %v971 = vmul.f32 %v935, %v965
      %v972 = vmul.f32 %v936, %v965
      %v973 = vmul.f32 %v937, %v965
      %v974 = vmul.f32 %v938, %v965
      %v975 = vmul.f32 %v939, %v965
      %v976 = vmul.f32 %v940, %v965
      %v977 = vmul.f32 %v941, %v965
      %v978 = vmul.f32 %v942, %v965
      %v979 = vmul.f32 %v943, %v965
      %v980 = vmul.f32 %v944, %v965
      %v981 = vmul.f32 %v945, %v965
      %v982 = vmul.f32 %v946, %v965
      %v983 = vmul.f32 %v947, %v965
      %v984 = vmul.f32 %v948, %v965
      %v985 = vmul.f32 %v949, %v965
      %v986 = vmul.f32 %v950, %v965
      %v987 = vmul.f32 %v951, %v965
      %v988 = vmul.f32 %v952, %v965
      %v989 = vmul.f32 %v953, %v965
      %v990 = vmul.f32 %v954, %v965
      %v991 = vmul.f32 %v955, %v965
      %v992 = vmul.f32 %v956, %v965
      %v993 = vmul.f32 %v957, %v965
      %v994 = vmul.f32 %v958, %v965
      %v995 = vmul.f32 %v959, %v965
      %v996 = vmul.f32 %v960, %v965
      %v997 = vmul.f32 %v961, %v965
      %v998 = vadd.f32 %v898, %v966
      %v999 = vadd.f32 %v899, %v967
      %v1000 = vadd.f32 %v900, %v968
      %v1001 = vadd.f32 %v901, %v969
      %v1002 = vadd.f32 %v902, %v970
      %v1003 = vadd.f32 %v903, %v971
      %v1004 = vadd.f32 %v904, %v972
      %v1005 = vadd.f32 %v905, %v973
      %v1006 = vadd.f32 %v906, %v974
      %v1007 = vadd.f32 %v907, %v975
      %v1008 = vadd.f32 %v908, %v976
      %v1009 = vadd.f32 %v909, %v977
      %v1010 = vadd.f32 %v910, %v978
      %v1011 = vadd.f32 %v911, %v979
      %v1012 = vadd.f32 %v912, %v980
      %v1013 = vadd.f32 %v913, %v981
      %v1014 = vadd.f32 %v914, %v982
      %v1015 = vadd.f32 %v915, %v983
      %v1016 = vadd.f32 %v916, %v984
      %v1017 = vadd.f32 %v917, %v985
      %v1018 = vadd.f32 %v918, %v986
      %v1019 = vadd.f32 %v919, %v987
      %v1020 = vadd.f32 %v920, %v988
      %v1021 = vadd.f32 %v921, %v989
      %v1022 = vadd.f32 %v922, %v990
      %v1023 = vadd.f32 %v923, %v991
      %v1024 = vadd.f32 %v924, %v992
      %v1025 = vadd.f32 %v925, %v993
      %v1026 = vadd.f32 %v926, %v994
      %v1027 = vadd.f32 %v927, %v995
      %v1028 = vadd.f32 %v928, %v996
      %v1029 = vadd.f32 %v929, %v997
      %s1030 = scalar_lea.vmem [#allocation2], 24
      %v1031 = vld [vmem:[%s1030] sm:$0xff]
      %v1032 = vld [vmem:[%s1030 + $0x8] sm:$0xff]
      %v1033 = vld [vmem:[%s1030 + $0x18] sm:$0xff]
      %v1034 = vld [vmem:[%s1030 + $0x20] sm:$0xff]
      %v1035 = vld [vmem:[%s1030 + $0x30] sm:$0xff]
      %v1036 = vld [vmem:[%s1030 + $0x38] sm:$0xff]
      %v1037 = vld [vmem:[%s1030 + $0x48] sm:$0xff]
      %v1038 = vld [vmem:[%s1030 + $0x50] sm:$0xff]
      %v1039 = vld [vmem:[%s1030 + $0x60] sm:$0xff]
      %v1040 = vld [vmem:[%s1030 + $0x68] sm:$0xff]
      %v1041 = vld [vmem:[%s1030 + $0x78] sm:$0xff]
      %v1042 = vld [vmem:[%s1030 + $0x80] sm:$0xff]
      %v1043 = vld [vmem:[%s1030 + $0x90] sm:$0xff]
      %v1044 = vld [vmem:[%s1030 + $0x98] sm:$0xff]
      %v1045 = vld [vmem:[%s1030 + $0xa8] sm:$0xff]
      %v1046 = vld [vmem:[%s1030 + $0xb0] sm:$0xff]
      %v1047 = vld [vmem:[%s1030 + $0xc0] sm:$0xff]
      %v1048 = vld [vmem:[%s1030 + $0xc8] sm:$0xff]
      %v1049 = vld [vmem:[%s1030 + $0xd8] sm:$0xff]
      %v1050 = vld [vmem:[%s1030 + $0xe0] sm:$0xff]
      %v1051 = vld [vmem:[%s1030 + $0xf0] sm:$0xff]
      %v1052 = vld [vmem:[%s1030 + $0xf8] sm:$0xff]
      %v1053 = vld [vmem:[%s1030 + $0x108] sm:$0xff]
      %v1054 = vld [vmem:[%s1030 + $0x110] sm:$0xff]
      %v1055 = vld [vmem:[%s1030 + $0x120] sm:$0xff]
      %v1056 = vld [vmem:[%s1030 + $0x128] sm:$0xff]
      %v1057 = vld [vmem:[%s1030 + $0x138] sm:$0xff]
      %v1058 = vld [vmem:[%s1030 + $0x140] sm:$0xff]
      %v1059 = vld [vmem:[%s1030 + $0x150] sm:$0xff]
      %v1060 = vld [vmem:[%s1030 + $0x158] sm:$0xff]
      %v1061 = vld [vmem:[%s1030 + $0x168] sm:$0xff]
      %v1062 = vld [vmem:[%s1030 + $0x170] sm:$0xff]
      %v1063 = vlaneseq
      %v1064 = vshrl.u32 %v1063, 7
      %v1065 = vsub.s32 0, %v1064
      %v1066 = vrot.slane %v324, %v1065
      %v1067 = vmul.f32 %v1031, %v1066
      %v1068 = vmul.f32 %v1032, %v1066
      %v1069 = vmul.f32 %v1033, %v1066
      %v1070 = vmul.f32 %v1034, %v1066
      %v1071 = vmul.f32 %v1035, %v1066
      %v1072 = vmul.f32 %v1036, %v1066
      %v1073 = vmul.f32 %v1037, %v1066
      %v1074 = vmul.f32 %v1038, %v1066
      %v1075 = vmul.f32 %v1039, %v1066
      %v1076 = vmul.f32 %v1040, %v1066
      %v1077 = vmul.f32 %v1041, %v1066
      %v1078 = vmul.f32 %v1042, %v1066
      %v1079 = vmul.f32 %v1043, %v1066
      %v1080 = vmul.f32 %v1044, %v1066
      %v1081 = vmul.f32 %v1045, %v1066
      %v1082 = vmul.f32 %v1046, %v1066
      %v1083 = vmul.f32 %v1047, %v1066
      %v1084 = vmul.f32 %v1048, %v1066
      %v1085 = vmul.f32 %v1049, %v1066
      %v1086 = vmul.f32 %v1050, %v1066
      %v1087 = vmul.f32 %v1051, %v1066
      %v1088 = vmul.f32 %v1052, %v1066
      %v1089 = vmul.f32 %v1053, %v1066
      %v1090 = vmul.f32 %v1054, %v1066
      %v1091 = vmul.f32 %v1055, %v1066
      %v1092 = vmul.f32 %v1056, %v1066
      %v1093 = vmul.f32 %v1057, %v1066
      %v1094 = vmul.f32 %v1058, %v1066
      %v1095 = vmul.f32 %v1059, %v1066
      %v1096 = vmul.f32 %v1060, %v1066
      %v1097 = vmul.f32 %v1061, %v1066
      %v1098 = vmul.f32 %v1062, %v1066
      %v1099 = vadd.f32 %v998, %v1067
      %v1100 = vadd.f32 %v999, %v1068
      %v1101 = vadd.f32 %v1000, %v1069
      %v1102 = vadd.f32 %v1001, %v1070
      %v1103 = vadd.f32 %v1002, %v1071
      %v1104 = vadd.f32 %v1003, %v1072
      %v1105 = vadd.f32 %v1004, %v1073
      %v1106 = vadd.f32 %v1005, %v1074
      %v1107 = vadd.f32 %v1006, %v1075
      %v1108 = vadd.f32 %v1007, %v1076
      %v1109 = vadd.f32 %v1008, %v1077
      %v1110 = vadd.f32 %v1009, %v1078
      %v1111 = vadd.f32 %v1010, %v1079
      %v1112 = vadd.f32 %v1011, %v1080
      %v1113 = vadd.f32 %v1012, %v1081
      %v1114 = vadd.f32 %v1013, %v1082
      %v1115 = vadd.f32 %v1014, %v1083
      %v1116 = vadd.f32 %v1015, %v1084
      %v1117 = vadd.f32 %v1016, %v1085
      %v1118 = vadd.f32 %v1017, %v1086
      %v1119 = vadd.f32 %v1018, %v1087
      %v1120 = vadd.f32 %v1019, %v1088
      %v1121 = vadd.f32 %v1020, %v1089
      %v1122 = vadd.f32 %v1021, %v1090
      %v1123 = vadd.f32 %v1022, %v1091
      %v1124 = vadd.f32 %v1023, %v1092
      %v1125 = vadd.f32 %v1024, %v1093
      %v1126 = vadd.f32 %v1025, %v1094
      %v1127 = vadd.f32 %v1026, %v1095
      %v1128 = vadd.f32 %v1027, %v1096
      %v1129 = vadd.f32 %v1028, %v1097
      %v1130 = vadd.f32 %v1029, %v1098
      %v1131 = vld [vmem:[%s1030 + $0x1] sm:$0xff]
      %v1132 = vld [vmem:[%s1030 + $0x9] sm:$0xff]
      %v1133 = vld [vmem:[%s1030 + $0x19] sm:$0xff]
      %v1134 = vld [vmem:[%s1030 + $0x21] sm:$0xff]
      %v1135 = vld [vmem:[%s1030 + $0x31] sm:$0xff]
      %v1136 = vld [vmem:[%s1030 + $0x39] sm:$0xff]
      %v1137 = vld [vmem:[%s1030 + $0x49] sm:$0xff]
      %v1138 = vld [vmem:[%s1030 + $0x51] sm:$0xff]
      %v1139 = vld [vmem:[%s1030 + $0x61] sm:$0xff]
      %v1140 = vld [vmem:[%s1030 + $0x69] sm:$0xff]
      %v1141 = vld [vmem:[%s1030 + $0x79] sm:$0xff]
      %v1142 = vld [vmem:[%s1030 + $0x81] sm:$0xff]
      %v1143 = vld [vmem:[%s1030 + $0x91] sm:$0xff]
      %v1144 = vld [vmem:[%s1030 + $0x99] sm:$0xff]
      %v1145 = vld [vmem:[%s1030 + $0xa9] sm:$0xff]
      %v1146 = vld [vmem:[%s1030 + $0xb1] sm:$0xff]
      %v1147 = vld [vmem:[%s1030 + $0xc1] sm:$0xff]
      %v1148 = vld [vmem:[%s1030 + $0xc9] sm:$0xff]
      %v1149 = vld [vmem:[%s1030 + $0xd9] sm:$0xff]
      %v1150 = vld [vmem:[%s1030 + $0xe1] sm:$0xff]
      %v1151 = vld [vmem:[%s1030 + $0xf1] sm:$0xff]
      %v1152 = vld [vmem:[%s1030 + $0xf9] sm:$0xff]
      %v1153 = vld [vmem:[%s1030 + $0x109] sm:$0xff]
      %v1154 = vld [vmem:[%s1030 + $0x111] sm:$0xff]
      %v1155 = vld [vmem:[%s1030 + $0x121] sm:$0xff]
      %v1156 = vld [vmem:[%s1030 + $0x129] sm:$0xff]
      %v1157 = vld [vmem:[%s1030 + $0x139] sm:$0xff]
      %v1158 = vld [vmem:[%s1030 + $0x141] sm:$0xff]
      %v1159 = vld [vmem:[%s1030 + $0x151] sm:$0xff]
      %v1160 = vld [vmem:[%s1030 + $0x159] sm:$0xff]
      %v1161 = vld [vmem:[%s1030 + $0x169] sm:$0xff]
      %v1162 = vld [vmem:[%s1030 + $0x171] sm:$0xff]
      %v1163 = vlaneseq
      %v1164 = vshrl.u32 %v1163, 7
      %v1165 = vsub.s32 1, %v1164
      %v1166 = vrot.slane %v324, %v1165
      %v1167 = vmul.f32 %v1131, %v1166
      %v1168 = vmul.f32 %v1132, %v1166
      %v1169 = vmul.f32 %v1133, %v1166
      %v1170 = vmul.f32 %v1134, %v1166
      %v1171 = vmul.f32 %v1135, %v1166
      %v1172 = vmul.f32 %v1136, %v1166
      %v1173 = vmul.f32 %v1137, %v1166
      %v1174 = vmul.f32 %v1138, %v1166
      %v1175 = vmul.f32 %v1139, %v1166
      %v1176 = vmul.f32 %v1140, %v1166
      %v1177 = vmul.f32 %v1141, %v1166
      %v1178 = vmul.f32 %v1142, %v1166
      %v1179 = vmul.f32 %v1143, %v1166
      %v1180 = vmul.f32 %v1144, %v1166
      %v1181 = vmul.f32 %v1145, %v1166
      %v1182 = vmul.f32 %v1146, %v1166
      %v1183 = vmul.f32 %v1147, %v1166
      %v1184 = vmul.f32 %v1148, %v1166
      %v1185 = vmul.f32 %v1149, %v1166
      %v1186 = vmul.f32 %v1150, %v1166
      %v1187 = vmul.f32 %v1151, %v1166
      %v1188 = vmul.f32 %v1152, %v1166
      %v1189 = vmul.f32 %v1153, %v1166
      %v1190 = vmul.f32 %v1154, %v1166
      %v1191 = vmul.f32 %v1155, %v1166
      %v1192 = vmul.f32 %v1156, %v1166
      %v1193 = vmul.f32 %v1157, %v1166
      %v1194 = vmul.f32 %v1158, %v1166
      %v1195 = vmul.f32 %v1159, %v1166
      %v1196 = vmul.f32 %v1160, %v1166
      %v1197 = vmul.f32 %v1161, %v1166
      %v1198 = vmul.f32 %v1162, %v1166
      %v1199 = vadd.f32 %v1099, %v1167
      %v1200 = vadd.f32 %v1100, %v1168
      %v1201 = vadd.f32 %v1101, %v1169
      %v1202 = vadd.f32 %v1102, %v1170
      %v1203 = vadd.f32 %v1103, %v1171
      %v1204 = vadd.f32 %v1104, %v1172
      %v1205 = vadd.f32 %v1105, %v1173
      %v1206 = vadd.f32 %v1106, %v1174
      %v1207 = vadd.f32 %v1107, %v1175
      %v1208 = vadd.f32 %v1108, %v1176
      %v1209 = vadd.f32 %v1109, %v1177
      %v1210 = vadd.f32 %v1110, %v1178
      %v1211 = vadd.f32 %v1111, %v1179
      %v1212 = vadd.f32 %v1112, %v1180
      %v1213 = vadd.f32 %v1113, %v1181
      %v1214 = vadd.f32 %v1114, %v1182
      %v1215 = vadd.f32 %v1115, %v1183
      %v1216 = vadd.f32 %v1116, %v1184
      %v1217 = vadd.f32 %v1117, %v1185
      %v1218 = vadd.f32 %v1118, %v1186
      %v1219 = vadd.f32 %v1119, %v1187
      %v1220 = vadd.f32 %v1120, %v1188
      %v1221 = vadd.f32 %v1121, %v1189
      %v1222 = vadd.f32 %v1122, %v1190
      %v1223 = vadd.f32 %v1123, %v1191
      %v1224 = vadd.f32 %v1124, %v1192
      %v1225 = vadd.f32 %v1125, %v1193
      %v1226 = vadd.f32 %v1126, %v1194
      %v1227 = vadd.f32 %v1127, %v1195
      %v1228 = vadd.f32 %v1128, %v1196
      %v1229 = vadd.f32 %v1129, %v1197
      %v1230 = vadd.f32 %v1130, %v1198
      %v1231 = vld [vmem:[%s1030 + $0x2] sm:$0xff]
      %v1232 = vld [vmem:[%s1030 + $0xa] sm:$0xff]
      %v1233 = vld [vmem:[%s1030 + $0x1a] sm:$0xff]
      %v1234 = vld [vmem:[%s1030 + $0x22] sm:$0xff]
      %v1235 = vld [vmem:[%s1030 + $0x32] sm:$0xff]
      %v1236 = vld [vmem:[%s1030 + $0x3a] sm:$0xff]
      %v1237 = vld [vmem:[%s1030 + $0x4a] sm:$0xff]
      %v1238 = vld [vmem:[%s1030 + $0x52] sm:$0xff]
      %v1239 = vld [vmem:[%s1030 + $0x62] sm:$0xff]
      %v1240 = vld [vmem:[%s1030 + $0x6a] sm:$0xff]
      %v1241 = vld [vmem:[%s1030 + $0x7a] sm:$0xff]
      %v1242 = vld [vmem:[%s1030 + $0x82] sm:$0xff]
      %v1243 = vld [vmem:[%s1030 + $0x92] sm:$0xff]
      %v1244 = vld [vmem:[%s1030 + $0x9a] sm:$0xff]
      %v1245 = vld [vmem:[%s1030 + $0xaa] sm:$0xff]
      %v1246 = vld [vmem:[%s1030 + $0xb2] sm:$0xff]
      %v1247 = vld [vmem:[%s1030 + $0xc2] sm:$0xff]
      %v1248 = vld [vmem:[%s1030 + $0xca] sm:$0xff]
      %v1249 = vld [vmem:[%s1030 + $0xda] sm:$0xff]
      %v1250 = vld [vmem:[%s1030 + $0xe2] sm:$0xff]
      %v1251 = vld [vmem:[%s1030 + $0xf2] sm:$0xff]
      %v1252 = vld [vmem:[%s1030 + $0xfa] sm:$0xff]
      %v1253 = vld [vmem:[%s1030 + $0x10a] sm:$0xff]
      %v1254 = vld [vmem:[%s1030 + $0x112] sm:$0xff]
      %v1255 = vld [vmem:[%s1030 + $0x122] sm:$0xff]
      %v1256 = vld [vmem:[%s1030 + $0x12a] sm:$0xff]
      %v1257 = vld [vmem:[%s1030 + $0x13a] sm:$0xff]
      %v1258 = vld [vmem:[%s1030 + $0x142] sm:$0xff]
      %v1259 = vld [vmem:[%s1030 + $0x152] sm:$0xff]
      %v1260 = vld [vmem:[%s1030 + $0x15a] sm:$0xff]
      %v1261 = vld [vmem:[%s1030 + $0x16a] sm:$0xff]
      %v1262 = vld [vmem:[%s1030 + $0x172] sm:$0xff]
      %v1263 = vlaneseq
      %v1264 = vshrl.u32 %v1263, 7
      %v1265 = vsub.s32 2, %v1264
      %v1266 = vrot.slane %v324, %v1265
      %v1267 = vmul.f32 %v1231, %v1266
      %v1268 = vmul.f32 %v1232, %v1266
      %v1269 = vmul.f32 %v1233, %v1266
      %v1270 = vmul.f32 %v1234, %v1266
      %v1271 = vmul.f32 %v1235, %v1266
      %v1272 = vmul.f32 %v1236, %v1266
      %v1273 = vmul.f32 %v1237, %v1266
      %v1274 = vmul.f32 %v1238, %v1266
      %v1275 = vmul.f32 %v1239, %v1266
      %v1276 = vmul.f32 %v1240, %v1266
      %v1277 = vmul.f32 %v1241, %v1266
      %v1278 = vmul.f32 %v1242, %v1266
      %v1279 = vmul.f32 %v1243, %v1266
      %v1280 = vmul.f32 %v1244, %v1266
      %v1281 = vmul.f32 %v1245, %v1266
      %v1282 = vmul.f32 %v1246, %v1266
      %v1283 = vmul.f32 %v1247, %v1266
      %v1284 = vmul.f32 %v1248, %v1266
      %v1285 = vmul.f32 %v1249, %v1266
      %v1286 = vmul.f32 %v1250, %v1266
      %v1287 = vmul.f32 %v1251, %v1266
      %v1288 = vmul.f32 %v1252, %v1266
      %v1289 = vmul.f32 %v1253, %v1266
      %v1290 = vmul.f32 %v1254, %v1266
      %v1291 = vmul.f32 %v1255, %v1266
      %v1292 = vmul.f32 %v1256, %v1266
      %v1293 = vmul.f32 %v1257, %v1266
      %v1294 = vmul.f32 %v1258, %v1266
      %v1295 = vmul.f32 %v1259, %v1266
      %v1296 = vmul.f32 %v1260, %v1266
      %v1297 = vmul.f32 %v1261, %v1266
      %v1298 = vmul.f32 %v1262, %v1266
      %v1299 = vadd.f32 %v1199, %v1267
      %v1300 = vadd.f32 %v1200, %v1268
      %v1301 = vadd.f32 %v1201, %v1269
      %v1302 = vadd.f32 %v1202, %v1270
      %v1303 = vadd.f32 %v1203, %v1271
      %v1304 = vadd.f32 %v1204, %v1272
      %v1305 = vadd.f32 %v1205, %v1273
      %v1306 = vadd.f32 %v1206, %v1274
      %v1307 = vadd.f32 %v1207, %v1275
      %v1308 = vadd.f32 %v1208, %v1276
      %v1309 = vadd.f32 %v1209, %v1277
      %v1310 = vadd.f32 %v1210, %v1278
      %v1311 = vadd.f32 %v1211, %v1279
      %v1312 = vadd.f32 %v1212, %v1280
      %v1313 = vadd.f32 %v1213, %v1281
      %v1314 = vadd.f32 %v1214, %v1282
      %v1315 = vadd.f32 %v1215, %v1283
      %v1316 = vadd.f32 %v1216, %v1284
      %v1317 = vadd.f32 %v1217, %v1285
      %v1318 = vadd.f32 %v1218, %v1286
      %v1319 = vadd.f32 %v1219, %v1287
      %v1320 = vadd.f32 %v1220, %v1288
      %v1321 = vadd.f32 %v1221, %v1289
      %v1322 = vadd.f32 %v1222, %v1290
      %v1323 = vadd.f32 %v1223, %v1291
      %v1324 = vadd.f32 %v1224, %v1292
      %v1325 = vadd.f32 %v1225, %v1293
      %v1326 = vadd.f32 %v1226, %v1294
      %v1327 = vadd.f32 %v1227, %v1295
      %v1328 = vadd.f32 %v1228, %v1296
      %v1329 = vadd.f32 %v1229, %v1297
      %v1330 = vadd.f32 %v1230, %v1298
      %v1331 = vld [vmem:[%s1030 + $0x3] sm:$0xff]
      %v1332 = vld [vmem:[%s1030 + $0xb] sm:$0xff]
      %v1333 = vld [vmem:[%s1030 + $0x1b] sm:$0xff]
      %v1334 = vld [vmem:[%s1030 + $0x23] sm:$0xff]
      %v1335 = vld [vmem:[%s1030 + $0x33] sm:$0xff]
      %v1336 = vld [vmem:[%s1030 + $0x3b] sm:$0xff]
      %v1337 = vld [vmem:[%s1030 + $0x4b] sm:$0xff]
      %v1338 = vld [vmem:[%s1030 + $0x53] sm:$0xff]
      %v1339 = vld [vmem:[%s1030 + $0x63] sm:$0xff]
      %v1340 = vld [vmem:[%s1030 + $0x6b] sm:$0xff]
      %v1341 = vld [vmem:[%s1030 + $0x7b] sm:$0xff]
      %v1342 = vld [vmem:[%s1030 + $0x83] sm:$0xff]
      %v1343 = vld [vmem:[%s1030 + $0x93] sm:$0xff]
      %v1344 = vld [vmem:[%s1030 + $0x9b] sm:$0xff]
      %v1345 = vld [vmem:[%s1030 + $0xab] sm:$0xff]
      %v1346 = vld [vmem:[%s1030 + $0xb3] sm:$0xff]
      %v1347 = vld [vmem:[%s1030 + $0xc3] sm:$0xff]
      %v1348 = vld [vmem:[%s1030 + $0xcb] sm:$0xff]
      %v1349 = vld [vmem:[%s1030 + $0xdb] sm:$0xff]
      %v1350 = vld [vmem:[%s1030 + $0xe3] sm:$0xff]
      %v1351 = vld [vmem:[%s1030 + $0xf3] sm:$0xff]
      %v1352 = vld [vmem:[%s1030 + $0xfb] sm:$0xff]
      %v1353 = vld [vmem:[%s1030 + $0x10b] sm:$0xff]
      %v1354 = vld [vmem:[%s1030 + $0x113] sm:$0xff]
      %v1355 = vld [vmem:[%s1030 + $0x123] sm:$0xff]
      %v1356 = vld [vmem:[%s1030 + $0x12b] sm:$0xff]
      %v1357 = vld [vmem:[%s1030 + $0x13b] sm:$0xff]
      %v1358 = vld [vmem:[%s1030 + $0x143] sm:$0xff]
      %v1359 = vld [vmem:[%s1030 + $0x153] sm:$0xff]
      %v1360 = vld [vmem:[%s1030 + $0x15b] sm:$0xff]
      %v1361 = vld [vmem:[%s1030 + $0x16b] sm:$0xff]
      %v1362 = vld [vmem:[%s1030 + $0x173] sm:$0xff]
      %v1363 = vlaneseq
      %v1364 = vshrl.u32 %v1363, 7
      %v1365 = vsub.s32 3, %v1364
      %v1366 = vrot.slane %v324, %v1365
      %v1367 = vmul.f32 %v1331, %v1366
      %v1368 = vmul.f32 %v1332, %v1366
      %v1369 = vmul.f32 %v1333, %v1366
      %v1370 = vmul.f32 %v1334, %v1366
      %v1371 = vmul.f32 %v1335, %v1366
      %v1372 = vmul.f32 %v1336, %v1366
      %v1373 = vmul.f32 %v1337, %v1366
      %v1374 = vmul.f32 %v1338, %v1366
      %v1375 = vmul.f32 %v1339, %v1366
      %v1376 = vmul.f32 %v1340, %v1366
      %v1377 = vmul.f32 %v1341, %v1366
      %v1378 = vmul.f32 %v1342, %v1366
      %v1379 = vmul.f32 %v1343, %v1366
      %v1380 = vmul.f32 %v1344, %v1366
      %v1381 = vmul.f32 %v1345, %v1366
      %v1382 = vmul.f32 %v1346, %v1366
      %v1383 = vmul.f32 %v1347, %v1366
      %v1384 = vmul.f32 %v1348, %v1366
      %v1385 = vmul.f32 %v1349, %v1366
      %v1386 = vmul.f32 %v1350, %v1366
      %v1387 = vmul.f32 %v1351, %v1366
      %v1388 = vmul.f32 %v1352, %v1366
      %v1389 = vmul.f32 %v1353, %v1366
      %v1390 = vmul.f32 %v1354, %v1366
      %v1391 = vmul.f32 %v1355, %v1366
      %v1392 = vmul.f32 %v1356, %v1366
      %v1393 = vmul.f32 %v1357, %v1366
      %v1394 = vmul.f32 %v1358, %v1366
      %v1395 = vmul.f32 %v1359, %v1366
      %v1396 = vmul.f32 %v1360, %v1366
      %v1397 = vmul.f32 %v1361, %v1366
      %v1398 = vmul.f32 %v1362, %v1366
      %v1399 = vadd.f32 %v1299, %v1367
      %v1400 = vadd.f32 %v1300, %v1368
      %v1401 = vadd.f32 %v1301, %v1369
      %v1402 = vadd.f32 %v1302, %v1370
      %v1403 = vadd.f32 %v1303, %v1371
      %v1404 = vadd.f32 %v1304, %v1372
      %v1405 = vadd.f32 %v1305, %v1373
      %v1406 = vadd.f32 %v1306, %v1374
      %v1407 = vadd.f32 %v1307, %v1375
      %v1408 = vadd.f32 %v1308, %v1376
      %v1409 = vadd.f32 %v1309, %v1377
      %v1410 = vadd.f32 %v1310, %v1378
      %v1411 = vadd.f32 %v1311, %v1379
      %v1412 = vadd.f32 %v1312, %v1380
      %v1413 = vadd.f32 %v1313, %v1381
      %v1414 = vadd.f32 %v1314, %v1382
      %v1415 = vadd.f32 %v1315, %v1383
      %v1416 = vadd.f32 %v1316, %v1384
      %v1417 = vadd.f32 %v1317, %v1385
      %v1418 = vadd.f32 %v1318, %v1386
      %v1419 = vadd.f32 %v1319, %v1387
      %v1420 = vadd.f32 %v1320, %v1388
      %v1421 = vadd.f32 %v1321, %v1389
      %v1422 = vadd.f32 %v1322, %v1390
      %v1423 = vadd.f32 %v1323, %v1391
      %v1424 = vadd.f32 %v1324, %v1392
      %v1425 = vadd.f32 %v1325, %v1393
      %v1426 = vadd.f32 %v1326, %v1394
      %v1427 = vadd.f32 %v1327, %v1395
      %v1428 = vadd.f32 %v1328, %v1396
      %v1429 = vadd.f32 %v1329, %v1397
      %v1430 = vadd.f32 %v1330, %v1398
      %v1431 = vld [vmem:[%s1030 + $0x4] sm:$0xff]
      %v1432 = vld [vmem:[%s1030 + $0xc] sm:$0xff]
      %v1433 = vld [vmem:[%s1030 + $0x1c] sm:$0xff]
      %v1434 = vld [vmem:[%s1030 + $0x24] sm:$0xff]
      %v1435 = vld [vmem:[%s1030 + $0x34] sm:$0xff]
      %v1436 = vld [vmem:[%s1030 + $0x3c] sm:$0xff]
      %v1437 = vld [vmem:[%s1030 + $0x4c] sm:$0xff]
      %v1438 = vld [vmem:[%s1030 + $0x54] sm:$0xff]
      %v1439 = vld [vmem:[%s1030 + $0x64] sm:$0xff]
      %v1440 = vld [vmem:[%s1030 + $0x6c] sm:$0xff]
      %v1441 = vld [vmem:[%s1030 + $0x7c] sm:$0xff]
      %v1442 = vld [vmem:[%s1030 + $0x84] sm:$0xff]
      %v1443 = vld [vmem:[%s1030 + $0x94] sm:$0xff]
      %v1444 = vld [vmem:[%s1030 + $0x9c] sm:$0xff]
      %v1445 = vld [vmem:[%s1030 + $0xac] sm:$0xff]
      %v1446 = vld [vmem:[%s1030 + $0xb4] sm:$0xff]
      %v1447 = vld [vmem:[%s1030 + $0xc4] sm:$0xff]
      %v1448 = vld [vmem:[%s1030 + $0xcc] sm:$0xff]
      %v1449 = vld [vmem:[%s1030 + $0xdc] sm:$0xff]
      %v1450 = vld [vmem:[%s1030 + $0xe4] sm:$0xff]
      %v1451 = vld [vmem:[%s1030 + $0xf4] sm:$0xff]
      %v1452 = vld [vmem:[%s1030 + $0xfc] sm:$0xff]
      %v1453 = vld [vmem:[%s1030 + $0x10c] sm:$0xff]
      %v1454 = vld [vmem:[%s1030 + $0x114] sm:$0xff]
      %v1455 = vld [vmem:[%s1030 + $0x124] sm:$0xff]
      %v1456 = vld [vmem:[%s1030 + $0x12c] sm:$0xff]
      %v1457 = vld [vmem:[%s1030 + $0x13c] sm:$0xff]
      %v1458 = vld [vmem:[%s1030 + $0x144] sm:$0xff]
      %v1459 = vld [vmem:[%s1030 + $0x154] sm:$0xff]
      %v1460 = vld [vmem:[%s1030 + $0x15c] sm:$0xff]
      %v1461 = vld [vmem:[%s1030 + $0x16c] sm:$0xff]
      %v1462 = vld [vmem:[%s1030 + $0x174] sm:$0xff]
      %v1463 = vlaneseq
      %v1464 = vshrl.u32 %v1463, 7
      %v1465 = vsub.s32 4, %v1464
      %v1466 = vrot.slane %v324, %v1465
      %v1467 = vmul.f32 %v1431, %v1466
      %v1468 = vmul.f32 %v1432, %v1466
      %v1469 = vmul.f32 %v1433, %v1466
      %v1470 = vmul.f32 %v1434, %v1466
      %v1471 = vmul.f32 %v1435, %v1466
      %v1472 = vmul.f32 %v1436, %v1466
      %v1473 = vmul.f32 %v1437, %v1466
      %v1474 = vmul.f32 %v1438, %v1466
      %v1475 = vmul.f32 %v1439, %v1466
      %v1476 = vmul.f32 %v1440, %v1466
      %v1477 = vmul.f32 %v1441, %v1466
      %v1478 = vmul.f32 %v1442, %v1466
      %v1479 = vmul.f32 %v1443, %v1466
      %v1480 = vmul.f32 %v1444, %v1466
      %v1481 = vmul.f32 %v1445, %v1466
      %v1482 = vmul.f32 %v1446, %v1466
      %v1483 = vmul.f32 %v1447, %v1466
      %v1484 = vmul.f32 %v1448, %v1466
      %v1485 = vmul.f32 %v1449, %v1466
      %v1486 = vmul.f32 %v1450, %v1466
      %v1487 = vmul.f32 %v1451, %v1466
      %v1488 = vmul.f32 %v1452, %v1466
      %v1489 = vmul.f32 %v1453, %v1466
      %v1490 = vmul.f32 %v1454, %v1466
      %v1491 = vmul.f32 %v1455, %v1466
      %v1492 = vmul.f32 %v1456, %v1466
      %v1493 = vmul.f32 %v1457, %v1466
      %v1494 = vmul.f32 %v1458, %v1466
      %v1495 = vmul.f32 %v1459, %v1466
      %v1496 = vmul.f32 %v1460, %v1466
      %v1497 = vmul.f32 %v1461, %v1466
      %v1498 = vmul.f32 %v1462, %v1466
      %v1499 = vadd.f32 %v1399, %v1467
      %v1500 = vadd.f32 %v1400, %v1468
      %v1501 = vadd.f32 %v1401, %v1469
      %v1502 = vadd.f32 %v1402, %v1470
      %v1503 = vadd.f32 %v1403, %v1471
      %v1504 = vadd.f32 %v1404, %v1472
      %v1505 = vadd.f32 %v1405, %v1473
      %v1506 = vadd.f32 %v1406, %v1474
      %v1507 = vadd.f32 %v1407, %v1475
      %v1508 = vadd.f32 %v1408, %v1476
      %v1509 = vadd.f32 %v1409, %v1477
      %v1510 = vadd.f32 %v1410, %v1478
      %v1511 = vadd.f32 %v1411, %v1479
      %v1512 = vadd.f32 %v1412, %v1480
      %v1513 = vadd.f32 %v1413, %v1481
      %v1514 = vadd.f32 %v1414, %v1482
      %v1515 = vadd.f32 %v1415, %v1483
      %v1516 = vadd.f32 %v1416, %v1484
      %v1517 = vadd.f32 %v1417, %v1485
      %v1518 = vadd.f32 %v1418, %v1486
      %v1519 = vadd.f32 %v1419, %v1487
      %v1520 = vadd.f32 %v1420, %v1488
      %v1521 = vadd.f32 %v1421, %v1489
      %v1522 = vadd.f32 %v1422, %v1490
      %v1523 = vadd.f32 %v1423, %v1491
      %v1524 = vadd.f32 %v1424, %v1492
      %v1525 = vadd.f32 %v1425, %v1493
      %v1526 = vadd.f32 %v1426, %v1494
      %v1527 = vadd.f32 %v1427, %v1495
      %v1528 = vadd.f32 %v1428, %v1496
      %v1529 = vadd.f32 %v1429, %v1497
      %v1530 = vadd.f32 %v1430, %v1498
      %v1531 = vld [vmem:[%s1030 + $0x5] sm:$0xff]
      %v1532 = vld [vmem:[%s1030 + $0xd] sm:$0xff]
      %v1533 = vld [vmem:[%s1030 + $0x1d] sm:$0xff]
      %v1534 = vld [vmem:[%s1030 + $0x25] sm:$0xff]
      %v1535 = vld [vmem:[%s1030 + $0x35] sm:$0xff]
      %v1536 = vld [vmem:[%s1030 + $0x3d] sm:$0xff]
      %v1537 = vld [vmem:[%s1030 + $0x4d] sm:$0xff]
      %v1538 = vld [vmem:[%s1030 + $0x55] sm:$0xff]
      %v1539 = vld [vmem:[%s1030 + $0x65] sm:$0xff]
      %v1540 = vld [vmem:[%s1030 + $0x6d] sm:$0xff]
      %v1541 = vld [vmem:[%s1030 + $0x7d] sm:$0xff]
      %v1542 = vld [vmem:[%s1030 + $0x85] sm:$0xff]
      %v1543 = vld [vmem:[%s1030 + $0x95] sm:$0xff]
      %v1544 = vld [vmem:[%s1030 + $0x9d] sm:$0xff]
      %v1545 = vld [vmem:[%s1030 + $0xad] sm:$0xff]
      %v1546 = vld [vmem:[%s1030 + $0xb5] sm:$0xff]
      %v1547 = vld [vmem:[%s1030 + $0xc5] sm:$0xff]
      %v1548 = vld [vmem:[%s1030 + $0xcd] sm:$0xff]
      %v1549 = vld [vmem:[%s1030 + $0xdd] sm:$0xff]
      %v1550 = vld [vmem:[%s1030 + $0xe5] sm:$0xff]
      %v1551 = vld [vmem:[%s1030 + $0xf5] sm:$0xff]
      %v1552 = vld [vmem:[%s1030 + $0xfd] sm:$0xff]
      %v1553 = vld [vmem:[%s1030 + $0x10d] sm:$0xff]
      %v1554 = vld [vmem:[%s1030 + $0x115] sm:$0xff]
      %v1555 = vld [vmem:[%s1030 + $0x125] sm:$0xff]
      %v1556 = vld [vmem:[%s1030 + $0x12d] sm:$0xff]
      %v1557 = vld [vmem:[%s1030 + $0x13d] sm:$0xff]
      %v1558 = vld [vmem:[%s1030 + $0x145] sm:$0xff]
      %v1559 = vld [vmem:[%s1030 + $0x155] sm:$0xff]
      %v1560 = vld [vmem:[%s1030 + $0x15d] sm:$0xff]
      %v1561 = vld [vmem:[%s1030 + $0x16d] sm:$0xff]
      %v1562 = vld [vmem:[%s1030 + $0x175] sm:$0xff]
      %v1563 = vlaneseq
      %v1564 = vshrl.u32 %v1563, 7
      %v1565 = vsub.s32 5, %v1564
      %v1566 = vrot.slane %v324, %v1565
      %v1567 = vmul.f32 %v1531, %v1566
      %v1568 = vmul.f32 %v1532, %v1566
      %v1569 = vmul.f32 %v1533, %v1566
      %v1570 = vmul.f32 %v1534, %v1566
      %v1571 = vmul.f32 %v1535, %v1566
      %v1572 = vmul.f32 %v1536, %v1566
      %v1573 = vmul.f32 %v1537, %v1566
      %v1574 = vmul.f32 %v1538, %v1566
      %v1575 = vmul.f32 %v1539, %v1566
      %v1576 = vmul.f32 %v1540, %v1566
      %v1577 = vmul.f32 %v1541, %v1566
      %v1578 = vmul.f32 %v1542, %v1566
      %v1579 = vmul.f32 %v1543, %v1566
      %v1580 = vmul.f32 %v1544, %v1566
      %v1581 = vmul.f32 %v1545, %v1566
      %v1582 = vmul.f32 %v1546, %v1566
      %v1583 = vmul.f32 %v1547, %v1566
      %v1584 = vmul.f32 %v1548, %v1566
      %v1585 = vmul.f32 %v1549, %v1566
      %v1586 = vmul.f32 %v1550, %v1566
      %v1587 = vmul.f32 %v1551, %v1566
      %v1588 = vmul.f32 %v1552, %v1566
      %v1589 = vmul.f32 %v1553, %v1566
      %v1590 = vmul.f32 %v1554, %v1566
      %v1591 = vmul.f32 %v1555, %v1566
      %v1592 = vmul.f32 %v1556, %v1566
      %v1593 = vmul.f32 %v1557, %v1566
      %v1594 = vmul.f32 %v1558, %v1566
      %v1595 = vmul.f32 %v1559, %v1566
      %v1596 = vmul.f32 %v1560, %v1566
      %v1597 = vmul.f32 %v1561, %v1566
      %v1598 = vmul.f32 %v1562, %v1566
      %v1599 = vadd.f32 %v1499, %v1567
      %v1600 = vadd.f32 %v1500, %v1568
      %v1601 = vadd.f32 %v1501, %v1569
      %v1602 = vadd.f32 %v1502, %v1570
      %v1603 = vadd.f32 %v1503, %v1571
      %v1604 = vadd.f32 %v1504, %v1572
      %v1605 = vadd.f32 %v1505, %v1573
      %v1606 = vadd.f32 %v1506, %v1574
      %v1607 = vadd.f32 %v1507, %v1575
      %v1608 = vadd.f32 %v1508, %v1576
      %v1609 = vadd.f32 %v1509, %v1577
      %v1610 = vadd.f32 %v1510, %v1578
      %v1611 = vadd.f32 %v1511, %v1579
      %v1612 = vadd.f32 %v1512, %v1580
      %v1613 = vadd.f32 %v1513, %v1581
      %v1614 = vadd.f32 %v1514, %v1582
      %v1615 = vadd.f32 %v1515, %v1583
      %v1616 = vadd.f32 %v1516, %v1584
      %v1617 = vadd.f32 %v1517, %v1585
      %v1618 = vadd.f32 %v1518, %v1586
      %v1619 = vadd.f32 %v1519, %v1587
      %v1620 = vadd.f32 %v1520, %v1588
      %v1621 = vadd.f32 %v1521, %v1589
      %v1622 = vadd.f32 %v1522, %v1590
      %v1623 = vadd.f32 %v1523, %v1591
      %v1624 = vadd.f32 %v1524, %v1592
      %v1625 = vadd.f32 %v1525, %v1593
      %v1626 = vadd.f32 %v1526, %v1594
      %v1627 = vadd.f32 %v1527, %v1595
      %v1628 = vadd.f32 %v1528, %v1596
      %v1629 = vadd.f32 %v1529, %v1597
      %v1630 = vadd.f32 %v1530, %v1598
      %v1631 = vld [vmem:[%s1030 + $0x6] sm:$0xff]
      %v1632 = vld [vmem:[%s1030 + $0xe] sm:$0xff]
      %v1633 = vld [vmem:[%s1030 + $0x1e] sm:$0xff]
      %v1634 = vld [vmem:[%s1030 + $0x26] sm:$0xff]
      %v1635 = vld [vmem:[%s1030 + $0x36] sm:$0xff]
      %v1636 = vld [vmem:[%s1030 + $0x3e] sm:$0xff]
      %v1637 = vld [vmem:[%s1030 + $0x4e] sm:$0xff]
      %v1638 = vld [vmem:[%s1030 + $0x56] sm:$0xff]
      %v1639 = vld [vmem:[%s1030 + $0x66] sm:$0xff]
      %v1640 = vld [vmem:[%s1030 + $0x6e] sm:$0xff]
      %v1641 = vld [vmem:[%s1030 + $0x7e] sm:$0xff]
      %v1642 = vld [vmem:[%s1030 + $0x86] sm:$0xff]
      %v1643 = vld [vmem:[%s1030 + $0x96] sm:$0xff]
      %v1644 = vld [vmem:[%s1030 + $0x9e] sm:$0xff]
      %v1645 = vld [vmem:[%s1030 + $0xae] sm:$0xff]
      %v1646 = vld [vmem:[%s1030 + $0xb6] sm:$0xff]
      %v1647 = vld [vmem:[%s1030 + $0xc6] sm:$0xff]
      %v1648 = vld [vmem:[%s1030 + $0xce] sm:$0xff]
      %v1649 = vld [vmem:[%s1030 + $0xde] sm:$0xff]
      %v1650 = vld [vmem:[%s1030 + $0xe6] sm:$0xff]
      %v1651 = vld [vmem:[%s1030 + $0xf6] sm:$0xff]
      %v1652 = vld [vmem:[%s1030 + $0xfe] sm:$0xff]
      %v1653 = vld [vmem:[%s1030 + $0x10e] sm:$0xff]
      %v1654 = vld [vmem:[%s1030 + $0x116] sm:$0xff]
      %v1655 = vld [vmem:[%s1030 + $0x126] sm:$0xff]
      %v1656 = vld [vmem:[%s1030 + $0x12e] sm:$0xff]
      %v1657 = vld [vmem:[%s1030 + $0x13e] sm:$0xff]
      %v1658 = vld [vmem:[%s1030 + $0x146] sm:$0xff]
      %v1659 = vld [vmem:[%s1030 + $0x156] sm:$0xff]
      %v1660 = vld [vmem:[%s1030 + $0x15e] sm:$0xff]
      %v1661 = vld [vmem:[%s1030 + $0x16e] sm:$0xff]
      %v1662 = vld [vmem:[%s1030 + $0x176] sm:$0xff]
      %v1663 = vlaneseq
      %v1664 = vshrl.u32 %v1663, 7
      %v1665 = vsub.s32 6, %v1664
      %v1666 = vrot.slane %v324, %v1665
      %v1667 = vmul.f32 %v1631, %v1666
      %v1668 = vmul.f32 %v1632, %v1666
      %v1669 = vmul.f32 %v1633, %v1666
      %v1670 = vmul.f32 %v1634, %v1666
      %v1671 = vmul.f32 %v1635, %v1666
      %v1672 = vmul.f32 %v1636, %v1666
      %v1673 = vmul.f32 %v1637, %v1666
      %v1674 = vmul.f32 %v1638, %v1666
      %v1675 = vmul.f32 %v1639, %v1666
      %v1676 = vmul.f32 %v1640, %v1666
      %v1677 = vmul.f32 %v1641, %v1666
      %v1678 = vmul.f32 %v1642, %v1666
      %v1679 = vmul.f32 %v1643, %v1666
      %v1680 = vmul.f32 %v1644, %v1666
      %v1681 = vmul.f32 %v1645, %v1666
      %v1682 = vmul.f32 %v1646, %v1666
      %v1683 = vmul.f32 %v1647, %v1666
      %v1684 = vmul.f32 %v1648, %v1666
      %v1685 = vmul.f32 %v1649, %v1666
      %v1686 = vmul.f32 %v1650, %v1666
      %v1687 = vmul.f32 %v1651, %v1666
      %v1688 = vmul.f32 %v1652, %v1666
      %v1689 = vmul.f32 %v1653, %v1666
      %v1690 = vmul.f32 %v1654, %v1666
      %v1691 = vmul.f32 %v1655, %v1666
      %v1692 = vmul.f32 %v1656, %v1666
      %v1693 = vmul.f32 %v1657, %v1666
      %v1694 = vmul.f32 %v1658, %v1666
      %v1695 = vmul.f32 %v1659, %v1666
      %v1696 = vmul.f32 %v1660, %v1666
      %v1697 = vmul.f32 %v1661, %v1666
      %v1698 = vmul.f32 %v1662, %v1666
      %v1699 = vadd.f32 %v1599, %v1667
      %v1700 = vadd.f32 %v1600, %v1668
      %v1701 = vadd.f32 %v1601, %v1669
      %v1702 = vadd.f32 %v1602, %v1670
      %v1703 = vadd.f32 %v1603, %v1671
      %v1704 = vadd.f32 %v1604, %v1672
      %v1705 = vadd.f32 %v1605, %v1673
      %v1706 = vadd.f32 %v1606, %v1674
      %v1707 = vadd.f32 %v1607, %v1675
      %v1708 = vadd.f32 %v1608, %v1676
      %v1709 = vadd.f32 %v1609, %v1677
      %v1710 = vadd.f32 %v1610, %v1678
      %v1711 = vadd.f32 %v1611, %v1679
      %v1712 = vadd.f32 %v1612, %v1680
      %v1713 = vadd.f32 %v1613, %v1681
      %v1714 = vadd.f32 %v1614, %v1682
      %v1715 = vadd.f32 %v1615, %v1683
      %v1716 = vadd.f32 %v1616, %v1684
      %v1717 = vadd.f32 %v1617, %v1685
      %v1718 = vadd.f32 %v1618, %v1686
      %v1719 = vadd.f32 %v1619, %v1687
      %v1720 = vadd.f32 %v1620, %v1688
      %v1721 = vadd.f32 %v1621, %v1689
      %v1722 = vadd.f32 %v1622, %v1690
      %v1723 = vadd.f32 %v1623, %v1691
      %v1724 = vadd.f32 %v1624, %v1692
      %v1725 = vadd.f32 %v1625, %v1693
      %v1726 = vadd.f32 %v1626, %v1694
      %v1727 = vadd.f32 %v1627, %v1695
      %v1728 = vadd.f32 %v1628, %v1696
      %v1729 = vadd.f32 %v1629, %v1697
      %v1730 = vadd.f32 %v1630, %v1698
      %s1731 = scalar_lea.vmem [#allocation2], 48
      %v1732 = vld [vmem:[%s1731] sm:$0xff]
      %v1733 = vld [vmem:[%s1731 + $0x8] sm:$0xff]
      %v1734 = vld [vmem:[%s1731 + $0x18] sm:$0xff]
      %v1735 = vld [vmem:[%s1731 + $0x20] sm:$0xff]
      %v1736 = vld [vmem:[%s1731 + $0x30] sm:$0xff]
      %v1737 = vld [vmem:[%s1731 + $0x38] sm:$0xff]
      %v1738 = vld [vmem:[%s1731 + $0x48] sm:$0xff]
      %v1739 = vld [vmem:[%s1731 + $0x50] sm:$0xff]
      %v1740 = vld [vmem:[%s1731 + $0x60] sm:$0xff]
      %v1741 = vld [vmem:[%s1731 + $0x68] sm:$0xff]
      %v1742 = vld [vmem:[%s1731 + $0x78] sm:$0xff]
      %v1743 = vld [vmem:[%s1731 + $0x80] sm:$0xff]
      %v1744 = vld [vmem:[%s1731 + $0x90] sm:$0xff]
      %v1745 = vld [vmem:[%s1731 + $0x98] sm:$0xff]
      %v1746 = vld [vmem:[%s1731 + $0xa8] sm:$0xff]
      %v1747 = vld [vmem:[%s1731 + $0xb0] sm:$0xff]
      %v1748 = vld [vmem:[%s1731 + $0xc0] sm:$0xff]
      %v1749 = vld [vmem:[%s1731 + $0xc8] sm:$0xff]
      %v1750 = vld [vmem:[%s1731 + $0xd8] sm:$0xff]
      %v1751 = vld [vmem:[%s1731 + $0xe0] sm:$0xff]
      %v1752 = vld [vmem:[%s1731 + $0xf0] sm:$0xff]
      %v1753 = vld [vmem:[%s1731 + $0xf8] sm:$0xff]
      %v1754 = vld [vmem:[%s1731 + $0x108] sm:$0xff]
      %v1755 = vld [vmem:[%s1731 + $0x110] sm:$0xff]
      %v1756 = vld [vmem:[%s1731 + $0x120] sm:$0xff]
      %v1757 = vld [vmem:[%s1731 + $0x128] sm:$0xff]
      %v1758 = vld [vmem:[%s1731 + $0x138] sm:$0xff]
      %v1759 = vld [vmem:[%s1731 + $0x140] sm:$0xff]
      %v1760 = vld [vmem:[%s1731 + $0x150] sm:$0xff]
      %v1761 = vld [vmem:[%s1731 + $0x158] sm:$0xff]
      %v1762 = vld [vmem:[%s1731 + $0x168] sm:$0xff]
      %v1763 = vld [vmem:[%s1731 + $0x170] sm:$0xff]
      %v1764 = vlaneseq
      %v1765 = vshrl.u32 %v1764, 7
      %v1766 = vsub.s32 0, %v1765
      %v1767 = vrot.slane %v325, %v1766
      %v1768 = vmul.f32 %v1732, %v1767
      %v1769 = vmul.f32 %v1733, %v1767
      %v1770 = vmul.f32 %v1734, %v1767
      %v1771 = vmul.f32 %v1735, %v1767
      %v1772 = vmul.f32 %v1736, %v1767
      %v1773 = vmul.f32 %v1737, %v1767
      %v1774 = vmul.f32 %v1738, %v1767
      %v1775 = vmul.f32 %v1739, %v1767
      %v1776 = vmul.f32 %v1740, %v1767
      %v1777 = vmul.f32 %v1741, %v1767
      %v1778 = vmul.f32 %v1742, %v1767
      %v1779 = vmul.f32 %v1743, %v1767
      %v1780 = vmul.f32 %v1744, %v1767
      %v1781 = vmul.f32 %v1745, %v1767
      %v1782 = vmul.f32 %v1746, %v1767
      %v1783 = vmul.f32 %v1747, %v1767
      %v1784 = vmul.f32 %v1748, %v1767
      %v1785 = vmul.f32 %v1749, %v1767
      %v1786 = vmul.f32 %v1750, %v1767
      %v1787 = vmul.f32 %v1751, %v1767
      %v1788 = vmul.f32 %v1752, %v1767
      %v1789 = vmul.f32 %v1753, %v1767
      %v1790 = vmul.f32 %v1754, %v1767
      %v1791 = vmul.f32 %v1755, %v1767
      %v1792 = vmul.f32 %v1756, %v1767
      %v1793 = vmul.f32 %v1757, %v1767
      %v1794 = vmul.f32 %v1758, %v1767
      %v1795 = vmul.f32 %v1759, %v1767
      %v1796 = vmul.f32 %v1760, %v1767
      %v1797 = vmul.f32 %v1761, %v1767
      %v1798 = vmul.f32 %v1762, %v1767
      %v1799 = vmul.f32 %v1763, %v1767
      %v1800 = vadd.f32 %v1699, %v1768
      %v1801 = vadd.f32 %v1700, %v1769
      %v1802 = vadd.f32 %v1701, %v1770
      %v1803 = vadd.f32 %v1702, %v1771
      %v1804 = vadd.f32 %v1703, %v1772
      %v1805 = vadd.f32 %v1704, %v1773
      %v1806 = vadd.f32 %v1705, %v1774
      %v1807 = vadd.f32 %v1706, %v1775
      %v1808 = vadd.f32 %v1707, %v1776
      %v1809 = vadd.f32 %v1708, %v1777
      %v1810 = vadd.f32 %v1709, %v1778
      %v1811 = vadd.f32 %v1710, %v1779
      %v1812 = vadd.f32 %v1711, %v1780
      %v1813 = vadd.f32 %v1712, %v1781
      %v1814 = vadd.f32 %v1713, %v1782
      %v1815 = vadd.f32 %v1714, %v1783
      %v1816 = vadd.f32 %v1715, %v1784
      %v1817 = vadd.f32 %v1716, %v1785
      %v1818 = vadd.f32 %v1717, %v1786
      %v1819 = vadd.f32 %v1718, %v1787
      %v1820 = vadd.f32 %v1719, %v1788
      %v1821 = vadd.f32 %v1720, %v1789
      %v1822 = vadd.f32 %v1721, %v1790
      %v1823 = vadd.f32 %v1722, %v1791
      %v1824 = vadd.f32 %v1723, %v1792
      %v1825 = vadd.f32 %v1724, %v1793
      %v1826 = vadd.f32 %v1725, %v1794
      %v1827 = vadd.f32 %v1726, %v1795
      %v1828 = vadd.f32 %v1727, %v1796
      %v1829 = vadd.f32 %v1728, %v1797
      %v1830 = vadd.f32 %v1729, %v1798
      %v1831 = vadd.f32 %v1730, %v1799
      %v1832 = vld [vmem:[%s1731 + $0x1] sm:$0xff]
      %v1833 = vld [vmem:[%s1731 + $0x9] sm:$0xff]
      %v1834 = vld [vmem:[%s1731 + $0x19] sm:$0xff]
      %v1835 = vld [vmem:[%s1731 + $0x21] sm:$0xff]
      %v1836 = vld [vmem:[%s1731 + $0x31] sm:$0xff]
      %v1837 = vld [vmem:[%s1731 + $0x39] sm:$0xff]
      %v1838 = vld [vmem:[%s1731 + $0x49] sm:$0xff]
      %v1839 = vld [vmem:[%s1731 + $0x51] sm:$0xff]
      %v1840 = vld [vmem:[%s1731 + $0x61] sm:$0xff]
      %v1841 = vld [vmem:[%s1731 + $0x69] sm:$0xff]
      %v1842 = vld [vmem:[%s1731 + $0x79] sm:$0xff]
      %v1843 = vld [vmem:[%s1731 + $0x81] sm:$0xff]
      %v1844 = vld [vmem:[%s1731 + $0x91] sm:$0xff]
      %v1845 = vld [vmem:[%s1731 + $0x99] sm:$0xff]
      %v1846 = vld [vmem:[%s1731 + $0xa9] sm:$0xff]
      %v1847 = vld [vmem:[%s1731 + $0xb1] sm:$0xff]
      %v1848 = vld [vmem:[%s1731 + $0xc1] sm:$0xff]
      %v1849 = vld [vmem:[%s1731 + $0xc9] sm:$0xff]
      %v1850 = vld [vmem:[%s1731 + $0xd9] sm:$0xff]
      %v1851 = vld [vmem:[%s1731 + $0xe1] sm:$0xff]
      %v1852 = vld [vmem:[%s1731 + $0xf1] sm:$0xff]
      %v1853 = vld [vmem:[%s1731 + $0xf9] sm:$0xff]
      %v1854 = vld [vmem:[%s1731 + $0x109] sm:$0xff]
      %v1855 = vld [vmem:[%s1731 + $0x111] sm:$0xff]
      %v1856 = vld [vmem:[%s1731 + $0x121] sm:$0xff]
      %v1857 = vld [vmem:[%s1731 + $0x129] sm:$0xff]
      %v1858 = vld [vmem:[%s1731 + $0x139] sm:$0xff]
      %v1859 = vld [vmem:[%s1731 + $0x141] sm:$0xff]
      %v1860 = vld [vmem:[%s1731 + $0x151] sm:$0xff]
      %v1861 = vld [vmem:[%s1731 + $0x159] sm:$0xff]
      %v1862 = vld [vmem:[%s1731 + $0x169] sm:$0xff]
      %v1863 = vld [vmem:[%s1731 + $0x171] sm:$0xff]
      %v1864 = vlaneseq
      %v1865 = vshrl.u32 %v1864, 7
      %v1866 = vsub.s32 1, %v1865
      %v1867 = vrot.slane %v325, %v1866
      %v1868 = vmul.f32 %v1832, %v1867
      %v1869 = vmul.f32 %v1833, %v1867
      %v1870 = vmul.f32 %v1834, %v1867
      %v1871 = vmul.f32 %v1835, %v1867
      %v1872 = vmul.f32 %v1836, %v1867
      %v1873 = vmul.f32 %v1837, %v1867
      %v1874 = vmul.f32 %v1838, %v1867
      %v1875 = vmul.f32 %v1839, %v1867
      %v1876 = vmul.f32 %v1840, %v1867
      %v1877 = vmul.f32 %v1841, %v1867
      %v1878 = vmul.f32 %v1842, %v1867
      %v1879 = vmul.f32 %v1843, %v1867
      %v1880 = vmul.f32 %v1844, %v1867
      %v1881 = vmul.f32 %v1845, %v1867
      %v1882 = vmul.f32 %v1846, %v1867
      %v1883 = vmul.f32 %v1847, %v1867
      %v1884 = vmul.f32 %v1848, %v1867
      %v1885 = vmul.f32 %v1849, %v1867
      %v1886 = vmul.f32 %v1850, %v1867
      %v1887 = vmul.f32 %v1851, %v1867
      %v1888 = vmul.f32 %v1852, %v1867
      %v1889 = vmul.f32 %v1853, %v1867
      %v1890 = vmul.f32 %v1854, %v1867
      %v1891 = vmul.f32 %v1855, %v1867
      %v1892 = vmul.f32 %v1856, %v1867
      %v1893 = vmul.f32 %v1857, %v1867
      %v1894 = vmul.f32 %v1858, %v1867
      %v1895 = vmul.f32 %v1859, %v1867
      %v1896 = vmul.f32 %v1860, %v1867
      %v1897 = vmul.f32 %v1861, %v1867
      %v1898 = vmul.f32 %v1862, %v1867
      %v1899 = vmul.f32 %v1863, %v1867
      %v1900 = vadd.f32 %v1800, %v1868
      %v1901 = vadd.f32 %v1801, %v1869
      %v1902 = vadd.f32 %v1802, %v1870
      %v1903 = vadd.f32 %v1803, %v1871
      %v1904 = vadd.f32 %v1804, %v1872
      %v1905 = vadd.f32 %v1805, %v1873
      %v1906 = vadd.f32 %v1806, %v1874
      %v1907 = vadd.f32 %v1807, %v1875
      %v1908 = vadd.f32 %v1808, %v1876
      %v1909 = vadd.f32 %v1809, %v1877
      %v1910 = vadd.f32 %v1810, %v1878
      %v1911 = vadd.f32 %v1811, %v1879
      %v1912 = vadd.f32 %v1812, %v1880
      %v1913 = vadd.f32 %v1813, %v1881
      %v1914 = vadd.f32 %v1814, %v1882
      %v1915 = vadd.f32 %v1815, %v1883
      %v1916 = vadd.f32 %v1816, %v1884
      %v1917 = vadd.f32 %v1817, %v1885
      %v1918 = vadd.f32 %v1818, %v1886
      %v1919 = vadd.f32 %v1819, %v1887
      %v1920 = vadd.f32 %v1820, %v1888
      %v1921 = vadd.f32 %v1821, %v1889
      %v1922 = vadd.f32 %v1822, %v1890
      %v1923 = vadd.f32 %v1823, %v1891
      %v1924 = vadd.f32 %v1824, %v1892
      %v1925 = vadd.f32 %v1825, %v1893
      %v1926 = vadd.f32 %v1826, %v1894
      %v1927 = vadd.f32 %v1827, %v1895
      %v1928 = vadd.f32 %v1828, %v1896
      %v1929 = vadd.f32 %v1829, %v1897
      %v1930 = vadd.f32 %v1830, %v1898
      %v1931 = vadd.f32 %v1831, %v1899
      %v1932 = vld [vmem:[%s1731 + $0x2] sm:$0xff]
      %v1933 = vld [vmem:[%s1731 + $0xa] sm:$0xff]
      %v1934 = vld [vmem:[%s1731 + $0x1a] sm:$0xff]
      %v1935 = vld [vmem:[%s1731 + $0x22] sm:$0xff]
      %v1936 = vld [vmem:[%s1731 + $0x32] sm:$0xff]
      %v1937 = vld [vmem:[%s1731 + $0x3a] sm:$0xff]
      %v1938 = vld [vmem:[%s1731 + $0x4a] sm:$0xff]
      %v1939 = vld [vmem:[%s1731 + $0x52] sm:$0xff]
      %v1940 = vld [vmem:[%s1731 + $0x62] sm:$0xff]
      %v1941 = vld [vmem:[%s1731 + $0x6a] sm:$0xff]
      %v1942 = vld [vmem:[%s1731 + $0x7a] sm:$0xff]
      %v1943 = vld [vmem:[%s1731 + $0x82] sm:$0xff]
      %v1944 = vld [vmem:[%s1731 + $0x92] sm:$0xff]
      %v1945 = vld [vmem:[%s1731 + $0x9a] sm:$0xff]
      %v1946 = vld [vmem:[%s1731 + $0xaa] sm:$0xff]
      %v1947 = vld [vmem:[%s1731 + $0xb2] sm:$0xff]
      %v1948 = vld [vmem:[%s1731 + $0xc2] sm:$0xff]
      %v1949 = vld [vmem:[%s1731 + $0xca] sm:$0xff]
      %v1950 = vld [vmem:[%s1731 + $0xda] sm:$0xff]
      %v1951 = vld [vmem:[%s1731 + $0xe2] sm:$0xff]
      %v1952 = vld [vmem:[%s1731 + $0xf2] sm:$0xff]
      %v1953 = vld [vmem:[%s1731 + $0xfa] sm:$0xff]
      %v1954 = vld [vmem:[%s1731 + $0x10a] sm:$0xff]
      %v1955 = vld [vmem:[%s1731 + $0x112] sm:$0xff]
      %v1956 = vld [vmem:[%s1731 + $0x122] sm:$0xff]
      %v1957 = vld [vmem:[%s1731 + $0x12a] sm:$0xff]
      %v1958 = vld [vmem:[%s1731 + $0x13a] sm:$0xff]
      %v1959 = vld [vmem:[%s1731 + $0x142] sm:$0xff]
      %v1960 = vld [vmem:[%s1731 + $0x152] sm:$0xff]
      %v1961 = vld [vmem:[%s1731 + $0x15a] sm:$0xff]
      %v1962 = vld [vmem:[%s1731 + $0x16a] sm:$0xff]
      %v1963 = vld [vmem:[%s1731 + $0x172] sm:$0xff]
      %v1964 = vlaneseq
      %v1965 = vshrl.u32 %v1964, 7
      %v1966 = vsub.s32 2, %v1965
      %v1967 = vrot.slane %v325, %v1966
      %v1968 = vmul.f32 %v1932, %v1967
      %v1969 = vmul.f32 %v1933, %v1967
      %v1970 = vmul.f32 %v1934, %v1967
      %v1971 = vmul.f32 %v1935, %v1967
      %v1972 = vmul.f32 %v1936, %v1967
      %v1973 = vmul.f32 %v1937, %v1967
      %v1974 = vmul.f32 %v1938, %v1967
      %v1975 = vmul.f32 %v1939, %v1967
      %v1976 = vmul.f32 %v1940, %v1967
      %v1977 = vmul.f32 %v1941, %v1967
      %v1978 = vmul.f32 %v1942, %v1967
      %v1979 = vmul.f32 %v1943, %v1967
      %v1980 = vmul.f32 %v1944, %v1967
      %v1981 = vmul.f32 %v1945, %v1967
      %v1982 = vmul.f32 %v1946, %v1967
      %v1983 = vmul.f32 %v1947, %v1967
      %v1984 = vmul.f32 %v1948, %v1967
      %v1985 = vmul.f32 %v1949, %v1967
      %v1986 = vmul.f32 %v1950, %v1967
      %v1987 = vmul.f32 %v1951, %v1967
      %v1988 = vmul.f32 %v1952, %v1967
      %v1989 = vmul.f32 %v1953, %v1967
      %v1990 = vmul.f32 %v1954, %v1967
      %v1991 = vmul.f32 %v1955, %v1967
      %v1992 = vmul.f32 %v1956, %v1967
      %v1993 = vmul.f32 %v1957, %v1967
      %v1994 = vmul.f32 %v1958, %v1967
      %v1995 = vmul.f32 %v1959, %v1967
      %v1996 = vmul.f32 %v1960, %v1967
      %v1997 = vmul.f32 %v1961, %v1967
      %v1998 = vmul.f32 %v1962, %v1967
      %v1999 = vmul.f32 %v1963, %v1967
      %v2000 = vadd.f32 %v1900, %v1968
      %v2001 = vadd.f32 %v1901, %v1969
      %v2002 = vadd.f32 %v1902, %v1970
      %v2003 = vadd.f32 %v1903, %v1971
      %v2004 = vadd.f32 %v1904, %v1972
      %v2005 = vadd.f32 %v1905, %v1973
      %v2006 = vadd.f32 %v1906, %v1974
      %v2007 = vadd.f32 %v1907, %v1975
      %v2008 = vadd.f32 %v1908, %v1976
      %v2009 = vadd.f32 %v1909, %v1977
      %v2010 = vadd.f32 %v1910, %v1978
      %v2011 = vadd.f32 %v1911, %v1979
      %v2012 = vadd.f32 %v1912, %v1980
      %v2013 = vadd.f32 %v1913, %v1981
      %v2014 = vadd.f32 %v1914, %v1982
      %v2015 = vadd.f32 %v1915, %v1983
      %v2016 = vadd.f32 %v1916, %v1984
      %v2017 = vadd.f32 %v1917, %v1985
      %v2018 = vadd.f32 %v1918, %v1986
      %v2019 = vadd.f32 %v1919, %v1987
      %v2020 = vadd.f32 %v1920, %v1988
      %v2021 = vadd.f32 %v1921, %v1989
      %v2022 = vadd.f32 %v1922, %v1990
      %v2023 = vadd.f32 %v1923, %v1991
      %v2024 = vadd.f32 %v1924, %v1992
      %v2025 = vadd.f32 %v1925, %v1993
      %v2026 = vadd.f32 %v1926, %v1994
      %v2027 = vadd.f32 %v1927, %v1995
      %v2028 = vadd.f32 %v1928, %v1996
      %v2029 = vadd.f32 %v1929, %v1997
      %v2030 = vadd.f32 %v1930, %v1998
      %v2031 = vadd.f32 %v1931, %v1999
      %v2032 = vld [vmem:[%s1731 + $0x3] sm:$0xff]
      %v2033 = vld [vmem:[%s1731 + $0xb] sm:$0xff]
      %v2034 = vld [vmem:[%s1731 + $0x1b] sm:$0xff]
      %v2035 = vld [vmem:[%s1731 + $0x23] sm:$0xff]
      %v2036 = vld [vmem:[%s1731 + $0x33] sm:$0xff]
      %v2037 = vld [vmem:[%s1731 + $0x3b] sm:$0xff]
      %v2038 = vld [vmem:[%s1731 + $0x4b] sm:$0xff]
      %v2039 = vld [vmem:[%s1731 + $0x53] sm:$0xff]
      %v2040 = vld [vmem:[%s1731 + $0x63] sm:$0xff]
      %v2041 = vld [vmem:[%s1731 + $0x6b] sm:$0xff]
      %v2042 = vld [vmem:[%s1731 + $0x7b] sm:$0xff]
      %v2043 = vld [vmem:[%s1731 + $0x83] sm:$0xff]
      %v2044 = vld [vmem:[%s1731 + $0x93] sm:$0xff]
      %v2045 = vld [vmem:[%s1731 + $0x9b] sm:$0xff]
      %v2046 = vld [vmem:[%s1731 + $0xab] sm:$0xff]
      %v2047 = vld [vmem:[%s1731 + $0xb3] sm:$0xff]
      %v2048 = vld [vmem:[%s1731 + $0xc3] sm:$0xff]
      %v2049 = vld [vmem:[%s1731 + $0xcb] sm:$0xff]
      %v2050 = vld [vmem:[%s1731 + $0xdb] sm:$0xff]
      %v2051 = vld [vmem:[%s1731 + $0xe3] sm:$0xff]
      %v2052 = vld [vmem:[%s1731 + $0xf3] sm:$0xff]
      %v2053 = vld [vmem:[%s1731 + $0xfb] sm:$0xff]
      %v2054 = vld [vmem:[%s1731 + $0x10b] sm:$0xff]
      %v2055 = vld [vmem:[%s1731 + $0x113] sm:$0xff]
      %v2056 = vld [vmem:[%s1731 + $0x123] sm:$0xff]
      %v2057 = vld [vmem:[%s1731 + $0x12b] sm:$0xff]
      %v2058 = vld [vmem:[%s1731 + $0x13b] sm:$0xff]
      %v2059 = vld [vmem:[%s1731 + $0x143] sm:$0xff]
      %v2060 = vld [vmem:[%s1731 + $0x153] sm:$0xff]
      %v2061 = vld [vmem:[%s1731 + $0x15b] sm:$0xff]
      %v2062 = vld [vmem:[%s1731 + $0x16b] sm:$0xff]
      %v2063 = vld [vmem:[%s1731 + $0x173] sm:$0xff]
      %v2064 = vlaneseq
      %v2065 = vshrl.u32 %v2064, 7
      %v2066 = vsub.s32 3, %v2065
      %v2067 = vrot.slane %v325, %v2066
      %v2068 = vmul.f32 %v2032, %v2067
      %v2069 = vmul.f32 %v2033, %v2067
      %v2070 = vmul.f32 %v2034, %v2067
      %v2071 = vmul.f32 %v2035, %v2067
      %v2072 = vmul.f32 %v2036, %v2067
      %v2073 = vmul.f32 %v2037, %v2067
      %v2074 = vmul.f32 %v2038, %v2067
      %v2075 = vmul.f32 %v2039, %v2067
      %v2076 = vmul.f32 %v2040, %v2067
      %v2077 = vmul.f32 %v2041, %v2067
      %v2078 = vmul.f32 %v2042, %v2067
      %v2079 = vmul.f32 %v2043, %v2067
      %v2080 = vmul.f32 %v2044, %v2067
      %v2081 = vmul.f32 %v2045, %v2067
      %v2082 = vmul.f32 %v2046, %v2067
      %v2083 = vmul.f32 %v2047, %v2067
      %v2084 = vmul.f32 %v2048, %v2067
      %v2085 = vmul.f32 %v2049, %v2067
      %v2086 = vmul.f32 %v2050, %v2067
      %v2087 = vmul.f32 %v2051, %v2067
      %v2088 = vmul.f32 %v2052, %v2067
      %v2089 = vmul.f32 %v2053, %v2067
      %v2090 = vmul.f32 %v2054, %v2067
      %v2091 = vmul.f32 %v2055, %v2067
      %v2092 = vmul.f32 %v2056, %v2067
      %v2093 = vmul.f32 %v2057, %v2067
      %v2094 = vmul.f32 %v2058, %v2067
      %v2095 = vmul.f32 %v2059, %v2067
      %v2096 = vmul.f32 %v2060, %v2067
      %v2097 = vmul.f32 %v2061, %v2067
      %v2098 = vmul.f32 %v2062, %v2067
      %v2099 = vmul.f32 %v2063, %v2067
      %v2100 = vadd.f32 %v2000, %v2068
      %v2101 = vadd.f32 %v2001, %v2069
      %v2102 = vadd.f32 %v2002, %v2070
      %v2103 = vadd.f32 %v2003, %v2071
      %v2104 = vadd.f32 %v2004, %v2072
      %v2105 = vadd.f32 %v2005, %v2073
      %v2106 = vadd.f32 %v2006, %v2074
      %v2107 = vadd.f32 %v2007, %v2075
      %v2108 = vadd.f32 %v2008, %v2076
      %v2109 = vadd.f32 %v2009, %v2077
      %v2110 = vadd.f32 %v2010, %v2078
      %v2111 = vadd.f32 %v2011, %v2079
      %v2112 = vadd.f32 %v2012, %v2080
      %v2113 = vadd.f32 %v2013, %v2081
      %v2114 = vadd.f32 %v2014, %v2082
      %v2115 = vadd.f32 %v2015, %v2083
      %v2116 = vadd.f32 %v2016, %v2084
      %v2117 = vadd.f32 %v2017, %v2085
      %v2118 = vadd.f32 %v2018, %v2086
      %v2119 = vadd.f32 %v2019, %v2087
      %v2120 = vadd.f32 %v2020, %v2088
      %v2121 = vadd.f32 %v2021, %v2089
      %v2122 = vadd.f32 %v2022, %v2090
      %v2123 = vadd.f32 %v2023, %v2091
      %v2124 = vadd.f32 %v2024, %v2092
      %v2125 = vadd.f32 %v2025, %v2093
      %v2126 = vadd.f32 %v2026, %v2094
      %v2127 = vadd.f32 %v2027, %v2095
      %v2128 = vadd.f32 %v2028, %v2096
      %v2129 = vadd.f32 %v2029, %v2097
      %v2130 = vadd.f32 %v2030, %v2098
      %v2131 = vadd.f32 %v2031, %v2099
      %v2132 = vld [vmem:[%s1731 + $0x4] sm:$0xff]
      %v2133 = vld [vmem:[%s1731 + $0xc] sm:$0xff]
      %v2134 = vld [vmem:[%s1731 + $0x1c] sm:$0xff]
      %v2135 = vld [vmem:[%s1731 + $0x24] sm:$0xff]
      %v2136 = vld [vmem:[%s1731 + $0x34] sm:$0xff]
      %v2137 = vld [vmem:[%s1731 + $0x3c] sm:$0xff]
      %v2138 = vld [vmem:[%s1731 + $0x4c] sm:$0xff]
      %v2139 = vld [vmem:[%s1731 + $0x54] sm:$0xff]
      %v2140 = vld [vmem:[%s1731 + $0x64] sm:$0xff]
      %v2141 = vld [vmem:[%s1731 + $0x6c] sm:$0xff]
      %v2142 = vld [vmem:[%s1731 + $0x7c] sm:$0xff]
      %v2143 = vld [vmem:[%s1731 + $0x84] sm:$0xff]
      %v2144 = vld [vmem:[%s1731 + $0x94] sm:$0xff]
      %v2145 = vld [vmem:[%s1731 + $0x9c] sm:$0xff]
      %v2146 = vld [vmem:[%s1731 + $0xac] sm:$0xff]
      %v2147 = vld [vmem:[%s1731 + $0xb4] sm:$0xff]
      %v2148 = vld [vmem:[%s1731 + $0xc4] sm:$0xff]
      %v2149 = vld [vmem:[%s1731 + $0xcc] sm:$0xff]
      %v2150 = vld [vmem:[%s1731 + $0xdc] sm:$0xff]
      %v2151 = vld [vmem:[%s1731 + $0xe4] sm:$0xff]
      %v2152 = vld [vmem:[%s1731 + $0xf4] sm:$0xff]
      %v2153 = vld [vmem:[%s1731 + $0xfc] sm:$0xff]
      %v2154 = vld [vmem:[%s1731 + $0x10c] sm:$0xff]
      %v2155 = vld [vmem:[%s1731 + $0x114] sm:$0xff]
      %v2156 = vld [vmem:[%s1731 + $0x124] sm:$0xff]
      %v2157 = vld [vmem:[%s1731 + $0x12c] sm:$0xff]
      %v2158 = vld [vmem:[%s1731 + $0x13c] sm:$0xff]
      %v2159 = vld [vmem:[%s1731 + $0x144] sm:$0xff]
      %v2160 = vld [vmem:[%s1731 + $0x154] sm:$0xff]
      %v2161 = vld [vmem:[%s1731 + $0x15c] sm:$0xff]
      %v2162 = vld [vmem:[%s1731 + $0x16c] sm:$0xff]
      %v2163 = vld [vmem:[%s1731 + $0x174] sm:$0xff]
      %v2164 = vlaneseq
      %v2165 = vshrl.u32 %v2164, 7
      %v2166 = vsub.s32 4, %v2165
      %v2167 = vrot.slane %v325, %v2166
      %v2168 = vmul.f32 %v2132, %v2167
      %v2169 = vmul.f32 %v2133, %v2167
      %v2170 = vmul.f32 %v2134, %v2167
      %v2171 = vmul.f32 %v2135, %v2167
      %v2172 = vmul.f32 %v2136, %v2167
      %v2173 = vmul.f32 %v2137, %v2167
      %v2174 = vmul.f32 %v2138, %v2167
      %v2175 = vmul.f32 %v2139, %v2167
      %v2176 = vmul.f32 %v2140, %v2167
      %v2177 = vmul.f32 %v2141, %v2167
      %v2178 = vmul.f32 %v2142, %v2167
      %v2179 = vmul.f32 %v2143, %v2167
      %v2180 = vmul.f32 %v2144, %v2167
      %v2181 = vmul.f32 %v2145, %v2167
      %v2182 = vmul.f32 %v2146, %v2167
      %v2183 = vmul.f32 %v2147, %v2167
      %v2184 = vmul.f32 %v2148, %v2167
      %v2185 = vmul.f32 %v2149, %v2167
      %v2186 = vmul.f32 %v2150, %v2167
      %v2187 = vmul.f32 %v2151, %v2167
      %v2188 = vmul.f32 %v2152, %v2167
      %v2189 = vmul.f32 %v2153, %v2167
      %v2190 = vmul.f32 %v2154, %v2167
      %v2191 = vmul.f32 %v2155, %v2167
      %v2192 = vmul.f32 %v2156, %v2167
      %v2193 = vmul.f32 %v2157, %v2167
      %v2194 = vmul.f32 %v2158, %v2167
      %v2195 = vmul.f32 %v2159, %v2167
      %v2196 = vmul.f32 %v2160, %v2167
      %v2197 = vmul.f32 %v2161, %v2167
      %v2198 = vmul.f32 %v2162, %v2167
      %v2199 = vmul.f32 %v2163, %v2167
      %v2200 = vadd.f32 %v2100, %v2168
      %v2201 = vadd.f32 %v2101, %v2169
      %v2202 = vadd.f32 %v2102, %v2170
      %v2203 = vadd.f32 %v2103, %v2171
      %v2204 = vadd.f32 %v2104, %v2172
      %v2205 = vadd.f32 %v2105, %v2173
      %v2206 = vadd.f32 %v2106, %v2174
      %v2207 = vadd.f32 %v2107, %v2175
      %v2208 = vadd.f32 %v2108, %v2176
      %v2209 = vadd.f32 %v2109, %v2177
      %v2210 = vadd.f32 %v2110, %v2178
      %v2211 = vadd.f32 %v2111, %v2179
      %v2212 = vadd.f32 %v2112, %v2180
      %v2213 = vadd.f32 %v2113, %v2181
      %v2214 = vadd.f32 %v2114, %v2182
      %v2215 = vadd.f32 %v2115, %v2183
      %v2216 = vadd.f32 %v2116, %v2184
      %v2217 = vadd.f32 %v2117, %v2185
      %v2218 = vadd.f32 %v2118, %v2186
      %v2219 = vadd.f32 %v2119, %v2187
      %v2220 = vadd.f32 %v2120, %v2188
      %v2221 = vadd.f32 %v2121, %v2189
      %v2222 = vadd.f32 %v2122, %v2190
      %v2223 = vadd.f32 %v2123, %v2191
      %v2224 = vadd.f32 %v2124, %v2192
      %v2225 = vadd.f32 %v2125, %v2193
      %v2226 = vadd.f32 %v2126, %v2194
      %v2227 = vadd.f32 %v2127, %v2195
      %v2228 = vadd.f32 %v2128, %v2196
      %v2229 = vadd.f32 %v2129, %v2197
      %v2230 = vadd.f32 %v2130, %v2198
      %v2231 = vadd.f32 %v2131, %v2199
      %v2232 = vld [vmem:[%s1731 + $0x5] sm:$0xff]
      %v2233 = vld [vmem:[%s1731 + $0xd] sm:$0xff]
      %v2234 = vld [vmem:[%s1731 + $0x1d] sm:$0xff]
      %v2235 = vld [vmem:[%s1731 + $0x25] sm:$0xff]
      %v2236 = vld [vmem:[%s1731 + $0x35] sm:$0xff]
      %v2237 = vld [vmem:[%s1731 + $0x3d] sm:$0xff]
      %v2238 = vld [vmem:[%s1731 + $0x4d] sm:$0xff]
      %v2239 = vld [vmem:[%s1731 + $0x55] sm:$0xff]
      %v2240 = vld [vmem:[%s1731 + $0x65] sm:$0xff]
      %v2241 = vld [vmem:[%s1731 + $0x6d] sm:$0xff]
      %v2242 = vld [vmem:[%s1731 + $0x7d] sm:$0xff]
      %v2243 = vld [vmem:[%s1731 + $0x85] sm:$0xff]
      %v2244 = vld [vmem:[%s1731 + $0x95] sm:$0xff]
      %v2245 = vld [vmem:[%s1731 + $0x9d] sm:$0xff]
      %v2246 = vld [vmem:[%s1731 + $0xad] sm:$0xff]
      %v2247 = vld [vmem:[%s1731 + $0xb5] sm:$0xff]
      %v2248 = vld [vmem:[%s1731 + $0xc5] sm:$0xff]
      %v2249 = vld [vmem:[%s1731 + $0xcd] sm:$0xff]
      %v2250 = vld [vmem:[%s1731 + $0xdd] sm:$0xff]
      %v2251 = vld [vmem:[%s1731 + $0xe5] sm:$0xff]
      %v2252 = vld [vmem:[%s1731 + $0xf5] sm:$0xff]
      %v2253 = vld [vmem:[%s1731 + $0xfd] sm:$0xff]
      %v2254 = vld [vmem:[%s1731 + $0x10d] sm:$0xff]
      %v2255 = vld [vmem:[%s1731 + $0x115] sm:$0xff]
      %v2256 = vld [vmem:[%s1731 + $0x125] sm:$0xff]
      %v2257 = vld [vmem:[%s1731 + $0x12d] sm:$0xff]
      %v2258 = vld [vmem:[%s1731 + $0x13d] sm:$0xff]
      %v2259 = vld [vmem:[%s1731 + $0x145] sm:$0xff]
      %v2260 = vld [vmem:[%s1731 + $0x155] sm:$0xff]
      %v2261 = vld [vmem:[%s1731 + $0x15d] sm:$0xff]
      %v2262 = vld [vmem:[%s1731 + $0x16d] sm:$0xff]
      %v2263 = vld [vmem:[%s1731 + $0x175] sm:$0xff]
      %v2264 = vlaneseq
      %v2265 = vshrl.u32 %v2264, 7
      %v2266 = vsub.s32 5, %v2265
      %v2267 = vrot.slane %v325, %v2266
      %v2268 = vmul.f32 %v2232, %v2267
      %v2269 = vmul.f32 %v2233, %v2267
      %v2270 = vmul.f32 %v2234, %v2267
      %v2271 = vmul.f32 %v2235, %v2267
      %v2272 = vmul.f32 %v2236, %v2267
      %v2273 = vmul.f32 %v2237, %v2267
      %v2274 = vmul.f32 %v2238, %v2267
      %v2275 = vmul.f32 %v2239, %v2267
      %v2276 = vmul.f32 %v2240, %v2267
      %v2277 = vmul.f32 %v2241, %v2267
      %v2278 = vmul.f32 %v2242, %v2267
      %v2279 = vmul.f32 %v2243, %v2267
      %v2280 = vmul.f32 %v2244, %v2267
      %v2281 = vmul.f32 %v2245, %v2267
      %v2282 = vmul.f32 %v2246, %v2267
      %v2283 = vmul.f32 %v2247, %v2267
      %v2284 = vmul.f32 %v2248, %v2267
      %v2285 = vmul.f32 %v2249, %v2267
      %v2286 = vmul.f32 %v2250, %v2267
      %v2287 = vmul.f32 %v2251, %v2267
      %v2288 = vmul.f32 %v2252, %v2267
      %v2289 = vmul.f32 %v2253, %v2267
      %v2290 = vmul.f32 %v2254, %v2267
      %v2291 = vmul.f32 %v2255, %v2267
      %v2292 = vmul.f32 %v2256, %v2267
      %v2293 = vmul.f32 %v2257, %v2267
      %v2294 = vmul.f32 %v2258, %v2267
      %v2295 = vmul.f32 %v2259, %v2267
      %v2296 = vmul.f32 %v2260, %v2267
      %v2297 = vmul.f32 %v2261, %v2267
      %v2298 = vmul.f32 %v2262, %v2267
      %v2299 = vmul.f32 %v2263, %v2267
      %v2300 = vadd.f32 %v2200, %v2268
      %v2301 = vadd.f32 %v2201, %v2269
      %v2302 = vadd.f32 %v2202, %v2270
      %v2303 = vadd.f32 %v2203, %v2271
      %v2304 = vadd.f32 %v2204, %v2272
      %v2305 = vadd.f32 %v2205, %v2273
      %v2306 = vadd.f32 %v2206, %v2274
      %v2307 = vadd.f32 %v2207, %v2275
      %v2308 = vadd.f32 %v2208, %v2276
      %v2309 = vadd.f32 %v2209, %v2277
      %v2310 = vadd.f32 %v2210, %v2278
      %v2311 = vadd.f32 %v2211, %v2279
      %v2312 = vadd.f32 %v2212, %v2280
      %v2313 = vadd.f32 %v2213, %v2281
      %v2314 = vadd.f32 %v2214, %v2282
      %v2315 = vadd.f32 %v2215, %v2283
      %v2316 = vadd.f32 %v2216, %v2284
      %v2317 = vadd.f32 %v2217, %v2285
      %v2318 = vadd.f32 %v2218, %v2286
      %v2319 = vadd.f32 %v2219, %v2287
      %v2320 = vadd.f32 %v2220, %v2288
      %v2321 = vadd.f32 %v2221, %v2289
      %v2322 = vadd.f32 %v2222, %v2290
      %v2323 = vadd.f32 %v2223, %v2291
      %v2324 = vadd.f32 %v2224, %v2292
      %v2325 = vadd.f32 %v2225, %v2293
      %v2326 = vadd.f32 %v2226, %v2294
      %v2327 = vadd.f32 %v2227, %v2295
      %v2328 = vadd.f32 %v2228, %v2296
      %v2329 = vadd.f32 %v2229, %v2297
      %v2330 = vadd.f32 %v2230, %v2298
      %v2331 = vadd.f32 %v2231, %v2299
      %v2332 = vld [vmem:[%s1731 + $0x6] sm:$0xff]
      %v2333 = vld [vmem:[%s1731 + $0xe] sm:$0xff]
      %v2334 = vld [vmem:[%s1731 + $0x1e] sm:$0xff]
      %v2335 = vld [vmem:[%s1731 + $0x26] sm:$0xff]
      %v2336 = vld [vmem:[%s1731 + $0x36] sm:$0xff]
      %v2337 = vld [vmem:[%s1731 + $0x3e] sm:$0xff]
      %v2338 = vld [vmem:[%s1731 + $0x4e] sm:$0xff]
      %v2339 = vld [vmem:[%s1731 + $0x56] sm:$0xff]
      %v2340 = vld [vmem:[%s1731 + $0x66] sm:$0xff]
      %v2341 = vld [vmem:[%s1731 + $0x6e] sm:$0xff]
      %v2342 = vld [vmem:[%s1731 + $0x7e] sm:$0xff]
      %v2343 = vld [vmem:[%s1731 + $0x86] sm:$0xff]
      %v2344 = vld [vmem:[%s1731 + $0x96] sm:$0xff]
      %v2345 = vld [vmem:[%s1731 + $0x9e] sm:$0xff]
      %v2346 = vld [vmem:[%s1731 + $0xae] sm:$0xff]
      %v2347 = vld [vmem:[%s1731 + $0xb6] sm:$0xff]
      %v2348 = vld [vmem:[%s1731 + $0xc6] sm:$0xff]
      %v2349 = vld [vmem:[%s1731 + $0xce] sm:$0xff]
      %v2350 = vld [vmem:[%s1731 + $0xde] sm:$0xff]
      %v2351 = vld [vmem:[%s1731 + $0xe6] sm:$0xff]
      %v2352 = vld [vmem:[%s1731 + $0xf6] sm:$0xff]
      %v2353 = vld [vmem:[%s1731 + $0xfe] sm:$0xff]
      %v2354 = vld [vmem:[%s1731 + $0x10e] sm:$0xff]
      %v2355 = vld [vmem:[%s1731 + $0x116] sm:$0xff]
      %v2356 = vld [vmem:[%s1731 + $0x126] sm:$0xff]
      %v2357 = vld [vmem:[%s1731 + $0x12e] sm:$0xff]
      %v2358 = vld [vmem:[%s1731 + $0x13e] sm:$0xff]
      %v2359 = vld [vmem:[%s1731 + $0x146] sm:$0xff]
      %v2360 = vld [vmem:[%s1731 + $0x156] sm:$0xff]
      %v2361 = vld [vmem:[%s1731 + $0x15e] sm:$0xff]
      %v2362 = vld [vmem:[%s1731 + $0x16e] sm:$0xff]
      %v2363 = vld [vmem:[%s1731 + $0x176] sm:$0xff]
      %v2364 = vlaneseq
      %v2365 = vshrl.u32 %v2364, 7
      %v2366 = vsub.s32 6, %v2365
      %v2367 = vrot.slane %v325, %v2366
      %v2368 = vmul.f32 %v2332, %v2367
      %v2369 = vmul.f32 %v2333, %v2367
      %v2370 = vmul.f32 %v2334, %v2367
      %v2371 = vmul.f32 %v2335, %v2367
      %v2372 = vmul.f32 %v2336, %v2367
      %v2373 = vmul.f32 %v2337, %v2367
      %v2374 = vmul.f32 %v2338, %v2367
      %v2375 = vmul.f32 %v2339, %v2367
      %v2376 = vmul.f32 %v2340, %v2367
      %v2377 = vmul.f32 %v2341, %v2367
      %v2378 = vmul.f32 %v2342, %v2367
      %v2379 = vmul.f32 %v2343, %v2367
      %v2380 = vmul.f32 %v2344, %v2367
      %v2381 = vmul.f32 %v2345, %v2367
      %v2382 = vmul.f32 %v2346, %v2367
      %v2383 = vmul.f32 %v2347, %v2367
      %v2384 = vmul.f32 %v2348, %v2367
      %v2385 = vmul.f32 %v2349, %v2367
      %v2386 = vmul.f32 %v2350, %v2367
      %v2387 = vmul.f32 %v2351, %v2367
      %v2388 = vmul.f32 %v2352, %v2367
      %v2389 = vmul.f32 %v2353, %v2367
      %v2390 = vmul.f32 %v2354, %v2367
      %v2391 = vmul.f32 %v2355, %v2367
      %v2392 = vmul.f32 %v2356, %v2367
      %v2393 = vmul.f32 %v2357, %v2367
      %v2394 = vmul.f32 %v2358, %v2367
      %v2395 = vmul.f32 %v2359, %v2367
      %v2396 = vmul.f32 %v2360, %v2367
      %v2397 = vmul.f32 %v2361, %v2367
      %v2398 = vmul.f32 %v2362, %v2367
      %v2399 = vmul.f32 %v2363, %v2367
      %v2400 = vadd.f32 %v2300, %v2368
      %v2401 = vadd.f32 %v2301, %v2369
      %v2402 = vadd.f32 %v2302, %v2370
      %v2403 = vadd.f32 %v2303, %v2371
      %v2404 = vadd.f32 %v2304, %v2372
      %v2405 = vadd.f32 %v2305, %v2373
      %v2406 = vadd.f32 %v2306, %v2374
      %v2407 = vadd.f32 %v2307, %v2375
      %v2408 = vadd.f32 %v2308, %v2376
      %v2409 = vadd.f32 %v2309, %v2377
      %v2410 = vadd.f32 %v2310, %v2378
      %v2411 = vadd.f32 %v2311, %v2379
      %v2412 = vadd.f32 %v2312, %v2380
      %v2413 = vadd.f32 %v2313, %v2381
      %v2414 = vadd.f32 %v2314, %v2382
      %v2415 = vadd.f32 %v2315, %v2383
      %v2416 = vadd.f32 %v2316, %v2384
      %v2417 = vadd.f32 %v2317, %v2385
      %v2418 = vadd.f32 %v2318, %v2386
      %v2419 = vadd.f32 %v2319, %v2387
      %v2420 = vadd.f32 %v2320, %v2388
      %v2421 = vadd.f32 %v2321, %v2389
      %v2422 = vadd.f32 %v2322, %v2390
      %v2423 = vadd.f32 %v2323, %v2391
      %v2424 = vadd.f32 %v2324, %v2392
      %v2425 = vadd.f32 %v2325, %v2393
      %v2426 = vadd.f32 %v2326, %v2394
      %v2427 = vadd.f32 %v2327, %v2395
      %v2428 = vadd.f32 %v2328, %v2396
      %v2429 = vadd.f32 %v2329, %v2397
      %v2430 = vadd.f32 %v2330, %v2398
      %v2431 = vadd.f32 %v2331, %v2399
      %v2432 = vld [vmem:[%s290] sm:$0xff]
      %v2433 = vld [vmem:[%s290 + $0x8] sm:$0xff]
      %v2434 = vld [vmem:[%s290 + $0x18] sm:$0xff]
      %v2435 = vld [vmem:[%s290 + $0x20] sm:$0xff]
      %v2436 = vld [vmem:[%s290 + $0x30] sm:$0xff]
      %v2437 = vld [vmem:[%s290 + $0x38] sm:$0xff]
      %v2438 = vld [vmem:[%s290 + $0x48] sm:$0xff]
      %v2439 = vld [vmem:[%s290 + $0x50] sm:$0xff]
      %v2440 = vld [vmem:[%s290 + $0x60] sm:$0xff]
      %v2441 = vld [vmem:[%s290 + $0x68] sm:$0xff]
      %v2442 = vld [vmem:[%s290 + $0x78] sm:$0xff]
      %v2443 = vld [vmem:[%s290 + $0x80] sm:$0xff]
      %v2444 = vld [vmem:[%s290 + $0x90] sm:$0xff]
      %v2445 = vld [vmem:[%s290 + $0x98] sm:$0xff]
      %v2446 = vld [vmem:[%s290 + $0xa8] sm:$0xff]
      %v2447 = vld [vmem:[%s290 + $0xb0] sm:$0xff]
      %v2448 = vld [vmem:[%s290 + $0xc0] sm:$0xff]
      %v2449 = vld [vmem:[%s290 + $0xc8] sm:$0xff]
      %v2450 = vld [vmem:[%s290 + $0xd8] sm:$0xff]
      %v2451 = vld [vmem:[%s290 + $0xe0] sm:$0xff]
      %v2452 = vld [vmem:[%s290 + $0xf0] sm:$0xff]
      %v2453 = vld [vmem:[%s290 + $0xf8] sm:$0xff]
      %v2454 = vld [vmem:[%s290 + $0x108] sm:$0xff]
      %v2455 = vld [vmem:[%s290 + $0x110] sm:$0xff]
      %v2456 = vld [vmem:[%s290 + $0x120] sm:$0xff]
      %v2457 = vld [vmem:[%s290 + $0x128] sm:$0xff]
      %v2458 = vld [vmem:[%s290 + $0x138] sm:$0xff]
      %v2459 = vld [vmem:[%s290 + $0x140] sm:$0xff]
      %v2460 = vld [vmem:[%s290 + $0x150] sm:$0xff]
      %v2461 = vld [vmem:[%s290 + $0x158] sm:$0xff]
      %v2462 = vld [vmem:[%s290 + $0x168] sm:$0xff]
      %v2463 = vld [vmem:[%s290 + $0x170] sm:$0xff]
      %v2464 = vlaneseq
      %v2465 = vshrl.u32 %v2464, 7
      %v2466 = vsub.s32 0, %v2465
      %v2467 = vrot.slane %v326, %v2466
      %v2468 = vmul.f32 %v2432, %v2467
      %v2469 = vmul.f32 %v2433, %v2467
      %v2470 = vmul.f32 %v2434, %v2467
      %v2471 = vmul.f32 %v2435, %v2467
      %v2472 = vmul.f32 %v2436, %v2467
      %v2473 = vmul.f32 %v2437, %v2467
      %v2474 = vmul.f32 %v2438, %v2467
      %v2475 = vmul.f32 %v2439, %v2467
      %v2476 = vmul.f32 %v2440, %v2467
      %v2477 = vmul.f32 %v2441, %v2467
      %v2478 = vmul.f32 %v2442, %v2467
      %v2479 = vmul.f32 %v2443, %v2467
      %v2480 = vmul.f32 %v2444, %v2467
      %v2481 = vmul.f32 %v2445, %v2467
      %v2482 = vmul.f32 %v2446, %v2467
      %v2483 = vmul.f32 %v2447, %v2467
      %v2484 = vmul.f32 %v2448, %v2467
      %v2485 = vmul.f32 %v2449, %v2467
      %v2486 = vmul.f32 %v2450, %v2467
      %v2487 = vmul.f32 %v2451, %v2467
      %v2488 = vmul.f32 %v2452, %v2467
      %v2489 = vmul.f32 %v2453, %v2467
      %v2490 = vmul.f32 %v2454, %v2467
      %v2491 = vmul.f32 %v2455, %v2467
      %v2492 = vmul.f32 %v2456, %v2467
      %v2493 = vmul.f32 %v2457, %v2467
      %v2494 = vmul.f32 %v2458, %v2467
      %v2495 = vmul.f32 %v2459, %v2467
      %v2496 = vmul.f32 %v2460, %v2467
      %v2497 = vmul.f32 %v2461, %v2467
      %v2498 = vmul.f32 %v2462, %v2467
      %v2499 = vmul.f32 %v2463, %v2467
      %v2500 = vadd.f32 %v2400, %v2468
      %v2501 = vadd.f32 %v2401, %v2469
      %v2502 = vadd.f32 %v2402, %v2470
      %v2503 = vadd.f32 %v2403, %v2471
      %v2504 = vadd.f32 %v2404, %v2472
      %v2505 = vadd.f32 %v2405, %v2473
      %v2506 = vadd.f32 %v2406, %v2474
      %v2507 = vadd.f32 %v2407, %v2475
      %v2508 = vadd.f32 %v2408, %v2476
      %v2509 = vadd.f32 %v2409, %v2477
      %v2510 = vadd.f32 %v2410, %v2478
      %v2511 = vadd.f32 %v2411, %v2479
      %v2512 = vadd.f32 %v2412, %v2480
      %v2513 = vadd.f32 %v2413, %v2481
      %v2514 = vadd.f32 %v2414, %v2482
      %v2515 = vadd.f32 %v2415, %v2483
      %v2516 = vadd.f32 %v2416, %v2484
      %v2517 = vadd.f32 %v2417, %v2485
      %v2518 = vadd.f32 %v2418, %v2486
      %v2519 = vadd.f32 %v2419, %v2487
      %v2520 = vadd.f32 %v2420, %v2488
      %v2521 = vadd.f32 %v2421, %v2489
      %v2522 = vadd.f32 %v2422, %v2490
      %v2523 = vadd.f32 %v2423, %v2491
      %v2524 = vadd.f32 %v2424, %v2492
      %v2525 = vadd.f32 %v2425, %v2493
      %v2526 = vadd.f32 %v2426, %v2494
      %v2527 = vadd.f32 %v2427, %v2495
      %v2528 = vadd.f32 %v2428, %v2496
      %v2529 = vadd.f32 %v2429, %v2497
      %v2530 = vadd.f32 %v2430, %v2498
      %v2531 = vadd.f32 %v2431, %v2499
      %v2532 = vld [vmem:[%s290 + $0x1] sm:$0xff]
      %v2533 = vld [vmem:[%s290 + $0x9] sm:$0xff]
      %v2534 = vld [vmem:[%s290 + $0x19] sm:$0xff]
      %v2535 = vld [vmem:[%s290 + $0x21] sm:$0xff]
      %v2536 = vld [vmem:[%s290 + $0x31] sm:$0xff]
      %v2537 = vld [vmem:[%s290 + $0x39] sm:$0xff]
      %v2538 = vld [vmem:[%s290 + $0x49] sm:$0xff]
      %v2539 = vld [vmem:[%s290 + $0x51] sm:$0xff]
      %v2540 = vld [vmem:[%s290 + $0x61] sm:$0xff]
      %v2541 = vld [vmem:[%s290 + $0x69] sm:$0xff]
      %v2542 = vld [vmem:[%s290 + $0x79] sm:$0xff]
      %v2543 = vld [vmem:[%s290 + $0x81] sm:$0xff]
      %v2544 = vld [vmem:[%s290 + $0x91] sm:$0xff]
      %v2545 = vld [vmem:[%s290 + $0x99] sm:$0xff]
      %v2546 = vld [vmem:[%s290 + $0xa9] sm:$0xff]
      %v2547 = vld [vmem:[%s290 + $0xb1] sm:$0xff]
      %v2548 = vld [vmem:[%s290 + $0xc1] sm:$0xff]
      %v2549 = vld [vmem:[%s290 + $0xc9] sm:$0xff]
      %v2550 = vld [vmem:[%s290 + $0xd9] sm:$0xff]
      %v2551 = vld [vmem:[%s290 + $0xe1] sm:$0xff]
      %v2552 = vld [vmem:[%s290 + $0xf1] sm:$0xff]
      %v2553 = vld [vmem:[%s290 + $0xf9] sm:$0xff]
      %v2554 = vld [vmem:[%s290 + $0x109] sm:$0xff]
      %v2555 = vld [vmem:[%s290 + $0x111] sm:$0xff]
      %v2556 = vld [vmem:[%s290 + $0x121] sm:$0xff]
      %v2557 = vld [vmem:[%s290 + $0x129] sm:$0xff]
      %v2558 = vld [vmem:[%s290 + $0x139] sm:$0xff]
      %v2559 = vld [vmem:[%s290 + $0x141] sm:$0xff]
      %v2560 = vld [vmem:[%s290 + $0x151] sm:$0xff]
      %v2561 = vld [vmem:[%s290 + $0x159] sm:$0xff]
      %v2562 = vld [vmem:[%s290 + $0x169] sm:$0xff]
      %v2563 = vld [vmem:[%s290 + $0x171] sm:$0xff]
      %v2564 = vlaneseq
      %v2565 = vshrl.u32 %v2564, 7
      %v2566 = vsub.s32 1, %v2565
      %v2567 = vrot.slane %v326, %v2566
      %v2568 = vmul.f32 %v2532, %v2567
      %v2569 = vmul.f32 %v2533, %v2567
      %v2570 = vmul.f32 %v2534, %v2567
      %v2571 = vmul.f32 %v2535, %v2567
      %v2572 = vmul.f32 %v2536, %v2567
      %v2573 = vmul.f32 %v2537, %v2567
      %v2574 = vmul.f32 %v2538, %v2567
      %v2575 = vmul.f32 %v2539, %v2567
      %v2576 = vmul.f32 %v2540, %v2567
      %v2577 = vmul.f32 %v2541, %v2567
      %v2578 = vmul.f32 %v2542, %v2567
      %v2579 = vmul.f32 %v2543, %v2567
      %v2580 = vmul.f32 %v2544, %v2567
      %v2581 = vmul.f32 %v2545, %v2567
      %v2582 = vmul.f32 %v2546, %v2567
      %v2583 = vmul.f32 %v2547, %v2567
      %v2584 = vmul.f32 %v2548, %v2567
      %v2585 = vmul.f32 %v2549, %v2567
      %v2586 = vmul.f32 %v2550, %v2567
      %v2587 = vmul.f32 %v2551, %v2567
      %v2588 = vmul.f32 %v2552, %v2567
      %v2589 = vmul.f32 %v2553, %v2567
      %v2590 = vmul.f32 %v2554, %v2567
      %v2591 = vmul.f32 %v2555, %v2567
      %v2592 = vmul.f32 %v2556, %v2567
      %v2593 = vmul.f32 %v2557, %v2567
      %v2594 = vmul.f32 %v2558, %v2567
      %v2595 = vmul.f32 %v2559, %v2567
      %v2596 = vmul.f32 %v2560, %v2567
      %v2597 = vmul.f32 %v2561, %v2567
      %v2598 = vmul.f32 %v2562, %v2567
      %v2599 = vmul.f32 %v2563, %v2567
      %v2600 = vadd.f32 %v2500, %v2568
      %v2601 = vadd.f32 %v2501, %v2569
      %v2602 = vadd.f32 %v2502, %v2570
      %v2603 = vadd.f32 %v2503, %v2571
      %v2604 = vadd.f32 %v2504, %v2572
      %v2605 = vadd.f32 %v2505, %v2573
      %v2606 = vadd.f32 %v2506, %v2574
      %v2607 = vadd.f32 %v2507, %v2575
      %v2608 = vadd.f32 %v2508, %v2576
      %v2609 = vadd.f32 %v2509, %v2577
      %v2610 = vadd.f32 %v2510, %v2578
      %v2611 = vadd.f32 %v2511, %v2579
      %v2612 = vadd.f32 %v2512, %v2580
      %v2613 = vadd.f32 %v2513, %v2581
      %v2614 = vadd.f32 %v2514, %v2582
      %v2615 = vadd.f32 %v2515, %v2583
      %v2616 = vadd.f32 %v2516, %v2584
      %v2617 = vadd.f32 %v2517, %v2585
      %v2618 = vadd.f32 %v2518, %v2586
      %v2619 = vadd.f32 %v2519, %v2587
      %v2620 = vadd.f32 %v2520, %v2588
      %v2621 = vadd.f32 %v2521, %v2589
      %v2622 = vadd.f32 %v2522, %v2590
      %v2623 = vadd.f32 %v2523, %v2591
      %v2624 = vadd.f32 %v2524, %v2592
      %v2625 = vadd.f32 %v2525, %v2593
      %v2626 = vadd.f32 %v2526, %v2594
      %v2627 = vadd.f32 %v2527, %v2595
      %v2628 = vadd.f32 %v2528, %v2596
      %v2629 = vadd.f32 %v2529, %v2597
      %v2630 = vadd.f32 %v2530, %v2598
      %v2631 = vadd.f32 %v2531, %v2599
      %v2632 = vld [vmem:[%s290 + $0x2] sm:$0xff]
      %v2633 = vld [vmem:[%s290 + $0xa] sm:$0xff]
      %v2634 = vld [vmem:[%s290 + $0x1a] sm:$0xff]
      %v2635 = vld [vmem:[%s290 + $0x22] sm:$0xff]
      %v2636 = vld [vmem:[%s290 + $0x32] sm:$0xff]
      %v2637 = vld [vmem:[%s290 + $0x3a] sm:$0xff]
      %v2638 = vld [vmem:[%s290 + $0x4a] sm:$0xff]
      %v2639 = vld [vmem:[%s290 + $0x52] sm:$0xff]
      %v2640 = vld [vmem:[%s290 + $0x62] sm:$0xff]
      %v2641 = vld [vmem:[%s290 + $0x6a] sm:$0xff]
      %v2642 = vld [vmem:[%s290 + $0x7a] sm:$0xff]
      %v2643 = vld [vmem:[%s290 + $0x82] sm:$0xff]
      %v2644 = vld [vmem:[%s290 + $0x92] sm:$0xff]
      %v2645 = vld [vmem:[%s290 + $0x9a] sm:$0xff]
      %v2646 = vld [vmem:[%s290 + $0xaa] sm:$0xff]
      %v2647 = vld [vmem:[%s290 + $0xb2] sm:$0xff]
      %v2648 = vld [vmem:[%s290 + $0xc2] sm:$0xff]
      %v2649 = vld [vmem:[%s290 + $0xca] sm:$0xff]
      %v2650 = vld [vmem:[%s290 + $0xda] sm:$0xff]
      %v2651 = vld [vmem:[%s290 + $0xe2] sm:$0xff]
      %v2652 = vld [vmem:[%s290 + $0xf2] sm:$0xff]
      %v2653 = vld [vmem:[%s290 + $0xfa] sm:$0xff]
      %v2654 = vld [vmem:[%s290 + $0x10a] sm:$0xff]
      %v2655 = vld [vmem:[%s290 + $0x112] sm:$0xff]
      %v2656 = vld [vmem:[%s290 + $0x122] sm:$0xff]
      %v2657 = vld [vmem:[%s290 + $0x12a] sm:$0xff]
      %v2658 = vld [vmem:[%s290 + $0x13a] sm:$0xff]
      %v2659 = vld [vmem:[%s290 + $0x142] sm:$0xff]
      %v2660 = vld [vmem:[%s290 + $0x152] sm:$0xff]
      %v2661 = vld [vmem:[%s290 + $0x15a] sm:$0xff]
      %v2662 = vld [vmem:[%s290 + $0x16a] sm:$0xff]
      %v2663 = vld [vmem:[%s290 + $0x172] sm:$0xff]
      %v2664 = vlaneseq
      %v2665 = vshrl.u32 %v2664, 7
      %v2666 = vsub.s32 2, %v2665
      %v2667 = vrot.slane %v326, %v2666
      %v2668 = vmul.f32 %v2632, %v2667
      %v2669 = vmul.f32 %v2633, %v2667
      %v2670 = vmul.f32 %v2634, %v2667
      %v2671 = vmul.f32 %v2635, %v2667
      %v2672 = vmul.f32 %v2636, %v2667
      %v2673 = vmul.f32 %v2637, %v2667
      %v2674 = vmul.f32 %v2638, %v2667
      %v2675 = vmul.f32 %v2639, %v2667
      %v2676 = vmul.f32 %v2640, %v2667
      %v2677 = vmul.f32 %v2641, %v2667
      %v2678 = vmul.f32 %v2642, %v2667
      %v2679 = vmul.f32 %v2643, %v2667
      %v2680 = vmul.f32 %v2644, %v2667
      %v2681 = vmul.f32 %v2645, %v2667
      %v2682 = vmul.f32 %v2646, %v2667
      %v2683 = vmul.f32 %v2647, %v2667
      %v2684 = vmul.f32 %v2648, %v2667
      %v2685 = vmul.f32 %v2649, %v2667
      %v2686 = vmul.f32 %v2650, %v2667
      %v2687 = vmul.f32 %v2651, %v2667
      %v2688 = vmul.f32 %v2652, %v2667
      %v2689 = vmul.f32 %v2653, %v2667
      %v2690 = vmul.f32 %v2654, %v2667
      %v2691 = vmul.f32 %v2655, %v2667
      %v2692 = vmul.f32 %v2656, %v2667
      %v2693 = vmul.f32 %v2657, %v2667
      %v2694 = vmul.f32 %v2658, %v2667
      %v2695 = vmul.f32 %v2659, %v2667
      %v2696 = vmul.f32 %v2660, %v2667
      %v2697 = vmul.f32 %v2661, %v2667
      %v2698 = vmul.f32 %v2662, %v2667
      %v2699 = vmul.f32 %v2663, %v2667
      %v2700 = vadd.f32 %v2600, %v2668
      %v2701 = vadd.f32 %v2601, %v2669
      %v2702 = vadd.f32 %v2602, %v2670
      %v2703 = vadd.f32 %v2603, %v2671
      %v2704 = vadd.f32 %v2604, %v2672
      %v2705 = vadd.f32 %v2605, %v2673
      %v2706 = vadd.f32 %v2606, %v2674
      %v2707 = vadd.f32 %v2607, %v2675
      %v2708 = vadd.f32 %v2608, %v2676
      %v2709 = vadd.f32 %v2609, %v2677
      %v2710 = vadd.f32 %v2610, %v2678
      %v2711 = vadd.f32 %v2611, %v2679
      %v2712 = vadd.f32 %v2612, %v2680
      %v2713 = vadd.f32 %v2613, %v2681
      %v2714 = vadd.f32 %v2614, %v2682
      %v2715 = vadd.f32 %v2615, %v2683
      %v2716 = vadd.f32 %v2616, %v2684
      %v2717 = vadd.f32 %v2617, %v2685
      %v2718 = vadd.f32 %v2618, %v2686
      %v2719 = vadd.f32 %v2619, %v2687
      %v2720 = vadd.f32 %v2620, %v2688
      %v2721 = vadd.f32 %v2621, %v2689
      %v2722 = vadd.f32 %v2622, %v2690
      %v2723 = vadd.f32 %v2623, %v2691
      %v2724 = vadd.f32 %v2624, %v2692
      %v2725 = vadd.f32 %v2625, %v2693
      %v2726 = vadd.f32 %v2626, %v2694
      %v2727 = vadd.f32 %v2627, %v2695
      %v2728 = vadd.f32 %v2628, %v2696
      %v2729 = vadd.f32 %v2629, %v2697
      %v2730 = vadd.f32 %v2630, %v2698
      %v2731 = vadd.f32 %v2631, %v2699
      %v2732 = vld [vmem:[%s290 + $0x3] sm:$0xff]
      %v2733 = vld [vmem:[%s290 + $0xb] sm:$0xff]
      %v2734 = vld [vmem:[%s290 + $0x1b] sm:$0xff]
      %v2735 = vld [vmem:[%s290 + $0x23] sm:$0xff]
      %v2736 = vld [vmem:[%s290 + $0x33] sm:$0xff]
      %v2737 = vld [vmem:[%s290 + $0x3b] sm:$0xff]
      %v2738 = vld [vmem:[%s290 + $0x4b] sm:$0xff]
      %v2739 = vld [vmem:[%s290 + $0x53] sm:$0xff]
      %v2740 = vld [vmem:[%s290 + $0x63] sm:$0xff]
      %v2741 = vld [vmem:[%s290 + $0x6b] sm:$0xff]
      %v2742 = vld [vmem:[%s290 + $0x7b] sm:$0xff]
      %v2743 = vld [vmem:[%s290 + $0x83] sm:$0xff]
      %v2744 = vld [vmem:[%s290 + $0x93] sm:$0xff]
      %v2745 = vld [vmem:[%s290 + $0x9b] sm:$0xff]
      %v2746 = vld [vmem:[%s290 + $0xab] sm:$0xff]
      %v2747 = vld [vmem:[%s290 + $0xb3] sm:$0xff]
      %v2748 = vld [vmem:[%s290 + $0xc3] sm:$0xff]
      %v2749 = vld [vmem:[%s290 + $0xcb] sm:$0xff]
      %v2750 = vld [vmem:[%s290 + $0xdb] sm:$0xff]
      %v2751 = vld [vmem:[%s290 + $0xe3] sm:$0xff]
      %v2752 = vld [vmem:[%s290 + $0xf3] sm:$0xff]
      %v2753 = vld [vmem:[%s290 + $0xfb] sm:$0xff]
      %v2754 = vld [vmem:[%s290 + $0x10b] sm:$0xff]
      %v2755 = vld [vmem:[%s290 + $0x113] sm:$0xff]
      %v2756 = vld [vmem:[%s290 + $0x123] sm:$0xff]
      %v2757 = vld [vmem:[%s290 + $0x12b] sm:$0xff]
      %v2758 = vld [vmem:[%s290 + $0x13b] sm:$0xff]
      %v2759 = vld [vmem:[%s290 + $0x143] sm:$0xff]
      %v2760 = vld [vmem:[%s290 + $0x153] sm:$0xff]
      %v2761 = vld [vmem:[%s290 + $0x15b] sm:$0xff]
      %v2762 = vld [vmem:[%s290 + $0x16b] sm:$0xff]
      %v2763 = vld [vmem:[%s290 + $0x173] sm:$0xff]
      %v2764 = vlaneseq
      %v2765 = vshrl.u32 %v2764, 7
      %v2766 = vsub.s32 3, %v2765
      %v2767 = vrot.slane %v326, %v2766
      %v2768 = vmul.f32 %v2732, %v2767
      %v2769 = vmul.f32 %v2733, %v2767
      %v2770 = vmul.f32 %v2734, %v2767
      %v2771 = vmul.f32 %v2735, %v2767
      %v2772 = vmul.f32 %v2736, %v2767
      %v2773 = vmul.f32 %v2737, %v2767
      %v2774 = vmul.f32 %v2738, %v2767
      %v2775 = vmul.f32 %v2739, %v2767
      %v2776 = vmul.f32 %v2740, %v2767
      %v2777 = vmul.f32 %v2741, %v2767
      %v2778 = vmul.f32 %v2742, %v2767
      %v2779 = vmul.f32 %v2743, %v2767
      %v2780 = vmul.f32 %v2744, %v2767
      %v2781 = vmul.f32 %v2745, %v2767
      %v2782 = vmul.f32 %v2746, %v2767
      %v2783 = vmul.f32 %v2747, %v2767
      %v2784 = vmul.f32 %v2748, %v2767
      %v2785 = vmul.f32 %v2749, %v2767
      %v2786 = vmul.f32 %v2750, %v2767
      %v2787 = vmul.f32 %v2751, %v2767
      %v2788 = vmul.f32 %v2752, %v2767
      %v2789 = vmul.f32 %v2753, %v2767
      %v2790 = vmul.f32 %v2754, %v2767
      %v2791 = vmul.f32 %v2755, %v2767
      %v2792 = vmul.f32 %v2756, %v2767
      %v2793 = vmul.f32 %v2757, %v2767
      %v2794 = vmul.f32 %v2758, %v2767
      %v2795 = vmul.f32 %v2759, %v2767
      %v2796 = vmul.f32 %v2760, %v2767
      %v2797 = vmul.f32 %v2761, %v2767
      %v2798 = vmul.f32 %v2762, %v2767
      %v2799 = vmul.f32 %v2763, %v2767
      %v2800 = vadd.f32 %v2700, %v2768
      %v2801 = vadd.f32 %v2701, %v2769
      %v2802 = vadd.f32 %v2702, %v2770
      %v2803 = vadd.f32 %v2703, %v2771
      %v2804 = vadd.f32 %v2704, %v2772
      %v2805 = vadd.f32 %v2705, %v2773
      %v2806 = vadd.f32 %v2706, %v2774
      %v2807 = vadd.f32 %v2707, %v2775
      %v2808 = vadd.f32 %v2708, %v2776
      %v2809 = vadd.f32 %v2709, %v2777
      %v2810 = vadd.f32 %v2710, %v2778
      %v2811 = vadd.f32 %v2711, %v2779
      %v2812 = vadd.f32 %v2712, %v2780
      %v2813 = vadd.f32 %v2713, %v2781
      %v2814 = vadd.f32 %v2714, %v2782
      %v2815 = vadd.f32 %v2715, %v2783
      %v2816 = vadd.f32 %v2716, %v2784
      %v2817 = vadd.f32 %v2717, %v2785
      %v2818 = vadd.f32 %v2718, %v2786
      %v2819 = vadd.f32 %v2719, %v2787
      %v2820 = vadd.f32 %v2720, %v2788
      %v2821 = vadd.f32 %v2721, %v2789
      %v2822 = vadd.f32 %v2722, %v2790
      %v2823 = vadd.f32 %v2723, %v2791
      %v2824 = vadd.f32 %v2724, %v2792
      %v2825 = vadd.f32 %v2725, %v2793
      %v2826 = vadd.f32 %v2726, %v2794
      %v2827 = vadd.f32 %v2727, %v2795
      %v2828 = vadd.f32 %v2728, %v2796
      %v2829 = vadd.f32 %v2729, %v2797
      %v2830 = vadd.f32 %v2730, %v2798
      %v2831 = vadd.f32 %v2731, %v2799
      %v2832 = vld [vmem:[%s290 + $0x4] sm:$0xff]
      %v2833 = vld [vmem:[%s290 + $0xc] sm:$0xff]
      %v2834 = vld [vmem:[%s290 + $0x1c] sm:$0xff]
      %v2835 = vld [vmem:[%s290 + $0x24] sm:$0xff]
      %v2836 = vld [vmem:[%s290 + $0x34] sm:$0xff]
      %v2837 = vld [vmem:[%s290 + $0x3c] sm:$0xff]
      %v2838 = vld [vmem:[%s290 + $0x4c] sm:$0xff]
      %v2839 = vld [vmem:[%s290 + $0x54] sm:$0xff]
      %v2840 = vld [vmem:[%s290 + $0x64] sm:$0xff]
      %v2841 = vld [vmem:[%s290 + $0x6c] sm:$0xff]
      %v2842 = vld [vmem:[%s290 + $0x7c] sm:$0xff]
      %v2843 = vld [vmem:[%s290 + $0x84] sm:$0xff]
      %v2844 = vld [vmem:[%s290 + $0x94] sm:$0xff]
      %v2845 = vld [vmem:[%s290 + $0x9c] sm:$0xff]
      %v2846 = vld [vmem:[%s290 + $0xac] sm:$0xff]
      %v2847 = vld [vmem:[%s290 + $0xb4] sm:$0xff]
      %v2848 = vld [vmem:[%s290 + $0xc4] sm:$0xff]
      %v2849 = vld [vmem:[%s290 + $0xcc] sm:$0xff]
      %v2850 = vld [vmem:[%s290 + $0xdc] sm:$0xff]
      %v2851 = vld [vmem:[%s290 + $0xe4] sm:$0xff]
      %v2852 = vld [vmem:[%s290 + $0xf4] sm:$0xff]
      %v2853 = vld [vmem:[%s290 + $0xfc] sm:$0xff]
      %v2854 = vld [vmem:[%s290 + $0x10c] sm:$0xff]
      %v2855 = vld [vmem:[%s290 + $0x114] sm:$0xff]
      %v2856 = vld [vmem:[%s290 + $0x124] sm:$0xff]
      %v2857 = vld [vmem:[%s290 + $0x12c] sm:$0xff]
      %v2858 = vld [vmem:[%s290 + $0x13c] sm:$0xff]
      %v2859 = vld [vmem:[%s290 + $0x144] sm:$0xff]
      %v2860 = vld [vmem:[%s290 + $0x154] sm:$0xff]
      %v2861 = vld [vmem:[%s290 + $0x15c] sm:$0xff]
      %v2862 = vld [vmem:[%s290 + $0x16c] sm:$0xff]
      %v2863 = vld [vmem:[%s290 + $0x174] sm:$0xff]
      %v2864 = vlaneseq
      %v2865 = vshrl.u32 %v2864, 7
      %v2866 = vsub.s32 4, %v2865
      %v2867 = vrot.slane %v326, %v2866
      %v2868 = vmul.f32 %v2832, %v2867
      %v2869 = vmul.f32 %v2833, %v2867
      %v2870 = vmul.f32 %v2834, %v2867
      %v2871 = vmul.f32 %v2835, %v2867
      %v2872 = vmul.f32 %v2836, %v2867
      %v2873 = vmul.f32 %v2837, %v2867
      %v2874 = vmul.f32 %v2838, %v2867
      %v2875 = vmul.f32 %v2839, %v2867
      %v2876 = vmul.f32 %v2840, %v2867
      %v2877 = vmul.f32 %v2841, %v2867
      %v2878 = vmul.f32 %v2842, %v2867
      %v2879 = vmul.f32 %v2843, %v2867
      %v2880 = vmul.f32 %v2844, %v2867
      %v2881 = vmul.f32 %v2845, %v2867
      %v2882 = vmul.f32 %v2846, %v2867
      %v2883 = vmul.f32 %v2847, %v2867
      %v2884 = vmul.f32 %v2848, %v2867
      %v2885 = vmul.f32 %v2849, %v2867
      %v2886 = vmul.f32 %v2850, %v2867
      %v2887 = vmul.f32 %v2851, %v2867
      %v2888 = vmul.f32 %v2852, %v2867
      %v2889 = vmul.f32 %v2853, %v2867
      %v2890 = vmul.f32 %v2854, %v2867
      %v2891 = vmul.f32 %v2855, %v2867
      %v2892 = vmul.f32 %v2856, %v2867
      %v2893 = vmul.f32 %v2857, %v2867
      %v2894 = vmul.f32 %v2858, %v2867
      %v2895 = vmul.f32 %v2859, %v2867
      %v2896 = vmul.f32 %v2860, %v2867
      %v2897 = vmul.f32 %v2861, %v2867
      %v2898 = vmul.f32 %v2862, %v2867
      %v2899 = vmul.f32 %v2863, %v2867
      %v2900 = vadd.f32 %v2800, %v2868
      %v2901 = vadd.f32 %v2801, %v2869
      %v2902 = vadd.f32 %v2802, %v2870
      %v2903 = vadd.f32 %v2803, %v2871
      %v2904 = vadd.f32 %v2804, %v2872
      %v2905 = vadd.f32 %v2805, %v2873
      %v2906 = vadd.f32 %v2806, %v2874
      %v2907 = vadd.f32 %v2807, %v2875
      %v2908 = vadd.f32 %v2808, %v2876
      %v2909 = vadd.f32 %v2809, %v2877
      %v2910 = vadd.f32 %v2810, %v2878
      %v2911 = vadd.f32 %v2811, %v2879
      %v2912 = vadd.f32 %v2812, %v2880
      %v2913 = vadd.f32 %v2813, %v2881
      %v2914 = vadd.f32 %v2814, %v2882
      %v2915 = vadd.f32 %v2815, %v2883
      %v2916 = vadd.f32 %v2816, %v2884
      %v2917 = vadd.f32 %v2817, %v2885
      %v2918 = vadd.f32 %v2818, %v2886
      %v2919 = vadd.f32 %v2819, %v2887
      %v2920 = vadd.f32 %v2820, %v2888
      %v2921 = vadd.f32 %v2821, %v2889
      %v2922 = vadd.f32 %v2822, %v2890
      %v2923 = vadd.f32 %v2823, %v2891
      %v2924 = vadd.f32 %v2824, %v2892
      %v2925 = vadd.f32 %v2825, %v2893
      %v2926 = vadd.f32 %v2826, %v2894
      %v2927 = vadd.f32 %v2827, %v2895
      %v2928 = vadd.f32 %v2828, %v2896
      %v2929 = vadd.f32 %v2829, %v2897
      %v2930 = vadd.f32 %v2830, %v2898
      %v2931 = vadd.f32 %v2831, %v2899
      %v2932 = vld [vmem:[%s290 + $0x5] sm:$0xff]
      %v2933 = vld [vmem:[%s290 + $0xd] sm:$0xff]
      %v2934 = vld [vmem:[%s290 + $0x1d] sm:$0xff]
      %v2935 = vld [vmem:[%s290 + $0x25] sm:$0xff]
      %v2936 = vld [vmem:[%s290 + $0x35] sm:$0xff]
      %v2937 = vld [vmem:[%s290 + $0x3d] sm:$0xff]
      %v2938 = vld [vmem:[%s290 + $0x4d] sm:$0xff]
      %v2939 = vld [vmem:[%s290 + $0x55] sm:$0xff]
      %v2940 = vld [vmem:[%s290 + $0x65] sm:$0xff]
      %v2941 = vld [vmem:[%s290 + $0x6d] sm:$0xff]
      %v2942 = vld [vmem:[%s290 + $0x7d] sm:$0xff]
      %v2943 = vld [vmem:[%s290 + $0x85] sm:$0xff]
      %v2944 = vld [vmem:[%s290 + $0x95] sm:$0xff]
      %v2945 = vld [vmem:[%s290 + $0x9d] sm:$0xff]
      %v2946 = vld [vmem:[%s290 + $0xad] sm:$0xff]
      %v2947 = vld [vmem:[%s290 + $0xb5] sm:$0xff]
      %v2948 = vld [vmem:[%s290 + $0xc5] sm:$0xff]
      %v2949 = vld [vmem:[%s290 + $0xcd] sm:$0xff]
      %v2950 = vld [vmem:[%s290 + $0xdd] sm:$0xff]
      %v2951 = vld [vmem:[%s290 + $0xe5] sm:$0xff]
      %v2952 = vld [vmem:[%s290 + $0xf5] sm:$0xff]
      %v2953 = vld [vmem:[%s290 + $0xfd] sm:$0xff]
      %v2954 = vld [vmem:[%s290 + $0x10d] sm:$0xff]
      %v2955 = vld [vmem:[%s290 + $0x115] sm:$0xff]
      %v2956 = vld [vmem:[%s290 + $0x125] sm:$0xff]
      %v2957 = vld [vmem:[%s290 + $0x12d] sm:$0xff]
      %v2958 = vld [vmem:[%s290 + $0x13d] sm:$0xff]
      %v2959 = vld [vmem:[%s290 + $0x145] sm:$0xff]
      %v2960 = vld [vmem:[%s290 + $0x155] sm:$0xff]
      %v2961 = vld [vmem:[%s290 + $0x15d] sm:$0xff]
      %v2962 = vld [vmem:[%s290 + $0x16d] sm:$0xff]
      %v2963 = vld [vmem:[%s290 + $0x175] sm:$0xff]
      %v2964 = vlaneseq
      %v2965 = vshrl.u32 %v2964, 7
      %v2966 = vsub.s32 5, %v2965
      %v2967 = vrot.slane %v326, %v2966
      %v2968 = vmul.f32 %v2932, %v2967
      %v2969 = vmul.f32 %v2933, %v2967
      %v2970 = vmul.f32 %v2934, %v2967
      %v2971 = vmul.f32 %v2935, %v2967
      %v2972 = vmul.f32 %v2936, %v2967
      %v2973 = vmul.f32 %v2937, %v2967
      %v2974 = vmul.f32 %v2938, %v2967
      %v2975 = vmul.f32 %v2939, %v2967
      %v2976 = vmul.f32 %v2940, %v2967
      %v2977 = vmul.f32 %v2941, %v2967
      %v2978 = vmul.f32 %v2942, %v2967
      %v2979 = vmul.f32 %v2943, %v2967
      %v2980 = vmul.f32 %v2944, %v2967
      %v2981 = vmul.f32 %v2945, %v2967
      %v2982 = vmul.f32 %v2946, %v2967
      %v2983 = vmul.f32 %v2947, %v2967
      %v2984 = vmul.f32 %v2948, %v2967
      %v2985 = vmul.f32 %v2949, %v2967
      %v2986 = vmul.f32 %v2950, %v2967
      %v2987 = vmul.f32 %v2951, %v2967
      %v2988 = vmul.f32 %v2952, %v2967
      %v2989 = vmul.f32 %v2953, %v2967
      %v2990 = vmul.f32 %v2954, %v2967
      %v2991 = vmul.f32 %v2955, %v2967
      %v2992 = vmul.f32 %v2956, %v2967
      %v2993 = vmul.f32 %v2957, %v2967
      %v2994 = vmul.f32 %v2958, %v2967
      %v2995 = vmul.f32 %v2959, %v2967
      %v2996 = vmul.f32 %v2960, %v2967
      %v2997 = vmul.f32 %v2961, %v2967
      %v2998 = vmul.f32 %v2962, %v2967
      %v2999 = vmul.f32 %v2963, %v2967
      %v3000 = vadd.f32 %v2900, %v2968
      %v3001 = vadd.f32 %v2901, %v2969
      %v3002 = vadd.f32 %v2902, %v2970
      %v3003 = vadd.f32 %v2903, %v2971
      %v3004 = vadd.f32 %v2904, %v2972
      %v3005 = vadd.f32 %v2905, %v2973
      %v3006 = vadd.f32 %v2906, %v2974
      %v3007 = vadd.f32 %v2907, %v2975
      %v3008 = vadd.f32 %v2908, %v2976
      %v3009 = vadd.f32 %v2909, %v2977
      %v3010 = vadd.f32 %v2910, %v2978
      %v3011 = vadd.f32 %v2911, %v2979
      %v3012 = vadd.f32 %v2912, %v2980
      %v3013 = vadd.f32 %v2913, %v2981
      %v3014 = vadd.f32 %v2914, %v2982
      %v3015 = vadd.f32 %v2915, %v2983
      %v3016 = vadd.f32 %v2916, %v2984
      %v3017 = vadd.f32 %v2917, %v2985
      %v3018 = vadd.f32 %v2918, %v2986
      %v3019 = vadd.f32 %v2919, %v2987
      %v3020 = vadd.f32 %v2920, %v2988
      %v3021 = vadd.f32 %v2921, %v2989
      %v3022 = vadd.f32 %v2922, %v2990
      %v3023 = vadd.f32 %v2923, %v2991
      %v3024 = vadd.f32 %v2924, %v2992
      %v3025 = vadd.f32 %v2925, %v2993
      %v3026 = vadd.f32 %v2926, %v2994
      %v3027 = vadd.f32 %v2927, %v2995
      %v3028 = vadd.f32 %v2928, %v2996
      %v3029 = vadd.f32 %v2929, %v2997
      %v3030 = vadd.f32 %v2930, %v2998
      %v3031 = vadd.f32 %v2931, %v2999
      %v3032 = vld [vmem:[%s290 + $0x6] sm:$0xff]
      %v3033 = vld [vmem:[%s290 + $0xe] sm:$0xff]
      %v3034 = vld [vmem:[%s290 + $0x1e] sm:$0xff]
      %v3035 = vld [vmem:[%s290 + $0x26] sm:$0xff]
      %v3036 = vld [vmem:[%s290 + $0x36] sm:$0xff]
      %v3037 = vld [vmem:[%s290 + $0x3e] sm:$0xff]
      %v3038 = vld [vmem:[%s290 + $0x4e] sm:$0xff]
      %v3039 = vld [vmem:[%s290 + $0x56] sm:$0xff]
      %v3040 = vld [vmem:[%s290 + $0x66] sm:$0xff]
      %v3041 = vld [vmem:[%s290 + $0x6e] sm:$0xff]
      %v3042 = vld [vmem:[%s290 + $0x7e] sm:$0xff]
      %v3043 = vld [vmem:[%s290 + $0x86] sm:$0xff]
      %v3044 = vld [vmem:[%s290 + $0x96] sm:$0xff]
      %v3045 = vld [vmem:[%s290 + $0x9e] sm:$0xff]
      %v3046 = vld [vmem:[%s290 + $0xae] sm:$0xff]
      %v3047 = vld [vmem:[%s290 + $0xb6] sm:$0xff]
      %v3048 = vld [vmem:[%s290 + $0xc6] sm:$0xff]
      %v3049 = vld [vmem:[%s290 + $0xce] sm:$0xff]
      %v3050 = vld [vmem:[%s290 + $0xde] sm:$0xff]
      %v3051 = vld [vmem:[%s290 + $0xe6] sm:$0xff]
      %v3052 = vld [vmem:[%s290 + $0xf6] sm:$0xff]
      %v3053 = vld [vmem:[%s290 + $0xfe] sm:$0xff]
      %v3054 = vld [vmem:[%s290 + $0x10e] sm:$0xff]
      %v3055 = vld [vmem:[%s290 + $0x116] sm:$0xff]
      %v3056 = vld [vmem:[%s290 + $0x126] sm:$0xff]
      %v3057 = vld [vmem:[%s290 + $0x12e] sm:$0xff]
      %v3058 = vld [vmem:[%s290 + $0x13e] sm:$0xff]
      %v3059 = vld [vmem:[%s290 + $0x146] sm:$0xff]
      %v3060 = vld [vmem:[%s290 + $0x156] sm:$0xff]
      %v3061 = vld [vmem:[%s290 + $0x15e] sm:$0xff]
      %v3062 = vld [vmem:[%s290 + $0x16e] sm:$0xff]
      %v3063 = vld [vmem:[%s290 + $0x176] sm:$0xff]
      %v3064 = vlaneseq
      %v3065 = vshrl.u32 %v3064, 7
      %v3066 = vsub.s32 6, %v3065
      %v3067 = vrot.slane %v326, %v3066
      %v3068 = vmul.f32 %v3032, %v3067
      %v3069 = vmul.f32 %v3033, %v3067
      %v3070 = vmul.f32 %v3034, %v3067
      %v3071 = vmul.f32 %v3035, %v3067
      %v3072 = vmul.f32 %v3036, %v3067
      %v3073 = vmul.f32 %v3037, %v3067
      %v3074 = vmul.f32 %v3038, %v3067
      %v3075 = vmul.f32 %v3039, %v3067
      %v3076 = vmul.f32 %v3040, %v3067
      %v3077 = vmul.f32 %v3041, %v3067
      %v3078 = vmul.f32 %v3042, %v3067
      %v3079 = vmul.f32 %v3043, %v3067
      %v3080 = vmul.f32 %v3044, %v3067
      %v3081 = vmul.f32 %v3045, %v3067
      %v3082 = vmul.f32 %v3046, %v3067
      %v3083 = vmul.f32 %v3047, %v3067
      %v3084 = vmul.f32 %v3048, %v3067
      %v3085 = vmul.f32 %v3049, %v3067
      %v3086 = vmul.f32 %v3050, %v3067
      %v3087 = vmul.f32 %v3051, %v3067
      %v3088 = vmul.f32 %v3052, %v3067
      %v3089 = vmul.f32 %v3053, %v3067
      %v3090 = vmul.f32 %v3054, %v3067
      %v3091 = vmul.f32 %v3055, %v3067
      %v3092 = vmul.f32 %v3056, %v3067
      %v3093 = vmul.f32 %v3057, %v3067
      %v3094 = vmul.f32 %v3058, %v3067
      %v3095 = vmul.f32 %v3059, %v3067
      %v3096 = vmul.f32 %v3060, %v3067
      %v3097 = vmul.f32 %v3061, %v3067
      %v3098 = vmul.f32 %v3062, %v3067
      %v3099 = vmul.f32 %v3063, %v3067
      %v3100 = vadd.f32 %v3000, %v3068
      %v3101 = vadd.f32 %v3001, %v3069
      %v3102 = vadd.f32 %v3002, %v3070
      %v3103 = vadd.f32 %v3003, %v3071
      %v3104 = vadd.f32 %v3004, %v3072
      %v3105 = vadd.f32 %v3005, %v3073
      %v3106 = vadd.f32 %v3006, %v3074
      %v3107 = vadd.f32 %v3007, %v3075
      %v3108 = vadd.f32 %v3008, %v3076
      %v3109 = vadd.f32 %v3009, %v3077
      %v3110 = vadd.f32 %v3010, %v3078
      %v3111 = vadd.f32 %v3011, %v3079
      %v3112 = vadd.f32 %v3012, %v3080
      %v3113 = vadd.f32 %v3013, %v3081
      %v3114 = vadd.f32 %v3014, %v3082
      %v3115 = vadd.f32 %v3015, %v3083
      %v3116 = vadd.f32 %v3016, %v3084
      %v3117 = vadd.f32 %v3017, %v3085
      %v3118 = vadd.f32 %v3018, %v3086
      %v3119 = vadd.f32 %v3019, %v3087
      %v3120 = vadd.f32 %v3020, %v3088
      %v3121 = vadd.f32 %v3021, %v3089
      %v3122 = vadd.f32 %v3022, %v3090
      %v3123 = vadd.f32 %v3023, %v3091
      %v3124 = vadd.f32 %v3024, %v3092
      %v3125 = vadd.f32 %v3025, %v3093
      %v3126 = vadd.f32 %v3026, %v3094
      %v3127 = vadd.f32 %v3027, %v3095
      %v3128 = vadd.f32 %v3028, %v3096
      %v3129 = vadd.f32 %v3029, %v3097
      %v3130 = vadd.f32 %v3030, %v3098
      %v3131 = vadd.f32 %v3031, %v3099
      %s3132 = scalar_lea.vmem [#allocation2], 96
      %v3133 = vld [vmem:[%s3132] sm:$0xff]
      %v3134 = vld [vmem:[%s3132 + $0x8] sm:$0xff]
      %v3135 = vld [vmem:[%s3132 + $0x18] sm:$0xff]
      %v3136 = vld [vmem:[%s3132 + $0x20] sm:$0xff]
      %v3137 = vld [vmem:[%s3132 + $0x30] sm:$0xff]
      %v3138 = vld [vmem:[%s3132 + $0x38] sm:$0xff]
      %v3139 = vld [vmem:[%s3132 + $0x48] sm:$0xff]
      %v3140 = vld [vmem:[%s3132 + $0x50] sm:$0xff]
      %v3141 = vld [vmem:[%s3132 + $0x60] sm:$0xff]
      %v3142 = vld [vmem:[%s3132 + $0x68] sm:$0xff]
      %v3143 = vld [vmem:[%s3132 + $0x78] sm:$0xff]
      %v3144 = vld [vmem:[%s3132 + $0x80] sm:$0xff]
      %v3145 = vld [vmem:[%s3132 + $0x90] sm:$0xff]
      %v3146 = vld [vmem:[%s3132 + $0x98] sm:$0xff]
      %v3147 = vld [vmem:[%s3132 + $0xa8] sm:$0xff]
      %v3148 = vld [vmem:[%s3132 + $0xb0] sm:$0xff]
      %v3149 = vld [vmem:[%s3132 + $0xc0] sm:$0xff]
      %v3150 = vld [vmem:[%s3132 + $0xc8] sm:$0xff]
      %v3151 = vld [vmem:[%s3132 + $0xd8] sm:$0xff]
      %v3152 = vld [vmem:[%s3132 + $0xe0] sm:$0xff]
      %v3153 = vld [vmem:[%s3132 + $0xf0] sm:$0xff]
      %v3154 = vld [vmem:[%s3132 + $0xf8] sm:$0xff]
      %v3155 = vld [vmem:[%s3132 + $0x108] sm:$0xff]
      %v3156 = vld [vmem:[%s3132 + $0x110] sm:$0xff]
      %v3157 = vld [vmem:[%s3132 + $0x120] sm:$0xff]
      %v3158 = vld [vmem:[%s3132 + $0x128] sm:$0xff]
      %v3159 = vld [vmem:[%s3132 + $0x138] sm:$0xff]
      %v3160 = vld [vmem:[%s3132 + $0x140] sm:$0xff]
      %v3161 = vld [vmem:[%s3132 + $0x150] sm:$0xff]
      %v3162 = vld [vmem:[%s3132 + $0x158] sm:$0xff]
      %v3163 = vld [vmem:[%s3132 + $0x168] sm:$0xff]
      %v3164 = vld [vmem:[%s3132 + $0x170] sm:$0xff]
      %v3165 = vlaneseq
      %v3166 = vshrl.u32 %v3165, 7
      %v3167 = vsub.s32 0, %v3166
      %v3168 = vrot.slane %v327, %v3167
      %v3169 = vmul.f32 %v3133, %v3168
      %v3170 = vmul.f32 %v3134, %v3168
      %v3171 = vmul.f32 %v3135, %v3168
      %v3172 = vmul.f32 %v3136, %v3168
      %v3173 = vmul.f32 %v3137, %v3168
      %v3174 = vmul.f32 %v3138, %v3168
      %v3175 = vmul.f32 %v3139, %v3168
      %v3176 = vmul.f32 %v3140, %v3168
      %v3177 = vmul.f32 %v3141, %v3168
      %v3178 = vmul.f32 %v3142, %v3168
      %v3179 = vmul.f32 %v3143, %v3168
      %v3180 = vmul.f32 %v3144, %v3168
      %v3181 = vmul.f32 %v3145, %v3168
      %v3182 = vmul.f32 %v3146, %v3168
      %v3183 = vmul.f32 %v3147, %v3168
      %v3184 = vmul.f32 %v3148, %v3168
      %v3185 = vmul.f32 %v3149, %v3168
      %v3186 = vmul.f32 %v3150, %v3168
      %v3187 = vmul.f32 %v3151, %v3168
      %v3188 = vmul.f32 %v3152, %v3168
      %v3189 = vmul.f32 %v3153, %v3168
      %v3190 = vmul.f32 %v3154, %v3168
      %v3191 = vmul.f32 %v3155, %v3168
      %v3192 = vmul.f32 %v3156, %v3168
      %v3193 = vmul.f32 %v3157, %v3168
      %v3194 = vmul.f32 %v3158, %v3168
      %v3195 = vmul.f32 %v3159, %v3168
      %v3196 = vmul.f32 %v3160, %v3168
      %v3197 = vmul.f32 %v3161, %v3168
      %v3198 = vmul.f32 %v3162, %v3168
      %v3199 = vmul.f32 %v3163, %v3168
      %v3200 = vmul.f32 %v3164, %v3168
      %v3201 = vadd.f32 %v3100, %v3169
      %v3202 = vadd.f32 %v3101, %v3170
      %v3203 = vadd.f32 %v3102, %v3171
      %v3204 = vadd.f32 %v3103, %v3172
      %v3205 = vadd.f32 %v3104, %v3173
      %v3206 = vadd.f32 %v3105, %v3174
      %v3207 = vadd.f32 %v3106, %v3175
      %v3208 = vadd.f32 %v3107, %v3176
      %v3209 = vadd.f32 %v3108, %v3177
      %v3210 = vadd.f32 %v3109, %v3178
      %v3211 = vadd.f32 %v3110, %v3179
      %v3212 = vadd.f32 %v3111, %v3180
      %v3213 = vadd.f32 %v3112, %v3181
      %v3214 = vadd.f32 %v3113, %v3182
      %v3215 = vadd.f32 %v3114, %v3183
      %v3216 = vadd.f32 %v3115, %v3184
      %v3217 = vadd.f32 %v3116, %v3185
      %v3218 = vadd.f32 %v3117, %v3186
      %v3219 = vadd.f32 %v3118, %v3187
      %v3220 = vadd.f32 %v3119, %v3188
      %v3221 = vadd.f32 %v3120, %v3189
      %v3222 = vadd.f32 %v3121, %v3190
      %v3223 = vadd.f32 %v3122, %v3191
      %v3224 = vadd.f32 %v3123, %v3192
      %v3225 = vadd.f32 %v3124, %v3193
      %v3226 = vadd.f32 %v3125, %v3194
      %v3227 = vadd.f32 %v3126, %v3195
      %v3228 = vadd.f32 %v3127, %v3196
      %v3229 = vadd.f32 %v3128, %v3197
      %v3230 = vadd.f32 %v3129, %v3198
      %v3231 = vadd.f32 %v3130, %v3199
      %v3232 = vadd.f32 %v3131, %v3200
      %v3233 = vld [vmem:[%s3132 + $0x1] sm:$0xff]
      %v3234 = vld [vmem:[%s3132 + $0x9] sm:$0xff]
      %v3235 = vld [vmem:[%s3132 + $0x19] sm:$0xff]
      %v3236 = vld [vmem:[%s3132 + $0x21] sm:$0xff]
      %v3237 = vld [vmem:[%s3132 + $0x31] sm:$0xff]
      %v3238 = vld [vmem:[%s3132 + $0x39] sm:$0xff]
      %v3239 = vld [vmem:[%s3132 + $0x49] sm:$0xff]
      %v3240 = vld [vmem:[%s3132 + $0x51] sm:$0xff]
      %v3241 = vld [vmem:[%s3132 + $0x61] sm:$0xff]
      %v3242 = vld [vmem:[%s3132 + $0x69] sm:$0xff]
      %v3243 = vld [vmem:[%s3132 + $0x79] sm:$0xff]
      %v3244 = vld [vmem:[%s3132 + $0x81] sm:$0xff]
      %v3245 = vld [vmem:[%s3132 + $0x91] sm:$0xff]
      %v3246 = vld [vmem:[%s3132 + $0x99] sm:$0xff]
      %v3247 = vld [vmem:[%s3132 + $0xa9] sm:$0xff]
      %v3248 = vld [vmem:[%s3132 + $0xb1] sm:$0xff]
      %v3249 = vld [vmem:[%s3132 + $0xc1] sm:$0xff]
      %v3250 = vld [vmem:[%s3132 + $0xc9] sm:$0xff]
      %v3251 = vld [vmem:[%s3132 + $0xd9] sm:$0xff]
      %v3252 = vld [vmem:[%s3132 + $0xe1] sm:$0xff]
      %v3253 = vld [vmem:[%s3132 + $0xf1] sm:$0xff]
      %v3254 = vld [vmem:[%s3132 + $0xf9] sm:$0xff]
      %v3255 = vld [vmem:[%s3132 + $0x109] sm:$0xff]
      %v3256 = vld [vmem:[%s3132 + $0x111] sm:$0xff]
      %v3257 = vld [vmem:[%s3132 + $0x121] sm:$0xff]
      %v3258 = vld [vmem:[%s3132 + $0x129] sm:$0xff]
      %v3259 = vld [vmem:[%s3132 + $0x139] sm:$0xff]
      %v3260 = vld [vmem:[%s3132 + $0x141] sm:$0xff]
      %v3261 = vld [vmem:[%s3132 + $0x151] sm:$0xff]
      %v3262 = vld [vmem:[%s3132 + $0x159] sm:$0xff]
      %v3263 = vld [vmem:[%s3132 + $0x169] sm:$0xff]
      %v3264 = vld [vmem:[%s3132 + $0x171] sm:$0xff]
      %v3265 = vlaneseq
      %v3266 = vshrl.u32 %v3265, 7
      %v3267 = vsub.s32 1, %v3266
      %v3268 = vrot.slane %v327, %v3267
      %v3269 = vmul.f32 %v3233, %v3268
      %v3270 = vmul.f32 %v3234, %v3268
      %v3271 = vmul.f32 %v3235, %v3268
      %v3272 = vmul.f32 %v3236, %v3268
      %v3273 = vmul.f32 %v3237, %v3268
      %v3274 = vmul.f32 %v3238, %v3268
      %v3275 = vmul.f32 %v3239, %v3268
      %v3276 = vmul.f32 %v3240, %v3268
      %v3277 = vmul.f32 %v3241, %v3268
      %v3278 = vmul.f32 %v3242, %v3268
      %v3279 = vmul.f32 %v3243, %v3268
      %v3280 = vmul.f32 %v3244, %v3268
      %v3281 = vmul.f32 %v3245, %v3268
      %v3282 = vmul.f32 %v3246, %v3268
      %v3283 = vmul.f32 %v3247, %v3268
      %v3284 = vmul.f32 %v3248, %v3268
      %v3285 = vmul.f32 %v3249, %v3268
      %v3286 = vmul.f32 %v3250, %v3268
      %v3287 = vmul.f32 %v3251, %v3268
      %v3288 = vmul.f32 %v3252, %v3268
      %v3289 = vmul.f32 %v3253, %v3268
      %v3290 = vmul.f32 %v3254, %v3268
      %v3291 = vmul.f32 %v3255, %v3268
      %v3292 = vmul.f32 %v3256, %v3268
      %v3293 = vmul.f32 %v3257, %v3268
      %v3294 = vmul.f32 %v3258, %v3268
      %v3295 = vmul.f32 %v3259, %v3268
      %v3296 = vmul.f32 %v3260, %v3268
      %v3297 = vmul.f32 %v3261, %v3268
      %v3298 = vmul.f32 %v3262, %v3268
      %v3299 = vmul.f32 %v3263, %v3268
      %v3300 = vmul.f32 %v3264, %v3268
      %v3301 = vadd.f32 %v3201, %v3269
      %v3302 = vadd.f32 %v3202, %v3270
      %v3303 = vadd.f32 %v3203, %v3271
      %v3304 = vadd.f32 %v3204, %v3272
      %v3305 = vadd.f32 %v3205, %v3273
      %v3306 = vadd.f32 %v3206, %v3274
      %v3307 = vadd.f32 %v3207, %v3275
      %v3308 = vadd.f32 %v3208, %v3276
      %v3309 = vadd.f32 %v3209, %v3277
      %v3310 = vadd.f32 %v3210, %v3278
      %v3311 = vadd.f32 %v3211, %v3279
      %v3312 = vadd.f32 %v3212, %v3280
      %v3313 = vadd.f32 %v3213, %v3281
      %v3314 = vadd.f32 %v3214, %v3282
      %v3315 = vadd.f32 %v3215, %v3283
      %v3316 = vadd.f32 %v3216, %v3284
      %v3317 = vadd.f32 %v3217, %v3285
      %v3318 = vadd.f32 %v3218, %v3286
      %v3319 = vadd.f32 %v3219, %v3287
      %v3320 = vadd.f32 %v3220, %v3288
      %v3321 = vadd.f32 %v3221, %v3289
      %v3322 = vadd.f32 %v3222, %v3290
      %v3323 = vadd.f32 %v3223, %v3291
      %v3324 = vadd.f32 %v3224, %v3292
      %v3325 = vadd.f32 %v3225, %v3293
      %v3326 = vadd.f32 %v3226, %v3294
      %v3327 = vadd.f32 %v3227, %v3295
      %v3328 = vadd.f32 %v3228, %v3296
      %v3329 = vadd.f32 %v3229, %v3297
      %v3330 = vadd.f32 %v3230, %v3298
      %v3331 = vadd.f32 %v3231, %v3299
      %v3332 = vadd.f32 %v3232, %v3300
      %v3333 = vld [vmem:[%s3132 + $0x2] sm:$0xff]
      %v3334 = vld [vmem:[%s3132 + $0xa] sm:$0xff]
      %v3335 = vld [vmem:[%s3132 + $0x1a] sm:$0xff]
      %v3336 = vld [vmem:[%s3132 + $0x22] sm:$0xff]
      %v3337 = vld [vmem:[%s3132 + $0x32] sm:$0xff]
      %v3338 = vld [vmem:[%s3132 + $0x3a] sm:$0xff]
      %v3339 = vld [vmem:[%s3132 + $0x4a] sm:$0xff]
      %v3340 = vld [vmem:[%s3132 + $0x52] sm:$0xff]
      %v3341 = vld [vmem:[%s3132 + $0x62] sm:$0xff]
      %v3342 = vld [vmem:[%s3132 + $0x6a] sm:$0xff]
      %v3343 = vld [vmem:[%s3132 + $0x7a] sm:$0xff]
      %v3344 = vld [vmem:[%s3132 + $0x82] sm:$0xff]
      %v3345 = vld [vmem:[%s3132 + $0x92] sm:$0xff]
      %v3346 = vld [vmem:[%s3132 + $0x9a] sm:$0xff]
      %v3347 = vld [vmem:[%s3132 + $0xaa] sm:$0xff]
      %v3348 = vld [vmem:[%s3132 + $0xb2] sm:$0xff]
      %v3349 = vld [vmem:[%s3132 + $0xc2] sm:$0xff]
      %v3350 = vld [vmem:[%s3132 + $0xca] sm:$0xff]
      %v3351 = vld [vmem:[%s3132 + $0xda] sm:$0xff]
      %v3352 = vld [vmem:[%s3132 + $0xe2] sm:$0xff]
      %v3353 = vld [vmem:[%s3132 + $0xf2] sm:$0xff]
      %v3354 = vld [vmem:[%s3132 + $0xfa] sm:$0xff]
      %v3355 = vld [vmem:[%s3132 + $0x10a] sm:$0xff]
      %v3356 = vld [vmem:[%s3132 + $0x112] sm:$0xff]
      %v3357 = vld [vmem:[%s3132 + $0x122] sm:$0xff]
      %v3358 = vld [vmem:[%s3132 + $0x12a] sm:$0xff]
      %v3359 = vld [vmem:[%s3132 + $0x13a] sm:$0xff]
      %v3360 = vld [vmem:[%s3132 + $0x142] sm:$0xff]
      %v3361 = vld [vmem:[%s3132 + $0x152] sm:$0xff]
      %v3362 = vld [vmem:[%s3132 + $0x15a] sm:$0xff]
      %v3363 = vld [vmem:[%s3132 + $0x16a] sm:$0xff]
      %v3364 = vld [vmem:[%s3132 + $0x172] sm:$0xff]
      %v3365 = vlaneseq
      %v3366 = vshrl.u32 %v3365, 7
      %v3367 = vsub.s32 2, %v3366
      %v3368 = vrot.slane %v327, %v3367
      %v3369 = vmul.f32 %v3333, %v3368
      %v3370 = vmul.f32 %v3334, %v3368
      %v3371 = vmul.f32 %v3335, %v3368
      %v3372 = vmul.f32 %v3336, %v3368
      %v3373 = vmul.f32 %v3337, %v3368
      %v3374 = vmul.f32 %v3338, %v3368
      %v3375 = vmul.f32 %v3339, %v3368
      %v3376 = vmul.f32 %v3340, %v3368
      %v3377 = vmul.f32 %v3341, %v3368
      %v3378 = vmul.f32 %v3342, %v3368
      %v3379 = vmul.f32 %v3343, %v3368
      %v3380 = vmul.f32 %v3344, %v3368
      %v3381 = vmul.f32 %v3345, %v3368
      %v3382 = vmul.f32 %v3346, %v3368
      %v3383 = vmul.f32 %v3347, %v3368
      %v3384 = vmul.f32 %v3348, %v3368
      %v3385 = vmul.f32 %v3349, %v3368
      %v3386 = vmul.f32 %v3350, %v3368
      %v3387 = vmul.f32 %v3351, %v3368
      %v3388 = vmul.f32 %v3352, %v3368
      %v3389 = vmul.f32 %v3353, %v3368
      %v3390 = vmul.f32 %v3354, %v3368
      %v3391 = vmul.f32 %v3355, %v3368
      %v3392 = vmul.f32 %v3356, %v3368
      %v3393 = vmul.f32 %v3357, %v3368
      %v3394 = vmul.f32 %v3358, %v3368
      %v3395 = vmul.f32 %v3359, %v3368
      %v3396 = vmul.f32 %v3360, %v3368
      %v3397 = vmul.f32 %v3361, %v3368
      %v3398 = vmul.f32 %v3362, %v3368
      %v3399 = vmul.f32 %v3363, %v3368
      %v3400 = vmul.f32 %v3364, %v3368
      %v3401 = vadd.f32 %v3301, %v3369
      %v3402 = vadd.f32 %v3302, %v3370
      %v3403 = vadd.f32 %v3303, %v3371
      %v3404 = vadd.f32 %v3304, %v3372
      %v3405 = vadd.f32 %v3305, %v3373
      %v3406 = vadd.f32 %v3306, %v3374
      %v3407 = vadd.f32 %v3307, %v3375
      %v3408 = vadd.f32 %v3308, %v3376
      %v3409 = vadd.f32 %v3309, %v3377
      %v3410 = vadd.f32 %v3310, %v3378
      %v3411 = vadd.f32 %v3311, %v3379
      %v3412 = vadd.f32 %v3312, %v3380
      %v3413 = vadd.f32 %v3313, %v3381
      %v3414 = vadd.f32 %v3314, %v3382
      %v3415 = vadd.f32 %v3315, %v3383
      %v3416 = vadd.f32 %v3316, %v3384
      %v3417 = vadd.f32 %v3317, %v3385
      %v3418 = vadd.f32 %v3318, %v3386
      %v3419 = vadd.f32 %v3319, %v3387
      %v3420 = vadd.f32 %v3320, %v3388
      %v3421 = vadd.f32 %v3321, %v3389
      %v3422 = vadd.f32 %v3322, %v3390
      %v3423 = vadd.f32 %v3323, %v3391
      %v3424 = vadd.f32 %v3324, %v3392
      %v3425 = vadd.f32 %v3325, %v3393
      %v3426 = vadd.f32 %v3326, %v3394
      %v3427 = vadd.f32 %v3327, %v3395
      %v3428 = vadd.f32 %v3328, %v3396
      %v3429 = vadd.f32 %v3329, %v3397
      %v3430 = vadd.f32 %v3330, %v3398
      %v3431 = vadd.f32 %v3331, %v3399
      %v3432 = vadd.f32 %v3332, %v3400
      %v3433 = vld [vmem:[%s3132 + $0x3] sm:$0xff]
      %v3434 = vld [vmem:[%s3132 + $0xb] sm:$0xff]
      %v3435 = vld [vmem:[%s3132 + $0x1b] sm:$0xff]
      %v3436 = vld [vmem:[%s3132 + $0x23] sm:$0xff]
      %v3437 = vld [vmem:[%s3132 + $0x33] sm:$0xff]
      %v3438 = vld [vmem:[%s3132 + $0x3b] sm:$0xff]
      %v3439 = vld [vmem:[%s3132 + $0x4b] sm:$0xff]
      %v3440 = vld [vmem:[%s3132 + $0x53] sm:$0xff]
      %v3441 = vld [vmem:[%s3132 + $0x63] sm:$0xff]
      %v3442 = vld [vmem:[%s3132 + $0x6b] sm:$0xff]
      %v3443 = vld [vmem:[%s3132 + $0x7b] sm:$0xff]
      %v3444 = vld [vmem:[%s3132 + $0x83] sm:$0xff]
      %v3445 = vld [vmem:[%s3132 + $0x93] sm:$0xff]
      %v3446 = vld [vmem:[%s3132 + $0x9b] sm:$0xff]
      %v3447 = vld [vmem:[%s3132 + $0xab] sm:$0xff]
      %v3448 = vld [vmem:[%s3132 + $0xb3] sm:$0xff]
      %v3449 = vld [vmem:[%s3132 + $0xc3] sm:$0xff]
      %v3450 = vld [vmem:[%s3132 + $0xcb] sm:$0xff]
      %v3451 = vld [vmem:[%s3132 + $0xdb] sm:$0xff]
      %v3452 = vld [vmem:[%s3132 + $0xe3] sm:$0xff]
      %v3453 = vld [vmem:[%s3132 + $0xf3] sm:$0xff]
      %v3454 = vld [vmem:[%s3132 + $0xfb] sm:$0xff]
      %v3455 = vld [vmem:[%s3132 + $0x10b] sm:$0xff]
      %v3456 = vld [vmem:[%s3132 + $0x113] sm:$0xff]
      %v3457 = vld [vmem:[%s3132 + $0x123] sm:$0xff]
      %v3458 = vld [vmem:[%s3132 + $0x12b] sm:$0xff]
      %v3459 = vld [vmem:[%s3132 + $0x13b] sm:$0xff]
      %v3460 = vld [vmem:[%s3132 + $0x143] sm:$0xff]
      %v3461 = vld [vmem:[%s3132 + $0x153] sm:$0xff]
      %v3462 = vld [vmem:[%s3132 + $0x15b] sm:$0xff]
      %v3463 = vld [vmem:[%s3132 + $0x16b] sm:$0xff]
      %v3464 = vld [vmem:[%s3132 + $0x173] sm:$0xff]
      %v3465 = vlaneseq
      %v3466 = vshrl.u32 %v3465, 7
      %v3467 = vsub.s32 3, %v3466
      %v3468 = vrot.slane %v327, %v3467
      %v3469 = vmul.f32 %v3433, %v3468
      %v3470 = vmul.f32 %v3434, %v3468
      %v3471 = vmul.f32 %v3435, %v3468
      %v3472 = vmul.f32 %v3436, %v3468
      %v3473 = vmul.f32 %v3437, %v3468
      %v3474 = vmul.f32 %v3438, %v3468
      %v3475 = vmul.f32 %v3439, %v3468
      %v3476 = vmul.f32 %v3440, %v3468
      %v3477 = vmul.f32 %v3441, %v3468
      %v3478 = vmul.f32 %v3442, %v3468
      %v3479 = vmul.f32 %v3443, %v3468
      %v3480 = vmul.f32 %v3444, %v3468
      %v3481 = vmul.f32 %v3445, %v3468
      %v3482 = vmul.f32 %v3446, %v3468
      %v3483 = vmul.f32 %v3447, %v3468
      %v3484 = vmul.f32 %v3448, %v3468
      %v3485 = vmul.f32 %v3449, %v3468
      %v3486 = vmul.f32 %v3450, %v3468
      %v3487 = vmul.f32 %v3451, %v3468
      %v3488 = vmul.f32 %v3452, %v3468
      %v3489 = vmul.f32 %v3453, %v3468
      %v3490 = vmul.f32 %v3454, %v3468
      %v3491 = vmul.f32 %v3455, %v3468
      %v3492 = vmul.f32 %v3456, %v3468
      %v3493 = vmul.f32 %v3457, %v3468
      %v3494 = vmul.f32 %v3458, %v3468
      %v3495 = vmul.f32 %v3459, %v3468
      %v3496 = vmul.f32 %v3460, %v3468
      %v3497 = vmul.f32 %v3461, %v3468
      %v3498 = vmul.f32 %v3462, %v3468
      %v3499 = vmul.f32 %v3463, %v3468
      %v3500 = vmul.f32 %v3464, %v3468
      %v3501 = vadd.f32 %v3401, %v3469
      %v3502 = vadd.f32 %v3402, %v3470
      %v3503 = vadd.f32 %v3403, %v3471
      %v3504 = vadd.f32 %v3404, %v3472
      %v3505 = vadd.f32 %v3405, %v3473
      %v3506 = vadd.f32 %v3406, %v3474
      %v3507 = vadd.f32 %v3407, %v3475
      %v3508 = vadd.f32 %v3408, %v3476
      %v3509 = vadd.f32 %v3409, %v3477
      %v3510 = vadd.f32 %v3410, %v3478
      %v3511 = vadd.f32 %v3411, %v3479
      %v3512 = vadd.f32 %v3412, %v3480
      %v3513 = vadd.f32 %v3413, %v3481
      %v3514 = vadd.f32 %v3414, %v3482
      %v3515 = vadd.f32 %v3415, %v3483
      %v3516 = vadd.f32 %v3416, %v3484
      %v3517 = vadd.f32 %v3417, %v3485
      %v3518 = vadd.f32 %v3418, %v3486
      %v3519 = vadd.f32 %v3419, %v3487
      %v3520 = vadd.f32 %v3420, %v3488
      %v3521 = vadd.f32 %v3421, %v3489
      %v3522 = vadd.f32 %v3422, %v3490
      %v3523 = vadd.f32 %v3423, %v3491
      %v3524 = vadd.f32 %v3424, %v3492
      %v3525 = vadd.f32 %v3425, %v3493
      %v3526 = vadd.f32 %v3426, %v3494
      %v3527 = vadd.f32 %v3427, %v3495
      %v3528 = vadd.f32 %v3428, %v3496
      %v3529 = vadd.f32 %v3429, %v3497
      %v3530 = vadd.f32 %v3430, %v3498
      %v3531 = vadd.f32 %v3431, %v3499
      %v3532 = vadd.f32 %v3432, %v3500
      %v3533 = vld [vmem:[%s3132 + $0x4] sm:$0xff]
      %v3534 = vld [vmem:[%s3132 + $0xc] sm:$0xff]
      %v3535 = vld [vmem:[%s3132 + $0x1c] sm:$0xff]
      %v3536 = vld [vmem:[%s3132 + $0x24] sm:$0xff]
      %v3537 = vld [vmem:[%s3132 + $0x34] sm:$0xff]
      %v3538 = vld [vmem:[%s3132 + $0x3c] sm:$0xff]
      %v3539 = vld [vmem:[%s3132 + $0x4c] sm:$0xff]
      %v3540 = vld [vmem:[%s3132 + $0x54] sm:$0xff]
      %v3541 = vld [vmem:[%s3132 + $0x64] sm:$0xff]
      %v3542 = vld [vmem:[%s3132 + $0x6c] sm:$0xff]
      %v3543 = vld [vmem:[%s3132 + $0x7c] sm:$0xff]
      %v3544 = vld [vmem:[%s3132 + $0x84] sm:$0xff]
      %v3545 = vld [vmem:[%s3132 + $0x94] sm:$0xff]
      %v3546 = vld [vmem:[%s3132 + $0x9c] sm:$0xff]
      %v3547 = vld [vmem:[%s3132 + $0xac] sm:$0xff]
      %v3548 = vld [vmem:[%s3132 + $0xb4] sm:$0xff]
      %v3549 = vld [vmem:[%s3132 + $0xc4] sm:$0xff]
      %v3550 = vld [vmem:[%s3132 + $0xcc] sm:$0xff]
      %v3551 = vld [vmem:[%s3132 + $0xdc] sm:$0xff]
      %v3552 = vld [vmem:[%s3132 + $0xe4] sm:$0xff]
      %v3553 = vld [vmem:[%s3132 + $0xf4] sm:$0xff]
      %v3554 = vld [vmem:[%s3132 + $0xfc] sm:$0xff]
      %v3555 = vld [vmem:[%s3132 + $0x10c] sm:$0xff]
      %v3556 = vld [vmem:[%s3132 + $0x114] sm:$0xff]
      %v3557 = vld [vmem:[%s3132 + $0x124] sm:$0xff]
      %v3558 = vld [vmem:[%s3132 + $0x12c] sm:$0xff]
      %v3559 = vld [vmem:[%s3132 + $0x13c] sm:$0xff]
      %v3560 = vld [vmem:[%s3132 + $0x144] sm:$0xff]
      %v3561 = vld [vmem:[%s3132 + $0x154] sm:$0xff]
      %v3562 = vld [vmem:[%s3132 + $0x15c] sm:$0xff]
      %v3563 = vld [vmem:[%s3132 + $0x16c] sm:$0xff]
      %v3564 = vld [vmem:[%s3132 + $0x174] sm:$0xff]
      %v3565 = vlaneseq
      %v3566 = vshrl.u32 %v3565, 7
      %v3567 = vsub.s32 4, %v3566
      %v3568 = vrot.slane %v327, %v3567
      %v3569 = vmul.f32 %v3533, %v3568
      %v3570 = vmul.f32 %v3534, %v3568
      %v3571 = vmul.f32 %v3535, %v3568
      %v3572 = vmul.f32 %v3536, %v3568
      %v3573 = vmul.f32 %v3537, %v3568
      %v3574 = vmul.f32 %v3538, %v3568
      %v3575 = vmul.f32 %v3539, %v3568
      %v3576 = vmul.f32 %v3540, %v3568
      %v3577 = vmul.f32 %v3541, %v3568
      %v3578 = vmul.f32 %v3542, %v3568
      %v3579 = vmul.f32 %v3543, %v3568
      %v3580 = vmul.f32 %v3544, %v3568
      %v3581 = vmul.f32 %v3545, %v3568
      %v3582 = vmul.f32 %v3546, %v3568
      %v3583 = vmul.f32 %v3547, %v3568
      %v3584 = vmul.f32 %v3548, %v3568
      %v3585 = vmul.f32 %v3549, %v3568
      %v3586 = vmul.f32 %v3550, %v3568
      %v3587 = vmul.f32 %v3551, %v3568
      %v3588 = vmul.f32 %v3552, %v3568
      %v3589 = vmul.f32 %v3553, %v3568
      %v3590 = vmul.f32 %v3554, %v3568
      %v3591 = vmul.f32 %v3555, %v3568
      %v3592 = vmul.f32 %v3556, %v3568
      %v3593 = vmul.f32 %v3557, %v3568
      %v3594 = vmul.f32 %v3558, %v3568
      %v3595 = vmul.f32 %v3559, %v3568
      %v3596 = vmul.f32 %v3560, %v3568
      %v3597 = vmul.f32 %v3561, %v3568
      %v3598 = vmul.f32 %v3562, %v3568
      %v3599 = vmul.f32 %v3563, %v3568
      %v3600 = vmul.f32 %v3564, %v3568
      %v3601 = vadd.f32 %v3501, %v3569
      %v3602 = vadd.f32 %v3502, %v3570
      %v3603 = vadd.f32 %v3503, %v3571
      %v3604 = vadd.f32 %v3504, %v3572
      %v3605 = vadd.f32 %v3505, %v3573
      %v3606 = vadd.f32 %v3506, %v3574
      %v3607 = vadd.f32 %v3507, %v3575
      %v3608 = vadd.f32 %v3508, %v3576
      %v3609 = vadd.f32 %v3509, %v3577
      %v3610 = vadd.f32 %v3510, %v3578
      %v3611 = vadd.f32 %v3511, %v3579
      %v3612 = vadd.f32 %v3512, %v3580
      %v3613 = vadd.f32 %v3513, %v3581
      %v3614 = vadd.f32 %v3514, %v3582
      %v3615 = vadd.f32 %v3515, %v3583
      %v3616 = vadd.f32 %v3516, %v3584
      %v3617 = vadd.f32 %v3517, %v3585
      %v3618 = vadd.f32 %v3518, %v3586
      %v3619 = vadd.f32 %v3519, %v3587
      %v3620 = vadd.f32 %v3520, %v3588
      %v3621 = vadd.f32 %v3521, %v3589
      %v3622 = vadd.f32 %v3522, %v3590
      %v3623 = vadd.f32 %v3523, %v3591
      %v3624 = vadd.f32 %v3524, %v3592
      %v3625 = vadd.f32 %v3525, %v3593
      %v3626 = vadd.f32 %v3526, %v3594
      %v3627 = vadd.f32 %v3527, %v3595
      %v3628 = vadd.f32 %v3528, %v3596
      %v3629 = vadd.f32 %v3529, %v3597
      %v3630 = vadd.f32 %v3530, %v3598
      %v3631 = vadd.f32 %v3531, %v3599
      %v3632 = vadd.f32 %v3532, %v3600
      %v3633 = vld [vmem:[%s3132 + $0x5] sm:$0xff]
      %v3634 = vld [vmem:[%s3132 + $0xd] sm:$0xff]
      %v3635 = vld [vmem:[%s3132 + $0x1d] sm:$0xff]
      %v3636 = vld [vmem:[%s3132 + $0x25] sm:$0xff]
      %v3637 = vld [vmem:[%s3132 + $0x35] sm:$0xff]
      %v3638 = vld [vmem:[%s3132 + $0x3d] sm:$0xff]
      %v3639 = vld [vmem:[%s3132 + $0x4d] sm:$0xff]
      %v3640 = vld [vmem:[%s3132 + $0x55] sm:$0xff]
      %v3641 = vld [vmem:[%s3132 + $0x65] sm:$0xff]
      %v3642 = vld [vmem:[%s3132 + $0x6d] sm:$0xff]
      %v3643 = vld [vmem:[%s3132 + $0x7d] sm:$0xff]
      %v3644 = vld [vmem:[%s3132 + $0x85] sm:$0xff]
      %v3645 = vld [vmem:[%s3132 + $0x95] sm:$0xff]
      %v3646 = vld [vmem:[%s3132 + $0x9d] sm:$0xff]
      %v3647 = vld [vmem:[%s3132 + $0xad] sm:$0xff]
      %v3648 = vld [vmem:[%s3132 + $0xb5] sm:$0xff]
      %v3649 = vld [vmem:[%s3132 + $0xc5] sm:$0xff]
      %v3650 = vld [vmem:[%s3132 + $0xcd] sm:$0xff]
      %v3651 = vld [vmem:[%s3132 + $0xdd] sm:$0xff]
      %v3652 = vld [vmem:[%s3132 + $0xe5] sm:$0xff]
      %v3653 = vld [vmem:[%s3132 + $0xf5] sm:$0xff]
      %v3654 = vld [vmem:[%s3132 + $0xfd] sm:$0xff]
      %v3655 = vld [vmem:[%s3132 + $0x10d] sm:$0xff]
      %v3656 = vld [vmem:[%s3132 + $0x115] sm:$0xff]
      %v3657 = vld [vmem:[%s3132 + $0x125] sm:$0xff]
      %v3658 = vld [vmem:[%s3132 + $0x12d] sm:$0xff]
      %v3659 = vld [vmem:[%s3132 + $0x13d] sm:$0xff]
      %v3660 = vld [vmem:[%s3132 + $0x145] sm:$0xff]
      %v3661 = vld [vmem:[%s3132 + $0x155] sm:$0xff]
      %v3662 = vld [vmem:[%s3132 + $0x15d] sm:$0xff]
      %v3663 = vld [vmem:[%s3132 + $0x16d] sm:$0xff]
      %v3664 = vld [vmem:[%s3132 + $0x175] sm:$0xff]
      %v3665 = vlaneseq
      %v3666 = vshrl.u32 %v3665, 7
      %v3667 = vsub.s32 5, %v3666
      %v3668 = vrot.slane %v327, %v3667
      %v3669 = vmul.f32 %v3633, %v3668
      %v3670 = vmul.f32 %v3634, %v3668
      %v3671 = vmul.f32 %v3635, %v3668
      %v3672 = vmul.f32 %v3636, %v3668
      %v3673 = vmul.f32 %v3637, %v3668
      %v3674 = vmul.f32 %v3638, %v3668
      %v3675 = vmul.f32 %v3639, %v3668
      %v3676 = vmul.f32 %v3640, %v3668
      %v3677 = vmul.f32 %v3641, %v3668
      %v3678 = vmul.f32 %v3642, %v3668
      %v3679 = vmul.f32 %v3643, %v3668
      %v3680 = vmul.f32 %v3644, %v3668
      %v3681 = vmul.f32 %v3645, %v3668
      %v3682 = vmul.f32 %v3646, %v3668
      %v3683 = vmul.f32 %v3647, %v3668
      %v3684 = vmul.f32 %v3648, %v3668
      %v3685 = vmul.f32 %v3649, %v3668
      %v3686 = vmul.f32 %v3650, %v3668
      %v3687 = vmul.f32 %v3651, %v3668
      %v3688 = vmul.f32 %v3652, %v3668
      %v3689 = vmul.f32 %v3653, %v3668
      %v3690 = vmul.f32 %v3654, %v3668
      %v3691 = vmul.f32 %v3655, %v3668
      %v3692 = vmul.f32 %v3656, %v3668
      %v3693 = vmul.f32 %v3657, %v3668
      %v3694 = vmul.f32 %v3658, %v3668
      %v3695 = vmul.f32 %v3659, %v3668
      %v3696 = vmul.f32 %v3660, %v3668
      %v3697 = vmul.f32 %v3661, %v3668
      %v3698 = vmul.f32 %v3662, %v3668
      %v3699 = vmul.f32 %v3663, %v3668
      %v3700 = vmul.f32 %v3664, %v3668
      %v3701 = vadd.f32 %v3601, %v3669
      %v3702 = vadd.f32 %v3602, %v3670
      %v3703 = vadd.f32 %v3603, %v3671
      %v3704 = vadd.f32 %v3604, %v3672
      %v3705 = vadd.f32 %v3605, %v3673
      %v3706 = vadd.f32 %v3606, %v3674
      %v3707 = vadd.f32 %v3607, %v3675
      %v3708 = vadd.f32 %v3608, %v3676
      %v3709 = vadd.f32 %v3609, %v3677
      %v3710 = vadd.f32 %v3610, %v3678
      %v3711 = vadd.f32 %v3611, %v3679
      %v3712 = vadd.f32 %v3612, %v3680
      %v3713 = vadd.f32 %v3613, %v3681
      %v3714 = vadd.f32 %v3614, %v3682
      %v3715 = vadd.f32 %v3615, %v3683
      %v3716 = vadd.f32 %v3616, %v3684
      %v3717 = vadd.f32 %v3617, %v3685
      %v3718 = vadd.f32 %v3618, %v3686
      %v3719 = vadd.f32 %v3619, %v3687
      %v3720 = vadd.f32 %v3620, %v3688
      %v3721 = vadd.f32 %v3621, %v3689
      %v3722 = vadd.f32 %v3622, %v3690
      %v3723 = vadd.f32 %v3623, %v3691
      %v3724 = vadd.f32 %v3624, %v3692
      %v3725 = vadd.f32 %v3625, %v3693
      %v3726 = vadd.f32 %v3626, %v3694
      %v3727 = vadd.f32 %v3627, %v3695
      %v3728 = vadd.f32 %v3628, %v3696
      %v3729 = vadd.f32 %v3629, %v3697
      %v3730 = vadd.f32 %v3630, %v3698
      %v3731 = vadd.f32 %v3631, %v3699
      %v3732 = vadd.f32 %v3632, %v3700
      %v3733 = vld [vmem:[%s3132 + $0x6] sm:$0xff]
      %v3734 = vld [vmem:[%s3132 + $0xe] sm:$0xff]
      %v3735 = vld [vmem:[%s3132 + $0x1e] sm:$0xff]
      %v3736 = vld [vmem:[%s3132 + $0x26] sm:$0xff]
      %v3737 = vld [vmem:[%s3132 + $0x36] sm:$0xff]
      %v3738 = vld [vmem:[%s3132 + $0x3e] sm:$0xff]
      %v3739 = vld [vmem:[%s3132 + $0x4e] sm:$0xff]
      %v3740 = vld [vmem:[%s3132 + $0x56] sm:$0xff]
      %v3741 = vld [vmem:[%s3132 + $0x66] sm:$0xff]
      %v3742 = vld [vmem:[%s3132 + $0x6e] sm:$0xff]
      %v3743 = vld [vmem:[%s3132 + $0x7e] sm:$0xff]
      %v3744 = vld [vmem:[%s3132 + $0x86] sm:$0xff]
      %v3745 = vld [vmem:[%s3132 + $0x96] sm:$0xff]
      %v3746 = vld [vmem:[%s3132 + $0x9e] sm:$0xff]
      %v3747 = vld [vmem:[%s3132 + $0xae] sm:$0xff]
      %v3748 = vld [vmem:[%s3132 + $0xb6] sm:$0xff]
      %v3749 = vld [vmem:[%s3132 + $0xc6] sm:$0xff]
      %v3750 = vld [vmem:[%s3132 + $0xce] sm:$0xff]
      %v3751 = vld [vmem:[%s3132 + $0xde] sm:$0xff]
      %v3752 = vld [vmem:[%s3132 + $0xe6] sm:$0xff]
      %v3753 = vld [vmem:[%s3132 + $0xf6] sm:$0xff]
      %v3754 = vld [vmem:[%s3132 + $0xfe] sm:$0xff]
      %v3755 = vld [vmem:[%s3132 + $0x10e] sm:$0xff]
      %v3756 = vld [vmem:[%s3132 + $0x116] sm:$0xff]
      %v3757 = vld [vmem:[%s3132 + $0x126] sm:$0xff]
      %v3758 = vld [vmem:[%s3132 + $0x12e] sm:$0xff]
      %v3759 = vld [vmem:[%s3132 + $0x13e] sm:$0xff]
      %v3760 = vld [vmem:[%s3132 + $0x146] sm:$0xff]
      %v3761 = vld [vmem:[%s3132 + $0x156] sm:$0xff]
      %v3762 = vld [vmem:[%s3132 + $0x15e] sm:$0xff]
      %v3763 = vld [vmem:[%s3132 + $0x16e] sm:$0xff]
      %v3764 = vld [vmem:[%s3132 + $0x176] sm:$0xff]
      %v3765 = vlaneseq
      %v3766 = vshrl.u32 %v3765, 7
      %v3767 = vsub.s32 6, %v3766
      %v3768 = vrot.slane %v327, %v3767
      %v3769 = vmul.f32 %v3733, %v3768
      %v3770 = vmul.f32 %v3734, %v3768
      %v3771 = vmul.f32 %v3735, %v3768
      %v3772 = vmul.f32 %v3736, %v3768
      %v3773 = vmul.f32 %v3737, %v3768
      %v3774 = vmul.f32 %v3738, %v3768
      %v3775 = vmul.f32 %v3739, %v3768
      %v3776 = vmul.f32 %v3740, %v3768
      %v3777 = vmul.f32 %v3741, %v3768
      %v3778 = vmul.f32 %v3742, %v3768
      %v3779 = vmul.f32 %v3743, %v3768
      %v3780 = vmul.f32 %v3744, %v3768
      %v3781 = vmul.f32 %v3745, %v3768
      %v3782 = vmul.f32 %v3746, %v3768
      %v3783 = vmul.f32 %v3747, %v3768
      %v3784 = vmul.f32 %v3748, %v3768
      %v3785 = vmul.f32 %v3749, %v3768
      %v3786 = vmul.f32 %v3750, %v3768
      %v3787 = vmul.f32 %v3751, %v3768
      %v3788 = vmul.f32 %v3752, %v3768
      %v3789 = vmul.f32 %v3753, %v3768
      %v3790 = vmul.f32 %v3754, %v3768
      %v3791 = vmul.f32 %v3755, %v3768
      %v3792 = vmul.f32 %v3756, %v3768
      %v3793 = vmul.f32 %v3757, %v3768
      %v3794 = vmul.f32 %v3758, %v3768
      %v3795 = vmul.f32 %v3759, %v3768
      %v3796 = vmul.f32 %v3760, %v3768
      %v3797 = vmul.f32 %v3761, %v3768
      %v3798 = vmul.f32 %v3762, %v3768
      %v3799 = vmul.f32 %v3763, %v3768
      %v3800 = vmul.f32 %v3764, %v3768
      %v3801 = vadd.f32 %v3701, %v3769
      %v3802 = vadd.f32 %v3702, %v3770
      %v3803 = vadd.f32 %v3703, %v3771
      %v3804 = vadd.f32 %v3704, %v3772
      %v3805 = vadd.f32 %v3705, %v3773
      %v3806 = vadd.f32 %v3706, %v3774
      %v3807 = vadd.f32 %v3707, %v3775
      %v3808 = vadd.f32 %v3708, %v3776
      %v3809 = vadd.f32 %v3709, %v3777
      %v3810 = vadd.f32 %v3710, %v3778
      %v3811 = vadd.f32 %v3711, %v3779
      %v3812 = vadd.f32 %v3712, %v3780
      %v3813 = vadd.f32 %v3713, %v3781
      %v3814 = vadd.f32 %v3714, %v3782
      %v3815 = vadd.f32 %v3715, %v3783
      %v3816 = vadd.f32 %v3716, %v3784
      %v3817 = vadd.f32 %v3717, %v3785
      %v3818 = vadd.f32 %v3718, %v3786
      %v3819 = vadd.f32 %v3719, %v3787
      %v3820 = vadd.f32 %v3720, %v3788
      %v3821 = vadd.f32 %v3721, %v3789
      %v3822 = vadd.f32 %v3722, %v3790
      %v3823 = vadd.f32 %v3723, %v3791
      %v3824 = vadd.f32 %v3724, %v3792
      %v3825 = vadd.f32 %v3725, %v3793
      %v3826 = vadd.f32 %v3726, %v3794
      %v3827 = vadd.f32 %v3727, %v3795
      %v3828 = vadd.f32 %v3728, %v3796
      %v3829 = vadd.f32 %v3729, %v3797
      %v3830 = vadd.f32 %v3730, %v3798
      %v3831 = vadd.f32 %v3731, %v3799
      %v3832 = vadd.f32 %v3732, %v3800
      %s3833 = scalar_lea.vmem [#allocation2], 120
      %v3834 = vld [vmem:[%s3833] sm:$0xff]
      %v3835 = vld [vmem:[%s3833 + $0x8] sm:$0xff]
      %v3836 = vld [vmem:[%s3833 + $0x18] sm:$0xff]
      %v3837 = vld [vmem:[%s3833 + $0x20] sm:$0xff]
      %v3838 = vld [vmem:[%s3833 + $0x30] sm:$0xff]
      %v3839 = vld [vmem:[%s3833 + $0x38] sm:$0xff]
      %v3840 = vld [vmem:[%s3833 + $0x48] sm:$0xff]
      %v3841 = vld [vmem:[%s3833 + $0x50] sm:$0xff]
      %v3842 = vld [vmem:[%s3833 + $0x60] sm:$0xff]
      %v3843 = vld [vmem:[%s3833 + $0x68] sm:$0xff]
      %v3844 = vld [vmem:[%s3833 + $0x78] sm:$0xff]
      %v3845 = vld [vmem:[%s3833 + $0x80] sm:$0xff]
      %v3846 = vld [vmem:[%s3833 + $0x90] sm:$0xff]
      %v3847 = vld [vmem:[%s3833 + $0x98] sm:$0xff]
      %v3848 = vld [vmem:[%s3833 + $0xa8] sm:$0xff]
      %v3849 = vld [vmem:[%s3833 + $0xb0] sm:$0xff]
      %v3850 = vld [vmem:[%s3833 + $0xc0] sm:$0xff]
      %v3851 = vld [vmem:[%s3833 + $0xc8] sm:$0xff]
      %v3852 = vld [vmem:[%s3833 + $0xd8] sm:$0xff]
      %v3853 = vld [vmem:[%s3833 + $0xe0] sm:$0xff]
      %v3854 = vld [vmem:[%s3833 + $0xf0] sm:$0xff]
      %v3855 = vld [vmem:[%s3833 + $0xf8] sm:$0xff]
      %v3856 = vld [vmem:[%s3833 + $0x108] sm:$0xff]
      %v3857 = vld [vmem:[%s3833 + $0x110] sm:$0xff]
      %v3858 = vld [vmem:[%s3833 + $0x120] sm:$0xff]
      %v3859 = vld [vmem:[%s3833 + $0x128] sm:$0xff]
      %v3860 = vld [vmem:[%s3833 + $0x138] sm:$0xff]
      %v3861 = vld [vmem:[%s3833 + $0x140] sm:$0xff]
      %v3862 = vld [vmem:[%s3833 + $0x150] sm:$0xff]
      %v3863 = vld [vmem:[%s3833 + $0x158] sm:$0xff]
      %v3864 = vld [vmem:[%s3833 + $0x168] sm:$0xff]
      %v3865 = vld [vmem:[%s3833 + $0x170] sm:$0xff]
      %v3866 = vlaneseq
      %v3867 = vshrl.u32 %v3866, 7
      %v3868 = vsub.s32 0, %v3867
      %v3869 = vrot.slane %v328, %v3868
      %v3870 = vmul.f32 %v3834, %v3869
      %v3871 = vmul.f32 %v3835, %v3869
      %v3872 = vmul.f32 %v3836, %v3869
      %v3873 = vmul.f32 %v3837, %v3869
      %v3874 = vmul.f32 %v3838, %v3869
      %v3875 = vmul.f32 %v3839, %v3869
      %v3876 = vmul.f32 %v3840, %v3869
      %v3877 = vmul.f32 %v3841, %v3869
      %v3878 = vmul.f32 %v3842, %v3869
      %v3879 = vmul.f32 %v3843, %v3869
      %v3880 = vmul.f32 %v3844, %v3869
      %v3881 = vmul.f32 %v3845, %v3869
      %v3882 = vmul.f32 %v3846, %v3869
      %v3883 = vmul.f32 %v3847, %v3869
      %v3884 = vmul.f32 %v3848, %v3869
      %v3885 = vmul.f32 %v3849, %v3869
      %v3886 = vmul.f32 %v3850, %v3869
      %v3887 = vmul.f32 %v3851, %v3869
      %v3888 = vmul.f32 %v3852, %v3869
      %v3889 = vmul.f32 %v3853, %v3869
      %v3890 = vmul.f32 %v3854, %v3869
      %v3891 = vmul.f32 %v3855, %v3869
      %v3892 = vmul.f32 %v3856, %v3869
      %v3893 = vmul.f32 %v3857, %v3869
      %v3894 = vmul.f32 %v3858, %v3869
      %v3895 = vmul.f32 %v3859, %v3869
      %v3896 = vmul.f32 %v3860, %v3869
      %v3897 = vmul.f32 %v3861, %v3869
      %v3898 = vmul.f32 %v3862, %v3869
      %v3899 = vmul.f32 %v3863, %v3869
      %v3900 = vmul.f32 %v3864, %v3869
      %v3901 = vmul.f32 %v3865, %v3869
      %v3902 = vadd.f32 %v3801, %v3870
      %v3903 = vadd.f32 %v3802, %v3871
      %v3904 = vadd.f32 %v3803, %v3872
      %v3905 = vadd.f32 %v3804, %v3873
      %v3906 = vadd.f32 %v3805, %v3874
      %v3907 = vadd.f32 %v3806, %v3875
      %v3908 = vadd.f32 %v3807, %v3876
      %v3909 = vadd.f32 %v3808, %v3877
      %v3910 = vadd.f32 %v3809, %v3878
      %v3911 = vadd.f32 %v3810, %v3879
      %v3912 = vadd.f32 %v3811, %v3880
      %v3913 = vadd.f32 %v3812, %v3881
      %v3914 = vadd.f32 %v3813, %v3882
      %v3915 = vadd.f32 %v3814, %v3883
      %v3916 = vadd.f32 %v3815, %v3884
      %v3917 = vadd.f32 %v3816, %v3885
      %v3918 = vadd.f32 %v3817, %v3886
      %v3919 = vadd.f32 %v3818, %v3887
      %v3920 = vadd.f32 %v3819, %v3888
      %v3921 = vadd.f32 %v3820, %v3889
      %v3922 = vadd.f32 %v3821, %v3890
      %v3923 = vadd.f32 %v3822, %v3891
      %v3924 = vadd.f32 %v3823, %v3892
      %v3925 = vadd.f32 %v3824, %v3893
      %v3926 = vadd.f32 %v3825, %v3894
      %v3927 = vadd.f32 %v3826, %v3895
      %v3928 = vadd.f32 %v3827, %v3896
      %v3929 = vadd.f32 %v3828, %v3897
      %v3930 = vadd.f32 %v3829, %v3898
      %v3931 = vadd.f32 %v3830, %v3899
      %v3932 = vadd.f32 %v3831, %v3900
      %v3933 = vadd.f32 %v3832, %v3901
      %v3934 = vld [vmem:[%s3833 + $0x1] sm:$0xff]
      %v3935 = vld [vmem:[%s3833 + $0x9] sm:$0xff]
      %v3936 = vld [vmem:[%s3833 + $0x19] sm:$0xff]
      %v3937 = vld [vmem:[%s3833 + $0x21] sm:$0xff]
      %v3938 = vld [vmem:[%s3833 + $0x31] sm:$0xff]
      %v3939 = vld [vmem:[%s3833 + $0x39] sm:$0xff]
      %v3940 = vld [vmem:[%s3833 + $0x49] sm:$0xff]
      %v3941 = vld [vmem:[%s3833 + $0x51] sm:$0xff]
      %v3942 = vld [vmem:[%s3833 + $0x61] sm:$0xff]
      %v3943 = vld [vmem:[%s3833 + $0x69] sm:$0xff]
      %v3944 = vld [vmem:[%s3833 + $0x79] sm:$0xff]
      %v3945 = vld [vmem:[%s3833 + $0x81] sm:$0xff]
      %v3946 = vld [vmem:[%s3833 + $0x91] sm:$0xff]
      %v3947 = vld [vmem:[%s3833 + $0x99] sm:$0xff]
      %v3948 = vld [vmem:[%s3833 + $0xa9] sm:$0xff]
      %v3949 = vld [vmem:[%s3833 + $0xb1] sm:$0xff]
      %v3950 = vld [vmem:[%s3833 + $0xc1] sm:$0xff]
      %v3951 = vld [vmem:[%s3833 + $0xc9] sm:$0xff]
      %v3952 = vld [vmem:[%s3833 + $0xd9] sm:$0xff]
      %v3953 = vld [vmem:[%s3833 + $0xe1] sm:$0xff]
      %v3954 = vld [vmem:[%s3833 + $0xf1] sm:$0xff]
      %v3955 = vld [vmem:[%s3833 + $0xf9] sm:$0xff]
      %v3956 = vld [vmem:[%s3833 + $0x109] sm:$0xff]
      %v3957 = vld [vmem:[%s3833 + $0x111] sm:$0xff]
      %v3958 = vld [vmem:[%s3833 + $0x121] sm:$0xff]
      %v3959 = vld [vmem:[%s3833 + $0x129] sm:$0xff]
      %v3960 = vld [vmem:[%s3833 + $0x139] sm:$0xff]
      %v3961 = vld [vmem:[%s3833 + $0x141] sm:$0xff]
      %v3962 = vld [vmem:[%s3833 + $0x151] sm:$0xff]
      %v3963 = vld [vmem:[%s3833 + $0x159] sm:$0xff]
      %v3964 = vld [vmem:[%s3833 + $0x169] sm:$0xff]
      %v3965 = vld [vmem:[%s3833 + $0x171] sm:$0xff]
      %v3966 = vlaneseq
      %v3967 = vshrl.u32 %v3966, 7
      %v3968 = vsub.s32 1, %v3967
      %v3969 = vrot.slane %v328, %v3968
      %v3970 = vmul.f32 %v3934, %v3969
      %v3971 = vmul.f32 %v3935, %v3969
      %v3972 = vmul.f32 %v3936, %v3969
      %v3973 = vmul.f32 %v3937, %v3969
      %v3974 = vmul.f32 %v3938, %v3969
      %v3975 = vmul.f32 %v3939, %v3969
      %v3976 = vmul.f32 %v3940, %v3969
      %v3977 = vmul.f32 %v3941, %v3969
      %v3978 = vmul.f32 %v3942, %v3969
      %v3979 = vmul.f32 %v3943, %v3969
      %v3980 = vmul.f32 %v3944, %v3969
      %v3981 = vmul.f32 %v3945, %v3969
      %v3982 = vmul.f32 %v3946, %v3969
      %v3983 = vmul.f32 %v3947, %v3969
      %v3984 = vmul.f32 %v3948, %v3969
      %v3985 = vmul.f32 %v3949, %v3969
      %v3986 = vmul.f32 %v3950, %v3969
      %v3987 = vmul.f32 %v3951, %v3969
      %v3988 = vmul.f32 %v3952, %v3969
      %v3989 = vmul.f32 %v3953, %v3969
      %v3990 = vmul.f32 %v3954, %v3969
      %v3991 = vmul.f32 %v3955, %v3969
      %v3992 = vmul.f32 %v3956, %v3969
      %v3993 = vmul.f32 %v3957, %v3969
      %v3994 = vmul.f32 %v3958, %v3969
      %v3995 = vmul.f32 %v3959, %v3969
      %v3996 = vmul.f32 %v3960, %v3969
      %v3997 = vmul.f32 %v3961, %v3969
      %v3998 = vmul.f32 %v3962, %v3969
      %v3999 = vmul.f32 %v3963, %v3969
      %v4000 = vmul.f32 %v3964, %v3969
      %v4001 = vmul.f32 %v3965, %v3969
      %v4002 = vadd.f32 %v3902, %v3970
      %v4003 = vadd.f32 %v3903, %v3971
      %v4004 = vadd.f32 %v3904, %v3972
      %v4005 = vadd.f32 %v3905, %v3973
      %v4006 = vadd.f32 %v3906, %v3974
      %v4007 = vadd.f32 %v3907, %v3975
      %v4008 = vadd.f32 %v3908, %v3976
      %v4009 = vadd.f32 %v3909, %v3977
      %v4010 = vadd.f32 %v3910, %v3978
      %v4011 = vadd.f32 %v3911, %v3979
      %v4012 = vadd.f32 %v3912, %v3980
      %v4013 = vadd.f32 %v3913, %v3981
      %v4014 = vadd.f32 %v3914, %v3982
      %v4015 = vadd.f32 %v3915, %v3983
      %v4016 = vadd.f32 %v3916, %v3984
      %v4017 = vadd.f32 %v3917, %v3985
      %v4018 = vadd.f32 %v3918, %v3986
      %v4019 = vadd.f32 %v3919, %v3987
      %v4020 = vadd.f32 %v3920, %v3988
      %v4021 = vadd.f32 %v3921, %v3989
      %v4022 = vadd.f32 %v3922, %v3990
      %v4023 = vadd.f32 %v3923, %v3991
      %v4024 = vadd.f32 %v3924, %v3992
      %v4025 = vadd.f32 %v3925, %v3993
      %v4026 = vadd.f32 %v3926, %v3994
      %v4027 = vadd.f32 %v3927, %v3995
      %v4028 = vadd.f32 %v3928, %v3996
      %v4029 = vadd.f32 %v3929, %v3997
      %v4030 = vadd.f32 %v3930, %v3998
      %v4031 = vadd.f32 %v3931, %v3999
      %v4032 = vadd.f32 %v3932, %v4000
      %v4033 = vadd.f32 %v3933, %v4001
      %v4034 = vld [vmem:[%s3833 + $0x2] sm:$0xff]
      %v4035 = vld [vmem:[%s3833 + $0xa] sm:$0xff]
      %v4036 = vld [vmem:[%s3833 + $0x1a] sm:$0xff]
      %v4037 = vld [vmem:[%s3833 + $0x22] sm:$0xff]
      %v4038 = vld [vmem:[%s3833 + $0x32] sm:$0xff]
      %v4039 = vld [vmem:[%s3833 + $0x3a] sm:$0xff]
      %v4040 = vld [vmem:[%s3833 + $0x4a] sm:$0xff]
      %v4041 = vld [vmem:[%s3833 + $0x52] sm:$0xff]
      %v4042 = vld [vmem:[%s3833 + $0x62] sm:$0xff]
      %v4043 = vld [vmem:[%s3833 + $0x6a] sm:$0xff]
      %v4044 = vld [vmem:[%s3833 + $0x7a] sm:$0xff]
      %v4045 = vld [vmem:[%s3833 + $0x82] sm:$0xff]
      %v4046 = vld [vmem:[%s3833 + $0x92] sm:$0xff]
      %v4047 = vld [vmem:[%s3833 + $0x9a] sm:$0xff]
      %v4048 = vld [vmem:[%s3833 + $0xaa] sm:$0xff]
      %v4049 = vld [vmem:[%s3833 + $0xb2] sm:$0xff]
      %v4050 = vld [vmem:[%s3833 + $0xc2] sm:$0xff]
      %v4051 = vld [vmem:[%s3833 + $0xca] sm:$0xff]
      %v4052 = vld [vmem:[%s3833 + $0xda] sm:$0xff]
      %v4053 = vld [vmem:[%s3833 + $0xe2] sm:$0xff]
      %v4054 = vld [vmem:[%s3833 + $0xf2] sm:$0xff]
      %v4055 = vld [vmem:[%s3833 + $0xfa] sm:$0xff]
      %v4056 = vld [vmem:[%s3833 + $0x10a] sm:$0xff]
      %v4057 = vld [vmem:[%s3833 + $0x112] sm:$0xff]
      %v4058 = vld [vmem:[%s3833 + $0x122] sm:$0xff]
      %v4059 = vld [vmem:[%s3833 + $0x12a] sm:$0xff]
      %v4060 = vld [vmem:[%s3833 + $0x13a] sm:$0xff]
      %v4061 = vld [vmem:[%s3833 + $0x142] sm:$0xff]
      %v4062 = vld [vmem:[%s3833 + $0x152] sm:$0xff]
      %v4063 = vld [vmem:[%s3833 + $0x15a] sm:$0xff]
      %v4064 = vld [vmem:[%s3833 + $0x16a] sm:$0xff]
      %v4065 = vld [vmem:[%s3833 + $0x172] sm:$0xff]
      %v4066 = vlaneseq
      %v4067 = vshrl.u32 %v4066, 7
      %v4068 = vsub.s32 2, %v4067
      %v4069 = vrot.slane %v328, %v4068
      %v4070 = vmul.f32 %v4034, %v4069
      %v4071 = vmul.f32 %v4035, %v4069
      %v4072 = vmul.f32 %v4036, %v4069
      %v4073 = vmul.f32 %v4037, %v4069
      %v4074 = vmul.f32 %v4038, %v4069
      %v4075 = vmul.f32 %v4039, %v4069
      %v4076 = vmul.f32 %v4040, %v4069
      %v4077 = vmul.f32 %v4041, %v4069
      %v4078 = vmul.f32 %v4042, %v4069
      %v4079 = vmul.f32 %v4043, %v4069
      %v4080 = vmul.f32 %v4044, %v4069
      %v4081 = vmul.f32 %v4045, %v4069
      %v4082 = vmul.f32 %v4046, %v4069
      %v4083 = vmul.f32 %v4047, %v4069
      %v4084 = vmul.f32 %v4048, %v4069
      %v4085 = vmul.f32 %v4049, %v4069
      %v4086 = vmul.f32 %v4050, %v4069
      %v4087 = vmul.f32 %v4051, %v4069
      %v4088 = vmul.f32 %v4052, %v4069
      %v4089 = vmul.f32 %v4053, %v4069
      %v4090 = vmul.f32 %v4054, %v4069
      %v4091 = vmul.f32 %v4055, %v4069
      %v4092 = vmul.f32 %v4056, %v4069
      %v4093 = vmul.f32 %v4057, %v4069
      %v4094 = vmul.f32 %v4058, %v4069
      %v4095 = vmul.f32 %v4059, %v4069
      %v4096 = vmul.f32 %v4060, %v4069
      %v4097 = vmul.f32 %v4061, %v4069
      %v4098 = vmul.f32 %v4062, %v4069
      %v4099 = vmul.f32 %v4063, %v4069
      %v4100 = vmul.f32 %v4064, %v4069
      %v4101 = vmul.f32 %v4065, %v4069
      %v4102 = vadd.f32 %v4002, %v4070
      %v4103 = vadd.f32 %v4003, %v4071
      %v4104 = vadd.f32 %v4004, %v4072
      %v4105 = vadd.f32 %v4005, %v4073
      %v4106 = vadd.f32 %v4006, %v4074
      %v4107 = vadd.f32 %v4007, %v4075
      %v4108 = vadd.f32 %v4008, %v4076
      %v4109 = vadd.f32 %v4009, %v4077
      %v4110 = vadd.f32 %v4010, %v4078
      %v4111 = vadd.f32 %v4011, %v4079
      %v4112 = vadd.f32 %v4012, %v4080
      %v4113 = vadd.f32 %v4013, %v4081
      %v4114 = vadd.f32 %v4014, %v4082
      %v4115 = vadd.f32 %v4015, %v4083
      %v4116 = vadd.f32 %v4016, %v4084
      %v4117 = vadd.f32 %v4017, %v4085
      %v4118 = vadd.f32 %v4018, %v4086
      %v4119 = vadd.f32 %v4019, %v4087
      %v4120 = vadd.f32 %v4020, %v4088
      %v4121 = vadd.f32 %v4021, %v4089
      %v4122 = vadd.f32 %v4022, %v4090
      %v4123 = vadd.f32 %v4023, %v4091
      %v4124 = vadd.f32 %v4024, %v4092
      %v4125 = vadd.f32 %v4025, %v4093
      %v4126 = vadd.f32 %v4026, %v4094
      %v4127 = vadd.f32 %v4027, %v4095
      %v4128 = vadd.f32 %v4028, %v4096
      %v4129 = vadd.f32 %v4029, %v4097
      %v4130 = vadd.f32 %v4030, %v4098
      %v4131 = vadd.f32 %v4031, %v4099
      %v4132 = vadd.f32 %v4032, %v4100
      %v4133 = vadd.f32 %v4033, %v4101
      %v4134 = vld [vmem:[%s3833 + $0x3] sm:$0xff]
      %v4135 = vld [vmem:[%s3833 + $0xb] sm:$0xff]
      %v4136 = vld [vmem:[%s3833 + $0x1b] sm:$0xff]
      %v4137 = vld [vmem:[%s3833 + $0x23] sm:$0xff]
      %v4138 = vld [vmem:[%s3833 + $0x33] sm:$0xff]
      %v4139 = vld [vmem:[%s3833 + $0x3b] sm:$0xff]
      %v4140 = vld [vmem:[%s3833 + $0x4b] sm:$0xff]
      %v4141 = vld [vmem:[%s3833 + $0x53] sm:$0xff]
      %v4142 = vld [vmem:[%s3833 + $0x63] sm:$0xff]
      %v4143 = vld [vmem:[%s3833 + $0x6b] sm:$0xff]
      %v4144 = vld [vmem:[%s3833 + $0x7b] sm:$0xff]
      %v4145 = vld [vmem:[%s3833 + $0x83] sm:$0xff]
      %v4146 = vld [vmem:[%s3833 + $0x93] sm:$0xff]
      %v4147 = vld [vmem:[%s3833 + $0x9b] sm:$0xff]
      %v4148 = vld [vmem:[%s3833 + $0xab] sm:$0xff]
      %v4149 = vld [vmem:[%s3833 + $0xb3] sm:$0xff]
      %v4150 = vld [vmem:[%s3833 + $0xc3] sm:$0xff]
      %v4151 = vld [vmem:[%s3833 + $0xcb] sm:$0xff]
      %v4152 = vld [vmem:[%s3833 + $0xdb] sm:$0xff]
      %v4153 = vld [vmem:[%s3833 + $0xe3] sm:$0xff]
      %v4154 = vld [vmem:[%s3833 + $0xf3] sm:$0xff]
      %v4155 = vld [vmem:[%s3833 + $0xfb] sm:$0xff]
      %v4156 = vld [vmem:[%s3833 + $0x10b] sm:$0xff]
      %v4157 = vld [vmem:[%s3833 + $0x113] sm:$0xff]
      %v4158 = vld [vmem:[%s3833 + $0x123] sm:$0xff]
      %v4159 = vld [vmem:[%s3833 + $0x12b] sm:$0xff]
      %v4160 = vld [vmem:[%s3833 + $0x13b] sm:$0xff]
      %v4161 = vld [vmem:[%s3833 + $0x143] sm:$0xff]
      %v4162 = vld [vmem:[%s3833 + $0x153] sm:$0xff]
      %v4163 = vld [vmem:[%s3833 + $0x15b] sm:$0xff]
      %v4164 = vld [vmem:[%s3833 + $0x16b] sm:$0xff]
      %v4165 = vld [vmem:[%s3833 + $0x173] sm:$0xff]
      %v4166 = vlaneseq
      %v4167 = vshrl.u32 %v4166, 7
      %v4168 = vsub.s32 3, %v4167
      %v4169 = vrot.slane %v328, %v4168
      %v4170 = vmul.f32 %v4134, %v4169
      %v4171 = vmul.f32 %v4135, %v4169
      %v4172 = vmul.f32 %v4136, %v4169
      %v4173 = vmul.f32 %v4137, %v4169
      %v4174 = vmul.f32 %v4138, %v4169
      %v4175 = vmul.f32 %v4139, %v4169
      %v4176 = vmul.f32 %v4140, %v4169
      %v4177 = vmul.f32 %v4141, %v4169
      %v4178 = vmul.f32 %v4142, %v4169
      %v4179 = vmul.f32 %v4143, %v4169
      %v4180 = vmul.f32 %v4144, %v4169
      %v4181 = vmul.f32 %v4145, %v4169
      %v4182 = vmul.f32 %v4146, %v4169
      %v4183 = vmul.f32 %v4147, %v4169
      %v4184 = vmul.f32 %v4148, %v4169
      %v4185 = vmul.f32 %v4149, %v4169
      %v4186 = vmul.f32 %v4150, %v4169
      %v4187 = vmul.f32 %v4151, %v4169
      %v4188 = vmul.f32 %v4152, %v4169
      %v4189 = vmul.f32 %v4153, %v4169
      %v4190 = vmul.f32 %v4154, %v4169
      %v4191 = vmul.f32 %v4155, %v4169
      %v4192 = vmul.f32 %v4156, %v4169
      %v4193 = vmul.f32 %v4157, %v4169
      %v4194 = vmul.f32 %v4158, %v4169
      %v4195 = vmul.f32 %v4159, %v4169
      %v4196 = vmul.f32 %v4160, %v4169
      %v4197 = vmul.f32 %v4161, %v4169
      %v4198 = vmul.f32 %v4162, %v4169
      %v4199 = vmul.f32 %v4163, %v4169
      %v4200 = vmul.f32 %v4164, %v4169
      %v4201 = vmul.f32 %v4165, %v4169
      %v4202 = vadd.f32 %v4102, %v4170
      %v4203 = vadd.f32 %v4103, %v4171
      %v4204 = vadd.f32 %v4104, %v4172
      %v4205 = vadd.f32 %v4105, %v4173
      %v4206 = vadd.f32 %v4106, %v4174
      %v4207 = vadd.f32 %v4107, %v4175
      %v4208 = vadd.f32 %v4108, %v4176
      %v4209 = vadd.f32 %v4109, %v4177
      %v4210 = vadd.f32 %v4110, %v4178
      %v4211 = vadd.f32 %v4111, %v4179
      %v4212 = vadd.f32 %v4112, %v4180
      %v4213 = vadd.f32 %v4113, %v4181
      %v4214 = vadd.f32 %v4114, %v4182
      %v4215 = vadd.f32 %v4115, %v4183
      %v4216 = vadd.f32 %v4116, %v4184
      %v4217 = vadd.f32 %v4117, %v4185
      %v4218 = vadd.f32 %v4118, %v4186
      %v4219 = vadd.f32 %v4119, %v4187
      %v4220 = vadd.f32 %v4120, %v4188
      %v4221 = vadd.f32 %v4121, %v4189
      %v4222 = vadd.f32 %v4122, %v4190
      %v4223 = vadd.f32 %v4123, %v4191
      %v4224 = vadd.f32 %v4124, %v4192
      %v4225 = vadd.f32 %v4125, %v4193
      %v4226 = vadd.f32 %v4126, %v4194
      %v4227 = vadd.f32 %v4127, %v4195
      %v4228 = vadd.f32 %v4128, %v4196
      %v4229 = vadd.f32 %v4129, %v4197
      %v4230 = vadd.f32 %v4130, %v4198
      %v4231 = vadd.f32 %v4131, %v4199
      %v4232 = vadd.f32 %v4132, %v4200
      %v4233 = vadd.f32 %v4133, %v4201
      %v4234 = vld [vmem:[%s3833 + $0x4] sm:$0xff]
      %v4235 = vld [vmem:[%s3833 + $0xc] sm:$0xff]
      %v4236 = vld [vmem:[%s3833 + $0x1c] sm:$0xff]
      %v4237 = vld [vmem:[%s3833 + $0x24] sm:$0xff]
      %v4238 = vld [vmem:[%s3833 + $0x34] sm:$0xff]
      %v4239 = vld [vmem:[%s3833 + $0x3c] sm:$0xff]
      %v4240 = vld [vmem:[%s3833 + $0x4c] sm:$0xff]
      %v4241 = vld [vmem:[%s3833 + $0x54] sm:$0xff]
      %v4242 = vld [vmem:[%s3833 + $0x64] sm:$0xff]
      %v4243 = vld [vmem:[%s3833 + $0x6c] sm:$0xff]
      %v4244 = vld [vmem:[%s3833 + $0x7c] sm:$0xff]
      %v4245 = vld [vmem:[%s3833 + $0x84] sm:$0xff]
      %v4246 = vld [vmem:[%s3833 + $0x94] sm:$0xff]
      %v4247 = vld [vmem:[%s3833 + $0x9c] sm:$0xff]
      %v4248 = vld [vmem:[%s3833 + $0xac] sm:$0xff]
      %v4249 = vld [vmem:[%s3833 + $0xb4] sm:$0xff]
      %v4250 = vld [vmem:[%s3833 + $0xc4] sm:$0xff]
      %v4251 = vld [vmem:[%s3833 + $0xcc] sm:$0xff]
      %v4252 = vld [vmem:[%s3833 + $0xdc] sm:$0xff]
      %v4253 = vld [vmem:[%s3833 + $0xe4] sm:$0xff]
      %v4254 = vld [vmem:[%s3833 + $0xf4] sm:$0xff]
      %v4255 = vld [vmem:[%s3833 + $0xfc] sm:$0xff]
      %v4256 = vld [vmem:[%s3833 + $0x10c] sm:$0xff]
      %v4257 = vld [vmem:[%s3833 + $0x114] sm:$0xff]
      %v4258 = vld [vmem:[%s3833 + $0x124] sm:$0xff]
      %v4259 = vld [vmem:[%s3833 + $0x12c] sm:$0xff]
      %v4260 = vld [vmem:[%s3833 + $0x13c] sm:$0xff]
      %v4261 = vld [vmem:[%s3833 + $0x144] sm:$0xff]
      %v4262 = vld [vmem:[%s3833 + $0x154] sm:$0xff]
      %v4263 = vld [vmem:[%s3833 + $0x15c] sm:$0xff]
      %v4264 = vld [vmem:[%s3833 + $0x16c] sm:$0xff]
      %v4265 = vld [vmem:[%s3833 + $0x174] sm:$0xff]
      %v4266 = vlaneseq
      %v4267 = vshrl.u32 %v4266, 7
      %v4268 = vsub.s32 4, %v4267
      %v4269 = vrot.slane %v328, %v4268
      %v4270 = vmul.f32 %v4234, %v4269
      %v4271 = vmul.f32 %v4235, %v4269
      %v4272 = vmul.f32 %v4236, %v4269
      %v4273 = vmul.f32 %v4237, %v4269
      %v4274 = vmul.f32 %v4238, %v4269
      %v4275 = vmul.f32 %v4239, %v4269
      %v4276 = vmul.f32 %v4240, %v4269
      %v4277 = vmul.f32 %v4241, %v4269
      %v4278 = vmul.f32 %v4242, %v4269
      %v4279 = vmul.f32 %v4243, %v4269
      %v4280 = vmul.f32 %v4244, %v4269
      %v4281 = vmul.f32 %v4245, %v4269
      %v4282 = vmul.f32 %v4246, %v4269
      %v4283 = vmul.f32 %v4247, %v4269
      %v4284 = vmul.f32 %v4248, %v4269
      %v4285 = vmul.f32 %v4249, %v4269
      %v4286 = vmul.f32 %v4250, %v4269
      %v4287 = vmul.f32 %v4251, %v4269
      %v4288 = vmul.f32 %v4252, %v4269
      %v4289 = vmul.f32 %v4253, %v4269
      %v4290 = vmul.f32 %v4254, %v4269
      %v4291 = vmul.f32 %v4255, %v4269
      %v4292 = vmul.f32 %v4256, %v4269
      %v4293 = vmul.f32 %v4257, %v4269
      %v4294 = vmul.f32 %v4258, %v4269
      %v4295 = vmul.f32 %v4259, %v4269
      %v4296 = vmul.f32 %v4260, %v4269
      %v4297 = vmul.f32 %v4261, %v4269
      %v4298 = vmul.f32 %v4262, %v4269
      %v4299 = vmul.f32 %v4263, %v4269
      %v4300 = vmul.f32 %v4264, %v4269
      %v4301 = vmul.f32 %v4265, %v4269
      %v4302 = vadd.f32 %v4202, %v4270
      %v4303 = vadd.f32 %v4203, %v4271
      %v4304 = vadd.f32 %v4204, %v4272
      %v4305 = vadd.f32 %v4205, %v4273
      %v4306 = vadd.f32 %v4206, %v4274
      %v4307 = vadd.f32 %v4207, %v4275
      %v4308 = vadd.f32 %v4208, %v4276
      %v4309 = vadd.f32 %v4209, %v4277
      %v4310 = vadd.f32 %v4210, %v4278
      %v4311 = vadd.f32 %v4211, %v4279
      %v4312 = vadd.f32 %v4212, %v4280
      %v4313 = vadd.f32 %v4213, %v4281
      %v4314 = vadd.f32 %v4214, %v4282
      %v4315 = vadd.f32 %v4215, %v4283
      %v4316 = vadd.f32 %v4216, %v4284
      %v4317 = vadd.f32 %v4217, %v4285
      %v4318 = vadd.f32 %v4218, %v4286
      %v4319 = vadd.f32 %v4219, %v4287
      %v4320 = vadd.f32 %v4220, %v4288
      %v4321 = vadd.f32 %v4221, %v4289
      %v4322 = vadd.f32 %v4222, %v4290
      %v4323 = vadd.f32 %v4223, %v4291
      %v4324 = vadd.f32 %v4224, %v4292
      %v4325 = vadd.f32 %v4225, %v4293
      %v4326 = vadd.f32 %v4226, %v4294
      %v4327 = vadd.f32 %v4227, %v4295
      %v4328 = vadd.f32 %v4228, %v4296
      %v4329 = vadd.f32 %v4229, %v4297
      %v4330 = vadd.f32 %v4230, %v4298
      %v4331 = vadd.f32 %v4231, %v4299
      %v4332 = vadd.f32 %v4232, %v4300
      %v4333 = vadd.f32 %v4233, %v4301
      %v4334 = vld [vmem:[%s3833 + $0x5] sm:$0xff]
      %v4335 = vld [vmem:[%s3833 + $0xd] sm:$0xff]
      %v4336 = vld [vmem:[%s3833 + $0x1d] sm:$0xff]
      %v4337 = vld [vmem:[%s3833 + $0x25] sm:$0xff]
      %v4338 = vld [vmem:[%s3833 + $0x35] sm:$0xff]
      %v4339 = vld [vmem:[%s3833 + $0x3d] sm:$0xff]
      %v4340 = vld [vmem:[%s3833 + $0x4d] sm:$0xff]
      %v4341 = vld [vmem:[%s3833 + $0x55] sm:$0xff]
      %v4342 = vld [vmem:[%s3833 + $0x65] sm:$0xff]
      %v4343 = vld [vmem:[%s3833 + $0x6d] sm:$0xff]
      %v4344 = vld [vmem:[%s3833 + $0x7d] sm:$0xff]
      %v4345 = vld [vmem:[%s3833 + $0x85] sm:$0xff]
      %v4346 = vld [vmem:[%s3833 + $0x95] sm:$0xff]
      %v4347 = vld [vmem:[%s3833 + $0x9d] sm:$0xff]
      %v4348 = vld [vmem:[%s3833 + $0xad] sm:$0xff]
      %v4349 = vld [vmem:[%s3833 + $0xb5] sm:$0xff]
      %v4350 = vld [vmem:[%s3833 + $0xc5] sm:$0xff]
      %v4351 = vld [vmem:[%s3833 + $0xcd] sm:$0xff]
      %v4352 = vld [vmem:[%s3833 + $0xdd] sm:$0xff]
      %v4353 = vld [vmem:[%s3833 + $0xe5] sm:$0xff]
      %v4354 = vld [vmem:[%s3833 + $0xf5] sm:$0xff]
      %v4355 = vld [vmem:[%s3833 + $0xfd] sm:$0xff]
      %v4356 = vld [vmem:[%s3833 + $0x10d] sm:$0xff]
      %v4357 = vld [vmem:[%s3833 + $0x115] sm:$0xff]
      %v4358 = vld [vmem:[%s3833 + $0x125] sm:$0xff]
      %v4359 = vld [vmem:[%s3833 + $0x12d] sm:$0xff]
      %v4360 = vld [vmem:[%s3833 + $0x13d] sm:$0xff]
      %v4361 = vld [vmem:[%s3833 + $0x145] sm:$0xff]
      %v4362 = vld [vmem:[%s3833 + $0x155] sm:$0xff]
      %v4363 = vld [vmem:[%s3833 + $0x15d] sm:$0xff]
      %v4364 = vld [vmem:[%s3833 + $0x16d] sm:$0xff]
      %v4365 = vld [vmem:[%s3833 + $0x175] sm:$0xff]
      %v4366 = vlaneseq
      %v4367 = vshrl.u32 %v4366, 7
      %v4368 = vsub.s32 5, %v4367
      %v4369 = vrot.slane %v328, %v4368
      %v4370 = vmul.f32 %v4334, %v4369
      %v4371 = vmul.f32 %v4335, %v4369
      %v4372 = vmul.f32 %v4336, %v4369
      %v4373 = vmul.f32 %v4337, %v4369
      %v4374 = vmul.f32 %v4338, %v4369
      %v4375 = vmul.f32 %v4339, %v4369
      %v4376 = vmul.f32 %v4340, %v4369
      %v4377 = vmul.f32 %v4341, %v4369
      %v4378 = vmul.f32 %v4342, %v4369
      %v4379 = vmul.f32 %v4343, %v4369
      %v4380 = vmul.f32 %v4344, %v4369
      %v4381 = vmul.f32 %v4345, %v4369
      %v4382 = vmul.f32 %v4346, %v4369
      %v4383 = vmul.f32 %v4347, %v4369
      %v4384 = vmul.f32 %v4348, %v4369
      %v4385 = vmul.f32 %v4349, %v4369
      %v4386 = vmul.f32 %v4350, %v4369
      %v4387 = vmul.f32 %v4351, %v4369
      %v4388 = vmul.f32 %v4352, %v4369
      %v4389 = vmul.f32 %v4353, %v4369
      %v4390 = vmul.f32 %v4354, %v4369
      %v4391 = vmul.f32 %v4355, %v4369
      %v4392 = vmul.f32 %v4356, %v4369
      %v4393 = vmul.f32 %v4357, %v4369
      %v4394 = vmul.f32 %v4358, %v4369
      %v4395 = vmul.f32 %v4359, %v4369
      %v4396 = vmul.f32 %v4360, %v4369
      %v4397 = vmul.f32 %v4361, %v4369
      %v4398 = vmul.f32 %v4362, %v4369
      %v4399 = vmul.f32 %v4363, %v4369
      %v4400 = vmul.f32 %v4364, %v4369
      %v4401 = vmul.f32 %v4365, %v4369
      %v4402 = vadd.f32 %v4302, %v4370
      %v4403 = vadd.f32 %v4303, %v4371
      %v4404 = vadd.f32 %v4304, %v4372
      %v4405 = vadd.f32 %v4305, %v4373
      %v4406 = vadd.f32 %v4306, %v4374
      %v4407 = vadd.f32 %v4307, %v4375
      %v4408 = vadd.f32 %v4308, %v4376
      %v4409 = vadd.f32 %v4309, %v4377
      %v4410 = vadd.f32 %v4310, %v4378
      %v4411 = vadd.f32 %v4311, %v4379
      %v4412 = vadd.f32 %v4312, %v4380
      %v4413 = vadd.f32 %v4313, %v4381
      %v4414 = vadd.f32 %v4314, %v4382
      %v4415 = vadd.f32 %v4315, %v4383
      %v4416 = vadd.f32 %v4316, %v4384
      %v4417 = vadd.f32 %v4317, %v4385
      %v4418 = vadd.f32 %v4318, %v4386
      %v4419 = vadd.f32 %v4319, %v4387
      %v4420 = vadd.f32 %v4320, %v4388
      %v4421 = vadd.f32 %v4321, %v4389
      %v4422 = vadd.f32 %v4322, %v4390
      %v4423 = vadd.f32 %v4323, %v4391
      %v4424 = vadd.f32 %v4324, %v4392
      %v4425 = vadd.f32 %v4325, %v4393
      %v4426 = vadd.f32 %v4326, %v4394
      %v4427 = vadd.f32 %v4327, %v4395
      %v4428 = vadd.f32 %v4328, %v4396
      %v4429 = vadd.f32 %v4329, %v4397
      %v4430 = vadd.f32 %v4330, %v4398
      %v4431 = vadd.f32 %v4331, %v4399
      %v4432 = vadd.f32 %v4332, %v4400
      %v4433 = vadd.f32 %v4333, %v4401
      %v4434 = vld [vmem:[%s3833 + $0x6] sm:$0xff]
      %v4435 = vld [vmem:[%s3833 + $0xe] sm:$0xff]
      %v4436 = vld [vmem:[%s3833 + $0x1e] sm:$0xff]
      %v4437 = vld [vmem:[%s3833 + $0x26] sm:$0xff]
      %v4438 = vld [vmem:[%s3833 + $0x36] sm:$0xff]
      %v4439 = vld [vmem:[%s3833 + $0x3e] sm:$0xff]
      %v4440 = vld [vmem:[%s3833 + $0x4e] sm:$0xff]
      %v4441 = vld [vmem:[%s3833 + $0x56] sm:$0xff]
      %v4442 = vld [vmem:[%s3833 + $0x66] sm:$0xff]
      %v4443 = vld [vmem:[%s3833 + $0x6e] sm:$0xff]
      %v4444 = vld [vmem:[%s3833 + $0x7e] sm:$0xff]
      %v4445 = vld [vmem:[%s3833 + $0x86] sm:$0xff]
      %v4446 = vld [vmem:[%s3833 + $0x96] sm:$0xff]
      %v4447 = vld [vmem:[%s3833 + $0x9e] sm:$0xff]
      %v4448 = vld [vmem:[%s3833 + $0xae] sm:$0xff]
      %v4449 = vld [vmem:[%s3833 + $0xb6] sm:$0xff]
      %v4450 = vld [vmem:[%s3833 + $0xc6] sm:$0xff]
      %v4451 = vld [vmem:[%s3833 + $0xce] sm:$0xff]
      %v4452 = vld [vmem:[%s3833 + $0xde] sm:$0xff]
      %v4453 = vld [vmem:[%s3833 + $0xe6] sm:$0xff]
      %v4454 = vld [vmem:[%s3833 + $0xf6] sm:$0xff]
      %v4455 = vld [vmem:[%s3833 + $0xfe] sm:$0xff]
      %v4456 = vld [vmem:[%s3833 + $0x10e] sm:$0xff]
      %v4457 = vld [vmem:[%s3833 + $0x116] sm:$0xff]
      %v4458 = vld [vmem:[%s3833 + $0x126] sm:$0xff]
      %v4459 = vld [vmem:[%s3833 + $0x12e] sm:$0xff]
      %v4460 = vld [vmem:[%s3833 + $0x13e] sm:$0xff]
      %v4461 = vld [vmem:[%s3833 + $0x146] sm:$0xff]
      %v4462 = vld [vmem:[%s3833 + $0x156] sm:$0xff]
      %v4463 = vld [vmem:[%s3833 + $0x15e] sm:$0xff]
      %v4464 = vld [vmem:[%s3833 + $0x16e] sm:$0xff]
      %v4465 = vld [vmem:[%s3833 + $0x176] sm:$0xff]
      %v4466 = vlaneseq
      %v4467 = vshrl.u32 %v4466, 7
      %v4468 = vsub.s32 6, %v4467
      %v4469 = vrot.slane %v328, %v4468
      %v4470 = vmul.f32 %v4434, %v4469
      %v4471 = vmul.f32 %v4435, %v4469
      %v4472 = vmul.f32 %v4436, %v4469
      %v4473 = vmul.f32 %v4437, %v4469
      %v4474 = vmul.f32 %v4438, %v4469
      %v4475 = vmul.f32 %v4439, %v4469
      %v4476 = vmul.f32 %v4440, %v4469
      %v4477 = vmul.f32 %v4441, %v4469
      %v4478 = vmul.f32 %v4442, %v4469
      %v4479 = vmul.f32 %v4443, %v4469
      %v4480 = vmul.f32 %v4444, %v4469
      %v4481 = vmul.f32 %v4445, %v4469
      %v4482 = vmul.f32 %v4446, %v4469
      %v4483 = vmul.f32 %v4447, %v4469
      %v4484 = vmul.f32 %v4448, %v4469
      %v4485 = vmul.f32 %v4449, %v4469
      %v4486 = vmul.f32 %v4450, %v4469
      %v4487 = vmul.f32 %v4451, %v4469
      %v4488 = vmul.f32 %v4452, %v4469
      %v4489 = vmul.f32 %v4453, %v4469
      %v4490 = vmul.f32 %v4454, %v4469
      %v4491 = vmul.f32 %v4455, %v4469
      %v4492 = vmul.f32 %v4456, %v4469
      %v4493 = vmul.f32 %v4457, %v4469
      %v4494 = vmul.f32 %v4458, %v4469
      %v4495 = vmul.f32 %v4459, %v4469
      %v4496 = vmul.f32 %v4460, %v4469
      %v4497 = vmul.f32 %v4461, %v4469
      %v4498 = vmul.f32 %v4462, %v4469
      %v4499 = vmul.f32 %v4463, %v4469
      %v4500 = vmul.f32 %v4464, %v4469
      %v4501 = vmul.f32 %v4465, %v4469
      %v4502 = vadd.f32 %v4402, %v4470
      %v4503 = vadd.f32 %v4403, %v4471
      %v4504 = vadd.f32 %v4404, %v4472
      %v4505 = vadd.f32 %v4405, %v4473
      %v4506 = vadd.f32 %v4406, %v4474
      %v4507 = vadd.f32 %v4407, %v4475
      %v4508 = vadd.f32 %v4408, %v4476
      %v4509 = vadd.f32 %v4409, %v4477
      %v4510 = vadd.f32 %v4410, %v4478
      %v4511 = vadd.f32 %v4411, %v4479
      %v4512 = vadd.f32 %v4412, %v4480
      %v4513 = vadd.f32 %v4413, %v4481
      %v4514 = vadd.f32 %v4414, %v4482
      %v4515 = vadd.f32 %v4415, %v4483
      %v4516 = vadd.f32 %v4416, %v4484
      %v4517 = vadd.f32 %v4417, %v4485
      %v4518 = vadd.f32 %v4418, %v4486
      %v4519 = vadd.f32 %v4419, %v4487
      %v4520 = vadd.f32 %v4420, %v4488
      %v4521 = vadd.f32 %v4421, %v4489
      %v4522 = vadd.f32 %v4422, %v4490
      %v4523 = vadd.f32 %v4423, %v4491
      %v4524 = vadd.f32 %v4424, %v4492
      %v4525 = vadd.f32 %v4425, %v4493
      %v4526 = vadd.f32 %v4426, %v4494
      %v4527 = vadd.f32 %v4427, %v4495
      %v4528 = vadd.f32 %v4428, %v4496
      %v4529 = vadd.f32 %v4429, %v4497
      %v4530 = vadd.f32 %v4430, %v4498
      %v4531 = vadd.f32 %v4431, %v4499
      %v4532 = vadd.f32 %v4432, %v4500
      %v4533 = vadd.f32 %v4433, %v4501
      %s4534 = scalar_lea.vmem [#allocation2], 144
      %v4535 = vld [vmem:[%s4534] sm:$0xff]
      %v4536 = vld [vmem:[%s4534 + $0x8] sm:$0xff]
      %v4537 = vld [vmem:[%s4534 + $0x18] sm:$0xff]
      %v4538 = vld [vmem:[%s4534 + $0x20] sm:$0xff]
      %v4539 = vld [vmem:[%s4534 + $0x30] sm:$0xff]
      %v4540 = vld [vmem:[%s4534 + $0x38] sm:$0xff]
      %v4541 = vld [vmem:[%s4534 + $0x48] sm:$0xff]
      %v4542 = vld [vmem:[%s4534 + $0x50] sm:$0xff]
      %v4543 = vld [vmem:[%s4534 + $0x60] sm:$0xff]
      %v4544 = vld [vmem:[%s4534 + $0x68] sm:$0xff]
      %v4545 = vld [vmem:[%s4534 + $0x78] sm:$0xff]
      %v4546 = vld [vmem:[%s4534 + $0x80] sm:$0xff]
      %v4547 = vld [vmem:[%s4534 + $0x90] sm:$0xff]
      %v4548 = vld [vmem:[%s4534 + $0x98] sm:$0xff]
      %v4549 = vld [vmem:[%s4534 + $0xa8] sm:$0xff]
      %v4550 = vld [vmem:[%s4534 + $0xb0] sm:$0xff]
      %v4551 = vld [vmem:[%s4534 + $0xc0] sm:$0xff]
      %v4552 = vld [vmem:[%s4534 + $0xc8] sm:$0xff]
      %v4553 = vld [vmem:[%s4534 + $0xd8] sm:$0xff]
      %v4554 = vld [vmem:[%s4534 + $0xe0] sm:$0xff]
      %v4555 = vld [vmem:[%s4534 + $0xf0] sm:$0xff]
      %v4556 = vld [vmem:[%s4534 + $0xf8] sm:$0xff]
      %v4557 = vld [vmem:[%s4534 + $0x108] sm:$0xff]
      %v4558 = vld [vmem:[%s4534 + $0x110] sm:$0xff]
      %v4559 = vld [vmem:[%s4534 + $0x120] sm:$0xff]
      %v4560 = vld [vmem:[%s4534 + $0x128] sm:$0xff]
      %v4561 = vld [vmem:[%s4534 + $0x138] sm:$0xff]
      %v4562 = vld [vmem:[%s4534 + $0x140] sm:$0xff]
      %v4563 = vld [vmem:[%s4534 + $0x150] sm:$0xff]
      %v4564 = vld [vmem:[%s4534 + $0x158] sm:$0xff]
      %v4565 = vld [vmem:[%s4534 + $0x168] sm:$0xff]
      %v4566 = vld [vmem:[%s4534 + $0x170] sm:$0xff]
      %v4567 = vlaneseq
      %v4568 = vshrl.u32 %v4567, 7
      %v4569 = vsub.s32 0, %v4568
      %v4570 = vrot.slane %v329, %v4569
      %v4571 = vmul.f32 %v4535, %v4570
      %v4572 = vmul.f32 %v4536, %v4570
      %v4573 = vmul.f32 %v4537, %v4570
      %v4574 = vmul.f32 %v4538, %v4570
      %v4575 = vmul.f32 %v4539, %v4570
      %v4576 = vmul.f32 %v4540, %v4570
      %v4577 = vmul.f32 %v4541, %v4570
      %v4578 = vmul.f32 %v4542, %v4570
      %v4579 = vmul.f32 %v4543, %v4570
      %v4580 = vmul.f32 %v4544, %v4570
      %v4581 = vmul.f32 %v4545, %v4570
      %v4582 = vmul.f32 %v4546, %v4570
      %v4583 = vmul.f32 %v4547, %v4570
      %v4584 = vmul.f32 %v4548, %v4570
      %v4585 = vmul.f32 %v4549, %v4570
      %v4586 = vmul.f32 %v4550, %v4570
      %v4587 = vmul.f32 %v4551, %v4570
      %v4588 = vmul.f32 %v4552, %v4570
      %v4589 = vmul.f32 %v4553, %v4570
      %v4590 = vmul.f32 %v4554, %v4570
      %v4591 = vmul.f32 %v4555, %v4570
      %v4592 = vmul.f32 %v4556, %v4570
      %v4593 = vmul.f32 %v4557, %v4570
      %v4594 = vmul.f32 %v4558, %v4570
      %v4595 = vmul.f32 %v4559, %v4570
      %v4596 = vmul.f32 %v4560, %v4570
      %v4597 = vmul.f32 %v4561, %v4570
      %v4598 = vmul.f32 %v4562, %v4570
      %v4599 = vmul.f32 %v4563, %v4570
      %v4600 = vmul.f32 %v4564, %v4570
      %v4601 = vmul.f32 %v4565, %v4570
      %v4602 = vmul.f32 %v4566, %v4570
      %v4603 = vadd.f32 %v4502, %v4571
      %v4604 = vadd.f32 %v4503, %v4572
      %v4605 = vadd.f32 %v4504, %v4573
      %v4606 = vadd.f32 %v4505, %v4574
      %v4607 = vadd.f32 %v4506, %v4575
      %v4608 = vadd.f32 %v4507, %v4576
      %v4609 = vadd.f32 %v4508, %v4577
      %v4610 = vadd.f32 %v4509, %v4578
      %v4611 = vadd.f32 %v4510, %v4579
      %v4612 = vadd.f32 %v4511, %v4580
      %v4613 = vadd.f32 %v4512, %v4581
      %v4614 = vadd.f32 %v4513, %v4582
      %v4615 = vadd.f32 %v4514, %v4583
      %v4616 = vadd.f32 %v4515, %v4584
      %v4617 = vadd.f32 %v4516, %v4585
      %v4618 = vadd.f32 %v4517, %v4586
      %v4619 = vadd.f32 %v4518, %v4587
      %v4620 = vadd.f32 %v4519, %v4588
      %v4621 = vadd.f32 %v4520, %v4589
      %v4622 = vadd.f32 %v4521, %v4590
      %v4623 = vadd.f32 %v4522, %v4591
      %v4624 = vadd.f32 %v4523, %v4592
      %v4625 = vadd.f32 %v4524, %v4593
      %v4626 = vadd.f32 %v4525, %v4594
      %v4627 = vadd.f32 %v4526, %v4595
      %v4628 = vadd.f32 %v4527, %v4596
      %v4629 = vadd.f32 %v4528, %v4597
      %v4630 = vadd.f32 %v4529, %v4598
      %v4631 = vadd.f32 %v4530, %v4599
      %v4632 = vadd.f32 %v4531, %v4600
      %v4633 = vadd.f32 %v4532, %v4601
      %v4634 = vadd.f32 %v4533, %v4602
      %v4635 = vld [vmem:[%s4534 + $0x1] sm:$0xff]
      %v4636 = vld [vmem:[%s4534 + $0x9] sm:$0xff]
      %v4637 = vld [vmem:[%s4534 + $0x19] sm:$0xff]
      %v4638 = vld [vmem:[%s4534 + $0x21] sm:$0xff]
      %v4639 = vld [vmem:[%s4534 + $0x31] sm:$0xff]
      %v4640 = vld [vmem:[%s4534 + $0x39] sm:$0xff]
      %v4641 = vld [vmem:[%s4534 + $0x49] sm:$0xff]
      %v4642 = vld [vmem:[%s4534 + $0x51] sm:$0xff]
      %v4643 = vld [vmem:[%s4534 + $0x61] sm:$0xff]
      %v4644 = vld [vmem:[%s4534 + $0x69] sm:$0xff]
      %v4645 = vld [vmem:[%s4534 + $0x79] sm:$0xff]
      %v4646 = vld [vmem:[%s4534 + $0x81] sm:$0xff]
      %v4647 = vld [vmem:[%s4534 + $0x91] sm:$0xff]
      %v4648 = vld [vmem:[%s4534 + $0x99] sm:$0xff]
      %v4649 = vld [vmem:[%s4534 + $0xa9] sm:$0xff]
      %v4650 = vld [vmem:[%s4534 + $0xb1] sm:$0xff]
      %v4651 = vld [vmem:[%s4534 + $0xc1] sm:$0xff]
      %v4652 = vld [vmem:[%s4534 + $0xc9] sm:$0xff]
      %v4653 = vld [vmem:[%s4534 + $0xd9] sm:$0xff]
      %v4654 = vld [vmem:[%s4534 + $0xe1] sm:$0xff]
      %v4655 = vld [vmem:[%s4534 + $0xf1] sm:$0xff]
      %v4656 = vld [vmem:[%s4534 + $0xf9] sm:$0xff]
      %v4657 = vld [vmem:[%s4534 + $0x109] sm:$0xff]
      %v4658 = vld [vmem:[%s4534 + $0x111] sm:$0xff]
      %v4659 = vld [vmem:[%s4534 + $0x121] sm:$0xff]
      %v4660 = vld [vmem:[%s4534 + $0x129] sm:$0xff]
      %v4661 = vld [vmem:[%s4534 + $0x139] sm:$0xff]
      %v4662 = vld [vmem:[%s4534 + $0x141] sm:$0xff]
      %v4663 = vld [vmem:[%s4534 + $0x151] sm:$0xff]
      %v4664 = vld [vmem:[%s4534 + $0x159] sm:$0xff]
      %v4665 = vld [vmem:[%s4534 + $0x169] sm:$0xff]
      %v4666 = vld [vmem:[%s4534 + $0x171] sm:$0xff]
      %v4667 = vlaneseq
      %v4668 = vshrl.u32 %v4667, 7
      %v4669 = vsub.s32 1, %v4668
      %v4670 = vrot.slane %v329, %v4669
      %v4671 = vmul.f32 %v4635, %v4670
      %v4672 = vmul.f32 %v4636, %v4670
      %v4673 = vmul.f32 %v4637, %v4670
      %v4674 = vmul.f32 %v4638, %v4670
      %v4675 = vmul.f32 %v4639, %v4670
      %v4676 = vmul.f32 %v4640, %v4670
      %v4677 = vmul.f32 %v4641, %v4670
      %v4678 = vmul.f32 %v4642, %v4670
      %v4679 = vmul.f32 %v4643, %v4670
      %v4680 = vmul.f32 %v4644, %v4670
      %v4681 = vmul.f32 %v4645, %v4670
      %v4682 = vmul.f32 %v4646, %v4670
      %v4683 = vmul.f32 %v4647, %v4670
      %v4684 = vmul.f32 %v4648, %v4670
      %v4685 = vmul.f32 %v4649, %v4670
      %v4686 = vmul.f32 %v4650, %v4670
      %v4687 = vmul.f32 %v4651, %v4670
      %v4688 = vmul.f32 %v4652, %v4670
      %v4689 = vmul.f32 %v4653, %v4670
      %v4690 = vmul.f32 %v4654, %v4670
      %v4691 = vmul.f32 %v4655, %v4670
      %v4692 = vmul.f32 %v4656, %v4670
      %v4693 = vmul.f32 %v4657, %v4670
      %v4694 = vmul.f32 %v4658, %v4670
      %v4695 = vmul.f32 %v4659, %v4670
      %v4696 = vmul.f32 %v4660, %v4670
      %v4697 = vmul.f32 %v4661, %v4670
      %v4698 = vmul.f32 %v4662, %v4670
      %v4699 = vmul.f32 %v4663, %v4670
      %v4700 = vmul.f32 %v4664, %v4670
      %v4701 = vmul.f32 %v4665, %v4670
      %v4702 = vmul.f32 %v4666, %v4670
      %v4703 = vadd.f32 %v4603, %v4671
      %v4704 = vadd.f32 %v4604, %v4672
      %v4705 = vadd.f32 %v4605, %v4673
      %v4706 = vadd.f32 %v4606, %v4674
      %v4707 = vadd.f32 %v4607, %v4675
      %v4708 = vadd.f32 %v4608, %v4676
      %v4709 = vadd.f32 %v4609, %v4677
      %v4710 = vadd.f32 %v4610, %v4678
      %v4711 = vadd.f32 %v4611, %v4679
      %v4712 = vadd.f32 %v4612, %v4680
      %v4713 = vadd.f32 %v4613, %v4681
      %v4714 = vadd.f32 %v4614, %v4682
      %v4715 = vadd.f32 %v4615, %v4683
      %v4716 = vadd.f32 %v4616, %v4684
      %v4717 = vadd.f32 %v4617, %v4685
      %v4718 = vadd.f32 %v4618, %v4686
      %v4719 = vadd.f32 %v4619, %v4687
      %v4720 = vadd.f32 %v4620, %v4688
      %v4721 = vadd.f32 %v4621, %v4689
      %v4722 = vadd.f32 %v4622, %v4690
      %v4723 = vadd.f32 %v4623, %v4691
      %v4724 = vadd.f32 %v4624, %v4692
      %v4725 = vadd.f32 %v4625, %v4693
      %v4726 = vadd.f32 %v4626, %v4694
      %v4727 = vadd.f32 %v4627, %v4695
      %v4728 = vadd.f32 %v4628, %v4696
      %v4729 = vadd.f32 %v4629, %v4697
      %v4730 = vadd.f32 %v4630, %v4698
      %v4731 = vadd.f32 %v4631, %v4699
      %v4732 = vadd.f32 %v4632, %v4700
      %v4733 = vadd.f32 %v4633, %v4701
      %v4734 = vadd.f32 %v4634, %v4702
      %v4735 = vld [vmem:[%s4534 + $0x2] sm:$0xff]
      %v4736 = vld [vmem:[%s4534 + $0xa] sm:$0xff]
      %v4737 = vld [vmem:[%s4534 + $0x1a] sm:$0xff]
      %v4738 = vld [vmem:[%s4534 + $0x22] sm:$0xff]
      %v4739 = vld [vmem:[%s4534 + $0x32] sm:$0xff]
      %v4740 = vld [vmem:[%s4534 + $0x3a] sm:$0xff]
      %v4741 = vld [vmem:[%s4534 + $0x4a] sm:$0xff]
      %v4742 = vld [vmem:[%s4534 + $0x52] sm:$0xff]
      %v4743 = vld [vmem:[%s4534 + $0x62] sm:$0xff]
      %v4744 = vld [vmem:[%s4534 + $0x6a] sm:$0xff]
      %v4745 = vld [vmem:[%s4534 + $0x7a] sm:$0xff]
      %v4746 = vld [vmem:[%s4534 + $0x82] sm:$0xff]
      %v4747 = vld [vmem:[%s4534 + $0x92] sm:$0xff]
      %v4748 = vld [vmem:[%s4534 + $0x9a] sm:$0xff]
      %v4749 = vld [vmem:[%s4534 + $0xaa] sm:$0xff]
      %v4750 = vld [vmem:[%s4534 + $0xb2] sm:$0xff]
      %v4751 = vld [vmem:[%s4534 + $0xc2] sm:$0xff]
      %v4752 = vld [vmem:[%s4534 + $0xca] sm:$0xff]
      %v4753 = vld [vmem:[%s4534 + $0xda] sm:$0xff]
      %v4754 = vld [vmem:[%s4534 + $0xe2] sm:$0xff]
      %v4755 = vld [vmem:[%s4534 + $0xf2] sm:$0xff]
      %v4756 = vld [vmem:[%s4534 + $0xfa] sm:$0xff]
      %v4757 = vld [vmem:[%s4534 + $0x10a] sm:$0xff]
      %v4758 = vld [vmem:[%s4534 + $0x112] sm:$0xff]
      %v4759 = vld [vmem:[%s4534 + $0x122] sm:$0xff]
      %v4760 = vld [vmem:[%s4534 + $0x12a] sm:$0xff]
      %v4761 = vld [vmem:[%s4534 + $0x13a] sm:$0xff]
      %v4762 = vld [vmem:[%s4534 + $0x142] sm:$0xff]
      %v4763 = vld [vmem:[%s4534 + $0x152] sm:$0xff]
      %v4764 = vld [vmem:[%s4534 + $0x15a] sm:$0xff]
      %v4765 = vld [vmem:[%s4534 + $0x16a] sm:$0xff]
      %v4766 = vld [vmem:[%s4534 + $0x172] sm:$0xff]
      %v4767 = vlaneseq
      %v4768 = vshrl.u32 %v4767, 7
      %v4769 = vsub.s32 2, %v4768
      %v4770 = vrot.slane %v329, %v4769
      %v4771 = vmul.f32 %v4735, %v4770
      %v4772 = vmul.f32 %v4736, %v4770
      %v4773 = vmul.f32 %v4737, %v4770
      %v4774 = vmul.f32 %v4738, %v4770
      %v4775 = vmul.f32 %v4739, %v4770
      %v4776 = vmul.f32 %v4740, %v4770
      %v4777 = vmul.f32 %v4741, %v4770
      %v4778 = vmul.f32 %v4742, %v4770
      %v4779 = vmul.f32 %v4743, %v4770
      %v4780 = vmul.f32 %v4744, %v4770
      %v4781 = vmul.f32 %v4745, %v4770
      %v4782 = vmul.f32 %v4746, %v4770
      %v4783 = vmul.f32 %v4747, %v4770
      %v4784 = vmul.f32 %v4748, %v4770
      %v4785 = vmul.f32 %v4749, %v4770
      %v4786 = vmul.f32 %v4750, %v4770
      %v4787 = vmul.f32 %v4751, %v4770
      %v4788 = vmul.f32 %v4752, %v4770
      %v4789 = vmul.f32 %v4753, %v4770
      %v4790 = vmul.f32 %v4754, %v4770
      %v4791 = vmul.f32 %v4755, %v4770
      %v4792 = vmul.f32 %v4756, %v4770
      %v4793 = vmul.f32 %v4757, %v4770
      %v4794 = vmul.f32 %v4758, %v4770
      %v4795 = vmul.f32 %v4759, %v4770
      %v4796 = vmul.f32 %v4760, %v4770
      %v4797 = vmul.f32 %v4761, %v4770
      %v4798 = vmul.f32 %v4762, %v4770
      %v4799 = vmul.f32 %v4763, %v4770
      %v4800 = vmul.f32 %v4764, %v4770
      %v4801 = vmul.f32 %v4765, %v4770
      %v4802 = vmul.f32 %v4766, %v4770
      %v4803 = vadd.f32 %v4703, %v4771
      %v4804 = vadd.f32 %v4704, %v4772
      %v4805 = vadd.f32 %v4705, %v4773
      %v4806 = vadd.f32 %v4706, %v4774
      %v4807 = vadd.f32 %v4707, %v4775
      %v4808 = vadd.f32 %v4708, %v4776
      %v4809 = vadd.f32 %v4709, %v4777
      %v4810 = vadd.f32 %v4710, %v4778
      %v4811 = vadd.f32 %v4711, %v4779
      %v4812 = vadd.f32 %v4712, %v4780
      %v4813 = vadd.f32 %v4713, %v4781
      %v4814 = vadd.f32 %v4714, %v4782
      %v4815 = vadd.f32 %v4715, %v4783
      %v4816 = vadd.f32 %v4716, %v4784
      %v4817 = vadd.f32 %v4717, %v4785
      %v4818 = vadd.f32 %v4718, %v4786
      %v4819 = vadd.f32 %v4719, %v4787
      %v4820 = vadd.f32 %v4720, %v4788
      %v4821 = vadd.f32 %v4721, %v4789
      %v4822 = vadd.f32 %v4722, %v4790
      %v4823 = vadd.f32 %v4723, %v4791
      %v4824 = vadd.f32 %v4724, %v4792
      %v4825 = vadd.f32 %v4725, %v4793
      %v4826 = vadd.f32 %v4726, %v4794
      %v4827 = vadd.f32 %v4727, %v4795
      %v4828 = vadd.f32 %v4728, %v4796
      %v4829 = vadd.f32 %v4729, %v4797
      %v4830 = vadd.f32 %v4730, %v4798
      %v4831 = vadd.f32 %v4731, %v4799
      %v4832 = vadd.f32 %v4732, %v4800
      %v4833 = vadd.f32 %v4733, %v4801
      %v4834 = vadd.f32 %v4734, %v4802
      %v4835 = vld [vmem:[%s4534 + $0x3] sm:$0xff]
      %v4836 = vld [vmem:[%s4534 + $0xb] sm:$0xff]
      %v4837 = vld [vmem:[%s4534 + $0x1b] sm:$0xff]
      %v4838 = vld [vmem:[%s4534 + $0x23] sm:$0xff]
      %v4839 = vld [vmem:[%s4534 + $0x33] sm:$0xff]
      %v4840 = vld [vmem:[%s4534 + $0x3b] sm:$0xff]
      %v4841 = vld [vmem:[%s4534 + $0x4b] sm:$0xff]
      %v4842 = vld [vmem:[%s4534 + $0x53] sm:$0xff]
      %v4843 = vld [vmem:[%s4534 + $0x63] sm:$0xff]
      %v4844 = vld [vmem:[%s4534 + $0x6b] sm:$0xff]
      %v4845 = vld [vmem:[%s4534 + $0x7b] sm:$0xff]
      %v4846 = vld [vmem:[%s4534 + $0x83] sm:$0xff]
      %v4847 = vld [vmem:[%s4534 + $0x93] sm:$0xff]
      %v4848 = vld [vmem:[%s4534 + $0x9b] sm:$0xff]
      %v4849 = vld [vmem:[%s4534 + $0xab] sm:$0xff]
      %v4850 = vld [vmem:[%s4534 + $0xb3] sm:$0xff]
      %v4851 = vld [vmem:[%s4534 + $0xc3] sm:$0xff]
      %v4852 = vld [vmem:[%s4534 + $0xcb] sm:$0xff]
      %v4853 = vld [vmem:[%s4534 + $0xdb] sm:$0xff]
      %v4854 = vld [vmem:[%s4534 + $0xe3] sm:$0xff]
      %v4855 = vld [vmem:[%s4534 + $0xf3] sm:$0xff]
      %v4856 = vld [vmem:[%s4534 + $0xfb] sm:$0xff]
      %v4857 = vld [vmem:[%s4534 + $0x10b] sm:$0xff]
      %v4858 = vld [vmem:[%s4534 + $0x113] sm:$0xff]
      %v4859 = vld [vmem:[%s4534 + $0x123] sm:$0xff]
      %v4860 = vld [vmem:[%s4534 + $0x12b] sm:$0xff]
      %v4861 = vld [vmem:[%s4534 + $0x13b] sm:$0xff]
      %v4862 = vld [vmem:[%s4534 + $0x143] sm:$0xff]
      %v4863 = vld [vmem:[%s4534 + $0x153] sm:$0xff]
      %v4864 = vld [vmem:[%s4534 + $0x15b] sm:$0xff]
      %v4865 = vld [vmem:[%s4534 + $0x16b] sm:$0xff]
      %v4866 = vld [vmem:[%s4534 + $0x173] sm:$0xff]
      %v4867 = vlaneseq
      %v4868 = vshrl.u32 %v4867, 7
      %v4869 = vsub.s32 3, %v4868
      %v4870 = vrot.slane %v329, %v4869
      %v4871 = vmul.f32 %v4835, %v4870
      %v4872 = vmul.f32 %v4836, %v4870
      %v4873 = vmul.f32 %v4837, %v4870
      %v4874 = vmul.f32 %v4838, %v4870
      %v4875 = vmul.f32 %v4839, %v4870
      %v4876 = vmul.f32 %v4840, %v4870
      %v4877 = vmul.f32 %v4841, %v4870
      %v4878 = vmul.f32 %v4842, %v4870
      %v4879 = vmul.f32 %v4843, %v4870
      %v4880 = vmul.f32 %v4844, %v4870
      %v4881 = vmul.f32 %v4845, %v4870
      %v4882 = vmul.f32 %v4846, %v4870
      %v4883 = vmul.f32 %v4847, %v4870
      %v4884 = vmul.f32 %v4848, %v4870
      %v4885 = vmul.f32 %v4849, %v4870
      %v4886 = vmul.f32 %v4850, %v4870
      %v4887 = vmul.f32 %v4851, %v4870
      %v4888 = vmul.f32 %v4852, %v4870
      %v4889 = vmul.f32 %v4853, %v4870
      %v4890 = vmul.f32 %v4854, %v4870
      %v4891 = vmul.f32 %v4855, %v4870
      %v4892 = vmul.f32 %v4856, %v4870
      %v4893 = vmul.f32 %v4857, %v4870
      %v4894 = vmul.f32 %v4858, %v4870
      %v4895 = vmul.f32 %v4859, %v4870
      %v4896 = vmul.f32 %v4860, %v4870
      %v4897 = vmul.f32 %v4861, %v4870
      %v4898 = vmul.f32 %v4862, %v4870
      %v4899 = vmul.f32 %v4863, %v4870
      %v4900 = vmul.f32 %v4864, %v4870
      %v4901 = vmul.f32 %v4865, %v4870
      %v4902 = vmul.f32 %v4866, %v4870
      %v4903 = vadd.f32 %v4803, %v4871
      %v4904 = vadd.f32 %v4804, %v4872
      %v4905 = vadd.f32 %v4805, %v4873
      %v4906 = vadd.f32 %v4806, %v4874
      %v4907 = vadd.f32 %v4807, %v4875
      %v4908 = vadd.f32 %v4808, %v4876
      %v4909 = vadd.f32 %v4809, %v4877
      %v4910 = vadd.f32 %v4810, %v4878
      %v4911 = vadd.f32 %v4811, %v4879
      %v4912 = vadd.f32 %v4812, %v4880
      %v4913 = vadd.f32 %v4813, %v4881
      %v4914 = vadd.f32 %v4814, %v4882
      %v4915 = vadd.f32 %v4815, %v4883
      %v4916 = vadd.f32 %v4816, %v4884
      %v4917 = vadd.f32 %v4817, %v4885
      %v4918 = vadd.f32 %v4818, %v4886
      %v4919 = vadd.f32 %v4819, %v4887
      %v4920 = vadd.f32 %v4820, %v4888
      %v4921 = vadd.f32 %v4821, %v4889
      %v4922 = vadd.f32 %v4822, %v4890
      %v4923 = vadd.f32 %v4823, %v4891
      %v4924 = vadd.f32 %v4824, %v4892
      %v4925 = vadd.f32 %v4825, %v4893
      %v4926 = vadd.f32 %v4826, %v4894
      %v4927 = vadd.f32 %v4827, %v4895
      %v4928 = vadd.f32 %v4828, %v4896
      %v4929 = vadd.f32 %v4829, %v4897
      %v4930 = vadd.f32 %v4830, %v4898
      %v4931 = vadd.f32 %v4831, %v4899
      %v4932 = vadd.f32 %v4832, %v4900
      %v4933 = vadd.f32 %v4833, %v4901
      %v4934 = vadd.f32 %v4834, %v4902
      %v4935 = vld [vmem:[%s4534 + $0x4] sm:$0xff]
      %v4936 = vld [vmem:[%s4534 + $0xc] sm:$0xff]
      %v4937 = vld [vmem:[%s4534 + $0x1c] sm:$0xff]
      %v4938 = vld [vmem:[%s4534 + $0x24] sm:$0xff]
      %v4939 = vld [vmem:[%s4534 + $0x34] sm:$0xff]
      %v4940 = vld [vmem:[%s4534 + $0x3c] sm:$0xff]
      %v4941 = vld [vmem:[%s4534 + $0x4c] sm:$0xff]
      %v4942 = vld [vmem:[%s4534 + $0x54] sm:$0xff]
      %v4943 = vld [vmem:[%s4534 + $0x64] sm:$0xff]
      %v4944 = vld [vmem:[%s4534 + $0x6c] sm:$0xff]
      %v4945 = vld [vmem:[%s4534 + $0x7c] sm:$0xff]
      %v4946 = vld [vmem:[%s4534 + $0x84] sm:$0xff]
      %v4947 = vld [vmem:[%s4534 + $0x94] sm:$0xff]
      %v4948 = vld [vmem:[%s4534 + $0x9c] sm:$0xff]
      %v4949 = vld [vmem:[%s4534 + $0xac] sm:$0xff]
      %v4950 = vld [vmem:[%s4534 + $0xb4] sm:$0xff]
      %v4951 = vld [vmem:[%s4534 + $0xc4] sm:$0xff]
      %v4952 = vld [vmem:[%s4534 + $0xcc] sm:$0xff]
      %v4953 = vld [vmem:[%s4534 + $0xdc] sm:$0xff]
      %v4954 = vld [vmem:[%s4534 + $0xe4] sm:$0xff]
      %v4955 = vld [vmem:[%s4534 + $0xf4] sm:$0xff]
      %v4956 = vld [vmem:[%s4534 + $0xfc] sm:$0xff]
      %v4957 = vld [vmem:[%s4534 + $0x10c] sm:$0xff]
      %v4958 = vld [vmem:[%s4534 + $0x114] sm:$0xff]
      %v4959 = vld [vmem:[%s4534 + $0x124] sm:$0xff]
      %v4960 = vld [vmem:[%s4534 + $0x12c] sm:$0xff]
      %v4961 = vld [vmem:[%s4534 + $0x13c] sm:$0xff]
      %v4962 = vld [vmem:[%s4534 + $0x144] sm:$0xff]
      %v4963 = vld [vmem:[%s4534 + $0x154] sm:$0xff]
      %v4964 = vld [vmem:[%s4534 + $0x15c] sm:$0xff]
      %v4965 = vld [vmem:[%s4534 + $0x16c] sm:$0xff]
      %v4966 = vld [vmem:[%s4534 + $0x174] sm:$0xff]
      %v4967 = vlaneseq
      %v4968 = vshrl.u32 %v4967, 7
      %v4969 = vsub.s32 4, %v4968
      %v4970 = vrot.slane %v329, %v4969
      %v4971 = vmul.f32 %v4935, %v4970
      %v4972 = vmul.f32 %v4936, %v4970
      %v4973 = vmul.f32 %v4937, %v4970
      %v4974 = vmul.f32 %v4938, %v4970
      %v4975 = vmul.f32 %v4939, %v4970
      %v4976 = vmul.f32 %v4940, %v4970
      %v4977 = vmul.f32 %v4941, %v4970
      %v4978 = vmul.f32 %v4942, %v4970
      %v4979 = vmul.f32 %v4943, %v4970
      %v4980 = vmul.f32 %v4944, %v4970
      %v4981 = vmul.f32 %v4945, %v4970
      %v4982 = vmul.f32 %v4946, %v4970
      %v4983 = vmul.f32 %v4947, %v4970
      %v4984 = vmul.f32 %v4948, %v4970
      %v4985 = vmul.f32 %v4949, %v4970
      %v4986 = vmul.f32 %v4950, %v4970
      %v4987 = vmul.f32 %v4951, %v4970
      %v4988 = vmul.f32 %v4952, %v4970
      %v4989 = vmul.f32 %v4953, %v4970
      %v4990 = vmul.f32 %v4954, %v4970
      %v4991 = vmul.f32 %v4955, %v4970
      %v4992 = vmul.f32 %v4956, %v4970
      %v4993 = vmul.f32 %v4957, %v4970
      %v4994 = vmul.f32 %v4958, %v4970
      %v4995 = vmul.f32 %v4959, %v4970
      %v4996 = vmul.f32 %v4960, %v4970
      %v4997 = vmul.f32 %v4961, %v4970
      %v4998 = vmul.f32 %v4962, %v4970
      %v4999 = vmul.f32 %v4963, %v4970
      %v5000 = vmul.f32 %v4964, %v4970
      %v5001 = vmul.f32 %v4965, %v4970
      %v5002 = vmul.f32 %v4966, %v4970
      %v5003 = vadd.f32 %v4903, %v4971
      %v5004 = vadd.f32 %v4904, %v4972
      %v5005 = vadd.f32 %v4905, %v4973
      %v5006 = vadd.f32 %v4906, %v4974
      %v5007 = vadd.f32 %v4907, %v4975
      %v5008 = vadd.f32 %v4908, %v4976
      %v5009 = vadd.f32 %v4909, %v4977
      %v5010 = vadd.f32 %v4910, %v4978
      %v5011 = vadd.f32 %v4911, %v4979
      %v5012 = vadd.f32 %v4912, %v4980
      %v5013 = vadd.f32 %v4913, %v4981
      %v5014 = vadd.f32 %v4914, %v4982
      %v5015 = vadd.f32 %v4915, %v4983
      %v5016 = vadd.f32 %v4916, %v4984
      %v5017 = vadd.f32 %v4917, %v4985
      %v5018 = vadd.f32 %v4918, %v4986
      %v5019 = vadd.f32 %v4919, %v4987
      %v5020 = vadd.f32 %v4920, %v4988
      %v5021 = vadd.f32 %v4921, %v4989
      %v5022 = vadd.f32 %v4922, %v4990
      %v5023 = vadd.f32 %v4923, %v4991
      %v5024 = vadd.f32 %v4924, %v4992
      %v5025 = vadd.f32 %v4925, %v4993
      %v5026 = vadd.f32 %v4926, %v4994
      %v5027 = vadd.f32 %v4927, %v4995
      %v5028 = vadd.f32 %v4928, %v4996
      %v5029 = vadd.f32 %v4929, %v4997
      %v5030 = vadd.f32 %v4930, %v4998
      %v5031 = vadd.f32 %v4931, %v4999
      %v5032 = vadd.f32 %v4932, %v5000
      %v5033 = vadd.f32 %v4933, %v5001
      %v5034 = vadd.f32 %v4934, %v5002
      %v5035 = vld [vmem:[%s4534 + $0x5] sm:$0xff]
      %v5036 = vld [vmem:[%s4534 + $0xd] sm:$0xff]
      %v5037 = vld [vmem:[%s4534 + $0x1d] sm:$0xff]
      %v5038 = vld [vmem:[%s4534 + $0x25] sm:$0xff]
      %v5039 = vld [vmem:[%s4534 + $0x35] sm:$0xff]
      %v5040 = vld [vmem:[%s4534 + $0x3d] sm:$0xff]
      %v5041 = vld [vmem:[%s4534 + $0x4d] sm:$0xff]
      %v5042 = vld [vmem:[%s4534 + $0x55] sm:$0xff]
      %v5043 = vld [vmem:[%s4534 + $0x65] sm:$0xff]
      %v5044 = vld [vmem:[%s4534 + $0x6d] sm:$0xff]
      %v5045 = vld [vmem:[%s4534 + $0x7d] sm:$0xff]
      %v5046 = vld [vmem:[%s4534 + $0x85] sm:$0xff]
      %v5047 = vld [vmem:[%s4534 + $0x95] sm:$0xff]
      %v5048 = vld [vmem:[%s4534 + $0x9d] sm:$0xff]
      %v5049 = vld [vmem:[%s4534 + $0xad] sm:$0xff]
      %v5050 = vld [vmem:[%s4534 + $0xb5] sm:$0xff]
      %v5051 = vld [vmem:[%s4534 + $0xc5] sm:$0xff]
      %v5052 = vld [vmem:[%s4534 + $0xcd] sm:$0xff]
      %v5053 = vld [vmem:[%s4534 + $0xdd] sm:$0xff]
      %v5054 = vld [vmem:[%s4534 + $0xe5] sm:$0xff]
      %v5055 = vld [vmem:[%s4534 + $0xf5] sm:$0xff]
      %v5056 = vld [vmem:[%s4534 + $0xfd] sm:$0xff]
      %v5057 = vld [vmem:[%s4534 + $0x10d] sm:$0xff]
      %v5058 = vld [vmem:[%s4534 + $0x115] sm:$0xff]
      %v5059 = vld [vmem:[%s4534 + $0x125] sm:$0xff]
      %v5060 = vld [vmem:[%s4534 + $0x12d] sm:$0xff]
      %v5061 = vld [vmem:[%s4534 + $0x13d] sm:$0xff]
      %v5062 = vld [vmem:[%s4534 + $0x145] sm:$0xff]
      %v5063 = vld [vmem:[%s4534 + $0x155] sm:$0xff]
      %v5064 = vld [vmem:[%s4534 + $0x15d] sm:$0xff]
      %v5065 = vld [vmem:[%s4534 + $0x16d] sm:$0xff]
      %v5066 = vld [vmem:[%s4534 + $0x175] sm:$0xff]
      %v5067 = vlaneseq
      %v5068 = vshrl.u32 %v5067, 7
      %v5069 = vsub.s32 5, %v5068
      %v5070 = vrot.slane %v329, %v5069
      %v5071 = vmul.f32 %v5035, %v5070
      %v5072 = vmul.f32 %v5036, %v5070
      %v5073 = vmul.f32 %v5037, %v5070
      %v5074 = vmul.f32 %v5038, %v5070
      %v5075 = vmul.f32 %v5039, %v5070
      %v5076 = vmul.f32 %v5040, %v5070
      %v5077 = vmul.f32 %v5041, %v5070
      %v5078 = vmul.f32 %v5042, %v5070
      %v5079 = vmul.f32 %v5043, %v5070
      %v5080 = vmul.f32 %v5044, %v5070
      %v5081 = vmul.f32 %v5045, %v5070
      %v5082 = vmul.f32 %v5046, %v5070
      %v5083 = vmul.f32 %v5047, %v5070
      %v5084 = vmul.f32 %v5048, %v5070
      %v5085 = vmul.f32 %v5049, %v5070
      %v5086 = vmul.f32 %v5050, %v5070
      %v5087 = vmul.f32 %v5051, %v5070
      %v5088 = vmul.f32 %v5052, %v5070
      %v5089 = vmul.f32 %v5053, %v5070
      %v5090 = vmul.f32 %v5054, %v5070
      %v5091 = vmul.f32 %v5055, %v5070
      %v5092 = vmul.f32 %v5056, %v5070
      %v5093 = vmul.f32 %v5057, %v5070
      %v5094 = vmul.f32 %v5058, %v5070
      %v5095 = vmul.f32 %v5059, %v5070
      %v5096 = vmul.f32 %v5060, %v5070
      %v5097 = vmul.f32 %v5061, %v5070
      %v5098 = vmul.f32 %v5062, %v5070
      %v5099 = vmul.f32 %v5063, %v5070
      %v5100 = vmul.f32 %v5064, %v5070
      %v5101 = vmul.f32 %v5065, %v5070
      %v5102 = vmul.f32 %v5066, %v5070
      %v5103 = vadd.f32 %v5003, %v5071
      %v5104 = vadd.f32 %v5004, %v5072
      %v5105 = vadd.f32 %v5005, %v5073
      %v5106 = vadd.f32 %v5006, %v5074
      %v5107 = vadd.f32 %v5007, %v5075
      %v5108 = vadd.f32 %v5008, %v5076
      %v5109 = vadd.f32 %v5009, %v5077
      %v5110 = vadd.f32 %v5010, %v5078
      %v5111 = vadd.f32 %v5011, %v5079
      %v5112 = vadd.f32 %v5012, %v5080
      %v5113 = vadd.f32 %v5013, %v5081
      %v5114 = vadd.f32 %v5014, %v5082
      %v5115 = vadd.f32 %v5015, %v5083
      %v5116 = vadd.f32 %v5016, %v5084
      %v5117 = vadd.f32 %v5017, %v5085
      %v5118 = vadd.f32 %v5018, %v5086
      %v5119 = vadd.f32 %v5019, %v5087
      %v5120 = vadd.f32 %v5020, %v5088
      %v5121 = vadd.f32 %v5021, %v5089
      %v5122 = vadd.f32 %v5022, %v5090
      %v5123 = vadd.f32 %v5023, %v5091
      %v5124 = vadd.f32 %v5024, %v5092
      %v5125 = vadd.f32 %v5025, %v5093
      %v5126 = vadd.f32 %v5026, %v5094
      %v5127 = vadd.f32 %v5027, %v5095
      %v5128 = vadd.f32 %v5028, %v5096
      %v5129 = vadd.f32 %v5029, %v5097
      %v5130 = vadd.f32 %v5030, %v5098
      %v5131 = vadd.f32 %v5031, %v5099
      %v5132 = vadd.f32 %v5032, %v5100
      %v5133 = vadd.f32 %v5033, %v5101
      %v5134 = vadd.f32 %v5034, %v5102
      %v5135 = vld [vmem:[%s4534 + $0x6] sm:$0xff]
      %v5136 = vld [vmem:[%s4534 + $0xe] sm:$0xff]
      %v5137 = vld [vmem:[%s4534 + $0x1e] sm:$0xff]
      %v5138 = vld [vmem:[%s4534 + $0x26] sm:$0xff]
      %v5139 = vld [vmem:[%s4534 + $0x36] sm:$0xff]
      %v5140 = vld [vmem:[%s4534 + $0x3e] sm:$0xff]
      %v5141 = vld [vmem:[%s4534 + $0x4e] sm:$0xff]
      %v5142 = vld [vmem:[%s4534 + $0x56] sm:$0xff]
      %v5143 = vld [vmem:[%s4534 + $0x66] sm:$0xff]
      %v5144 = vld [vmem:[%s4534 + $0x6e] sm:$0xff]
      %v5145 = vld [vmem:[%s4534 + $0x7e] sm:$0xff]
      %v5146 = vld [vmem:[%s4534 + $0x86] sm:$0xff]
      %v5147 = vld [vmem:[%s4534 + $0x96] sm:$0xff]
      %v5148 = vld [vmem:[%s4534 + $0x9e] sm:$0xff]
      %v5149 = vld [vmem:[%s4534 + $0xae] sm:$0xff]
      %v5150 = vld [vmem:[%s4534 + $0xb6] sm:$0xff]
      %v5151 = vld [vmem:[%s4534 + $0xc6] sm:$0xff]
      %v5152 = vld [vmem:[%s4534 + $0xce] sm:$0xff]
      %v5153 = vld [vmem:[%s4534 + $0xde] sm:$0xff]
      %v5154 = vld [vmem:[%s4534 + $0xe6] sm:$0xff]
      %v5155 = vld [vmem:[%s4534 + $0xf6] sm:$0xff]
      %v5156 = vld [vmem:[%s4534 + $0xfe] sm:$0xff]
      %v5157 = vld [vmem:[%s4534 + $0x10e] sm:$0xff]
      %v5158 = vld [vmem:[%s4534 + $0x116] sm:$0xff]
      %v5159 = vld [vmem:[%s4534 + $0x126] sm:$0xff]
      %v5160 = vld [vmem:[%s4534 + $0x12e] sm:$0xff]
      %v5161 = vld [vmem:[%s4534 + $0x13e] sm:$0xff]
      %v5162 = vld [vmem:[%s4534 + $0x146] sm:$0xff]
      %v5163 = vld [vmem:[%s4534 + $0x156] sm:$0xff]
      %v5164 = vld [vmem:[%s4534 + $0x15e] sm:$0xff]
      %v5165 = vld [vmem:[%s4534 + $0x16e] sm:$0xff]
      %v5166 = vld [vmem:[%s4534 + $0x176] sm:$0xff]
      %v5167 = vlaneseq
      %v5168 = vshrl.u32 %v5167, 7
      %v5169 = vsub.s32 6, %v5168
      %v5170 = vrot.slane %v329, %v5169
      %v5171 = vmul.f32 %v5135, %v5170
      %v5172 = vmul.f32 %v5136, %v5170
      %v5173 = vmul.f32 %v5137, %v5170
      %v5174 = vmul.f32 %v5138, %v5170
      %v5175 = vmul.f32 %v5139, %v5170
      %v5176 = vmul.f32 %v5140, %v5170
      %v5177 = vmul.f32 %v5141, %v5170
      %v5178 = vmul.f32 %v5142, %v5170
      %v5179 = vmul.f32 %v5143, %v5170
      %v5180 = vmul.f32 %v5144, %v5170
      %v5181 = vmul.f32 %v5145, %v5170
      %v5182 = vmul.f32 %v5146, %v5170
      %v5183 = vmul.f32 %v5147, %v5170
      %v5184 = vmul.f32 %v5148, %v5170
      %v5185 = vmul.f32 %v5149, %v5170
      %v5186 = vmul.f32 %v5150, %v5170
      %v5187 = vmul.f32 %v5151, %v5170
      %v5188 = vmul.f32 %v5152, %v5170
      %v5189 = vmul.f32 %v5153, %v5170
      %v5190 = vmul.f32 %v5154, %v5170
      %v5191 = vmul.f32 %v5155, %v5170
      %v5192 = vmul.f32 %v5156, %v5170
      %v5193 = vmul.f32 %v5157, %v5170
      %v5194 = vmul.f32 %v5158, %v5170
      %v5195 = vmul.f32 %v5159, %v5170
      %v5196 = vmul.f32 %v5160, %v5170
      %v5197 = vmul.f32 %v5161, %v5170
      %v5198 = vmul.f32 %v5162, %v5170
      %v5199 = vmul.f32 %v5163, %v5170
      %v5200 = vmul.f32 %v5164, %v5170
      %v5201 = vmul.f32 %v5165, %v5170
      %v5202 = vmul.f32 %v5166, %v5170
      %v5203 = vadd.f32 %v5103, %v5171
      %v5204 = vadd.f32 %v5104, %v5172
      %v5205 = vadd.f32 %v5105, %v5173
      %v5206 = vadd.f32 %v5106, %v5174
      %v5207 = vadd.f32 %v5107, %v5175
      %v5208 = vadd.f32 %v5108, %v5176
      %v5209 = vadd.f32 %v5109, %v5177
      %v5210 = vadd.f32 %v5110, %v5178
      %v5211 = vadd.f32 %v5111, %v5179
      %v5212 = vadd.f32 %v5112, %v5180
      %v5213 = vadd.f32 %v5113, %v5181
      %v5214 = vadd.f32 %v5114, %v5182
      %v5215 = vadd.f32 %v5115, %v5183
      %v5216 = vadd.f32 %v5116, %v5184
      %v5217 = vadd.f32 %v5117, %v5185
      %v5218 = vadd.f32 %v5118, %v5186
      %v5219 = vadd.f32 %v5119, %v5187
      %v5220 = vadd.f32 %v5120, %v5188
      %v5221 = vadd.f32 %v5121, %v5189
      %v5222 = vadd.f32 %v5122, %v5190
      %v5223 = vadd.f32 %v5123, %v5191
      %v5224 = vadd.f32 %v5124, %v5192
      %v5225 = vadd.f32 %v5125, %v5193
      %v5226 = vadd.f32 %v5126, %v5194
      %v5227 = vadd.f32 %v5127, %v5195
      %v5228 = vadd.f32 %v5128, %v5196
      %v5229 = vadd.f32 %v5129, %v5197
      %v5230 = vadd.f32 %v5130, %v5198
      %v5231 = vadd.f32 %v5131, %v5199
      %v5232 = vadd.f32 %v5132, %v5200
      %v5233 = vadd.f32 %v5133, %v5201
      %v5234 = vadd.f32 %v5134, %v5202
      %5235 = vst [vmem:[%s191] sm:$0xff] %v5203
      %5236 = vst [vmem:[%s191 + $0x8] sm:$0xff] %v5204
      %5237 = vst [vmem:[%s191 + $0x10] sm:$0xff] %v5205
      %5238 = vst [vmem:[%s191 + $0x18] sm:$0xff] %v5206
      %5239 = vst [vmem:[%s191 + $0x20] sm:$0xff] %v5207
      %5240 = vst [vmem:[%s191 + $0x28] sm:$0xff] %v5208
      %5241 = vst [vmem:[%s191 + $0x30] sm:$0xff] %v5209
      %5242 = vst [vmem:[%s191 + $0x38] sm:$0xff] %v5210
      %5243 = vst [vmem:[%s191 + $0x40] sm:$0xff] %v5211
      %5244 = vst [vmem:[%s191 + $0x48] sm:$0xff] %v5212
      %5245 = vst [vmem:[%s191 + $0x50] sm:$0xff] %v5213
      %5246 = vst [vmem:[%s191 + $0x58] sm:$0xff] %v5214
      %5247 = vst [vmem:[%s191 + $0x60] sm:$0xff] %v5215
      %5248 = vst [vmem:[%s191 + $0x68] sm:$0xff] %v5216
      %5249 = vst [vmem:[%s191 + $0x70] sm:$0xff] %v5217
      %5250 = vst [vmem:[%s191 + $0x78] sm:$0xff] %v5218
      %5251 = vst [vmem:[%s191 + $0x80] sm:$0xff] %v5219
      %5252 = vst [vmem:[%s191 + $0x88] sm:$0xff] %v5220
      %5253 = vst [vmem:[%s191 + $0x90] sm:$0xff] %v5221
      %5254 = vst [vmem:[%s191 + $0x98] sm:$0xff] %v5222
      %5255 = vst [vmem:[%s191 + $0xa0] sm:$0xff] %v5223
      %5256 = vst [vmem:[%s191 + $0xa8] sm:$0xff] %v5224
      %5257 = vst [vmem:[%s191 + $0xb0] sm:$0xff] %v5225
      %5258 = vst [vmem:[%s191 + $0xb8] sm:$0xff] %v5226
      %5259 = vst [vmem:[%s191 + $0xc0] sm:$0xff] %v5227
      %5260 = vst [vmem:[%s191 + $0xc8] sm:$0xff] %v5228
      %5261 = vst [vmem:[%s191 + $0xd0] sm:$0xff] %v5229
      %5262 = vst [vmem:[%s191 + $0xd8] sm:$0xff] %v5230
      %5263 = vst [vmem:[%s191 + $0xe0] sm:$0xff] %v5231
      %5264 = vst [vmem:[%s191 + $0xe8] sm:$0xff] %v5232
      %5265 = vst [vmem:[%s191 + $0xf0] sm:$0xff] %v5233
      %5266 = vst [vmem:[%s191 + $0xf8] sm:$0xff] %v5234
      %p5267 = scmp.lt.s32.totalorder %s17, 1
      %s5268 = scalar_select %p5267, %s17, 1
      %p5269 = scmp.lt.s32.totalorder %s18, 0
      %s5270 = scalar_select %p5269, %s18, 0
      %s5271 = smul.addr %s5268, 32
      %s5272 = sadd.s32 %s5270, %s5271
      %s5273 = smul.addr %s5272, 8
      %s5274 = scalar_lea.vmem %s2, %s5273
      // Predicated region
      $region29: #{convnext_block.2} parent=27 // pred_check
        %p5275 = pneg %p99
      $region30: #{convnext_block.2} parent=27 // pred_check_branch
        %5277 = sbr.rel (%p5275) target = $region32
      $region31: #{convnext_block.2} parent=27 // pred_region
        _
      $region32: #{convnext_block.2} parent=27 // pred_fallthru
        _
    $region28: #{convnext_block.2} parent=5 // pred_fallthru
      _
    %p5278 = scmp.le.s32.totalorder 2, %s8
    // Predicated region
    $region33: #{convnext_block.2} parent=5 // pred_check
      %p5279 = pneg %p5278
    $region34: #{convnext_block.2} parent=5 // pred_check_branch
      %5281 = sbr.rel (%p5279) target = $region36
    $region35: #{convnext_block.2} parent=5 // pred_region
      %s5282 = ssub.s32 %s8, 2
      // Predicated region
      $region37: #{convnext_block.2} parent=35 // pred_check
        %p5283 = pneg %p105
      $region38: #{convnext_block.2} parent=35 // pred_check_branch
        %5285 = sbr.rel (%p5283) target = $region40
      $region39: #{convnext_block.2} parent=35 // pred_region
        %p5286 = scmp.lt.s32.totalorder %s19, 1
        %s5287 = scalar_select %p5286, %s19, 1
        %p5288 = scmp.lt.s32.totalorder %s20, 0
        %s5289 = scalar_select %p5288, %s20, 0
        %s5290 = smul.addr %s5287, 32
        %s5291 = sadd.s32 %s5289, %s5290
        %s5292 = smul.addr %s5291, 8
        %s5293 = scalar_lea.vmem %s2, %s5292
      $region40: #{convnext_block.2} parent=35 // pred_fallthru
        _
    $region36: #{convnext_block.2} parent=5 // pred_fallthru
      _
  $region6: #{convnext_block.2} parent=0 // loop_footer
    %s12 = sadd.s32 1, %s8
  $region7: #{convnext_block.2} parent=0 // loop_footer_branch
    %7 = sbr.rel target = $region3
  $region8: #{convnext_block.2} parent=0 // loop_exit
    _

</llo_original>
